<compile_context>
chip_gen: v7x
topology: tpu7x:2x2x1
jax: 0.10.0
libtpu: 0.0.40
codegen_flags: <defaults>
</compile_context>

<pallas_src>
import functools

import jax
import jax.numpy as jnp
from jax import lax
from jax.experimental import pallas as pl
from jax.experimental.pallas import tpu as pltpu

# ---------------- model hyper-parameters (small, forward-consistent) ---------
IMG_SIZE = 16
PATCH = 4
IN_CHANS = 3
EMBED = 32
DEPTH = 2
NUM_HEADS = 4
HEAD_DIM = EMBED // NUM_HEADS
MLP_RATIO = 4.0
MLP_HIDDEN = int(EMBED * MLP_RATIO)
NUM_PATCHES = (IMG_SIZE // PATCH) ** 2
SEQ = NUM_PATCHES + 1
LN_EPS = 1e-5                                    # nn.LayerNorm default
VEC_W = max(128, MLP_HIDDEN, 3 * EMBED)          # lane width of the bias/LN slab

# row layout of the packed per-layer vector slab (one (8, VEC_W) tile / layer)
R_LN1G, R_LN1B, R_LN2G, R_LN2B, R_BQKV, R_BO, R_BFC1, R_BFC2 = range(8)


# ------------------------------ kernel helpers --------------------------------
def _layernorm(x, g, b):
    mu = jnp.mean(x, axis=-1, keepdims=True)
    var = jnp.mean((x - mu) ** 2, axis=-1, keepdims=True)
    return (x - mu) * lax.rsqrt(var + LN_EPS) * g + b


def _gelu(x):
    # TODO(synk): PyTorch nn.GELU default is the exact erf form; tanh approximation used here.
    return 0.5 * x * (1.0 + jnp.tanh(0.7978845608028654 * (x + 0.044715 * x * x * x)))


# ------------------------------ fused forward kernel --------------------------
def vit_fused_kernel(
    patches_ref,   # [1, BB*S, K]   (zero row at every cls position)
    addc_ref,      # [BB*S, D]      cls+pos[0] at cls rows, patch_b+pos[1:] elsewhere
    pw_ref,        # [K, D]         conv-as-matmul weight
    wqkv_ref,      # [L, D, 3D]     fused q|k|v weight
    wo_ref,        # [L, D, D]      attention output projection
    wfc1_ref,      # [L, D, F]
    wfc2_ref,      # [L, F, D]
    vecs_ref,      # [L+1, 8, VEC_W] biases + LayerNorm params (lane-padded)
    o_ref,         # [1, BB, D]
    *, depth, num_heads, bb, seq, embed, head_dim,
):
    S, D, H, dh = seq, embed, num_heads, head_dim
    F = wfc1_ref.shape[2]
    scale = float(dh) ** -0.5

    # ---- patch embedding + additive constants (cls token & pos embed fused) --
    p = patches_ref[0]                                               # [BB*S, K]
    x = jnp.dot(p, pw_ref[...], preferred_element_type=jnp.float32) + addc_ref[...]

    # static unroll over blocks (fine at DEPTH=2; switch to fori_loop if deep)
    for d in range(depth):
        vrow = vecs_ref[d]                                           # [8, VEC_W]
        ln1_g = vrow[R_LN1G:R_LN1G + 1, :D]
        ln1_b = vrow[R_LN1B:R_LN1B + 1, :D]
        ln2_g = vrow[R_LN2G:R_LN2G + 1, :D]
        ln2_b = vrow[R_LN2B:R_LN2B + 1, :D]
        bqkv = vrow[R_BQKV:R_BQKV + 1, :3 * D]
        bo = vrow[R_BO:R_BO + 1, :D]
        bfc1 = vrow[R_BFC1:R_BFC1 + 1, :F]
        bfc2 = vrow[R_BFC2:R_BFC2 + 1, :D]

        # ----- attention: one lane-dense fused QKV matmul for all heads -------
        h = _layernorm(x, ln1_g, ln1_b)
        qkv = jnp.dot(h, wqkv_ref[d], preferred_element_type=jnp.float32) + bqkv

        ctx_rows = []
        for b in range(bb):
            qkv_b = qkv[b * S:(b + 1) * S, :]                        # [S, 3D]
            heads = []
            for hh in range(H):
                qh = qkv_b[:, hh * dh:(hh + 1) * dh]
                kh = qkv_b[:, D + hh * dh:D + (hh + 1) * dh]
                vh = qkv_b[:, 2 * D + hh * dh:2 * D + (hh + 1) * dh]
                # q @ k^T via dot_general (contract the dh axis of both)
                s = lax.dot_general(qh, kh, (((1,), (1,)), ((), ())),
                                    preferred_element_type=jnp.float32) * scale
                s = s - jnp.max(s, axis=-1, keepdims=True)
                e = jnp.exp(s)
                pm = e * pl.reciprocal(jnp.sum(e, axis=-1, keepdims=True),
                                       approx=True)
                heads.append(jnp.dot(pm, vh, preferred_element_type=jnp.float32))
            ctx_rows.append(jnp.concatenate(heads, axis=-1))          # [S, D]
        ctx = ctx_rows[0] if bb == 1 else jnp.concatenate(ctx_rows, axis=0)

        # single output projection: contraction over H*dh folds the head sum
        x = x + jnp.dot(ctx, wo_ref[d], preferred_element_type=jnp.float32) + bo

        # ----- MLP -------------------------------------------------------------
        h = _layernorm(x, ln2_g, ln2_b)
        h = jnp.dot(h, wfc1_ref[d], preferred_element_type=jnp.float32) + bfc1
        h = _gelu(h)
        x = x + jnp.dot(h, wfc2_ref[d], preferred_element_type=jnp.float32) + bfc2

    # ---- final LayerNorm of the cls rows only (torch forward returns x[:, 0]) -
    vfin = vecs_ref[depth]
    ng, nb = vfin[0:1, :D], vfin[1:2, :D]
    if bb == 1:
        cls = x[0:1, :]
    else:
        cls = jnp.concatenate([x[b * S:b * S + 1, :] for b in range(bb)], axis=0)
    o_ref[0] = _layernorm(cls, ng, nb).astype(o_ref.dtype)


# ------------------------------ wrapper ---------------------------------------
def extract_patches(x, p):
    # NCHW -> [B, N, C*p*p] with per-patch (C, ph, pw) order (Conv2d weight order)
    B, C, H, W = x.shape
    x = x.reshape(B, C, H // p, p, W // p, p)
    x = x.transpose(0, 2, 4, 1, 3, 5)
    return x.reshape(B, (H // p) * (W // p), C * p * p)


def _batch_block(batch):
    """Batch elements folded into one grid step.
    v7x has two TensorCores: keep grid=(B,) ('parallel') so batch shards across
    cores.  Single-TC chips (v5e/v6e/other): fold the batch into matmul rows."""
    kind = ""
    try:
        kind = jax.devices()[0].device_kind.lower()
    except Exception:
        pass
    if "v7" in kind and batch > 1:
        return 1
    return batch


@functools.partial(jax.jit, static_argnames=("bb",))
def _vit_forward_impl(x, packed, *, bb):
    B = x.shape[0]
    K = IN_CHANS * PATCH * PATCH
    patches = extract_patches(x, PATCH)                        # [B, N, K]
    # prepend a zero row per element at the cls position so the patch-embed
    # matmul emits a zero cls row (addc then supplies cls_token + pos_embed[0])
    patches = jnp.pad(patches, ((0, 0), (1, 0), (0, 0)))       # [B, S, K]
    patches = patches.reshape(B // bb, bb * SEQ, K)            # rows stacked / step
    addc = jnp.tile(packed["addc"], (bb, 1))                   # [bb*S, D]

    def full(a):
        return pl.BlockSpec(a.shape, lambda g, _nd=a.ndim: (0,) * _nd)

    in_specs = [
        pl.BlockSpec((1, bb * SEQ, K), lambda g: (g, 0, 0)),
        full(addc),
        full(packed["patch_w"]),
        full(packed["wqkv"]),
        full(packed["wo"]),
        full(packed["wfc1"]),
        full(packed["wfc2"]),
        full(packed["vecs"]),
    ]
    out = pl.pallas_call(
        functools.partial(
            vit_fused_kernel, depth=DEPTH, num_heads=NUM_HEADS, bb=bb,
            seq=SEQ, embed=EMBED, head_dim=HEAD_DIM),
        out_shape=jax.ShapeDtypeStruct((B // bb, bb, EMBED), jnp.float32),
        grid=(B // bb,),
        in_specs=in_specs,
        out_specs=pl.BlockSpec((1, bb, EMBED), lambda g: (g, 0, 0)),
        compiler_params=pltpu.CompilerParams(
            dimension_semantics=("parallel",)),   # v7x: shard batch across 2 TCs
    )(patches, addc, packed["patch_w"], packed["wqkv"], packed["wo"],
      packed["wfc1"], packed["wfc2"], packed["vecs"])
    return out.reshape(B, EMBED)


def vit_forward(x, packed):
    return _vit_forward_impl(x, packed, bb=_batch_block(x.shape[0]))


# ------------------------------ parameter init / packing ----------------------
def xavier_uniform(key, shape):
    fan_in, fan_out = shape
    limit = (6.0 / (fan_in + fan_out)) ** 0.5
    return jax.random.uniform(key, shape, jnp.float32, -limit, limit)


def get_2d_sincos_pos_embed(embed_dim, grid_size, cls_token=True):
    # Matches the MAE reference: first half from the w-varying grid, second
    # half from the h-varying grid ('xy' meshgrid, grid[0] first).
    def _1d(dim, pos):
        omega = jnp.arange(dim // 2, dtype=jnp.float32) / (dim / 2.0)
        omega = 1.0 / (10000.0 ** omega)
        out = pos[:, None] * omega[None, :]
        return jnp.concatenate([jnp.sin(out), jnp.cos(out)], axis=1)

    g = jnp.arange(grid_size, dtype=jnp.float32)
    gx, gy = jnp.meshgrid(g, g)               # 'xy': gx varies along w, gy along h
    emb = jnp.concatenate([_1d(embed_dim // 2, gx.reshape(-1)),
                           _1d(embed_dim // 2, gy.reshape(-1))], axis=1)
    if cls_token:
        emb = jnp.concatenate([jnp.zeros((1, embed_dim), jnp.float32), emb], axis=0)
    return emb


def init_params(key):
    """Torch-equivalent parameter layout (linear weights stored [in, out])."""
    keys = jax.random.split(key, DEPTH + 2)
    K = IN_CHANS * PATCH * PATCH
    params = {
        "patch_w": xavier_uniform(keys[0], (K, EMBED)),      # conv-as-matmul weight
        "patch_b": jnp.zeros((EMBED,), jnp.float32),
        "cls_token": 0.02 * jax.random.normal(keys[1], (1, 1, EMBED), jnp.float32),
        "pos_embed": get_2d_sincos_pos_embed(EMBED, IMG_SIZE // PATCH)[None],
        "norm_g": jnp.ones((EMBED,), jnp.float32),
        "norm_b": jnp.zeros((EMBED,), jnp.float32),
        "blocks": [],
    }
    for d in range(DEPTH):
        ks = jax.random.split(keys[2 + d], 4)
        params["blocks"].append(dict(
            ln1_g=jnp.ones((EMBED,), jnp.float32), ln1_b=jnp.zeros((EMBED,), jnp.float32),
            wqkv=xavier_uniform(ks[0], (EMBED, 3 * EMBED)),
            bqkv=jnp.zeros((3 * EMBED,), jnp.float32),
            wproj=xavier_uniform(ks[1], (EMBED, EMBED)),
            bproj=jnp.zeros((EMBED,), jnp.float32),
            ln2_g=jnp.ones((EMBED,), jnp.float32), ln2_b=jnp.zeros((EMBED,), jnp.float32),
            wfc1=xavier_uniform(ks[2], (EMBED, MLP_HIDDEN)),
            bfc1=jnp.zeros((MLP_HIDDEN,), jnp.float32),
            wfc2=xavier_uniform(ks[3], (MLP_HIDDEN, EMBED)),
            bfc2=jnp.zeros((EMBED,), jnp.float32),
        ))
    return params


def pack_params(params):
    """One-time re-layout into a few lane-dense slabs for the fused kernel."""
    D = EMBED

    def pad_row(v):
        v = v.reshape(-1)
        return jnp.pad(v, (0, VEC_W - v.shape[0]))

    vec_layers = []
    for blk in params["blocks"]:
        vec_layers.append(jnp.stack([
            pad_row(blk["ln1_g"]), pad_row(blk["ln1_b"]),
            pad_row(blk["ln2_g"]), pad_row(blk["ln2_b"]),
            pad_row(blk["bqkv"]), pad_row(blk["bproj"]),
            pad_row(blk["bfc1"]), pad_row(blk["bfc2"]),
        ]))
    zeros = jnp.zeros((VEC_W,), jnp.float32)
    vec_layers.append(jnp.stack(
        [pad_row(params["norm_g"]), pad_row(params["norm_b"])] + [zeros] * 6))
    vecs = jnp.stack(vec_layers)                                  # [L+1, 8, VEC_W]

    pos = params["pos_embed"].reshape(SEQ, D)
    cls_row = params["cls_token"].reshape(1, D) + pos[0:1]        # cls + pos[0]
    body = params["patch_b"].reshape(1, D) + pos[1:]              # patch_b + pos[1:]
    addc = jnp.concatenate([cls_row, body], axis=0)               # [S, D]

    return dict(
        patch_w=params["patch_w"],
        addc=addc,
        wqkv=jnp.stack([b["wqkv"] for b in params["blocks"]]),    # [L, D, 3D]
        wo=jnp.stack([b["wproj"] for b in params["blocks"]]),     # [L, D, D]
        wfc1=jnp.stack([b["wfc1"] for b in params["blocks"]]),    # [L, D, F]
        wfc2=jnp.stack([b["wfc2"] for b in params["blocks"]]),    # [L, F, D]
        vecs=vecs,
    )


# ------------------------------ pure-JAX reference (same math) -----------------
def vit_reference(x, packed):
    B = x.shape[0]
    D, H, dh, S, F = EMBED, NUM_HEADS, HEAD_DIM, SEQ, MLP_HIDDEN
    tok = extract_patches(x, PATCH) @ packed["patch_w"]            # [B, N, D]
    xx = jnp.concatenate([jnp.zeros((B, 1, D), tok.dtype), tok], axis=1)
    xx = xx + packed["addc"][None]

    def ln(v, g, b):
        mu = v.mean(-1, keepdims=True)
        var = ((v - mu) ** 2).mean(-1, keepdims=True)
        return (v - mu) * lax.rsqrt(var + LN_EPS) * g + b

    for d in range(DEPTH):
        vr = packed["vecs"][d]
        h = ln(xx, vr[R_LN1G, :D], vr[R_LN1B, :D])
        qkv = h @ packed["wqkv"][d] + vr[R_BQKV, :3 * D]
        q, k, v = (qkv[..., i * D:(i + 1) * D].reshape(B, S, H, dh).transpose(0, 2, 1, 3)
                   for i in range(3))
        s = jnp.einsum("bhqd,bhkd->bhqk", q, k) * (dh ** -0.5)
        p = jax.nn.softmax(s, axis=-1)
        ctx = jnp.einsum("bhqk,bhkd->bhqd", p, v).transpose(0, 2, 1, 3).reshape(B, S, D)
        xx = xx + ctx @ packed["wo"][d] + vr[R_BO, :D]
        h = ln(xx, vr[R_LN2G, :D], vr[R_LN2B, :D])
        h = _gelu(h @ packed["wfc1"][d] + vr[R_BFC1, :F])
        xx = xx + h @ packed["wfc2"][d] + vr[R_BFC2, :D]
    vf = packed["vecs"][DEPTH]
    return ln(xx[:, 0], vf[0, :D], vf[1, :D])


if __name__ == "__main__":
    key = jax.random.PRNGKey(0)
    k_param, k_x = jax.random.split(key)
    params = init_params(k_param)
    packed = pack_params(params)      # one-time re-layout outside the jitted forward

    B = 2
    x = jax.random.normal(k_x, (B, IN_CHANS, IMG_SIZE, IMG_SIZE), jnp.float32)

    out = jax.block_until_ready(vit_forward(x, packed))
    ref = jax.block_until_ready(vit_reference(x, packed))

    assert out.shape == (B, EMBED), out.shape
    assert bool(jnp.all(jnp.isfinite(out)))
    # loose tolerance: kernel softmax uses the EUP approximate reciprocal
    assert bool(jnp.allclose(out, ref, atol=2e-2, rtol=2e-2)), \
        float(jnp.max(jnp.abs(out - ref)))
    print("KERNEL_OK")
</pallas_src>

<mosaic_0001>
module attributes {stable_mosaic.version = 11 : i64} {
  func.func @vit_fused_kernel(%arg0: i32, %arg1: memref<1x34x48xf32, #tpu.memory_space<vmem>>, %arg2: memref<34x32xf32, #tpu.memory_space<vmem>>, %arg3: memref<48x32xf32, #tpu.memory_space<vmem>>, %arg4: memref<2x32x96xf32, #tpu.memory_space<vmem>>, %arg5: memref<2x32x32xf32, #tpu.memory_space<vmem>>, %arg6: memref<2x32x128xf32, #tpu.memory_space<vmem>>, %arg7: memref<2x128x32xf32, #tpu.memory_space<vmem>>, %arg8: memref<3x8x128xf32, #tpu.memory_space<vmem>>, %arg9: memref<1x2x32xf32, #tpu.memory_space<vmem>>) attributes {dimension_semantics = [#tpu.dimension_semantics<parallel>], iteration_bounds = array<i64: 1>, scalar_prefetch = 0 : i64, scratch_operands = 0 : i64, tpu.core_type = #tpu.core_type<tc>, window_params = [{transform_indices = @transform_0, window_bounds = array<i64: 1, 34, 48>}, {pipeline_mode = #tpu.pipeline_mode<synchronous>, transform_indices = @transform_1, window_bounds = array<i64: 34, 32>}, {pipeline_mode = #tpu.pipeline_mode<synchronous>, transform_indices = @transform_2, window_bounds = array<i64: 48, 32>}, {pipeline_mode = #tpu.pipeline_mode<synchronous>, transform_indices = @transform_3, window_bounds = array<i64: 2, 32, 96>}, {pipeline_mode = #tpu.pipeline_mode<synchronous>, transform_indices = @transform_4, window_bounds = array<i64: 2, 32, 32>}, {pipeline_mode = #tpu.pipeline_mode<synchronous>, transform_indices = @transform_5, window_bounds = array<i64: 2, 32, 128>}, {pipeline_mode = #tpu.pipeline_mode<synchronous>, transform_indices = @transform_6, window_bounds = array<i64: 2, 128, 32>}, {pipeline_mode = #tpu.pipeline_mode<synchronous>, transform_indices = @transform_7, window_bounds = array<i64: 3, 8, 128>}, {transform_indices = @transform_8, window_bounds = array<i64: 1, 2, 32>}]} {
    %c0 = arith.constant 0 : index
    %c0_0 = arith.constant 0 : index
    %c0_1 = arith.constant 0 : index
    %0 = vector.load %arg1[%c0, %c0_0, %c0_1] : memref<1x34x48xf32, #tpu.memory_space<vmem>>, vector<1x34x48xf32>
    %1 = vector.shape_cast %0 : vector<1x34x48xf32> to vector<34x48xf32>
    %c0_2 = arith.constant 0 : index
    %c0_3 = arith.constant 0 : index
    %2 = vector.load %arg3[%c0_2, %c0_3] : memref<48x32xf32, #tpu.memory_space<vmem>>, vector<48x32xf32>
    %cst = arith.constant dense<0.000000e+00> : vector<34x32xf32>
    %3 = tpu.matmul %1, %2, %cst {dimension_numbers = #tpu.dot_dimension_numbers<[1], [0], [0], [1], [0, 0, 1, 1], [], []>} : vector<34x48xf32>, vector<48x32xf32>, vector<34x32xf32> -> vector<34x32xf32>
    %c0_4 = arith.constant 0 : index
    %c0_5 = arith.constant 0 : index
    %4 = vector.load %arg2[%c0_4, %c0_5] : memref<34x32xf32, #tpu.memory_space<vmem>>, vector<34x32xf32>
    %5 = arith.addf %3, %4 : vector<34x32xf32>
    %c0_6 = arith.constant 0 : index
    %c0_7 = arith.constant 0 : index
    %c0_8 = arith.constant 0 : index
    %6 = vector.load %arg8[%c0_6, %c0_7, %c0_8] : memref<3x8x128xf32, #tpu.memory_space<vmem>>, vector<1x8x128xf32>
    %7 = vector.shape_cast %6 : vector<1x8x128xf32> to vector<8x128xf32>
    %8 = vector.extract_strided_slice %7 {offsets = [0, 0], sizes = [1, 32], strides = [1, 1]} : vector<8x128xf32> to vector<1x32xf32>
    %9 = vector.extract_strided_slice %7 {offsets = [1, 0], sizes = [1, 32], strides = [1, 1]} : vector<8x128xf32> to vector<1x32xf32>
    %10 = vector.extract_strided_slice %7 {offsets = [2, 0], sizes = [1, 32], strides = [1, 1]} : vector<8x128xf32> to vector<1x32xf32>
    %11 = vector.extract_strided_slice %7 {offsets = [3, 0], sizes = [1, 32], strides = [1, 1]} : vector<8x128xf32> to vector<1x32xf32>
    %12 = vector.extract_strided_slice %7 {offsets = [4, 0], sizes = [1, 96], strides = [1, 1]} : vector<8x128xf32> to vector<1x96xf32>
    %13 = vector.extract_strided_slice %7 {offsets = [5, 0], sizes = [1, 32], strides = [1, 1]} : vector<8x128xf32> to vector<1x32xf32>
    %14 = vector.extract_strided_slice %7 {offsets = [6, 0], sizes = [1, 128], strides = [1, 1]} : vector<8x128xf32> to vector<1x128xf32>
    %15 = vector.extract_strided_slice %7 {offsets = [7, 0], sizes = [1, 32], strides = [1, 1]} : vector<8x128xf32> to vector<1x32xf32>
    %cst_9 = arith.constant dense<0.000000e+00> : vector<34xf32>
    %16 = vector.multi_reduction <add>, %5, %cst_9 [1] : vector<34x32xf32> to vector<34xf32>
    %17 = vector.shape_cast %16 : vector<34xf32> to vector<34x1xf32>
    %cst_10 = arith.constant 3.200000e+01 : f32
    %18 = vector.broadcast %cst_10 : f32 to vector<34x1xf32>
    %19 = arith.divf %17, %18 : vector<34x1xf32>
    %20 = vector.broadcast %19 : vector<34x1xf32> to vector<34x32xf32>
    %21 = arith.subf %5, %20 : vector<34x32xf32>
    %22 = arith.mulf %21, %21 : vector<34x32xf32>
    %cst_11 = arith.constant dense<0.000000e+00> : vector<34xf32>
    %23 = vector.multi_reduction <add>, %22, %cst_11 [1] : vector<34x32xf32> to vector<34xf32>
    %24 = vector.shape_cast %23 : vector<34xf32> to vector<34x1xf32>
    %cst_12 = arith.constant 3.200000e+01 : f32
    %25 = vector.broadcast %cst_12 : f32 to vector<34x1xf32>
    %26 = arith.divf %24, %25 : vector<34x1xf32>
    %27 = vector.broadcast %19 : vector<34x1xf32> to vector<34x32xf32>
    %28 = arith.subf %5, %27 : vector<34x32xf32>
    %cst_13 = arith.constant 9.99999974E-6 : f32
    %29 = vector.broadcast %cst_13 : f32 to vector<34x1xf32>
    %30 = arith.addf %26, %29 : vector<34x1xf32>
    %31 = math.rsqrt %30 : vector<34x1xf32>
    %32 = vector.broadcast %31 : vector<34x1xf32> to vector<34x32xf32>
    %33 = arith.mulf %28, %32 : vector<34x32xf32>
    %34 = vector.broadcast %8 : vector<1x32xf32> to vector<34x32xf32>
    %35 = arith.mulf %33, %34 : vector<34x32xf32>
    %36 = vector.broadcast %9 : vector<1x32xf32> to vector<34x32xf32>
    %37 = arith.addf %35, %36 : vector<34x32xf32>
    %c0_14 = arith.constant 0 : index
    %c0_15 = arith.constant 0 : index
    %c0_16 = arith.constant 0 : index
    %38 = vector.load %arg4[%c0_14, %c0_15, %c0_16] : memref<2x32x96xf32, #tpu.memory_space<vmem>>, vector<1x32x96xf32>
    %39 = vector.shape_cast %38 : vector<1x32x96xf32> to vector<32x96xf32>
    %cst_17 = arith.constant dense<0.000000e+00> : vector<34x96xf32>
    %40 = tpu.matmul %37, %39, %cst_17 {dimension_numbers = #tpu.dot_dimension_numbers<[1], [0], [0], [1], [0, 0, 1, 1], [], []>} : vector<34x32xf32>, vector<32x96xf32>, vector<34x96xf32> -> vector<34x96xf32>
    %41 = vector.broadcast %12 : vector<1x96xf32> to vector<34x96xf32>
    %42 = arith.addf %40, %41 : vector<34x96xf32>
    %43 = vector.extract_strided_slice %42 {offsets = [0, 0], sizes = [17, 96], strides = [1, 1]} : vector<34x96xf32> to vector<17x96xf32>
    %44 = vector.extract_strided_slice %43 {offsets = [0, 0], sizes = [17, 8], strides = [1, 1]} : vector<17x96xf32> to vector<17x8xf32>
    %45 = vector.extract_strided_slice %43 {offsets = [0, 32], sizes = [17, 8], strides = [1, 1]} : vector<17x96xf32> to vector<17x8xf32>
    %46 = vector.extract_strided_slice %43 {offsets = [0, 64], sizes = [17, 8], strides = [1, 1]} : vector<17x96xf32> to vector<17x8xf32>
    %cst_18 = arith.constant dense<0.000000e+00> : vector<17x17xf32>
    %47 = tpu.matmul %44, %45, %cst_18 {dimension_numbers = #tpu.dot_dimension_numbers<[1], [1], [0], [0], [0, 0, 1, 0], [], []>} : vector<17x8xf32>, vector<17x8xf32>, vector<17x17xf32> -> vector<17x17xf32>
    %cst_19 = arith.constant 0.353553385 : f32
    %48 = vector.broadcast %cst_19 : f32 to vector<17x17xf32>
    %49 = arith.mulf %47, %48 : vector<17x17xf32>
    %cst_20 = arith.constant dense<0xFF800000> : vector<17xf32>
    %50 = vector.multi_reduction <maximumf>, %49, %cst_20 [1] : vector<17x17xf32> to vector<17xf32>
    %51 = vector.shape_cast %50 : vector<17xf32> to vector<17x1xf32>
    %52 = vector.broadcast %51 : vector<17x1xf32> to vector<17x17xf32>
    %53 = arith.subf %49, %52 : vector<17x17xf32>
    %54 = math.exp %53 : vector<17x17xf32>
    %cst_21 = arith.constant dense<0.000000e+00> : vector<17xf32>
    %55 = vector.multi_reduction <add>, %54, %cst_21 [1] : vector<17x17xf32> to vector<17xf32>
    %56 = vector.shape_cast %55 : vector<17xf32> to vector<17x1xf32>
    %57 = tpu.reciprocal %56 {approx = true} : vector<17x1xf32> -> vector<17x1xf32>
    %58 = vector.broadcast %57 : vector<17x1xf32> to vector<17x17xf32>
    %59 = arith.mulf %54, %58 : vector<17x17xf32>
    %cst_22 = arith.constant dense<0.000000e+00> : vector<17x8xf32>
    %60 = tpu.matmul %59, %46, %cst_22 {dimension_numbers = #tpu.dot_dimension_numbers<[1], [0], [0], [1], [0, 0, 1, 1], [], []>} : vector<17x17xf32>, vector<17x8xf32>, vector<17x8xf32> -> vector<17x8xf32>
    %61 = vector.extract_strided_slice %43 {offsets = [0, 8], sizes = [17, 8], strides = [1, 1]} : vector<17x96xf32> to vector<17x8xf32>
    %62 = vector.extract_strided_slice %43 {offsets = [0, 40], sizes = [17, 8], strides = [1, 1]} : vector<17x96xf32> to vector<17x8xf32>
    %63 = vector.extract_strided_slice %43 {offsets = [0, 72], sizes = [17, 8], strides = [1, 1]} : vector<17x96xf32> to vector<17x8xf32>
    %cst_23 = arith.constant dense<0.000000e+00> : vector<17x17xf32>
    %64 = tpu.matmul %61, %62, %cst_23 {dimension_numbers = #tpu.dot_dimension_numbers<[1], [1], [0], [0], [0, 0, 1, 0], [], []>} : vector<17x8xf32>, vector<17x8xf32>, vector<17x17xf32> -> vector<17x17xf32>
    %cst_24 = arith.constant 0.353553385 : f32
    %65 = vector.broadcast %cst_24 : f32 to vector<17x17xf32>
    %66 = arith.mulf %64, %65 : vector<17x17xf32>
    %cst_25 = arith.constant dense<0xFF800000> : vector<17xf32>
    %67 = vector.multi_reduction <maximumf>, %66, %cst_25 [1] : vector<17x17xf32> to vector<17xf32>
    %68 = vector.shape_cast %67 : vector<17xf32> to vector<17x1xf32>
    %69 = vector.broadcast %68 : vector<17x1xf32> to vector<17x17xf32>
    %70 = arith.subf %66, %69 : vector<17x17xf32>
    %71 = math.exp %70 : vector<17x17xf32>
    %cst_26 = arith.constant dense<0.000000e+00> : vector<17xf32>
    %72 = vector.multi_reduction <add>, %71, %cst_26 [1] : vector<17x17xf32> to vector<17xf32>
    %73 = vector.shape_cast %72 : vector<17xf32> to vector<17x1xf32>
    %74 = tpu.reciprocal %73 {approx = true} : vector<17x1xf32> -> vector<17x1xf32>
    %75 = vector.broadcast %74 : vector<17x1xf32> to vector<17x17xf32>
    %76 = arith.mulf %71, %75 : vector<17x17xf32>
    %cst_27 = arith.constant dense<0.000000e+00> : vector<17x8xf32>
    %77 = tpu.matmul %76, %63, %cst_27 {dimension_numbers = #tpu.dot_dimension_numbers<[1], [0], [0], [1], [0, 0, 1, 1], [], []>} : vector<17x17xf32>, vector<17x8xf32>, vector<17x8xf32> -> vector<17x8xf32>
    %78 = vector.extract_strided_slice %43 {offsets = [0, 16], sizes = [17, 8], strides = [1, 1]} : vector<17x96xf32> to vector<17x8xf32>
    %79 = vector.extract_strided_slice %43 {offsets = [0, 48], sizes = [17, 8], strides = [1, 1]} : vector<17x96xf32> to vector<17x8xf32>
    %80 = vector.extract_strided_slice %43 {offsets = [0, 80], sizes = [17, 8], strides = [1, 1]} : vector<17x96xf32> to vector<17x8xf32>
    %cst_28 = arith.constant dense<0.000000e+00> : vector<17x17xf32>
    %81 = tpu.matmul %78, %79, %cst_28 {dimension_numbers = #tpu.dot_dimension_numbers<[1], [1], [0], [0], [0, 0, 1, 0], [], []>} : vector<17x8xf32>, vector<17x8xf32>, vector<17x17xf32> -> vector<17x17xf32>
    %cst_29 = arith.constant 0.353553385 : f32
    %82 = vector.broadcast %cst_29 : f32 to vector<17x17xf32>
    %83 = arith.mulf %81, %82 : vector<17x17xf32>
    %cst_30 = arith.constant dense<0xFF800000> : vector<17xf32>
    %84 = vector.multi_reduction <maximumf>, %83, %cst_30 [1] : vector<17x17xf32> to vector<17xf32>
    %85 = vector.shape_cast %84 : vector<17xf32> to vector<17x1xf32>
    %86 = vector.broadcast %85 : vector<17x1xf32> to vector<17x17xf32>
    %87 = arith.subf %83, %86 : vector<17x17xf32>
    %88 = math.exp %87 : vector<17x17xf32>
    %cst_31 = arith.constant dense<0.000000e+00> : vector<17xf32>
    %89 = vector.multi_reduction <add>, %88, %cst_31 [1] : vector<17x17xf32> to vector<17xf32>
    %90 = vector.shape_cast %89 : vector<17xf32> to vector<17x1xf32>
    %91 = tpu.reciprocal %90 {approx = true} : vector<17x1xf32> -> vector<17x1xf32>
    %92 = vector.broadcast %91 : vector<17x1xf32> to vector<17x17xf32>
    %93 = arith.mulf %88, %92 : vector<17x17xf32>
    %cst_32 = arith.constant dense<0.000000e+00> : vector<17x8xf32>
    %94 = tpu.matmul %93, %80, %cst_32 {dimension_numbers = #tpu.dot_dimension_numbers<[1], [0], [0], [1], [0, 0, 1, 1], [], []>} : vector<17x17xf32>, vector<17x8xf32>, vector<17x8xf32> -> vector<17x8xf32>
    %95 = vector.extract_strided_slice %43 {offsets = [0, 24], sizes = [17, 8], strides = [1, 1]} : vector<17x96xf32> to vector<17x8xf32>
    %96 = vector.extract_strided_slice %43 {offsets = [0, 56], sizes = [17, 8], strides = [1, 1]} : vector<17x96xf32> to vector<17x8xf32>
    %97 = vector.extract_strided_slice %43 {offsets = [0, 88], sizes = [17, 8], strides = [1, 1]} : vector<17x96xf32> to vector<17x8xf32>
    %cst_33 = arith.constant dense<0.000000e+00> : vector<17x17xf32>
    %98 = tpu.matmul %95, %96, %cst_33 {dimension_numbers = #tpu.dot_dimension_numbers<[1], [1], [0], [0], [0, 0, 1, 0], [], []>} : vector<17x8xf32>, vector<17x8xf32>, vector<17x17xf32> -> vector<17x17xf32>
    %cst_34 = arith.constant 0.353553385 : f32
    %99 = vector.broadcast %cst_34 : f32 to vector<17x17xf32>
    %100 = arith.mulf %98, %99 : vector<17x17xf32>
    %cst_35 = arith.constant dense<0xFF800000> : vector<17xf32>
    %101 = vector.multi_reduction <maximumf>, %100, %cst_35 [1] : vector<17x17xf32> to vector<17xf32>
    %102 = vector.shape_cast %101 : vector<17xf32> to vector<17x1xf32>
    %103 = vector.broadcast %102 : vector<17x1xf32> to vector<17x17xf32>
    %104 = arith.subf %100, %103 : vector<17x17xf32>
    %105 = math.exp %104 : vector<17x17xf32>
    %cst_36 = arith.constant dense<0.000000e+00> : vector<17xf32>
    %106 = vector.multi_reduction <add>, %105, %cst_36 [1] : vector<17x17xf32> to vector<17xf32>
    %107 = vector.shape_cast %106 : vector<17xf32> to vector<17x1xf32>
    %108 = tpu.reciprocal %107 {approx = true} : vector<17x1xf32> -> vector<17x1xf32>
    %109 = vector.broadcast %108 : vector<17x1xf32> to vector<17x17xf32>
    %110 = arith.mulf %105, %109 : vector<17x17xf32>
    %cst_37 = arith.constant dense<0.000000e+00> : vector<17x8xf32>
    %111 = tpu.matmul %110, %97, %cst_37 {dimension_numbers = #tpu.dot_dimension_numbers<[1], [0], [0], [1], [0, 0, 1, 1], [], []>} : vector<17x17xf32>, vector<17x8xf32>, vector<17x8xf32> -> vector<17x8xf32>
    %112 = tpu.concatenate %60, %77, %94, %111 in 1 : vector<17x8xf32>, vector<17x8xf32>, vector<17x8xf32>, vector<17x8xf32> -> vector<17x32xf32>
    %113 = vector.extract_strided_slice %42 {offsets = [17, 0], sizes = [17, 96], strides = [1, 1]} : vector<34x96xf32> to vector<17x96xf32>
    %114 = vector.extract_strided_slice %113 {offsets = [0, 0], sizes = [17, 8], strides = [1, 1]} : vector<17x96xf32> to vector<17x8xf32>
    %115 = vector.extract_strided_slice %113 {offsets = [0, 32], sizes = [17, 8], strides = [1, 1]} : vector<17x96xf32> to vector<17x8xf32>
    %116 = vector.extract_strided_slice %113 {offsets = [0, 64], sizes = [17, 8], strides = [1, 1]} : vector<17x96xf32> to vector<17x8xf32>
    %cst_38 = arith.constant dense<0.000000e+00> : vector<17x17xf32>
    %117 = tpu.matmul %114, %115, %cst_38 {dimension_numbers = #tpu.dot_dimension_numbers<[1], [1], [0], [0], [0, 0, 1, 0], [], []>} : vector<17x8xf32>, vector<17x8xf32>, vector<17x17xf32> -> vector<17x17xf32>
    %cst_39 = arith.constant 0.353553385 : f32
    %118 = vector.broadcast %cst_39 : f32 to vector<17x17xf32>
    %119 = arith.mulf %117, %118 : vector<17x17xf32>
    %cst_40 = arith.constant dense<0xFF800000> : vector<17xf32>
    %120 = vector.multi_reduction <maximumf>, %119, %cst_40 [1] : vector<17x17xf32> to vector<17xf32>
    %121 = vector.shape_cast %120 : vector<17xf32> to vector<17x1xf32>
    %122 = vector.broadcast %121 : vector<17x1xf32> to vector<17x17xf32>
    %123 = arith.subf %119, %122 : vector<17x17xf32>
    %124 = math.exp %123 : vector<17x17xf32>
    %cst_41 = arith.constant dense<0.000000e+00> : vector<17xf32>
    %125 = vector.multi_reduction <add>, %124, %cst_41 [1] : vector<17x17xf32> to vector<17xf32>
    %126 = vector.shape_cast %125 : vector<17xf32> to vector<17x1xf32>
    %127 = tpu.reciprocal %126 {approx = true} : vector<17x1xf32> -> vector<17x1xf32>
    %128 = vector.broadcast %127 : vector<17x1xf32> to vector<17x17xf32>
    %129 = arith.mulf %124, %128 : vector<17x17xf32>
    %cst_42 = arith.constant dense<0.000000e+00> : vector<17x8xf32>
    %130 = tpu.matmul %129, %116, %cst_42 {dimension_numbers = #tpu.dot_dimension_numbers<[1], [0], [0], [1], [0, 0, 1, 1], [], []>} : vector<17x17xf32>, vector<17x8xf32>, vector<17x8xf32> -> vector<17x8xf32>
    %131 = vector.extract_strided_slice %113 {offsets = [0, 8], sizes = [17, 8], strides = [1, 1]} : vector<17x96xf32> to vector<17x8xf32>
    %132 = vector.extract_strided_slice %113 {offsets = [0, 40], sizes = [17, 8], strides = [1, 1]} : vector<17x96xf32> to vector<17x8xf32>
    %133 = vector.extract_strided_slice %113 {offsets = [0, 72], sizes = [17, 8], strides = [1, 1]} : vector<17x96xf32> to vector<17x8xf32>
    %cst_43 = arith.constant dense<0.000000e+00> : vector<17x17xf32>
    %134 = tpu.matmul %131, %132, %cst_43 {dimension_numbers = #tpu.dot_dimension_numbers<[1], [1], [0], [0], [0, 0, 1, 0], [], []>} : vector<17x8xf32>, vector<17x8xf32>, vector<17x17xf32> -> vector<17x17xf32>
    %cst_44 = arith.constant 0.353553385 : f32
    %135 = vector.broadcast %cst_44 : f32 to vector<17x17xf32>
    %136 = arith.mulf %134, %135 : vector<17x17xf32>
    %cst_45 = arith.constant dense<0xFF800000> : vector<17xf32>
    %137 = vector.multi_reduction <maximumf>, %136, %cst_45 [1] : vector<17x17xf32> to vector<17xf32>
    %138 = vector.shape_cast %137 : vector<17xf32> to vector<17x1xf32>
    %139 = vector.broadcast %138 : vector<17x1xf32> to vector<17x17xf32>
    %140 = arith.subf %136, %139 : vector<17x17xf32>
    %141 = math.exp %140 : vector<17x17xf32>
    %cst_46 = arith.constant dense<0.000000e+00> : vector<17xf32>
    %142 = vector.multi_reduction <add>, %141, %cst_46 [1] : vector<17x17xf32> to vector<17xf32>
    %143 = vector.shape_cast %142 : vector<17xf32> to vector<17x1xf32>
    %144 = tpu.reciprocal %143 {approx = true} : vector<17x1xf32> -> vector<17x1xf32>
    %145 = vector.broadcast %144 : vector<17x1xf32> to vector<17x17xf32>
    %146 = arith.mulf %141, %145 : vector<17x17xf32>
    %cst_47 = arith.constant dense<0.000000e+00> : vector<17x8xf32>
    %147 = tpu.matmul %146, %133, %cst_47 {dimension_numbers = #tpu.dot_dimension_numbers<[1], [0], [0], [1], [0, 0, 1, 1], [], []>} : vector<17x17xf32>, vector<17x8xf32>, vector<17x8xf32> -> vector<17x8xf32>
    %148 = vector.extract_strided_slice %113 {offsets = [0, 16], sizes = [17, 8], strides = [1, 1]} : vector<17x96xf32> to vector<17x8xf32>
    %149 = vector.extract_strided_slice %113 {offsets = [0, 48], sizes = [17, 8], strides = [1, 1]} : vector<17x96xf32> to vector<17x8xf32>
    %150 = vector.extract_strided_slice %113 {offsets = [0, 80], sizes = [17, 8], strides = [1, 1]} : vector<17x96xf32> to vector<17x8xf32>
    %cst_48 = arith.constant dense<0.000000e+00> : vector<17x17xf32>
    %151 = tpu.matmul %148, %149, %cst_48 {dimension_numbers = #tpu.dot_dimension_numbers<[1], [1], [0], [0], [0, 0, 1, 0], [], []>} : vector<17x8xf32>, vector<17x8xf32>, vector<17x17xf32> -> vector<17x17xf32>
    %cst_49 = arith.constant 0.353553385 : f32
    %152 = vector.broadcast %cst_49 : f32 to vector<17x17xf32>
    %153 = arith.mulf %151, %152 : vector<17x17xf32>
    %cst_50 = arith.constant dense<0xFF800000> : vector<17xf32>
    %154 = vector.multi_reduction <maximumf>, %153, %cst_50 [1] : vector<17x17xf32> to vector<17xf32>
    %155 = vector.shape_cast %154 : vector<17xf32> to vector<17x1xf32>
    %156 = vector.broadcast %155 : vector<17x1xf32> to vector<17x17xf32>
    %157 = arith.subf %153, %156 : vector<17x17xf32>
    %158 = math.exp %157 : vector<17x17xf32>
    %cst_51 = arith.constant dense<0.000000e+00> : vector<17xf32>
    %159 = vector.multi_reduction <add>, %158, %cst_51 [1] : vector<17x17xf32> to vector<17xf32>
    %160 = vector.shape_cast %159 : vector<17xf32> to vector<17x1xf32>
    %161 = tpu.reciprocal %160 {approx = true} : vector<17x1xf32> -> vector<17x1xf32>
    %162 = vector.broadcast %161 : vector<17x1xf32> to vector<17x17xf32>
    %163 = arith.mulf %158, %162 : vector<17x17xf32>
    %cst_52 = arith.constant dense<0.000000e+00> : vector<17x8xf32>
    %164 = tpu.matmul %163, %150, %cst_52 {dimension_numbers = #tpu.dot_dimension_numbers<[1], [0], [0], [1], [0, 0, 1, 1], [], []>} : vector<17x17xf32>, vector<17x8xf32>, vector<17x8xf32> -> vector<17x8xf32>
    %165 = vector.extract_strided_slice %113 {offsets = [0, 24], sizes = [17, 8], strides = [1, 1]} : vector<17x96xf32> to vector<17x8xf32>
    %166 = vector.extract_strided_slice %113 {offsets = [0, 56], sizes = [17, 8], strides = [1, 1]} : vector<17x96xf32> to vector<17x8xf32>
    %167 = vector.extract_strided_slice %113 {offsets = [0, 88], sizes = [17, 8], strides = [1, 1]} : vector<17x96xf32> to vector<17x8xf32>
    %cst_53 = arith.constant dense<0.000000e+00> : vector<17x17xf32>
    %168 = tpu.matmul %165, %166, %cst_53 {dimension_numbers = #tpu.dot_dimension_numbers<[1], [1], [0], [0], [0, 0, 1, 0], [], []>} : vector<17x8xf32>, vector<17x8xf32>, vector<17x17xf32> -> vector<17x17xf32>
    %cst_54 = arith.constant 0.353553385 : f32
    %169 = vector.broadcast %cst_54 : f32 to vector<17x17xf32>
    %170 = arith.mulf %168, %169 : vector<17x17xf32>
    %cst_55 = arith.constant dense<0xFF800000> : vector<17xf32>
    %171 = vector.multi_reduction <maximumf>, %170, %cst_55 [1] : vector<17x17xf32> to vector<17xf32>
    %172 = vector.shape_cast %171 : vector<17xf32> to vector<17x1xf32>
    %173 = vector.broadcast %172 : vector<17x1xf32> to vector<17x17xf32>
    %174 = arith.subf %170, %173 : vector<17x17xf32>
    %175 = math.exp %174 : vector<17x17xf32>
    %cst_56 = arith.constant dense<0.000000e+00> : vector<17xf32>
    %176 = vector.multi_reduction <add>, %175, %cst_56 [1] : vector<17x17xf32> to vector<17xf32>
    %177 = vector.shape_cast %176 : vector<17xf32> to vector<17x1xf32>
    %178 = tpu.reciprocal %177 {approx = true} : vector<17x1xf32> -> vector<17x1xf32>
    %179 = vector.broadcast %178 : vector<17x1xf32> to vector<17x17xf32>
    %180 = arith.mulf %175, %179 : vector<17x17xf32>
    %cst_57 = arith.constant dense<0.000000e+00> : vector<17x8xf32>
    %181 = tpu.matmul %180, %167, %cst_57 {dimension_numbers = #tpu.dot_dimension_numbers<[1], [0], [0], [1], [0, 0, 1, 1], [], []>} : vector<17x17xf32>, vector<17x8xf32>, vector<17x8xf32> -> vector<17x8xf32>
    %182 = tpu.concatenate %130, %147, %164, %181 in 1 : vector<17x8xf32>, vector<17x8xf32>, vector<17x8xf32>, vector<17x8xf32> -> vector<17x32xf32>
    %183 = tpu.concatenate %112, %182 in 0 : vector<17x32xf32>, vector<17x32xf32> -> vector<34x32xf32>
    %c0_58 = arith.constant 0 : index
    %c0_59 = arith.constant 0 : index
    %c0_60 = arith.constant 0 : index
    %184 = vector.load %arg5[%c0_58, %c0_59, %c0_60] : memref<2x32x32xf32, #tpu.memory_space<vmem>>, vector<1x32x32xf32>
    %185 = vector.shape_cast %184 : vector<1x32x32xf32> to vector<32x32xf32>
    %cst_61 = arith.constant dense<0.000000e+00> : vector<34x32xf32>
    %186 = tpu.matmul %183, %185, %cst_61 {dimension_numbers = #tpu.dot_dimension_numbers<[1], [0], [0], [1], [0, 0, 1, 1], [], []>} : vector<34x32xf32>, vector<32x32xf32>, vector<34x32xf32> -> vector<34x32xf32>
    %187 = arith.addf %5, %186 : vector<34x32xf32>
    %188 = vector.broadcast %13 : vector<1x32xf32> to vector<34x32xf32>
    %189 = arith.addf %187, %188 : vector<34x32xf32>
    %cst_62 = arith.constant dense<0.000000e+00> : vector<34xf32>
    %190 = vector.multi_reduction <add>, %189, %cst_62 [1] : vector<34x32xf32> to vector<34xf32>
    %191 = vector.shape_cast %190 : vector<34xf32> to vector<34x1xf32>
    %cst_63 = arith.constant 3.200000e+01 : f32
    %192 = vector.broadcast %cst_63 : f32 to vector<34x1xf32>
    %193 = arith.divf %191, %192 : vector<34x1xf32>
    %194 = vector.broadcast %193 : vector<34x1xf32> to vector<34x32xf32>
    %195 = arith.subf %189, %194 : vector<34x32xf32>
    %196 = arith.mulf %195, %195 : vector<34x32xf32>
    %cst_64 = arith.constant dense<0.000000e+00> : vector<34xf32>
    %197 = vector.multi_reduction <add>, %196, %cst_64 [1] : vector<34x32xf32> to vector<34xf32>
    %198 = vector.shape_cast %197 : vector<34xf32> to vector<34x1xf32>
    %cst_65 = arith.constant 3.200000e+01 : f32
    %199 = vector.broadcast %cst_65 : f32 to vector<34x1xf32>
    %200 = arith.divf %198, %199 : vector<34x1xf32>
    %201 = vector.broadcast %193 : vector<34x1xf32> to vector<34x32xf32>
    %202 = arith.subf %189, %201 : vector<34x32xf32>
    %cst_66 = arith.constant 9.99999974E-6 : f32
    %203 = vector.broadcast %cst_66 : f32 to vector<34x1xf32>
    %204 = arith.addf %200, %203 : vector<34x1xf32>
    %205 = math.rsqrt %204 : vector<34x1xf32>
    %206 = vector.broadcast %205 : vector<34x1xf32> to vector<34x32xf32>
    %207 = arith.mulf %202, %206 : vector<34x32xf32>
    %208 = vector.broadcast %10 : vector<1x32xf32> to vector<34x32xf32>
    %209 = arith.mulf %207, %208 : vector<34x32xf32>
    %210 = vector.broadcast %11 : vector<1x32xf32> to vector<34x32xf32>
    %211 = arith.addf %209, %210 : vector<34x32xf32>
    %c0_67 = arith.constant 0 : index
    %c0_68 = arith.constant 0 : index
    %c0_69 = arith.constant 0 : index
    %212 = vector.load %arg6[%c0_67, %c0_68, %c0_69] : memref<2x32x128xf32, #tpu.memory_space<vmem>>, vector<1x32x128xf32>
    %213 = vector.shape_cast %212 : vector<1x32x128xf32> to vector<32x128xf32>
    %cst_70 = arith.constant dense<0.000000e+00> : vector<34x128xf32>
    %214 = tpu.matmul %211, %213, %cst_70 {dimension_numbers = #tpu.dot_dimension_numbers<[1], [0], [0], [1], [0, 0, 1, 1], [], []>} : vector<34x32xf32>, vector<32x128xf32>, vector<34x128xf32> -> vector<34x128xf32>
    %215 = vector.broadcast %14 : vector<1x128xf32> to vector<34x128xf32>
    %216 = arith.addf %214, %215 : vector<34x128xf32>
    %cst_71 = arith.constant 5.000000e-01 : f32
    %217 = vector.broadcast %cst_71 : f32 to vector<34x128xf32>
    %218 = arith.mulf %217, %216 : vector<34x128xf32>
    %cst_72 = arith.constant 4.471500e-02 : f32
    %219 = vector.broadcast %cst_72 : f32 to vector<34x128xf32>
    %220 = arith.mulf %219, %216 : vector<34x128xf32>
    %221 = arith.mulf %220, %216 : vector<34x128xf32>
    %222 = arith.mulf %221, %216 : vector<34x128xf32>
    %223 = arith.addf %216, %222 : vector<34x128xf32>
    %cst_73 = arith.constant 0.797884583 : f32
    %224 = vector.broadcast %cst_73 : f32 to vector<34x128xf32>
    %225 = arith.mulf %224, %223 : vector<34x128xf32>
    %226 = math.tanh %225 : vector<34x128xf32>
    %cst_74 = arith.constant 1.000000e+00 : f32
    %227 = vector.broadcast %cst_74 : f32 to vector<34x128xf32>
    %228 = arith.addf %227, %226 : vector<34x128xf32>
    %229 = arith.mulf %218, %228 : vector<34x128xf32>
    %c0_75 = arith.constant 0 : index
    %c0_76 = arith.constant 0 : index
    %c0_77 = arith.constant 0 : index
    %230 = vector.load %arg7[%c0_75, %c0_76, %c0_77] : memref<2x128x32xf32, #tpu.memory_space<vmem>>, vector<1x128x32xf32>
    %231 = vector.shape_cast %230 : vector<1x128x32xf32> to vector<128x32xf32>
    %cst_78 = arith.constant dense<0.000000e+00> : vector<34x32xf32>
    %232 = tpu.matmul %229, %231, %cst_78 {dimension_numbers = #tpu.dot_dimension_numbers<[1], [0], [0], [1], [0, 0, 1, 1], [], []>} : vector<34x128xf32>, vector<128x32xf32>, vector<34x32xf32> -> vector<34x32xf32>
    %233 = arith.addf %189, %232 : vector<34x32xf32>
    %234 = vector.broadcast %15 : vector<1x32xf32> to vector<34x32xf32>
    %235 = arith.addf %233, %234 : vector<34x32xf32>
    %c1 = arith.constant 1 : index
    %c0_79 = arith.constant 0 : index
    %c0_80 = arith.constant 0 : index
    %236 = vector.load %arg8[%c1, %c0_79, %c0_80] : memref<3x8x128xf32, #tpu.memory_space<vmem>>, vector<1x8x128xf32>
    %237 = vector.shape_cast %236 : vector<1x8x128xf32> to vector<8x128xf32>
    %238 = vector.extract_strided_slice %237 {offsets = [0, 0], sizes = [1, 32], strides = [1, 1]} : vector<8x128xf32> to vector<1x32xf32>
    %239 = vector.extract_strided_slice %237 {offsets = [1, 0], sizes = [1, 32], strides = [1, 1]} : vector<8x128xf32> to vector<1x32xf32>
    %240 = vector.extract_strided_slice %237 {offsets = [2, 0], sizes = [1, 32], strides = [1, 1]} : vector<8x128xf32> to vector<1x32xf32>
    %241 = vector.extract_strided_slice %237 {offsets = [3, 0], sizes = [1, 32], strides = [1, 1]} : vector<8x128xf32> to vector<1x32xf32>
    %242 = vector.extract_strided_slice %237 {offsets = [4, 0], sizes = [1, 96], strides = [1, 1]} : vector<8x128xf32> to vector<1x96xf32>
    %243 = vector.extract_strided_slice %237 {offsets = [5, 0], sizes = [1, 32], strides = [1, 1]} : vector<8x128xf32> to vector<1x32xf32>
    %244 = vector.extract_strided_slice %237 {offsets = [6, 0], sizes = [1, 128], strides = [1, 1]} : vector<8x128xf32> to vector<1x128xf32>
    %245 = vector.extract_strided_slice %237 {offsets = [7, 0], sizes = [1, 32], strides = [1, 1]} : vector<8x128xf32> to vector<1x32xf32>
    %cst_81 = arith.constant dense<0.000000e+00> : vector<34xf32>
    %246 = vector.multi_reduction <add>, %235, %cst_81 [1] : vector<34x32xf32> to vector<34xf32>
    %247 = vector.shape_cast %246 : vector<34xf32> to vector<34x1xf32>
    %cst_82 = arith.constant 3.200000e+01 : f32
    %248 = vector.broadcast %cst_82 : f32 to vector<34x1xf32>
    %249 = arith.divf %247, %248 : vector<34x1xf32>
    %250 = vector.broadcast %249 : vector<34x1xf32> to vector<34x32xf32>
    %251 = arith.subf %235, %250 : vector<34x32xf32>
    %252 = arith.mulf %251, %251 : vector<34x32xf32>
    %cst_83 = arith.constant dense<0.000000e+00> : vector<34xf32>
    %253 = vector.multi_reduction <add>, %252, %cst_83 [1] : vector<34x32xf32> to vector<34xf32>
    %254 = vector.shape_cast %253 : vector<34xf32> to vector<34x1xf32>
    %cst_84 = arith.constant 3.200000e+01 : f32
    %255 = vector.broadcast %cst_84 : f32 to vector<34x1xf32>
    %256 = arith.divf %254, %255 : vector<34x1xf32>
    %257 = vector.broadcast %249 : vector<34x1xf32> to vector<34x32xf32>
    %258 = arith.subf %235, %257 : vector<34x32xf32>
    %cst_85 = arith.constant 9.99999974E-6 : f32
    %259 = vector.broadcast %cst_85 : f32 to vector<34x1xf32>
    %260 = arith.addf %256, %259 : vector<34x1xf32>
    %261 = math.rsqrt %260 : vector<34x1xf32>
    %262 = vector.broadcast %261 : vector<34x1xf32> to vector<34x32xf32>
    %263 = arith.mulf %258, %262 : vector<34x32xf32>
    %264 = vector.broadcast %238 : vector<1x32xf32> to vector<34x32xf32>
    %265 = arith.mulf %263, %264 : vector<34x32xf32>
    %266 = vector.broadcast %239 : vector<1x32xf32> to vector<34x32xf32>
    %267 = arith.addf %265, %266 : vector<34x32xf32>
    %c1_86 = arith.constant 1 : index
    %c0_87 = arith.constant 0 : index
    %c0_88 = arith.constant 0 : index
    %268 = vector.load %arg4[%c1_86, %c0_87, %c0_88] : memref<2x32x96xf32, #tpu.memory_space<vmem>>, vector<1x32x96xf32>
    %269 = vector.shape_cast %268 : vector<1x32x96xf32> to vector<32x96xf32>
    %cst_89 = arith.constant dense<0.000000e+00> : vector<34x96xf32>
    %270 = tpu.matmul %267, %269, %cst_89 {dimension_numbers = #tpu.dot_dimension_numbers<[1], [0], [0], [1], [0, 0, 1, 1], [], []>} : vector<34x32xf32>, vector<32x96xf32>, vector<34x96xf32> -> vector<34x96xf32>
    %271 = vector.broadcast %242 : vector<1x96xf32> to vector<34x96xf32>
    %272 = arith.addf %270, %271 : vector<34x96xf32>
    %273 = vector.extract_strided_slice %272 {offsets = [0, 0], sizes = [17, 96], strides = [1, 1]} : vector<34x96xf32> to vector<17x96xf32>
    %274 = vector.extract_strided_slice %273 {offsets = [0, 0], sizes = [17, 8], strides = [1, 1]} : vector<17x96xf32> to vector<17x8xf32>
    %275 = vector.extract_strided_slice %273 {offsets = [0, 32], sizes = [17, 8], strides = [1, 1]} : vector<17x96xf32> to vector<17x8xf32>
    %276 = vector.extract_strided_slice %273 {offsets = [0, 64], sizes = [17, 8], strides = [1, 1]} : vector<17x96xf32> to vector<17x8xf32>
    %cst_90 = arith.constant dense<0.000000e+00> : vector<17x17xf32>
    %277 = tpu.matmul %274, %275, %cst_90 {dimension_numbers = #tpu.dot_dimension_numbers<[1], [1], [0], [0], [0, 0, 1, 0], [], []>} : vector<17x8xf32>, vector<17x8xf32>, vector<17x17xf32> -> vector<17x17xf32>
    %cst_91 = arith.constant 0.353553385 : f32
    %278 = vector.broadcast %cst_91 : f32 to vector<17x17xf32>
    %279 = arith.mulf %277, %278 : vector<17x17xf32>
    %cst_92 = arith.constant dense<0xFF800000> : vector<17xf32>
    %280 = vector.multi_reduction <maximumf>, %279, %cst_92 [1] : vector<17x17xf32> to vector<17xf32>
    %281 = vector.shape_cast %280 : vector<17xf32> to vector<17x1xf32>
    %282 = vector.broadcast %281 : vector<17x1xf32> to vector<17x17xf32>
    %283 = arith.subf %279, %282 : vector<17x17xf32>
    %284 = math.exp %283 : vector<17x17xf32>
    %cst_93 = arith.constant dense<0.000000e+00> : vector<17xf32>
    %285 = vector.multi_reduction <add>, %284, %cst_93 [1] : vector<17x17xf32> to vector<17xf32>
    %286 = vector.shape_cast %285 : vector<17xf32> to vector<17x1xf32>
    %287 = tpu.reciprocal %286 {approx = true} : vector<17x1xf32> -> vector<17x1xf32>
    %288 = vector.broadcast %287 : vector<17x1xf32> to vector<17x17xf32>
    %289 = arith.mulf %284, %288 : vector<17x17xf32>
    %cst_94 = arith.constant dense<0.000000e+00> : vector<17x8xf32>
    %290 = tpu.matmul %289, %276, %cst_94 {dimension_numbers = #tpu.dot_dimension_numbers<[1], [0], [0], [1], [0, 0, 1, 1], [], []>} : vector<17x17xf32>, vector<17x8xf32>, vector<17x8xf32> -> vector<17x8xf32>
    %291 = vector.extract_strided_slice %273 {offsets = [0, 8], sizes = [17, 8], strides = [1, 1]} : vector<17x96xf32> to vector<17x8xf32>
    %292 = vector.extract_strided_slice %273 {offsets = [0, 40], sizes = [17, 8], strides = [1, 1]} : vector<17x96xf32> to vector<17x8xf32>
    %293 = vector.extract_strided_slice %273 {offsets = [0, 72], sizes = [17, 8], strides = [1, 1]} : vector<17x96xf32> to vector<17x8xf32>
    %cst_95 = arith.constant dense<0.000000e+00> : vector<17x17xf32>
    %294 = tpu.matmul %291, %292, %cst_95 {dimension_numbers = #tpu.dot_dimension_numbers<[1], [1], [0], [0], [0, 0, 1, 0], [], []>} : vector<17x8xf32>, vector<17x8xf32>, vector<17x17xf32> -> vector<17x17xf32>
    %cst_96 = arith.constant 0.353553385 : f32
    %295 = vector.broadcast %cst_96 : f32 to vector<17x17xf32>
    %296 = arith.mulf %294, %295 : vector<17x17xf32>
    %cst_97 = arith.constant dense<0xFF800000> : vector<17xf32>
    %297 = vector.multi_reduction <maximumf>, %296, %cst_97 [1] : vector<17x17xf32> to vector<17xf32>
    %298 = vector.shape_cast %297 : vector<17xf32> to vector<17x1xf32>
    %299 = vector.broadcast %298 : vector<17x1xf32> to vector<17x17xf32>
    %300 = arith.subf %296, %299 : vector<17x17xf32>
    %301 = math.exp %300 : vector<17x17xf32>
    %cst_98 = arith.constant dense<0.000000e+00> : vector<17xf32>
    %302 = vector.multi_reduction <add>, %301, %cst_98 [1] : vector<17x17xf32> to vector<17xf32>
    %303 = vector.shape_cast %302 : vector<17xf32> to vector<17x1xf32>
    %304 = tpu.reciprocal %303 {approx = true} : vector<17x1xf32> -> vector<17x1xf32>
    %305 = vector.broadcast %304 : vector<17x1xf32> to vector<17x17xf32>
    %306 = arith.mulf %301, %305 : vector<17x17xf32>
    %cst_99 = arith.constant dense<0.000000e+00> : vector<17x8xf32>
    %307 = tpu.matmul %306, %293, %cst_99 {dimension_numbers = #tpu.dot_dimension_numbers<[1], [0], [0], [1], [0, 0, 1, 1], [], []>} : vector<17x17xf32>, vector<17x8xf32>, vector<17x8xf32> -> vector<17x8xf32>
    %308 = vector.extract_strided_slice %273 {offsets = [0, 16], sizes = [17, 8], strides = [1, 1]} : vector<17x96xf32> to vector<17x8xf32>
    %309 = vector.extract_strided_slice %273 {offsets = [0, 48], sizes = [17, 8], strides = [1, 1]} : vector<17x96xf32> to vector<17x8xf32>
    %310 = vector.extract_strided_slice %273 {offsets = [0, 80], sizes = [17, 8], strides = [1, 1]} : vector<17x96xf32> to vector<17x8xf32>
    %cst_100 = arith.constant dense<0.000000e+00> : vector<17x17xf32>
    %311 = tpu.matmul %308, %309, %cst_100 {dimension_numbers = #tpu.dot_dimension_numbers<[1], [1], [0], [0], [0, 0, 1, 0], [], []>} : vector<17x8xf32>, vector<17x8xf32>, vector<17x17xf32> -> vector<17x17xf32>
    %cst_101 = arith.constant 0.353553385 : f32
    %312 = vector.broadcast %cst_101 : f32 to vector<17x17xf32>
    %313 = arith.mulf %311, %312 : vector<17x17xf32>
    %cst_102 = arith.constant dense<0xFF800000> : vector<17xf32>
    %314 = vector.multi_reduction <maximumf>, %313, %cst_102 [1] : vector<17x17xf32> to vector<17xf32>
    %315 = vector.shape_cast %314 : vector<17xf32> to vector<17x1xf32>
    %316 = vector.broadcast %315 : vector<17x1xf32> to vector<17x17xf32>
    %317 = arith.subf %313, %316 : vector<17x17xf32>
    %318 = math.exp %317 : vector<17x17xf32>
    %cst_103 = arith.constant dense<0.000000e+00> : vector<17xf32>
    %319 = vector.multi_reduction <add>, %318, %cst_103 [1] : vector<17x17xf32> to vector<17xf32>
    %320 = vector.shape_cast %319 : vector<17xf32> to vector<17x1xf32>
    %321 = tpu.reciprocal %320 {approx = true} : vector<17x1xf32> -> vector<17x1xf32>
    %322 = vector.broadcast %321 : vector<17x1xf32> to vector<17x17xf32>
    %323 = arith.mulf %318, %322 : vector<17x17xf32>
    %cst_104 = arith.constant dense<0.000000e+00> : vector<17x8xf32>
    %324 = tpu.matmul %323, %310, %cst_104 {dimension_numbers = #tpu.dot_dimension_numbers<[1], [0], [0], [1], [0, 0, 1, 1], [], []>} : vector<17x17xf32>, vector<17x8xf32>, vector<17x8xf32> -> vector<17x8xf32>
    %325 = vector.extract_strided_slice %273 {offsets = [0, 24], sizes = [17, 8], strides = [1, 1]} : vector<17x96xf32> to vector<17x8xf32>
    %326 = vector.extract_strided_slice %273 {offsets = [0, 56], sizes = [17, 8], strides = [1, 1]} : vector<17x96xf32> to vector<17x8xf32>
    %327 = vector.extract_strided_slice %273 {offsets = [0, 88], sizes = [17, 8], strides = [1, 1]} : vector<17x96xf32> to vector<17x8xf32>
    %cst_105 = arith.constant dense<0.000000e+00> : vector<17x17xf32>
    %328 = tpu.matmul %325, %326, %cst_105 {dimension_numbers = #tpu.dot_dimension_numbers<[1], [1], [0], [0], [0, 0, 1, 0], [], []>} : vector<17x8xf32>, vector<17x8xf32>, vector<17x17xf32> -> vector<17x17xf32>
    %cst_106 = arith.constant 0.353553385 : f32
    %329 = vector.broadcast %cst_106 : f32 to vector<17x17xf32>
    %330 = arith.mulf %328, %329 : vector<17x17xf32>
    %cst_107 = arith.constant dense<0xFF800000> : vector<17xf32>
    %331 = vector.multi_reduction <maximumf>, %330, %cst_107 [1] : vector<17x17xf32> to vector<17xf32>
    %332 = vector.shape_cast %331 : vector<17xf32> to vector<17x1xf32>
    %333 = vector.broadcast %332 : vector<17x1xf32> to vector<17x17xf32>
    %334 = arith.subf %330, %333 : vector<17x17xf32>
    %335 = math.exp %334 : vector<17x17xf32>
    %cst_108 = arith.constant dense<0.000000e+00> : vector<17xf32>
    %336 = vector.multi_reduction <add>, %335, %cst_108 [1] : vector<17x17xf32> to vector<17xf32>
    %337 = vector.shape_cast %336 : vector<17xf32> to vector<17x1xf32>
    %338 = tpu.reciprocal %337 {approx = true} : vector<17x1xf32> -> vector<17x1xf32>
    %339 = vector.broadcast %338 : vector<17x1xf32> to vector<17x17xf32>
    %340 = arith.mulf %335, %339 : vector<17x17xf32>
    %cst_109 = arith.constant dense<0.000000e+00> : vector<17x8xf32>
    %341 = tpu.matmul %340, %327, %cst_109 {dimension_numbers = #tpu.dot_dimension_numbers<[1], [0], [0], [1], [0, 0, 1, 1], [], []>} : vector<17x17xf32>, vector<17x8xf32>, vector<17x8xf32> -> vector<17x8xf32>
    %342 = tpu.concatenate %290, %307, %324, %341 in 1 : vector<17x8xf32>, vector<17x8xf32>, vector<17x8xf32>, vector<17x8xf32> -> vector<17x32xf32>
    %343 = vector.extract_strided_slice %272 {offsets = [17, 0], sizes = [17, 96], strides = [1, 1]} : vector<34x96xf32> to vector<17x96xf32>
    %344 = vector.extract_strided_slice %343 {offsets = [0, 0], sizes = [17, 8], strides = [1, 1]} : vector<17x96xf32> to vector<17x8xf32>
    %345 = vector.extract_strided_slice %343 {offsets = [0, 32], sizes = [17, 8], strides = [1, 1]} : vector<17x96xf32> to vector<17x8xf32>
    %346 = vector.extract_strided_slice %343 {offsets = [0, 64], sizes = [17, 8], strides = [1, 1]} : vector<17x96xf32> to vector<17x8xf32>
    %cst_110 = arith.constant dense<0.000000e+00> : vector<17x17xf32>
    %347 = tpu.matmul %344, %345, %cst_110 {dimension_numbers = #tpu.dot_dimension_numbers<[1], [1], [0], [0], [0, 0, 1, 0], [], []>} : vector<17x8xf32>, vector<17x8xf32>, vector<17x17xf32> -> vector<17x17xf32>
    %cst_111 = arith.constant 0.353553385 : f32
    %348 = vector.broadcast %cst_111 : f32 to vector<17x17xf32>
    %349 = arith.mulf %347, %348 : vector<17x17xf32>
    %cst_112 = arith.constant dense<0xFF800000> : vector<17xf32>
    %350 = vector.multi_reduction <maximumf>, %349, %cst_112 [1] : vector<17x17xf32> to vector<17xf32>
    %351 = vector.shape_cast %350 : vector<17xf32> to vector<17x1xf32>
    %352 = vector.broadcast %351 : vector<17x1xf32> to vector<17x17xf32>
    %353 = arith.subf %349, %352 : vector<17x17xf32>
    %354 = math.exp %353 : vector<17x17xf32>
    %cst_113 = arith.constant dense<0.000000e+00> : vector<17xf32>
    %355 = vector.multi_reduction <add>, %354, %cst_113 [1] : vector<17x17xf32> to vector<17xf32>
    %356 = vector.shape_cast %355 : vector<17xf32> to vector<17x1xf32>
    %357 = tpu.reciprocal %356 {approx = true} : vector<17x1xf32> -> vector<17x1xf32>
    %358 = vector.broadcast %357 : vector<17x1xf32> to vector<17x17xf32>
    %359 = arith.mulf %354, %358 : vector<17x17xf32>
    %cst_114 = arith.constant dense<0.000000e+00> : vector<17x8xf32>
    %360 = tpu.matmul %359, %346, %cst_114 {dimension_numbers = #tpu.dot_dimension_numbers<[1], [0], [0], [1], [0, 0, 1, 1], [], []>} : vector<17x17xf32>, vector<17x8xf32>, vector<17x8xf32> -> vector<17x8xf32>
    %361 = vector.extract_strided_slice %343 {offsets = [0, 8], sizes = [17, 8], strides = [1, 1]} : vector<17x96xf32> to vector<17x8xf32>
    %362 = vector.extract_strided_slice %343 {offsets = [0, 40], sizes = [17, 8], strides = [1, 1]} : vector<17x96xf32> to vector<17x8xf32>
    %363 = vector.extract_strided_slice %343 {offsets = [0, 72], sizes = [17, 8], strides = [1, 1]} : vector<17x96xf32> to vector<17x8xf32>
    %cst_115 = arith.constant dense<0.000000e+00> : vector<17x17xf32>
    %364 = tpu.matmul %361, %362, %cst_115 {dimension_numbers = #tpu.dot_dimension_numbers<[1], [1], [0], [0], [0, 0, 1, 0], [], []>} : vector<17x8xf32>, vector<17x8xf32>, vector<17x17xf32> -> vector<17x17xf32>
    %cst_116 = arith.constant 0.353553385 : f32
    %365 = vector.broadcast %cst_116 : f32 to vector<17x17xf32>
    %366 = arith.mulf %364, %365 : vector<17x17xf32>
    %cst_117 = arith.constant dense<0xFF800000> : vector<17xf32>
    %367 = vector.multi_reduction <maximumf>, %366, %cst_117 [1] : vector<17x17xf32> to vector<17xf32>
    %368 = vector.shape_cast %367 : vector<17xf32> to vector<17x1xf32>
    %369 = vector.broadcast %368 : vector<17x1xf32> to vector<17x17xf32>
    %370 = arith.subf %366, %369 : vector<17x17xf32>
    %371 = math.exp %370 : vector<17x17xf32>
    %cst_118 = arith.constant dense<0.000000e+00> : vector<17xf32>
    %372 = vector.multi_reduction <add>, %371, %cst_118 [1] : vector<17x17xf32> to vector<17xf32>
    %373 = vector.shape_cast %372 : vector<17xf32> to vector<17x1xf32>
    %374 = tpu.reciprocal %373 {approx = true} : vector<17x1xf32> -> vector<17x1xf32>
    %375 = vector.broadcast %374 : vector<17x1xf32> to vector<17x17xf32>
    %376 = arith.mulf %371, %375 : vector<17x17xf32>
    %cst_119 = arith.constant dense<0.000000e+00> : vector<17x8xf32>
    %377 = tpu.matmul %376, %363, %cst_119 {dimension_numbers = #tpu.dot_dimension_numbers<[1], [0], [0], [1], [0, 0, 1, 1], [], []>} : vector<17x17xf32>, vector<17x8xf32>, vector<17x8xf32> -> vector<17x8xf32>
    %378 = vector.extract_strided_slice %343 {offsets = [0, 16], sizes = [17, 8], strides = [1, 1]} : vector<17x96xf32> to vector<17x8xf32>
    %379 = vector.extract_strided_slice %343 {offsets = [0, 48], sizes = [17, 8], strides = [1, 1]} : vector<17x96xf32> to vector<17x8xf32>
    %380 = vector.extract_strided_slice %343 {offsets = [0, 80], sizes = [17, 8], strides = [1, 1]} : vector<17x96xf32> to vector<17x8xf32>
    %cst_120 = arith.constant dense<0.000000e+00> : vector<17x17xf32>
    %381 = tpu.matmul %378, %379, %cst_120 {dimension_numbers = #tpu.dot_dimension_numbers<[1], [1], [0], [0], [0, 0, 1, 0], [], []>} : vector<17x8xf32>, vector<17x8xf32>, vector<17x17xf32> -> vector<17x17xf32>
    %cst_121 = arith.constant 0.353553385 : f32
    %382 = vector.broadcast %cst_121 : f32 to vector<17x17xf32>
    %383 = arith.mulf %381, %382 : vector<17x17xf32>
    %cst_122 = arith.constant dense<0xFF800000> : vector<17xf32>
    %384 = vector.multi_reduction <maximumf>, %383, %cst_122 [1] : vector<17x17xf32> to vector<17xf32>
    %385 = vector.shape_cast %384 : vector<17xf32> to vector<17x1xf32>
    %386 = vector.broadcast %385 : vector<17x1xf32> to vector<17x17xf32>
    %387 = arith.subf %383, %386 : vector<17x17xf32>
    %388 = math.exp %387 : vector<17x17xf32>
    %cst_123 = arith.constant dense<0.000000e+00> : vector<17xf32>
    %389 = vector.multi_reduction <add>, %388, %cst_123 [1] : vector<17x17xf32> to vector<17xf32>
    %390 = vector.shape_cast %389 : vector<17xf32> to vector<17x1xf32>
    %391 = tpu.reciprocal %390 {approx = true} : vector<17x1xf32> -> vector<17x1xf32>
    %392 = vector.broadcast %391 : vector<17x1xf32> to vector<17x17xf32>
    %393 = arith.mulf %388, %392 : vector<17x17xf32>
    %cst_124 = arith.constant dense<0.000000e+00> : vector<17x8xf32>
    %394 = tpu.matmul %393, %380, %cst_124 {dimension_numbers = #tpu.dot_dimension_numbers<[1], [0], [0], [1], [0, 0, 1, 1], [], []>} : vector<17x17xf32>, vector<17x8xf32>, vector<17x8xf32> -> vector<17x8xf32>
    %395 = vector.extract_strided_slice %343 {offsets = [0, 24], sizes = [17, 8], strides = [1, 1]} : vector<17x96xf32> to vector<17x8xf32>
    %396 = vector.extract_strided_slice %343 {offsets = [0, 56], sizes = [17, 8], strides = [1, 1]} : vector<17x96xf32> to vector<17x8xf32>
    %397 = vector.extract_strided_slice %343 {offsets = [0, 88], sizes = [17, 8], strides = [1, 1]} : vector<17x96xf32> to vector<17x8xf32>
    %cst_125 = arith.constant dense<0.000000e+00> : vector<17x17xf32>
    %398 = tpu.matmul %395, %396, %cst_125 {dimension_numbers = #tpu.dot_dimension_numbers<[1], [1], [0], [0], [0, 0, 1, 0], [], []>} : vector<17x8xf32>, vector<17x8xf32>, vector<17x17xf32> -> vector<17x17xf32>
    %cst_126 = arith.constant 0.353553385 : f32
    %399 = vector.broadcast %cst_126 : f32 to vector<17x17xf32>
    %400 = arith.mulf %398, %399 : vector<17x17xf32>
    %cst_127 = arith.constant dense<0xFF800000> : vector<17xf32>
    %401 = vector.multi_reduction <maximumf>, %400, %cst_127 [1] : vector<17x17xf32> to vector<17xf32>
    %402 = vector.shape_cast %401 : vector<17xf32> to vector<17x1xf32>
    %403 = vector.broadcast %402 : vector<17x1xf32> to vector<17x17xf32>
    %404 = arith.subf %400, %403 : vector<17x17xf32>
    %405 = math.exp %404 : vector<17x17xf32>
    %cst_128 = arith.constant dense<0.000000e+00> : vector<17xf32>
    %406 = vector.multi_reduction <add>, %405, %cst_128 [1] : vector<17x17xf32> to vector<17xf32>
    %407 = vector.shape_cast %406 : vector<17xf32> to vector<17x1xf32>
    %408 = tpu.reciprocal %407 {approx = true} : vector<17x1xf32> -> vector<17x1xf32>
    %409 = vector.broadcast %408 : vector<17x1xf32> to vector<17x17xf32>
    %410 = arith.mulf %405, %409 : vector<17x17xf32>
    %cst_129 = arith.constant dense<0.000000e+00> : vector<17x8xf32>
    %411 = tpu.matmul %410, %397, %cst_129 {dimension_numbers = #tpu.dot_dimension_numbers<[1], [0], [0], [1], [0, 0, 1, 1], [], []>} : vector<17x17xf32>, vector<17x8xf32>, vector<17x8xf32> -> vector<17x8xf32>
    %412 = tpu.concatenate %360, %377, %394, %411 in 1 : vector<17x8xf32>, vector<17x8xf32>, vector<17x8xf32>, vector<17x8xf32> -> vector<17x32xf32>
    %413 = tpu.concatenate %342, %412 in 0 : vector<17x32xf32>, vector<17x32xf32> -> vector<34x32xf32>
    %c1_130 = arith.constant 1 : index
    %c0_131 = arith.constant 0 : index
    %c0_132 = arith.constant 0 : index
    %414 = vector.load %arg5[%c1_130, %c0_131, %c0_132] : memref<2x32x32xf32, #tpu.memory_space<vmem>>, vector<1x32x32xf32>
    %415 = vector.shape_cast %414 : vector<1x32x32xf32> to vector<32x32xf32>
    %cst_133 = arith.constant dense<0.000000e+00> : vector<34x32xf32>
    %416 = tpu.matmul %413, %415, %cst_133 {dimension_numbers = #tpu.dot_dimension_numbers<[1], [0], [0], [1], [0, 0, 1, 1], [], []>} : vector<34x32xf32>, vector<32x32xf32>, vector<34x32xf32> -> vector<34x32xf32>
    %417 = arith.addf %235, %416 : vector<34x32xf32>
    %418 = vector.broadcast %243 : vector<1x32xf32> to vector<34x32xf32>
    %419 = arith.addf %417, %418 : vector<34x32xf32>
    %cst_134 = arith.constant dense<0.000000e+00> : vector<34xf32>
    %420 = vector.multi_reduction <add>, %419, %cst_134 [1] : vector<34x32xf32> to vector<34xf32>
    %421 = vector.shape_cast %420 : vector<34xf32> to vector<34x1xf32>
    %cst_135 = arith.constant 3.200000e+01 : f32
    %422 = vector.broadcast %cst_135 : f32 to vector<34x1xf32>
    %423 = arith.divf %421, %422 : vector<34x1xf32>
    %424 = vector.broadcast %423 : vector<34x1xf32> to vector<34x32xf32>
    %425 = arith.subf %419, %424 : vector<34x32xf32>
    %426 = arith.mulf %425, %425 : vector<34x32xf32>
    %cst_136 = arith.constant dense<0.000000e+00> : vector<34xf32>
    %427 = vector.multi_reduction <add>, %426, %cst_136 [1] : vector<34x32xf32> to vector<34xf32>
    %428 = vector.shape_cast %427 : vector<34xf32> to vector<34x1xf32>
    %cst_137 = arith.constant 3.200000e+01 : f32
    %429 = vector.broadcast %cst_137 : f32 to vector<34x1xf32>
    %430 = arith.divf %428, %429 : vector<34x1xf32>
    %431 = vector.broadcast %423 : vector<34x1xf32> to vector<34x32xf32>
    %432 = arith.subf %419, %431 : vector<34x32xf32>
    %cst_138 = arith.constant 9.99999974E-6 : f32
    %433 = vector.broadcast %cst_138 : f32 to vector<34x1xf32>
    %434 = arith.addf %430, %433 : vector<34x1xf32>
    %435 = math.rsqrt %434 : vector<34x1xf32>
    %436 = vector.broadcast %435 : vector<34x1xf32> to vector<34x32xf32>
    %437 = arith.mulf %432, %436 : vector<34x32xf32>
    %438 = vector.broadcast %240 : vector<1x32xf32> to vector<34x32xf32>
    %439 = arith.mulf %437, %438 : vector<34x32xf32>
    %440 = vector.broadcast %241 : vector<1x32xf32> to vector<34x32xf32>
    %441 = arith.addf %439, %440 : vector<34x32xf32>
    %c1_139 = arith.constant 1 : index
    %c0_140 = arith.constant 0 : index
    %c0_141 = arith.constant 0 : index
    %442 = vector.load %arg6[%c1_139, %c0_140, %c0_141] : memref<2x32x128xf32, #tpu.memory_space<vmem>>, vector<1x32x128xf32>
    %443 = vector.shape_cast %442 : vector<1x32x128xf32> to vector<32x128xf32>
    %cst_142 = arith.constant dense<0.000000e+00> : vector<34x128xf32>
    %444 = tpu.matmul %441, %443, %cst_142 {dimension_numbers = #tpu.dot_dimension_numbers<[1], [0], [0], [1], [0, 0, 1, 1], [], []>} : vector<34x32xf32>, vector<32x128xf32>, vector<34x128xf32> -> vector<34x128xf32>
    %445 = vector.broadcast %244 : vector<1x128xf32> to vector<34x128xf32>
    %446 = arith.addf %444, %445 : vector<34x128xf32>
    %cst_143 = arith.constant 5.000000e-01 : f32
    %447 = vector.broadcast %cst_143 : f32 to vector<34x128xf32>
    %448 = arith.mulf %447, %446 : vector<34x128xf32>
    %cst_144 = arith.constant 4.471500e-02 : f32
    %449 = vector.broadcast %cst_144 : f32 to vector<34x128xf32>
    %450 = arith.mulf %449, %446 : vector<34x128xf32>
    %451 = arith.mulf %450, %446 : vector<34x128xf32>
    %452 = arith.mulf %451, %446 : vector<34x128xf32>
    %453 = arith.addf %446, %452 : vector<34x128xf32>
    %cst_145 = arith.constant 0.797884583 : f32
    %454 = vector.broadcast %cst_145 : f32 to vector<34x128xf32>
    %455 = arith.mulf %454, %453 : vector<34x128xf32>
    %456 = math.tanh %455 : vector<34x128xf32>
    %cst_146 = arith.constant 1.000000e+00 : f32
    %457 = vector.broadcast %cst_146 : f32 to vector<34x128xf32>
    %458 = arith.addf %457, %456 : vector<34x128xf32>
    %459 = arith.mulf %448, %458 : vector<34x128xf32>
    %c1_147 = arith.constant 1 : index
    %c0_148 = arith.constant 0 : index
    %c0_149 = arith.constant 0 : index
    %460 = vector.load %arg7[%c1_147, %c0_148, %c0_149] : memref<2x128x32xf32, #tpu.memory_space<vmem>>, vector<1x128x32xf32>
    %461 = vector.shape_cast %460 : vector<1x128x32xf32> to vector<128x32xf32>
    %cst_150 = arith.constant dense<0.000000e+00> : vector<34x32xf32>
    %462 = tpu.matmul %459, %461, %cst_150 {dimension_numbers = #tpu.dot_dimension_numbers<[1], [0], [0], [1], [0, 0, 1, 1], [], []>} : vector<34x128xf32>, vector<128x32xf32>, vector<34x32xf32> -> vector<34x32xf32>
    %463 = arith.addf %419, %462 : vector<34x32xf32>
    %464 = vector.broadcast %245 : vector<1x32xf32> to vector<34x32xf32>
    %465 = arith.addf %463, %464 : vector<34x32xf32>
    %c2 = arith.constant 2 : index
    %c0_151 = arith.constant 0 : index
    %c0_152 = arith.constant 0 : index
    %466 = vector.load %arg8[%c2, %c0_151, %c0_152] : memref<3x8x128xf32, #tpu.memory_space<vmem>>, vector<1x8x128xf32>
    %467 = vector.shape_cast %466 : vector<1x8x128xf32> to vector<8x128xf32>
    %468 = vector.extract_strided_slice %467 {offsets = [0, 0], sizes = [1, 32], strides = [1, 1]} : vector<8x128xf32> to vector<1x32xf32>
    %469 = vector.extract_strided_slice %467 {offsets = [1, 0], sizes = [1, 32], strides = [1, 1]} : vector<8x128xf32> to vector<1x32xf32>
    %470 = vector.extract_strided_slice %465 {offsets = [0, 0], sizes = [1, 32], strides = [1, 1]} : vector<34x32xf32> to vector<1x32xf32>
    %471 = vector.extract_strided_slice %465 {offsets = [17, 0], sizes = [1, 32], strides = [1, 1]} : vector<34x32xf32> to vector<1x32xf32>
    %472 = tpu.concatenate %470, %471 in 0 : vector<1x32xf32>, vector<1x32xf32> -> vector<2x32xf32>
    %cst_153 = arith.constant dense<0.000000e+00> : vector<2xf32>
    %473 = vector.multi_reduction <add>, %472, %cst_153 [1] : vector<2x32xf32> to vector<2xf32>
    %474 = vector.shape_cast %473 : vector<2xf32> to vector<2x1xf32>
    %cst_154 = arith.constant 3.200000e+01 : f32
    %475 = vector.broadcast %cst_154 : f32 to vector<2x1xf32>
    %476 = arith.divf %474, %475 : vector<2x1xf32>
    %477 = vector.broadcast %476 : vector<2x1xf32> to vector<2x32xf32>
    %478 = arith.subf %472, %477 : vector<2x32xf32>
    %479 = arith.mulf %478, %478 : vector<2x32xf32>
    %cst_155 = arith.constant dense<0.000000e+00> : vector<2xf32>
    %480 = vector.multi_reduction <add>, %479, %cst_155 [1] : vector<2x32xf32> to vector<2xf32>
    %481 = vector.shape_cast %480 : vector<2xf32> to vector<2x1xf32>
    %cst_156 = arith.constant 3.200000e+01 : f32
    %482 = vector.broadcast %cst_156 : f32 to vector<2x1xf32>
    %483 = arith.divf %481, %482 : vector<2x1xf32>
    %484 = vector.broadcast %476 : vector<2x1xf32> to vector<2x32xf32>
    %485 = arith.subf %472, %484 : vector<2x32xf32>
    %cst_157 = arith.constant 9.99999974E-6 : f32
    %486 = vector.broadcast %cst_157 : f32 to vector<2x1xf32>
    %487 = arith.addf %483, %486 : vector<2x1xf32>
    %488 = math.rsqrt %487 : vector<2x1xf32>
    %489 = vector.broadcast %488 : vector<2x1xf32> to vector<2x32xf32>
    %490 = arith.mulf %485, %489 : vector<2x32xf32>
    %491 = vector.broadcast %468 : vector<1x32xf32> to vector<2x32xf32>
    %492 = arith.mulf %490, %491 : vector<2x32xf32>
    %493 = vector.broadcast %469 : vector<1x32xf32> to vector<2x32xf32>
    %494 = arith.addf %492, %493 : vector<2x32xf32>
    %c0_158 = arith.constant 0 : index
    %c0_159 = arith.constant 0 : index
    %c0_160 = arith.constant 0 : index
    %495 = vector.load %arg9[%c0_158, %c0_159, %c0_160] : memref<1x2x32xf32, #tpu.memory_space<vmem>>, vector<1x2x32xf32>
    %496 = vector.shape_cast %495 : vector<1x2x32xf32> to vector<2x32xf32>
    %497 = vector.shape_cast %494 : vector<2x32xf32> to vector<1x2x32xf32>
    tpu.vector_store %arg9[%c0_158, %c0_159, %c0_160], %497 {strides = array<i32>} : memref<1x2x32xf32, #tpu.memory_space<vmem>>, vector<1x2x32xf32>,
    return
  }
  func.func @transform_0(%arg0: i32) -> (i32, i32, i32) {
    %c0_i32 = arith.constant 0 : i32
    %c0_i32_0 = arith.constant 0 : i32
    %c0_i32_1 = arith.constant 0 : i32
    return %arg0, %c0_i32, %c0_i32_0 : i32, i32, i32
  }
  func.func @transform_1(%arg0: i32) -> (i32, i32) {
    %c0_i32 = arith.constant 0 : i32
    %c0_i32_0 = arith.constant 0 : i32
    %c0_i32_1 = arith.constant 0 : i32
    return %c0_i32, %c0_i32_0 : i32, i32
  }
  func.func @transform_2(%arg0: i32) -> (i32, i32) {
    %c0_i32 = arith.constant 0 : i32
    %c0_i32_0 = arith.constant 0 : i32
    %c0_i32_1 = arith.constant 0 : i32
    return %c0_i32, %c0_i32_0 : i32, i32
  }
  func.func @transform_3(%arg0: i32) -> (i32, i32, i32) {
    %c0_i32 = arith.constant 0 : i32
    %c0_i32_0 = arith.constant 0 : i32
    %c0_i32_1 = arith.constant 0 : i32
    %c0_i32_2 = arith.constant 0 : i32
    return %c0_i32, %c0_i32_0, %c0_i32_1 : i32, i32, i32
  }
  func.func @transform_4(%arg0: i32) -> (i32, i32, i32) {
    %c0_i32 = arith.constant 0 : i32
    %c0_i32_0 = arith.constant 0 : i32
    %c0_i32_1 = arith.constant 0 : i32
    %c0_i32_2 = arith.constant 0 : i32
    return %c0_i32, %c0_i32_0, %c0_i32_1 : i32, i32, i32
  }
  func.func @transform_5(%arg0: i32) -> (i32, i32, i32) {
    %c0_i32 = arith.constant 0 : i32
    %c0_i32_0 = arith.constant 0 : i32
    %c0_i32_1 = arith.constant 0 : i32
    %c0_i32_2 = arith.constant 0 : i32
    return %c0_i32, %c0_i32_0, %c0_i32_1 : i32, i32, i32
  }
  func.func @transform_6(%arg0: i32) -> (i32, i32, i32) {
    %c0_i32 = arith.constant 0 : i32
    %c0_i32_0 = arith.constant 0 : i32
    %c0_i32_1 = arith.constant 0 : i32
    %c0_i32_2 = arith.constant 0 : i32
    return %c0_i32, %c0_i32_0, %c0_i32_1 : i32, i32, i32
  }
  func.func @transform_7(%arg0: i32) -> (i32, i32, i32) {
    %c0_i32 = arith.constant 0 : i32
    %c0_i32_0 = arith.constant 0 : i32
    %c0_i32_1 = arith.constant 0 : i32
    %c0_i32_2 = arith.constant 0 : i32
    return %c0_i32, %c0_i32_0, %c0_i32_1 : i32, i32, i32
  }
  func.func @transform_8(%arg0: i32) -> (i32, i32, i32) {
    %c0_i32 = arith.constant 0 : i32
    %c0_i32_0 = arith.constant 0 : i32
    %c0_i32_1 = arith.constant 0 : i32
    return %arg0, %c0_i32, %c0_i32_0 : i32, i32, i32
  }
}

</mosaic_0001>

<llo_original>
// kernel: tile.9
$region0: #{tile.9}
  %s0 = inlined_call_operand.vmem [shape: f32[2,17,32], index: 0, kind: input, shape index: {}]
  %s1 = inlined_call_operand.vmem [shape: f32[34,32], index: 1, kind: output, shape index: {}]
  %v2 = vld [vmem:[%s0] sm:$0xff]
  %vm3 = vcmask 261120
  %4 = vst.msk [vmem:[%s1] sm:$0xff] %vm3, %v2
  %s5 = scalar_lea.vmem %s0, 8
  %v6 = vld [vmem:[%s5] sm:$0xff]
  %vm7 = vcmask 261120
  %s8 = scalar_lea.vmem %s1, 8
  %9 = vst.msk [vmem:[%s8] sm:$0xff] %vm7, %v6
  %s10 = scalar_lea.vmem %s0, 16
  %s11 = smov 3
  %v12 = vld [vmem:[%s10] ss:$8 sm:%s11]
  %vm13 = vcmask 261120
  %s14 = scalar_lea.vmem %s1, 16
  %15 = vst.msk [vmem:[%s14] sm:$0x3] %vm13, %v12
  %s16 = scalar_lea.vmem %s0, 25
  %v17 = vld [vmem:[%s16] sm:$0xff]
  %vm18 = vcmask 261120
  %s19 = scalar_lea.vmem %s1, 18
  %20 = vst.msk [vmem:[%s19] sm:$0xff] %vm18, %v17
  %s21 = scalar_lea.vmem %s0, 33
  %v22 = vld [vmem:[%s21] sm:$0xff]
  %vm23 = vcmask 261120
  %s24 = scalar_lea.vmem %s1, 26
  %25 = vst.msk [vmem:[%s24] sm:$0xff] %vm23, %v22

// kernel: _vit_forward_impl.1
$region0: #{_vit_forward_impl.1}
  #allocation0 [shape = 'u32[]', space=smem, size = 0x4, offset = 0x4, fixed_abs, tag = 'smem constant byte address 0x4 - core index']
  #allocation1 [shape = 'u32[144,128]{1,0:T(1,128)}', space=vmem, size = 0x12000, scoped, tag = 'internal scratch']
  %s0 = inlined_call_operand.vmem [shape: f32[1,34,48], index: 0, kind: input, shape index: {}]
  %s1 = inlined_call_operand.vmem [shape: f32[34,32], index: 1, kind: input, shape index: {}]
  %s2 = inlined_call_operand.vmem [shape: f32[48,32], index: 2, kind: input, shape index: {}]
  %s3 = inlined_call_operand.vmem [shape: f32[2,32,96], index: 3, kind: input, shape index: {}]
  %s4 = inlined_call_operand.vmem [shape: f32[2,32,32], index: 4, kind: input, shape index: {}]
  %s5 = inlined_call_operand.vmem [shape: f32[2,32,128], index: 5, kind: input, shape index: {}]
  %s6 = inlined_call_operand.vmem [shape: f32[2,128,32], index: 6, kind: input, shape index: {}]
  %s7 = inlined_call_operand.vmem [shape: f32[3,8,128], index: 7, kind: input, shape index: {}]
  %s8 = inlined_call_operand.hbm [shape: f32[1,2,32], index: 8, kind: output, shape index: {}]
  %s9 = sld [smem:[#allocation0]]
  $region42: #{_vit_forward_impl.1} parent=0
    _
  %s11 = ssub.s32 1, %s9
  %s12 = scalar_select 0, %s11, %s9
  $region1: #{_vit_forward_impl.1} parent=0
    #allocation2 [shape = 'u8[1024]{0}', space=vmem, size = 0x400, scoped, tag = 'output window, operand 0, single buffered']
    #allocation3 [shape = 's32[1]{0}', space=sflag, size = 0x4, scoped, tag = 'scoped memory for _vit_forward_impl.1']
    %13 = vsyncpa [#allocation3], 0
    // Predicated region
    $region2: #{_vit_forward_impl.1} parent=1 // pred_check
      _
    $region3: #{_vit_forward_impl.1} parent=1 // pred_check_branch
      %15 = sbr.rel (0) target = $region5
    $region4: #{_vit_forward_impl.1} parent=1 // pred_region
      _
    $region5: #{_vit_forward_impl.1} parent=1 // pred_fallthru
      _
    // Predicated region
    $region6: #{_vit_forward_impl.1} parent=1 // pred_check
      _
    $region7: #{_vit_forward_impl.1} parent=1 // pred_check_branch
      %17 = sbr.rel (0) target = $region9
    $region8: #{_vit_forward_impl.1} parent=1 // pred_region
      _
    $region9: #{_vit_forward_impl.1} parent=1 // pred_fallthru
      _
    // Predicated region
    $region10: #{_vit_forward_impl.1} parent=1 // pred_check
      _
    $region11: #{_vit_forward_impl.1} parent=1 // pred_check_branch
      %19 = sbr.rel (0) target = $region13
    $region12: #{_vit_forward_impl.1} parent=1 // pred_region
      _
    $region13: #{_vit_forward_impl.1} parent=1 // pred_fallthru
      _
    // Predicated region
    $region14: #{_vit_forward_impl.1} parent=1 // pred_check
      _
    $region15: #{_vit_forward_impl.1} parent=1 // pred_check_branch
      %21 = sbr.rel (0) target = $region17
    $region16: #{_vit_forward_impl.1} parent=1 // pred_region
      _
    $region17: #{_vit_forward_impl.1} parent=1 // pred_fallthru
      _
    // Predicated region
    $region18: #{_vit_forward_impl.1} parent=1 // pred_check
      _
    $region19: #{_vit_forward_impl.1} parent=1 // pred_check_branch
      %23 = sbr.rel (0) target = $region21
    $region20: #{_vit_forward_impl.1} parent=1 // pred_region
      _
    $region21: #{_vit_forward_impl.1} parent=1 // pred_fallthru
      _
    // Predicated region
    $region22: #{_vit_forward_impl.1} parent=1 // pred_check
      _
    $region23: #{_vit_forward_impl.1} parent=1 // pred_check_branch
      %25 = sbr.rel (0) target = $region25
    $region24: #{_vit_forward_impl.1} parent=1 // pred_region
      _
    $region25: #{_vit_forward_impl.1} parent=1 // pred_fallthru
      _
    // Predicated region
    $region26: #{_vit_forward_impl.1} parent=1 // pred_check
      _
    $region27: #{_vit_forward_impl.1} parent=1 // pred_check_branch
      %27 = sbr.rel (0) target = $region29
    $region28: #{_vit_forward_impl.1} parent=1 // pred_region
      _
    $region29: #{_vit_forward_impl.1} parent=1 // pred_fallthru
      _
    // Predicated region
    $region30: #{_vit_forward_impl.1} parent=1 // pred_check
      _
    $region31: #{_vit_forward_impl.1} parent=1 // pred_check_branch
      %29 = sbr.rel (0) target = $region33
    $region32: #{_vit_forward_impl.1} parent=1 // pred_region
      _
    $region33: #{_vit_forward_impl.1} parent=1 // pred_fallthru
      _
    %v30 = vld [vmem:[%s0] sm:$0xff]
    %v31 = vld [vmem:[%s0 + $0x8] sm:$0xff]
    %v32 = vld [vmem:[%s0 + $0x10] sm:$0xff]
    %v33 = vld [vmem:[%s0 + $0x18] sm:$0xff]
    %v34 = vld [vmem:[%s0 + $0x20] sm:$0x3]
    %v35 = vld [vmem:[%s2] sm:$0xff]
    %v36 = vld [vmem:[%s2 + $0x8] sm:$0xff]
    %v37 = vld [vmem:[%s2 + $0x10] sm:$0xff]
    %v38 = vld [vmem:[%s2 + $0x18] sm:$0xff]
    %v39 = vld [vmem:[%s2 + $0x20] sm:$0xff]
    %v40 = vld [vmem:[%s2 + $0x28] sm:$0xff]
    %v41 = vld [vmem:[%s1] sm:$0xff]
    %v42 = vld [vmem:[%s1 + $0x8] sm:$0xff]
    %v43 = vld [vmem:[%s1 + $0x10] sm:$0xff]
    %v44 = vld [vmem:[%s1 + $0x18] sm:$0xff]
    %v45 = vld [vmem:[%s1 + $0x20] sm:$0x3]
    %vm46 = vcmask 392192
    %v48 = vsel %vm46, %v30, 0
    %v51 = vsel %vm46, %v31, 0
    %v54 = vsel %vm46, %v32, 0
    %v57 = vsel %vm46, %v33, 0
    %v60 = vsel %vm46, %v34, 0
    %62 = vmatprep.subr.mxu0 0.0
    %63 = vmatpush1.msra.mxu0 %v35
    %64 = vmatprep.subr.mxu0 0.0
    %65 = vmatpush1.msra.mxu0 %v36
    %66 = vmatprep.subr.mxu0 0.0
    %67 = vmatpush1.msra.mxu0 %v37
    %68 = vmatprep.subr.mxu0 0.0
    %69 = vmatpush1.msra.mxu0 %v38
    %70 = vmatprep.subr.mxu0 0.0
    %71 = vmatpush1.msra.mxu0 %v39
    %72 = vmatprep.subr.mxu0 0.0
    %73 = vmatpush1.msra.mxu0 %v40
    %74 = vmatprep.subr.mxu0 0.0
    %75 = vmatpush1.msra.mxu0 0.0
    %76 = vmatprep.subr.mxu0 0.0
    %77 = vmatpush1.msra.mxu0 0.0
    %78 = vmatprep.subr.mxu0 0.0
    %79 = vmatpush1.msra.mxu0 0.0
    %80 = vmatprep.subr.mxu0 0.0
    %81 = vmatpush1.msra.mxu0 0.0
    %82 = vmatprep.subr.mxu0 0.0
    %83 = vmatpush1.msra.mxu0 0.0
    %84 = vmatprep.subr.mxu0 0.0
    %85 = vmatpush1.msra.mxu0 0.0
    %86 = vmatprep.subr.mxu0 0.0
    %87 = vmatpush1.msra.mxu0 0.0
    %88 = vmatprep.subr.mxu0 0.0
    %89 = vmatpush1.msra.mxu0 0.0
    %90 = vmatprep.subr.mxu0 0.0
    %91 = vmatpush1.msra.mxu0 0.0
    %92 = vmatprep.subr.mxu0 0.0
    %93 = vmatpush1.msra.mxu0 0.0
    %94 = vmatprep.subr.mxu0 0.0
    %95 = vmatpush1.msra.mxu0 0.0
    %96 = vmatprep.subr.mxu0 0.0
    %97 = vmatpush1.msra.mxu0 0.0
    %98 = vmatprep.subr.mxu0 0.0
    %99 = vmatpush1.msra.mxu0 0.0
    %100 = vmatprep.subr.mxu0 0.0
    %101 = vmatpush1.msra.mxu0 0.0
    %102 = vmatprep.subr.mxu0 0.0
    %103 = vmatpush1.msra.mxu0 0.0
    %104 = vmatprep.subr.mxu0 0.0
    %105 = vmatpush1.msra.mxu0 0.0
    %106 = vmatprep.subr.mxu0 0.0
    %107 = vmatpush1.msra.mxu0 0.0
    %108 = vmatprep.subr.mxu0 0.0
    %109 = vmatpush1.msra.mxu0 0.0
    %110 = vmatprep.subr.mxu0 0.0
    %111 = vmatpush1.msra.mxu0 0.0
    %112 = vmatprep.subr.mxu0 0.0
    %113 = vmatpush1.msra.mxu0 0.0
    %114 = vmatprep.subr.mxu0 0.0
    %115 = vmatpush1.msra.mxu0 0.0
    %116 = vmatprep.subr.mxu0 0.0
    %117 = vmatpush1.msra.mxu0 0.0
    %118 = vmatprep.subr.mxu0 0.0
    %119 = vmatpush1.msra.mxu0 0.0
    %120 = vmatprep.subr.mxu0 0.0
    %121 = vmatpush1.msra.mxu0 0.0
    %122 = vmatprep.subr.mxu0 0.0
    %123 = vmatpush1.msra.mxu0 0.0
    %124 = vmatprep.subr.mxu0 0.0
    %125 = vmatpush1.msra.mxu0 0.0
    %126 = vmatprep.mubr.f32.mxu0 0.0
    %127 = vmatmul.mubr.f32.gmra.mrb[0].mxu0 %v48
    %v128 = vpop.f32.mrb[0].mxu0
    %v129 = vadd.f32 %v41, %v128
    %v130 = vpop.f32.mrb[0].mxu0
    %131 = vmatprep.mubr.f32.mxu0 0.0
    %132 = vmatmul.mubr.f32.gmra.mrb[0].mxu0 %v51
    %v133 = vpop.f32.mrb[0].mxu0
    %v134 = vadd.f32 %v42, %v133
    %v135 = vpop.f32.mrb[0].mxu0
    %136 = vmatprep.mubr.f32.mxu0 0.0
    %137 = vmatmul.mubr.f32.gmra.mrb[0].mxu0 %v54
    %v138 = vpop.f32.mrb[0].mxu0
    %v139 = vadd.f32 %v43, %v138
    %v140 = vpop.f32.mrb[0].mxu0
    %141 = vmatprep.mubr.f32.mxu0 0.0
    %142 = vmatmul.mubr.f32.gmra.mrb[0].mxu0 %v57
    %v143 = vpop.f32.mrb[0].mxu0
    %v144 = vadd.f32 %v44, %v143
    %v145 = vpop.f32.mrb[0].mxu0
    %146 = vmatprep.mubr.f32.mxu0 0.0
    %147 = vmatmul.mubr.f32.gmra.mrb[0].mxu0 %v60
    %v148 = vpop.f32.mrb[0].mxu0
    %v149 = vadd.f32 %v45, %v148
    %v150 = vpop.f32.mrb[0].mxu0
    %151 = vdwg.mxu0
    %v152 = vld [vmem:[%s7] sm:$0xff]
    %vm153 = vcmask 261120
    %v154 = vsel %vm153, %v129, 0.0
    %155 = vadd.xlane.f32.xlu0 %v154
    %v156 = vpop.xlane.xlu0 %155
    %v157 = vsel %vm153, %v134, 0.0
    %158 = vadd.xlane.f32.xlu0 %v157
    %v159 = vpop.xlane.xlu0 %158
    %v160 = vsel %vm153, %v139, 0.0
    %161 = vadd.xlane.f32.xlu0 %v160
    %v162 = vpop.xlane.xlu0 %161
    %v163 = vsel %vm153, %v144, 0.0
    %164 = vadd.xlane.f32.xlu0 %v163
    %v165 = vpop.xlane.xlu0 %164
    %vm166 = vcmask 254976
    %v167 = vsel %vm166, %v149, 0.0
    %168 = vadd.xlane.f32.xlu0 %v167
    %v169 = vpop.xlane.xlu0 %168
    %v170 = vrcp.pop 32.0
    %v171 = vmul.f32 %v156, %v170
    %v172 = vmul.f32 %v159, %v170
    %v173 = vmul.f32 %v162, %v170
    %v174 = vmul.f32 %v165, %v170
    %v175 = vmul.f32 %v169, %v170
    %v176 = vsub.f32 %v129, %v171
    %v177 = vsub.f32 %v134, %v172
    %v178 = vsub.f32 %v139, %v173
    %v179 = vsub.f32 %v144, %v174
    %v180 = vsub.f32 %v149, %v175
    %v181 = vmul.f32 %v176, %v176
    %v182 = vmul.f32 %v177, %v177
    %v183 = vmul.f32 %v178, %v178
    %v184 = vmul.f32 %v179, %v179
    %v185 = vmul.f32 %v180, %v180
    %v186 = vsel %vm153, %v181, 0.0
    %187 = vadd.xlane.f32.xlu0 %v186
    %v188 = vpop.xlane.xlu0 %187
    %v189 = vsel %vm153, %v182, 0.0
    %190 = vadd.xlane.f32.xlu0 %v189
    %v191 = vpop.xlane.xlu0 %190
    %v192 = vsel %vm153, %v183, 0.0
    %193 = vadd.xlane.f32.xlu0 %v192
    %v194 = vpop.xlane.xlu0 %193
    %v195 = vsel %vm153, %v184, 0.0
    %196 = vadd.xlane.f32.xlu0 %v195
    %v197 = vpop.xlane.xlu0 %196
    %v198 = vsel %vm166, %v185, 0.0
    %199 = vadd.xlane.f32.xlu0 %v198
    %v200 = vpop.xlane.xlu0 %199
    %v201 = vmul.f32 %v188, %v170
    %v202 = vmul.f32 %v191, %v170
    %v203 = vmul.f32 %v194, %v170
    %v204 = vmul.f32 %v197, %v170
    %v205 = vmul.f32 %v200, %v170
    %v206 = vadd.f32 %v201, 1e-05
    %v207 = vadd.f32 %v202, 1e-05
    %v208 = vadd.f32 %v203, 1e-05
    %v209 = vadd.f32 %v204, 1e-05
    %v210 = vadd.f32 %v205, 1e-05
    %v211 = vrsqrt.pop %v206
    %v212 = vrsqrt.pop %v207
    %v213 = vrsqrt.pop %v208
    %v214 = vrsqrt.pop %v209
    %v215 = vrsqrt.pop %v210
    %v216 = vmul.f32 %v176, %v211
    %v217 = vmul.f32 %v177, %v212
    %v218 = vmul.f32 %v178, %v213
    %v219 = vmul.f32 %v179, %v214
    %v220 = vmul.f32 %v180, %v215
    %v221 = vlaneseq
    %v222 = vshrl.u32 %v221, 7
    %v223 = vsub.s32 0, %v222
    %v224 = vrot.slane %v152, %v223
    %v225 = vmul.f32 %v216, %v224
    %v226 = vmul.f32 %v217, %v224
    %v227 = vmul.f32 %v218, %v224
    %v228 = vmul.f32 %v219, %v224
    %v229 = vmul.f32 %v220, %v224
    %v230 = vlaneseq
    %v231 = vshrl.u32 %v230, 7
    %v232 = vsub.s32 1, %v231
    %v233 = vrot.slane %v152, %v232
    %v234 = vadd.f32 %v225, %v233
    %v235 = vadd.f32 %v226, %v233
    %v236 = vadd.f32 %v227, %v233
    %v237 = vadd.f32 %v228, %v233
    %v238 = vadd.f32 %v229, %v233
    %v239 = vld [vmem:[%s3] sm:$0xff]
    %v240 = vld [vmem:[%s3 + $0x8] sm:$0xff]
    %v241 = vld [vmem:[%s3 + $0x10] sm:$0xff]
    %v242 = vld [vmem:[%s3 + $0x18] sm:$0xff]
    %v243 = vlaneseq
    %v244 = vshrl.u32 %v243, 7
    %v245 = vsub.s32 4, %v244
    %v246 = vrot.slane %v152, %v245
    %v248 = vsel %vm153, %v234, 0
    %v251 = vsel %vm153, %v235, 0
    %v254 = vsel %vm153, %v236, 0
    %v257 = vsel %vm153, %v237, 0
    %v260 = vsel %vm153, %v238, 0
    %262 = vmatprep.subr.mxu0 0.0
    %263 = vmatpush1.msra.mxu0 %v239
    %264 = vmatprep.subr.mxu0 0.0
    %265 = vmatpush1.msra.mxu0 %v240
    %266 = vmatprep.subr.mxu0 0.0
    %267 = vmatpush1.msra.mxu0 %v241
    %268 = vmatprep.subr.mxu0 0.0
    %269 = vmatpush1.msra.mxu0 %v242
    %270 = vmatprep.subr.mxu0 0.0
    %271 = vmatpush1.msra.mxu0 0.0
    %272 = vmatprep.subr.mxu0 0.0
    %273 = vmatpush1.msra.mxu0 0.0
    %274 = vmatprep.subr.mxu0 0.0
    %275 = vmatpush1.msra.mxu0 0.0
    %276 = vmatprep.subr.mxu0 0.0
    %277 = vmatpush1.msra.mxu0 0.0
    %278 = vmatprep.subr.mxu0 0.0
    %279 = vmatpush1.msra.mxu0 0.0
    %280 = vmatprep.subr.mxu0 0.0
    %281 = vmatpush1.msra.mxu0 0.0
    %282 = vmatprep.subr.mxu0 0.0
    %283 = vmatpush1.msra.mxu0 0.0
    %284 = vmatprep.subr.mxu0 0.0
    %285 = vmatpush1.msra.mxu0 0.0
    %286 = vmatprep.subr.mxu0 0.0
    %287 = vmatpush1.msra.mxu0 0.0
    %288 = vmatprep.subr.mxu0 0.0
    %289 = vmatpush1.msra.mxu0 0.0
    %290 = vmatprep.subr.mxu0 0.0
    %291 = vmatpush1.msra.mxu0 0.0
    %292 = vmatprep.subr.mxu0 0.0
    %293 = vmatpush1.msra.mxu0 0.0
    %294 = vmatprep.subr.mxu0 0.0
    %295 = vmatpush1.msra.mxu0 0.0
    %296 = vmatprep.subr.mxu0 0.0
    %297 = vmatpush1.msra.mxu0 0.0
    %298 = vmatprep.subr.mxu0 0.0
    %299 = vmatpush1.msra.mxu0 0.0
    %300 = vmatprep.subr.mxu0 0.0
    %301 = vmatpush1.msra.mxu0 0.0
    %302 = vmatprep.subr.mxu0 0.0
    %303 = vmatpush1.msra.mxu0 0.0
    %304 = vmatprep.subr.mxu0 0.0
    %305 = vmatpush1.msra.mxu0 0.0
    %306 = vmatprep.subr.mxu0 0.0
    %307 = vmatpush1.msra.mxu0 0.0
    %308 = vmatprep.subr.mxu0 0.0
    %309 = vmatpush1.msra.mxu0 0.0
    %310 = vmatprep.subr.mxu0 0.0
    %311 = vmatpush1.msra.mxu0 0.0
    %312 = vmatprep.subr.mxu0 0.0
    %313 = vmatpush1.msra.mxu0 0.0
    %314 = vmatprep.subr.mxu0 0.0
    %315 = vmatpush1.msra.mxu0 0.0
    %316 = vmatprep.subr.mxu0 0.0
    %317 = vmatpush1.msra.mxu0 0.0
    %318 = vmatprep.subr.mxu0 0.0
    %319 = vmatpush1.msra.mxu0 0.0
    %320 = vmatprep.subr.mxu0 0.0
    %321 = vmatpush1.msra.mxu0 0.0
    %322 = vmatprep.subr.mxu0 0.0
    %323 = vmatpush1.msra.mxu0 0.0
    %324 = vmatprep.subr.mxu0 0.0
    %325 = vmatpush1.msra.mxu0 0.0
    %326 = vmatprep.mubr.f32.mxu0 0.0
    %327 = vmatmul.mubr.f32.gmra.mrb[0].mxu0 %v248
    %v328 = vpop.f32.mrb[0].mxu0
    %v329 = vadd.f32 %v246, %v328
    %v330 = vpop.f32.mrb[0].mxu0
    %331 = vmatprep.mubr.f32.mxu0 0.0
    %332 = vmatmul.mubr.f32.gmra.mrb[0].mxu0 %v251
    %v333 = vpop.f32.mrb[0].mxu0
    %v334 = vadd.f32 %v246, %v333
    %v335 = vpop.f32.mrb[0].mxu0
    %336 = vmatprep.mubr.f32.mxu0 0.0
    %337 = vmatmul.mubr.f32.gmra.mrb[0].mxu0 %v254
    %v338 = vpop.f32.mrb[0].mxu0
    %v339 = vadd.f32 %v246, %v338
    %v340 = vpop.f32.mrb[0].mxu0
    %341 = vmatprep.mubr.f32.mxu0 0.0
    %342 = vmatmul.mubr.f32.gmra.mrb[0].mxu0 %v257
    %v343 = vpop.f32.mrb[0].mxu0
    %v344 = vadd.f32 %v246, %v343
    %v345 = vpop.f32.mrb[0].mxu0
    %346 = vmatprep.mubr.f32.mxu0 0.0
    %347 = vmatmul.mubr.f32.gmra.mrb[0].mxu0 %v260
    %v348 = vpop.f32.mrb[0].mxu0
    %v349 = vadd.f32 %v246, %v348
    %v350 = vpop.f32.mrb[0].mxu0
    %351 = vdwg.mxu0
    %355 = vrot.lane.b32.xlu0 %v329, 96
    %v356 = vpop.permute.xlu0 %355
    %357 = vrot.lane.b32.xlu0 %v334, 96
    %v358 = vpop.permute.xlu0 %357
    %359 = vrot.lane.b32.xlu0 %v339, 96
    %v360 = vpop.permute.xlu0 %359
    %vm361 = vcmask 64512
    %v362 = vsel %vm361, %v329, 0
    %v364 = vsel %vm361, %v334, 0
    %v366 = vsel %vm361, %v339, 0
    %v368 = vsel %vm361, %v356, 0
    %v370 = vsel %vm361, %v358, 0
    %v372 = vsel %vm361, %v360, 0
    %374 = vmatprep.subr.mxu0 0.0
    %375 = vmatpush1.xpose.msra.mxu0 %v368
    %376 = vmatprep.subr.mxu0 0.0
    %377 = vmatpush1.xpose.msra.mxu0 %v370
    %378 = vmatprep.subr.mxu0 0.0
    %379 = vmatpush1.xpose.msra.mxu0 %v372
    %380 = vmatprep.subr.mxu0 0.0
    %381 = vmatpush1.xpose.msra.mxu0 0.0
    %382 = vmatprep.subr.mxu0 0.0
    %383 = vmatpush1.xpose.msra.mxu0 0.0
    %384 = vmatprep.subr.mxu0 0.0
    %385 = vmatpush1.xpose.msra.mxu0 0.0
    %386 = vmatprep.subr.mxu0 0.0
    %387 = vmatpush1.xpose.msra.mxu0 0.0
    %388 = vmatprep.subr.mxu0 0.0
    %389 = vmatpush1.xpose.msra.mxu0 0.0
    %390 = vmatprep.subr.mxu0 0.0
    %391 = vmatpush1.xpose.msra.mxu0 0.0
    %392 = vmatprep.subr.mxu0 0.0
    %393 = vmatpush1.xpose.msra.mxu0 0.0
    %394 = vmatprep.subr.mxu0 0.0
    %395 = vmatpush1.xpose.msra.mxu0 0.0
    %396 = vmatprep.subr.mxu0 0.0
    %397 = vmatpush1.xpose.msra.mxu0 0.0
    %398 = vmatprep.subr.mxu0 0.0
    %399 = vmatpush1.xpose.msra.mxu0 0.0
    %400 = vmatprep.subr.mxu0 0.0
    %401 = vmatpush1.xpose.msra.mxu0 0.0
    %402 = vmatprep.subr.mxu0 0.0
    %403 = vmatpush1.xpose.msra.mxu0 0.0
    %404 = vmatprep.subr.mxu0 0.0
    %405 = vmatpush1.xpose.msra.mxu0 0.0
    %406 = vmatprep.subr.mxu0 0.0
    %407 = vmatpush1.xpose.msra.mxu0 0.0
    %408 = vmatprep.subr.mxu0 0.0
    %409 = vmatpush1.xpose.msra.mxu0 0.0
    %410 = vmatprep.subr.mxu0 0.0
    %411 = vmatpush1.xpose.msra.mxu0 0.0
    %412 = vmatprep.subr.mxu0 0.0
    %413 = vmatpush1.xpose.msra.mxu0 0.0
    %414 = vmatprep.subr.mxu0 0.0
    %415 = vmatpush1.xpose.msra.mxu0 0.0
    %416 = vmatprep.subr.mxu0 0.0
    %417 = vmatpush1.xpose.msra.mxu0 0.0
    %418 = vmatprep.subr.mxu0 0.0
    %419 = vmatpush1.xpose.msra.mxu0 0.0
    %420 = vmatprep.subr.mxu0 0.0
    %421 = vmatpush1.xpose.msra.mxu0 0.0
    %422 = vmatprep.subr.mxu0 0.0
    %423 = vmatpush1.xpose.msra.mxu0 0.0
    %424 = vmatprep.subr.mxu0 0.0
    %425 = vmatpush1.xpose.msra.mxu0 0.0
    %426 = vmatprep.subr.mxu0 0.0
    %427 = vmatpush1.xpose.msra.mxu0 0.0
    %428 = vmatprep.subr.mxu0 0.0
    %429 = vmatpush1.xpose.msra.mxu0 0.0
    %430 = vmatprep.subr.mxu0 0.0
    %431 = vmatpush1.xpose.msra.mxu0 0.0
    %432 = vmatprep.subr.mxu0 0.0
    %433 = vmatpush1.xpose.msra.mxu0 0.0
    %434 = vmatprep.subr.mxu0 0.0
    %435 = vmatpush1.xpose.msra.mxu0 0.0
    %436 = vmatprep.subr.mxu0 0.0
    %437 = vmatpush1.xpose.msra.mxu0 0.0
    %438 = vmatprep.mubr.f32.mxu0 0.0
    %439 = vmatmul.mubr.f32.gmra.mrb[0].mxu0 %v362
    %v440 = vpop.f32.mrb[0].mxu0
    %v441 = vadd.f32 0.0, %v440
    %v442 = vpop.f32.mrb[0].mxu0
    %443 = vmatprep.mubr.f32.mxu0 0.0
    %444 = vmatmul.mubr.f32.gmra.mrb[0].mxu0 %v364
    %v445 = vpop.f32.mrb[0].mxu0
    %v446 = vadd.f32 0.0, %v445
    %v447 = vpop.f32.mrb[0].mxu0
    %448 = vmatprep.mubr.f32.mxu0 0.0
    %449 = vmatmul.mubr.f32.gmra.mrb[0].mxu0 %v366
    %v450 = vpop.f32.mrb[0].mxu0
    %v451 = vadd.f32 0.0, %v450
    %v452 = vpop.f32.mrb[0].mxu0
    %453 = vdwg.mxu0
    %v454 = vmul.f32 %v441, 0.35355338
    %v455 = vmul.f32 %v446, 0.35355338
    %v456 = vmul.f32 %v451, 0.35355338
    %vm457 = vcmask 138240
    %v458 = vsel %vm457, %v454, -inf
    %459 = vmax.xlane.f32.xlu0 %v458
    %v460 = vpop.xlane.xlu0 %459
    %v461 = vsel %vm457, %v455, -inf
    %462 = vmax.xlane.f32.xlu0 %v461
    %v463 = vpop.xlane.xlu0 %462
    %vm464 = vcmask 131072
    %v465 = vsel %vm464, %v456, -inf
    %466 = vmax.xlane.f32.xlu0 %v465
    %v467 = vpop.xlane.xlu0 %466
    %v468 = vsub.f32 %v454, %v460
    %v469 = vsub.f32 %v455, %v463
    %v470 = vsub.f32 %v456, %v467
    %v471 = vmul.f32 %v468, 1.442695
    %v472 = vpow.pop %v471
    %v473 = vmul.f32 %v469, 1.442695
    %v474 = vpow.pop %v473
    %v475 = vmul.f32 %v470, 1.442695
    %v476 = vpow.pop %v475
    %v477 = vsel %vm457, %v472, 0.0
    %478 = vadd.xlane.f32.xlu0 %v477
    %v479 = vpop.xlane.xlu0 %478
    %v480 = vsel %vm457, %v474, 0.0
    %481 = vadd.xlane.f32.xlu0 %v480
    %v482 = vpop.xlane.xlu0 %481
    %v483 = vsel %vm464, %v476, 0.0
    %484 = vadd.xlane.f32.xlu0 %v483
    %v485 = vpop.xlane.xlu0 %484
    %v486 = vrcp.pop %v479
    %v487 = vrcp.pop %v482
    %v488 = vrcp.pop %v485
    %v489 = vmul.f32 %v472, %v486
    %v490 = vmul.f32 %v474, %v487
    %v491 = vmul.f32 %v476, %v488
    %492 = vrot.lane.b32.xlu0 %v329, 64
    %v493 = vpop.permute.xlu0 %492
    %494 = vrot.lane.b32.xlu0 %v334, 64
    %v495 = vpop.permute.xlu0 %494
    %496 = vrot.lane.b32.xlu0 %v339, 64
    %v497 = vpop.permute.xlu0 %496
    %v501 = vsel %vm457, %v489, 0
    %v504 = vsel %vm457, %v490, 0
    %v507 = vsel %vm457, %v491, 0
    %vm509 = vcmask 1040384
    %v510 = vsel %vm509, %v497, 0
    %512 = vmatprep.subr.mxu0 0.0
    %513 = vmatpush1.msra.mxu0 %v493
    %514 = vmatprep.subr.mxu0 0.0
    %515 = vmatpush1.msra.mxu0 %v495
    %516 = vmatprep.subr.mxu0 0.0
    %517 = vmatpush1.msra.mxu0 %v510
    %518 = vmatprep.subr.mxu0 0.0
    %519 = vmatpush1.msra.mxu0 0.0
    %520 = vmatprep.subr.mxu0 0.0
    %521 = vmatpush1.msra.mxu0 0.0
    %522 = vmatprep.subr.mxu0 0.0
    %523 = vmatpush1.msra.mxu0 0.0
    %524 = vmatprep.subr.mxu0 0.0
    %525 = vmatpush1.msra.mxu0 0.0
    %526 = vmatprep.subr.mxu0 0.0
    %527 = vmatpush1.msra.mxu0 0.0
    %528 = vmatprep.subr.mxu0 0.0
    %529 = vmatpush1.msra.mxu0 0.0
    %530 = vmatprep.subr.mxu0 0.0
    %531 = vmatpush1.msra.mxu0 0.0
    %532 = vmatprep.subr.mxu0 0.0
    %533 = vmatpush1.msra.mxu0 0.0
    %534 = vmatprep.subr.mxu0 0.0
    %535 = vmatpush1.msra.mxu0 0.0
    %536 = vmatprep.subr.mxu0 0.0
    %537 = vmatpush1.msra.mxu0 0.0
    %538 = vmatprep.subr.mxu0 0.0
    %539 = vmatpush1.msra.mxu0 0.0
    %540 = vmatprep.subr.mxu0 0.0
    %541 = vmatpush1.msra.mxu0 0.0
    %542 = vmatprep.subr.mxu0 0.0
    %543 = vmatpush1.msra.mxu0 0.0
    %544 = vmatprep.subr.mxu0 0.0
    %545 = vmatpush1.msra.mxu0 0.0
    %546 = vmatprep.subr.mxu0 0.0
    %547 = vmatpush1.msra.mxu0 0.0
    %548 = vmatprep.subr.mxu0 0.0
    %549 = vmatpush1.msra.mxu0 0.0
    %550 = vmatprep.subr.mxu0 0.0
    %551 = vmatpush1.msra.mxu0 0.0
    %552 = vmatprep.subr.mxu0 0.0
    %553 = vmatpush1.msra.mxu0 0.0
    %554 = vmatprep.subr.mxu0 0.0
    %555 = vmatpush1.msra.mxu0 0.0
    %556 = vmatprep.subr.mxu0 0.0
    %557 = vmatpush1.msra.mxu0 0.0
    %558 = vmatprep.subr.mxu0 0.0
    %559 = vmatpush1.msra.mxu0 0.0
    %560 = vmatprep.subr.mxu0 0.0
    %561 = vmatpush1.msra.mxu0 0.0
    %562 = vmatprep.subr.mxu0 0.0
    %563 = vmatpush1.msra.mxu0 0.0
    %564 = vmatprep.subr.mxu0 0.0
    %565 = vmatpush1.msra.mxu0 0.0
    %566 = vmatprep.subr.mxu0 0.0
    %567 = vmatpush1.msra.mxu0 0.0
    %568 = vmatprep.subr.mxu0 0.0
    %569 = vmatpush1.msra.mxu0 0.0
    %570 = vmatprep.subr.mxu0 0.0
    %571 = vmatpush1.msra.mxu0 0.0
    %572 = vmatprep.subr.mxu0 0.0
    %573 = vmatpush1.msra.mxu0 0.0
    %574 = vmatprep.subr.mxu0 0.0
    %575 = vmatpush1.msra.mxu0 0.0
    %576 = vmatprep.mubr.f32.mxu0 0.0
    %577 = vmatmul.mubr.f32.gmra.mrb[0].mxu0 %v501
    %v578 = vpop.f32.mrb[0].mxu0
    %v579 = vadd.f32 0.0, %v578
    %v580 = vpop.f32.mrb[0].mxu0
    %581 = vmatprep.mubr.f32.mxu0 0.0
    %582 = vmatmul.mubr.f32.gmra.mrb[0].mxu0 %v504
    %v583 = vpop.f32.mrb[0].mxu0
    %v584 = vadd.f32 0.0, %v583
    %v585 = vpop.f32.mrb[0].mxu0
    %586 = vmatprep.mubr.f32.mxu0 0.0
    %587 = vmatmul.mubr.f32.gmra.mrb[0].mxu0 %v507
    %v588 = vpop.f32.mrb[0].mxu0
    %v589 = vadd.f32 0.0, %v588
    %v590 = vpop.f32.mrb[0].mxu0
    %591 = vdwg.mxu0
    %592 = vrot.lane.b32.xlu0 %v329, 120
    %v593 = vpop.permute.xlu0 %592
    %594 = vrot.lane.b32.xlu0 %v334, 120
    %v595 = vpop.permute.xlu0 %594
    %596 = vrot.lane.b32.xlu0 %v339, 120
    %v597 = vpop.permute.xlu0 %596
    %598 = vrot.lane.b32.xlu0 %v329, 88
    %v599 = vpop.permute.xlu0 %598
    %600 = vrot.lane.b32.xlu0 %v334, 88
    %v601 = vpop.permute.xlu0 %600
    %602 = vrot.lane.b32.xlu0 %v339, 88
    %v603 = vpop.permute.xlu0 %602
    %v604 = vsel %vm361, %v593, 0
    %v606 = vsel %vm361, %v595, 0
    %v608 = vsel %vm361, %v597, 0
    %v610 = vsel %vm361, %v599, 0
    %v612 = vsel %vm361, %v601, 0
    %v614 = vsel %vm361, %v603, 0
    %616 = vmatprep.subr.mxu0 0.0
    %617 = vmatpush1.xpose.msra.mxu0 %v610
    %618 = vmatprep.subr.mxu0 0.0
    %619 = vmatpush1.xpose.msra.mxu0 %v612
    %620 = vmatprep.subr.mxu0 0.0
    %621 = vmatpush1.xpose.msra.mxu0 %v614
    %622 = vmatprep.subr.mxu0 0.0
    %623 = vmatpush1.xpose.msra.mxu0 0.0
    %624 = vmatprep.subr.mxu0 0.0
    %625 = vmatpush1.xpose.msra.mxu0 0.0
    %626 = vmatprep.subr.mxu0 0.0
    %627 = vmatpush1.xpose.msra.mxu0 0.0
    %628 = vmatprep.subr.mxu0 0.0
    %629 = vmatpush1.xpose.msra.mxu0 0.0
    %630 = vmatprep.subr.mxu0 0.0
    %631 = vmatpush1.xpose.msra.mxu0 0.0
    %632 = vmatprep.subr.mxu0 0.0
    %633 = vmatpush1.xpose.msra.mxu0 0.0
    %634 = vmatprep.subr.mxu0 0.0
    %635 = vmatpush1.xpose.msra.mxu0 0.0
    %636 = vmatprep.subr.mxu0 0.0
    %637 = vmatpush1.xpose.msra.mxu0 0.0
    %638 = vmatprep.subr.mxu0 0.0
    %639 = vmatpush1.xpose.msra.mxu0 0.0
    %640 = vmatprep.subr.mxu0 0.0
    %641 = vmatpush1.xpose.msra.mxu0 0.0
    %642 = vmatprep.subr.mxu0 0.0
    %643 = vmatpush1.xpose.msra.mxu0 0.0
    %644 = vmatprep.subr.mxu0 0.0
    %645 = vmatpush1.xpose.msra.mxu0 0.0
    %646 = vmatprep.subr.mxu0 0.0
    %647 = vmatpush1.xpose.msra.mxu0 0.0
    %648 = vmatprep.subr.mxu0 0.0
    %649 = vmatpush1.xpose.msra.mxu0 0.0
    %650 = vmatprep.subr.mxu0 0.0
    %651 = vmatpush1.xpose.msra.mxu0 0.0
    %652 = vmatprep.subr.mxu0 0.0
    %653 = vmatpush1.xpose.msra.mxu0 0.0
    %654 = vmatprep.subr.mxu0 0.0
    %655 = vmatpush1.xpose.msra.mxu0 0.0
    %656 = vmatprep.subr.mxu0 0.0
    %657 = vmatpush1.xpose.msra.mxu0 0.0
    %658 = vmatprep.subr.mxu0 0.0
    %659 = vmatpush1.xpose.msra.mxu0 0.0
    %660 = vmatprep.subr.mxu0 0.0
    %661 = vmatpush1.xpose.msra.mxu0 0.0
    %662 = vmatprep.subr.mxu0 0.0
    %663 = vmatpush1.xpose.msra.mxu0 0.0
    %664 = vmatprep.subr.mxu0 0.0
    %665 = vmatpush1.xpose.msra.mxu0 0.0
    %666 = vmatprep.subr.mxu0 0.0
    %667 = vmatpush1.xpose.msra.mxu0 0.0
    %668 = vmatprep.subr.mxu0 0.0
    %669 = vmatpush1.xpose.msra.mxu0 0.0
    %670 = vmatprep.subr.mxu0 0.0
    %671 = vmatpush1.xpose.msra.mxu0 0.0
    %672 = vmatprep.subr.mxu0 0.0
    %673 = vmatpush1.xpose.msra.mxu0 0.0
    %674 = vmatprep.subr.mxu0 0.0
    %675 = vmatpush1.xpose.msra.mxu0 0.0
    %676 = vmatprep.subr.mxu0 0.0
    %677 = vmatpush1.xpose.msra.mxu0 0.0
    %678 = vmatprep.subr.mxu0 0.0
    %679 = vmatpush1.xpose.msra.mxu0 0.0
    %680 = vmatprep.mubr.f32.mxu0 0.0
    %681 = vmatmul.mubr.f32.gmra.mrb[0].mxu0 %v604
    %v682 = vpop.f32.mrb[0].mxu0
    %v683 = vadd.f32 0.0, %v682
    %v684 = vpop.f32.mrb[0].mxu0
    %685 = vmatprep.mubr.f32.mxu0 0.0
    %686 = vmatmul.mubr.f32.gmra.mrb[0].mxu0 %v606
    %v687 = vpop.f32.mrb[0].mxu0
    %v688 = vadd.f32 0.0, %v687
    %v689 = vpop.f32.mrb[0].mxu0
    %690 = vmatprep.mubr.f32.mxu0 0.0
    %691 = vmatmul.mubr.f32.gmra.mrb[0].mxu0 %v608
    %v692 = vpop.f32.mrb[0].mxu0
    %v693 = vadd.f32 0.0, %v692
    %v694 = vpop.f32.mrb[0].mxu0
    %695 = vdwg.mxu0
    %v696 = vmul.f32 %v683, 0.35355338
    %v697 = vmul.f32 %v688, 0.35355338
    %v698 = vmul.f32 %v693, 0.35355338
    %v699 = vsel %vm457, %v696, -inf
    %700 = vmax.xlane.f32.xlu0 %v699
    %v701 = vpop.xlane.xlu0 %700
    %v702 = vsel %vm457, %v697, -inf
    %703 = vmax.xlane.f32.xlu0 %v702
    %v704 = vpop.xlane.xlu0 %703
    %v705 = vsel %vm464, %v698, -inf
    %706 = vmax.xlane.f32.xlu0 %v705
    %v707 = vpop.xlane.xlu0 %706
    %v708 = vsub.f32 %v696, %v701
    %v709 = vsub.f32 %v697, %v704
    %v710 = vsub.f32 %v698, %v707
    %v711 = vmul.f32 %v708, 1.442695
    %v712 = vpow.pop %v711
    %v713 = vmul.f32 %v709, 1.442695
    %v714 = vpow.pop %v713
    %v715 = vmul.f32 %v710, 1.442695
    %v716 = vpow.pop %v715
    %v717 = vsel %vm457, %v712, 0.0
    %718 = vadd.xlane.f32.xlu0 %v717
    %v719 = vpop.xlane.xlu0 %718
    %v720 = vsel %vm457, %v714, 0.0
    %721 = vadd.xlane.f32.xlu0 %v720
    %v722 = vpop.xlane.xlu0 %721
    %v723 = vsel %vm464, %v716, 0.0
    %724 = vadd.xlane.f32.xlu0 %v723
    %v725 = vpop.xlane.xlu0 %724
    %v726 = vrcp.pop %v719
    %v727 = vrcp.pop %v722
    %v728 = vrcp.pop %v725
    %v729 = vmul.f32 %v712, %v726
    %v730 = vmul.f32 %v714, %v727
    %v731 = vmul.f32 %v716, %v728
    %732 = vrot.lane.b32.xlu0 %v329, 56
    %v733 = vpop.permute.xlu0 %732
    %734 = vrot.lane.b32.xlu0 %v334, 56
    %v735 = vpop.permute.xlu0 %734
    %736 = vrot.lane.b32.xlu0 %v339, 56
    %v737 = vpop.permute.xlu0 %736
    %v741 = vsel %vm457, %v729, 0
    %v744 = vsel %vm457, %v730, 0
    %v747 = vsel %vm457, %v731, 0
    %v749 = vsel %vm509, %v737, 0
    %751 = vmatprep.subr.mxu0 0.0
    %752 = vmatpush1.msra.mxu0 %v733
    %753 = vmatprep.subr.mxu0 0.0
    %754 = vmatpush1.msra.mxu0 %v735
    %755 = vmatprep.subr.mxu0 0.0
    %756 = vmatpush1.msra.mxu0 %v749
    %757 = vmatprep.subr.mxu0 0.0
    %758 = vmatpush1.msra.mxu0 0.0
    %759 = vmatprep.subr.mxu0 0.0
    %760 = vmatpush1.msra.mxu0 0.0
    %761 = vmatprep.subr.mxu0 0.0
    %762 = vmatpush1.msra.mxu0 0.0
    %763 = vmatprep.subr.mxu0 0.0
    %764 = vmatpush1.msra.mxu0 0.0
    %765 = vmatprep.subr.mxu0 0.0
    %766 = vmatpush1.msra.mxu0 0.0
    %767 = vmatprep.subr.mxu0 0.0
    %768 = vmatpush1.msra.mxu0 0.0
    %769 = vmatprep.subr.mxu0 0.0
    %770 = vmatpush1.msra.mxu0 0.0
    %771 = vmatprep.subr.mxu0 0.0
    %772 = vmatpush1.msra.mxu0 0.0
    %773 = vmatprep.subr.mxu0 0.0
    %774 = vmatpush1.msra.mxu0 0.0
    %775 = vmatprep.subr.mxu0 0.0
    %776 = vmatpush1.msra.mxu0 0.0
    %777 = vmatprep.subr.mxu0 0.0
    %778 = vmatpush1.msra.mxu0 0.0
    %779 = vmatprep.subr.mxu0 0.0
    %780 = vmatpush1.msra.mxu0 0.0
    %781 = vmatprep.subr.mxu0 0.0
    %782 = vmatpush1.msra.mxu0 0.0
    %783 = vmatprep.subr.mxu0 0.0
    %784 = vmatpush1.msra.mxu0 0.0
    %785 = vmatprep.subr.mxu0 0.0
    %786 = vmatpush1.msra.mxu0 0.0
    %787 = vmatprep.subr.mxu0 0.0
    %788 = vmatpush1.msra.mxu0 0.0
    %789 = vmatprep.subr.mxu0 0.0
    %790 = vmatpush1.msra.mxu0 0.0
    %791 = vmatprep.subr.mxu0 0.0
    %792 = vmatpush1.msra.mxu0 0.0
    %793 = vmatprep.subr.mxu0 0.0
    %794 = vmatpush1.msra.mxu0 0.0
    %795 = vmatprep.subr.mxu0 0.0
    %796 = vmatpush1.msra.mxu0 0.0
    %797 = vmatprep.subr.mxu0 0.0
    %798 = vmatpush1.msra.mxu0 0.0
    %799 = vmatprep.subr.mxu0 0.0
    %800 = vmatpush1.msra.mxu0 0.0
    %801 = vmatprep.subr.mxu0 0.0
    %802 = vmatpush1.msra.mxu0 0.0
    %803 = vmatprep.subr.mxu0 0.0
    %804 = vmatpush1.msra.mxu0 0.0
    %805 = vmatprep.subr.mxu0 0.0
    %806 = vmatpush1.msra.mxu0 0.0
    %807 = vmatprep.subr.mxu0 0.0
    %808 = vmatpush1.msra.mxu0 0.0
    %809 = vmatprep.subr.mxu0 0.0
    %810 = vmatpush1.msra.mxu0 0.0
    %811 = vmatprep.subr.mxu0 0.0
    %812 = vmatpush1.msra.mxu0 0.0
    %813 = vmatprep.subr.mxu0 0.0
    %814 = vmatpush1.msra.mxu0 0.0
    %815 = vmatprep.mubr.f32.mxu0 0.0
    %816 = vmatmul.mubr.f32.gmra.mrb[0].mxu0 %v741
    %v817 = vpop.f32.mrb[0].mxu0
    %v818 = vadd.f32 0.0, %v817
    %v819 = vpop.f32.mrb[0].mxu0
    %820 = vmatprep.mubr.f32.mxu0 0.0
    %821 = vmatmul.mubr.f32.gmra.mrb[0].mxu0 %v744
    %v822 = vpop.f32.mrb[0].mxu0
    %v823 = vadd.f32 0.0, %v822
    %v824 = vpop.f32.mrb[0].mxu0
    %825 = vmatprep.mubr.f32.mxu0 0.0
    %826 = vmatmul.mubr.f32.gmra.mrb[0].mxu0 %v747
    %v827 = vpop.f32.mrb[0].mxu0
    %v828 = vadd.f32 0.0, %v827
    %v829 = vpop.f32.mrb[0].mxu0
    %830 = vdwg.mxu0
    %831 = vrot.lane.b32.xlu0 %v329, 112
    %v832 = vpop.permute.xlu0 %831
    %833 = vrot.lane.b32.xlu0 %v334, 112
    %v834 = vpop.permute.xlu0 %833
    %835 = vrot.lane.b32.xlu0 %v339, 112
    %v836 = vpop.permute.xlu0 %835
    %837 = vrot.lane.b32.xlu0 %v329, 80
    %v838 = vpop.permute.xlu0 %837
    %839 = vrot.lane.b32.xlu0 %v334, 80
    %v840 = vpop.permute.xlu0 %839
    %841 = vrot.lane.b32.xlu0 %v339, 80
    %v842 = vpop.permute.xlu0 %841
    %v843 = vsel %vm361, %v832, 0
    %v845 = vsel %vm361, %v834, 0
    %v847 = vsel %vm361, %v836, 0
    %v849 = vsel %vm361, %v838, 0
    %v851 = vsel %vm361, %v840, 0
    %v853 = vsel %vm361, %v842, 0
    %855 = vmatprep.subr.mxu0 0.0
    %856 = vmatpush1.xpose.msra.mxu0 %v849
    %857 = vmatprep.subr.mxu0 0.0
    %858 = vmatpush1.xpose.msra.mxu0 %v851
    %859 = vmatprep.subr.mxu0 0.0
    %860 = vmatpush1.xpose.msra.mxu0 %v853
    %861 = vmatprep.subr.mxu0 0.0
    %862 = vmatpush1.xpose.msra.mxu0 0.0
    %863 = vmatprep.subr.mxu0 0.0
    %864 = vmatpush1.xpose.msra.mxu0 0.0
    %865 = vmatprep.subr.mxu0 0.0
    %866 = vmatpush1.xpose.msra.mxu0 0.0
    %867 = vmatprep.subr.mxu0 0.0
    %868 = vmatpush1.xpose.msra.mxu0 0.0
    %869 = vmatprep.subr.mxu0 0.0
    %870 = vmatpush1.xpose.msra.mxu0 0.0
    %871 = vmatprep.subr.mxu0 0.0
    %872 = vmatpush1.xpose.msra.mxu0 0.0
    %873 = vmatprep.subr.mxu0 0.0
    %874 = vmatpush1.xpose.msra.mxu0 0.0
    %875 = vmatprep.subr.mxu0 0.0
    %876 = vmatpush1.xpose.msra.mxu0 0.0
    %877 = vmatprep.subr.mxu0 0.0
    %878 = vmatpush1.xpose.msra.mxu0 0.0
    %879 = vmatprep.subr.mxu0 0.0
    %880 = vmatpush1.xpose.msra.mxu0 0.0
    %881 = vmatprep.subr.mxu0 0.0
    %882 = vmatpush1.xpose.msra.mxu0 0.0
    %883 = vmatprep.subr.mxu0 0.0
    %884 = vmatpush1.xpose.msra.mxu0 0.0
    %885 = vmatprep.subr.mxu0 0.0
    %886 = vmatpush1.xpose.msra.mxu0 0.0
    %887 = vmatprep.subr.mxu0 0.0
    %888 = vmatpush1.xpose.msra.mxu0 0.0
    %889 = vmatprep.subr.mxu0 0.0
    %890 = vmatpush1.xpose.msra.mxu0 0.0
    %891 = vmatprep.subr.mxu0 0.0
    %892 = vmatpush1.xpose.msra.mxu0 0.0
    %893 = vmatprep.subr.mxu0 0.0
    %894 = vmatpush1.xpose.msra.mxu0 0.0
    %895 = vmatprep.subr.mxu0 0.0
    %896 = vmatpush1.xpose.msra.mxu0 0.0
    %897 = vmatprep.subr.mxu0 0.0
    %898 = vmatpush1.xpose.msra.mxu0 0.0
    %899 = vmatprep.subr.mxu0 0.0
    %900 = vmatpush1.xpose.msra.mxu0 0.0
    %901 = vmatprep.subr.mxu0 0.0
    %902 = vmatpush1.xpose.msra.mxu0 0.0
    %903 = vmatprep.subr.mxu0 0.0
    %904 = vmatpush1.xpose.msra.mxu0 0.0
    %905 = vmatprep.subr.mxu0 0.0
    %906 = vmatpush1.xpose.msra.mxu0 0.0
    %907 = vmatprep.subr.mxu0 0.0
    %908 = vmatpush1.xpose.msra.mxu0 0.0
    %909 = vmatprep.subr.mxu0 0.0
    %910 = vmatpush1.xpose.msra.mxu0 0.0
    %911 = vmatprep.subr.mxu0 0.0
    %912 = vmatpush1.xpose.msra.mxu0 0.0
    %913 = vmatprep.subr.mxu0 0.0
    %914 = vmatpush1.xpose.msra.mxu0 0.0
    %915 = vmatprep.subr.mxu0 0.0
    %916 = vmatpush1.xpose.msra.mxu0 0.0
    %917 = vmatprep.subr.mxu0 0.0
    %918 = vmatpush1.xpose.msra.mxu0 0.0
    %919 = vmatprep.mubr.f32.mxu0 0.0
    %920 = vmatmul.mubr.f32.gmra.mrb[0].mxu0 %v843
    %v921 = vpop.f32.mrb[0].mxu0
    %v922 = vadd.f32 0.0, %v921
    %v923 = vpop.f32.mrb[0].mxu0
    %924 = vmatprep.mubr.f32.mxu0 0.0
    %925 = vmatmul.mubr.f32.gmra.mrb[0].mxu0 %v845
    %v926 = vpop.f32.mrb[0].mxu0
    %v927 = vadd.f32 0.0, %v926
    %v928 = vpop.f32.mrb[0].mxu0
    %929 = vmatprep.mubr.f32.mxu0 0.0
    %930 = vmatmul.mubr.f32.gmra.mrb[0].mxu0 %v847
    %v931 = vpop.f32.mrb[0].mxu0
    %v932 = vadd.f32 0.0, %v931
    %v933 = vpop.f32.mrb[0].mxu0
    %934 = vdwg.mxu0
    %v935 = vmul.f32 %v922, 0.35355338
    %v936 = vmul.f32 %v927, 0.35355338
    %v937 = vmul.f32 %v932, 0.35355338
    %v938 = vsel %vm457, %v935, -inf
    %939 = vmax.xlane.f32.xlu0 %v938
    %v940 = vpop.xlane.xlu0 %939
    %v941 = vsel %vm457, %v936, -inf
    %942 = vmax.xlane.f32.xlu0 %v941
    %v943 = vpop.xlane.xlu0 %942
    %v944 = vsel %vm464, %v937, -inf
    %945 = vmax.xlane.f32.xlu0 %v944
    %v946 = vpop.xlane.xlu0 %945
    %v947 = vsub.f32 %v935, %v940
    %v948 = vsub.f32 %v936, %v943
    %v949 = vsub.f32 %v937, %v946
    %v950 = vmul.f32 %v947, 1.442695
    %v951 = vpow.pop %v950
    %v952 = vmul.f32 %v948, 1.442695
    %v953 = vpow.pop %v952
    %v954 = vmul.f32 %v949, 1.442695
    %v955 = vpow.pop %v954
    %v956 = vsel %vm457, %v951, 0.0
    %957 = vadd.xlane.f32.xlu0 %v956
    %v958 = vpop.xlane.xlu0 %957
    %v959 = vsel %vm457, %v953, 0.0
    %960 = vadd.xlane.f32.xlu0 %v959
    %v961 = vpop.xlane.xlu0 %960
    %v962 = vsel %vm464, %v955, 0.0
    %963 = vadd.xlane.f32.xlu0 %v962
    %v964 = vpop.xlane.xlu0 %963
    %v965 = vrcp.pop %v958
    %v966 = vrcp.pop %v961
    %v967 = vrcp.pop %v964
    %v968 = vmul.f32 %v951, %v965
    %v969 = vmul.f32 %v953, %v966
    %v970 = vmul.f32 %v955, %v967
    %971 = vrot.lane.b32.xlu0 %v329, 48
    %v972 = vpop.permute.xlu0 %971
    %973 = vrot.lane.b32.xlu0 %v334, 48
    %v974 = vpop.permute.xlu0 %973
    %975 = vrot.lane.b32.xlu0 %v339, 48
    %v976 = vpop.permute.xlu0 %975
    %v980 = vsel %vm457, %v968, 0
    %v983 = vsel %vm457, %v969, 0
    %v986 = vsel %vm457, %v970, 0
    %v988 = vsel %vm509, %v976, 0
    %990 = vmatprep.subr.mxu0 0.0
    %991 = vmatpush1.msra.mxu0 %v972
    %992 = vmatprep.subr.mxu0 0.0
    %993 = vmatpush1.msra.mxu0 %v974
    %994 = vmatprep.subr.mxu0 0.0
    %995 = vmatpush1.msra.mxu0 %v988
    %996 = vmatprep.subr.mxu0 0.0
    %997 = vmatpush1.msra.mxu0 0.0
    %998 = vmatprep.subr.mxu0 0.0
    %999 = vmatpush1.msra.mxu0 0.0
    %1000 = vmatprep.subr.mxu0 0.0
    %1001 = vmatpush1.msra.mxu0 0.0
    %1002 = vmatprep.subr.mxu0 0.0
    %1003 = vmatpush1.msra.mxu0 0.0
    %1004 = vmatprep.subr.mxu0 0.0
    %1005 = vmatpush1.msra.mxu0 0.0
    %1006 = vmatprep.subr.mxu0 0.0
    %1007 = vmatpush1.msra.mxu0 0.0
    %1008 = vmatprep.subr.mxu0 0.0
    %1009 = vmatpush1.msra.mxu0 0.0
    %1010 = vmatprep.subr.mxu0 0.0
    %1011 = vmatpush1.msra.mxu0 0.0
    %1012 = vmatprep.subr.mxu0 0.0
    %1013 = vmatpush1.msra.mxu0 0.0
    %1014 = vmatprep.subr.mxu0 0.0
    %1015 = vmatpush1.msra.mxu0 0.0
    %1016 = vmatprep.subr.mxu0 0.0
    %1017 = vmatpush1.msra.mxu0 0.0
    %1018 = vmatprep.subr.mxu0 0.0
    %1019 = vmatpush1.msra.mxu0 0.0
    %1020 = vmatprep.subr.mxu0 0.0
    %1021 = vmatpush1.msra.mxu0 0.0
    %1022 = vmatprep.subr.mxu0 0.0
    %1023 = vmatpush1.msra.mxu0 0.0
    %1024 = vmatprep.subr.mxu0 0.0
    %1025 = vmatpush1.msra.mxu0 0.0
    %1026 = vmatprep.subr.mxu0 0.0
    %1027 = vmatpush1.msra.mxu0 0.0
    %1028 = vmatprep.subr.mxu0 0.0
    %1029 = vmatpush1.msra.mxu0 0.0
    %1030 = vmatprep.subr.mxu0 0.0
    %1031 = vmatpush1.msra.mxu0 0.0
    %1032 = vmatprep.subr.mxu0 0.0
    %1033 = vmatpush1.msra.mxu0 0.0
    %1034 = vmatprep.subr.mxu0 0.0
    %1035 = vmatpush1.msra.mxu0 0.0
    %1036 = vmatprep.subr.mxu0 0.0
    %1037 = vmatpush1.msra.mxu0 0.0
    %1038 = vmatprep.subr.mxu0 0.0
    %1039 = vmatpush1.msra.mxu0 0.0
    %1040 = vmatprep.subr.mxu0 0.0
    %1041 = vmatpush1.msra.mxu0 0.0
    %1042 = vmatprep.subr.mxu0 0.0
    %1043 = vmatpush1.msra.mxu0 0.0
    %1044 = vmatprep.subr.mxu0 0.0
    %1045 = vmatpush1.msra.mxu0 0.0
    %1046 = vmatprep.subr.mxu0 0.0
    %1047 = vmatpush1.msra.mxu0 0.0
    %1048 = vmatprep.subr.mxu0 0.0
    %1049 = vmatpush1.msra.mxu0 0.0
    %1050 = vmatprep.subr.mxu0 0.0
    %1051 = vmatpush1.msra.mxu0 0.0
    %1052 = vmatprep.subr.mxu0 0.0
    %1053 = vmatpush1.msra.mxu0 0.0
    %1054 = vmatprep.mubr.f32.mxu0 0.0
    %1055 = vmatmul.mubr.f32.gmra.mrb[0].mxu0 %v980
    %v1056 = vpop.f32.mrb[0].mxu0
    %v1057 = vadd.f32 0.0, %v1056
    %v1058 = vpop.f32.mrb[0].mxu0
    %1059 = vmatprep.mubr.f32.mxu0 0.0
    %1060 = vmatmul.mubr.f32.gmra.mrb[0].mxu0 %v983
    %v1061 = vpop.f32.mrb[0].mxu0
    %v1062 = vadd.f32 0.0, %v1061
    %v1063 = vpop.f32.mrb[0].mxu0
    %1064 = vmatprep.mubr.f32.mxu0 0.0
    %1065 = vmatmul.mubr.f32.gmra.mrb[0].mxu0 %v986
    %v1066 = vpop.f32.mrb[0].mxu0
    %v1067 = vadd.f32 0.0, %v1066
    %v1068 = vpop.f32.mrb[0].mxu0
    %1069 = vdwg.mxu0
    %1070 = vrot.lane.b32.xlu0 %v329, 104
    %v1071 = vpop.permute.xlu0 %1070
    %1072 = vrot.lane.b32.xlu0 %v334, 104
    %v1073 = vpop.permute.xlu0 %1072
    %1074 = vrot.lane.b32.xlu0 %v339, 104
    %v1075 = vpop.permute.xlu0 %1074
    %1076 = vrot.lane.b32.xlu0 %v329, 72
    %v1077 = vpop.permute.xlu0 %1076
    %1078 = vrot.lane.b32.xlu0 %v334, 72
    %v1079 = vpop.permute.xlu0 %1078
    %1080 = vrot.lane.b32.xlu0 %v339, 72
    %v1081 = vpop.permute.xlu0 %1080
    %v1082 = vsel %vm361, %v1071, 0
    %v1084 = vsel %vm361, %v1073, 0
    %v1086 = vsel %vm361, %v1075, 0
    %v1088 = vsel %vm361, %v1077, 0
    %v1090 = vsel %vm361, %v1079, 0
    %v1092 = vsel %vm361, %v1081, 0
    %1094 = vmatprep.subr.mxu0 0.0
    %1095 = vmatpush1.xpose.msra.mxu0 %v1088
    %1096 = vmatprep.subr.mxu0 0.0
    %1097 = vmatpush1.xpose.msra.mxu0 %v1090
    %1098 = vmatprep.subr.mxu0 0.0
    %1099 = vmatpush1.xpose.msra.mxu0 %v1092
    %1100 = vmatprep.subr.mxu0 0.0
    %1101 = vmatpush1.xpose.msra.mxu0 0.0
    %1102 = vmatprep.subr.mxu0 0.0
    %1103 = vmatpush1.xpose.msra.mxu0 0.0
    %1104 = vmatprep.subr.mxu0 0.0
    %1105 = vmatpush1.xpose.msra.mxu0 0.0
    %1106 = vmatprep.subr.mxu0 0.0
    %1107 = vmatpush1.xpose.msra.mxu0 0.0
    %1108 = vmatprep.subr.mxu0 0.0
    %1109 = vmatpush1.xpose.msra.mxu0 0.0
    %1110 = vmatprep.subr.mxu0 0.0
    %1111 = vmatpush1.xpose.msra.mxu0 0.0
    %1112 = vmatprep.subr.mxu0 0.0
    %1113 = vmatpush1.xpose.msra.mxu0 0.0
    %1114 = vmatprep.subr.mxu0 0.0
    %1115 = vmatpush1.xpose.msra.mxu0 0.0
    %1116 = vmatprep.subr.mxu0 0.0
    %1117 = vmatpush1.xpose.msra.mxu0 0.0
    %1118 = vmatprep.subr.mxu0 0.0
    %1119 = vmatpush1.xpose.msra.mxu0 0.0
    %1120 = vmatprep.subr.mxu0 0.0
    %1121 = vmatpush1.xpose.msra.mxu0 0.0
    %1122 = vmatprep.subr.mxu0 0.0
    %1123 = vmatpush1.xpose.msra.mxu0 0.0
    %1124 = vmatprep.subr.mxu0 0.0
    %1125 = vmatpush1.xpose.msra.mxu0 0.0
    %1126 = vmatprep.subr.mxu0 0.0
    %1127 = vmatpush1.xpose.msra.mxu0 0.0
    %1128 = vmatprep.subr.mxu0 0.0
    %1129 = vmatpush1.xpose.msra.mxu0 0.0
    %1130 = vmatprep.subr.mxu0 0.0
    %1131 = vmatpush1.xpose.msra.mxu0 0.0
    %1132 = vmatprep.subr.mxu0 0.0
    %1133 = vmatpush1.xpose.msra.mxu0 0.0
    %1134 = vmatprep.subr.mxu0 0.0
    %1135 = vmatpush1.xpose.msra.mxu0 0.0
    %1136 = vmatprep.subr.mxu0 0.0
    %1137 = vmatpush1.xpose.msra.mxu0 0.0
    %1138 = vmatprep.subr.mxu0 0.0
    %1139 = vmatpush1.xpose.msra.mxu0 0.0
    %1140 = vmatprep.subr.mxu0 0.0
    %1141 = vmatpush1.xpose.msra.mxu0 0.0
    %1142 = vmatprep.subr.mxu0 0.0
    %1143 = vmatpush1.xpose.msra.mxu0 0.0
    %1144 = vmatprep.subr.mxu0 0.0
    %1145 = vmatpush1.xpose.msra.mxu0 0.0
    %1146 = vmatprep.subr.mxu0 0.0
    %1147 = vmatpush1.xpose.msra.mxu0 0.0
    %1148 = vmatprep.subr.mxu0 0.0
    %1149 = vmatpush1.xpose.msra.mxu0 0.0
    %1150 = vmatprep.subr.mxu0 0.0
    %1151 = vmatpush1.xpose.msra.mxu0 0.0
    %1152 = vmatprep.subr.mxu0 0.0
    %1153 = vmatpush1.xpose.msra.mxu0 0.0
    %1154 = vmatprep.subr.mxu0 0.0
    %1155 = vmatpush1.xpose.msra.mxu0 0.0
    %1156 = vmatprep.subr.mxu0 0.0
    %1157 = vmatpush1.xpose.msra.mxu0 0.0
    %1158 = vmatprep.mubr.f32.mxu0 0.0
    %1159 = vmatmul.mubr.f32.gmra.mrb[0].mxu0 %v1082
    %v1160 = vpop.f32.mrb[0].mxu0
    %v1161 = vadd.f32 0.0, %v1160
    %v1162 = vpop.f32.mrb[0].mxu0
    %1163 = vmatprep.mubr.f32.mxu0 0.0
    %1164 = vmatmul.mubr.f32.gmra.mrb[0].mxu0 %v1084
    %v1165 = vpop.f32.mrb[0].mxu0
    %v1166 = vadd.f32 0.0, %v1165
    %v1167 = vpop.f32.mrb[0].mxu0
    %1168 = vmatprep.mubr.f32.mxu0 0.0
    %1169 = vmatmul.mubr.f32.gmra.mrb[0].mxu0 %v1086
    %v1170 = vpop.f32.mrb[0].mxu0
    %v1171 = vadd.f32 0.0, %v1170
    %v1172 = vpop.f32.mrb[0].mxu0
    %1173 = vdwg.mxu0
    %v1174 = vmul.f32 %v1161, 0.35355338
    %v1175 = vmul.f32 %v1166, 0.35355338
    %v1176 = vmul.f32 %v1171, 0.35355338
    %v1177 = vsel %vm457, %v1174, -inf
    %1178 = vmax.xlane.f32.xlu0 %v1177
    %v1179 = vpop.xlane.xlu0 %1178
    %v1180 = vsel %vm457, %v1175, -inf
    %1181 = vmax.xlane.f32.xlu0 %v1180
    %v1182 = vpop.xlane.xlu0 %1181
    %v1183 = vsel %vm464, %v1176, -inf
    %1184 = vmax.xlane.f32.xlu0 %v1183
    %v1185 = vpop.xlane.xlu0 %1184
    %v1186 = vsub.f32 %v1174, %v1179
    %v1187 = vsub.f32 %v1175, %v1182
    %v1188 = vsub.f32 %v1176, %v1185
    %v1189 = vmul.f32 %v1186, 1.442695
    %v1190 = vpow.pop %v1189
    %v1191 = vmul.f32 %v1187, 1.442695
    %v1192 = vpow.pop %v1191
    %v1193 = vmul.f32 %v1188, 1.442695
    %v1194 = vpow.pop %v1193
    %v1195 = vsel %vm457, %v1190, 0.0
    %1196 = vadd.xlane.f32.xlu0 %v1195
    %v1197 = vpop.xlane.xlu0 %1196
    %v1198 = vsel %vm457, %v1192, 0.0
    %1199 = vadd.xlane.f32.xlu0 %v1198
    %v1200 = vpop.xlane.xlu0 %1199
    %v1201 = vsel %vm464, %v1194, 0.0
    %1202 = vadd.xlane.f32.xlu0 %v1201
    %v1203 = vpop.xlane.xlu0 %1202
    %v1204 = vrcp.pop %v1197
    %v1205 = vrcp.pop %v1200
    %v1206 = vrcp.pop %v1203
    %v1207 = vmul.f32 %v1190, %v1204
    %v1208 = vmul.f32 %v1192, %v1205
    %v1209 = vmul.f32 %v1194, %v1206
    %1210 = vrot.lane.b32.xlu0 %v329, 40
    %v1211 = vpop.permute.xlu0 %1210
    %1212 = vrot.lane.b32.xlu0 %v334, 40
    %v1213 = vpop.permute.xlu0 %1212
    %1214 = vrot.lane.b32.xlu0 %v339, 40
    %v1215 = vpop.permute.xlu0 %1214
    %v1219 = vsel %vm457, %v1207, 0
    %v1222 = vsel %vm457, %v1208, 0
    %v1225 = vsel %vm457, %v1209, 0
    %v1227 = vsel %vm509, %v1215, 0
    %1229 = vmatprep.subr.mxu0 0.0
    %1230 = vmatpush1.msra.mxu0 %v1211
    %1231 = vmatprep.subr.mxu0 0.0
    %1232 = vmatpush1.msra.mxu0 %v1213
    %1233 = vmatprep.subr.mxu0 0.0
    %1234 = vmatpush1.msra.mxu0 %v1227
    %1235 = vmatprep.subr.mxu0 0.0
    %1236 = vmatpush1.msra.mxu0 0.0
    %1237 = vmatprep.subr.mxu0 0.0
    %1238 = vmatpush1.msra.mxu0 0.0
    %1239 = vmatprep.subr.mxu0 0.0
    %1240 = vmatpush1.msra.mxu0 0.0
    %1241 = vmatprep.subr.mxu0 0.0
    %1242 = vmatpush1.msra.mxu0 0.0
    %1243 = vmatprep.subr.mxu0 0.0
    %1244 = vmatpush1.msra.mxu0 0.0
    %1245 = vmatprep.subr.mxu0 0.0
    %1246 = vmatpush1.msra.mxu0 0.0
    %1247 = vmatprep.subr.mxu0 0.0
    %1248 = vmatpush1.msra.mxu0 0.0
    %1249 = vmatprep.subr.mxu0 0.0
    %1250 = vmatpush1.msra.mxu0 0.0
    %1251 = vmatprep.subr.mxu0 0.0
    %1252 = vmatpush1.msra.mxu0 0.0
    %1253 = vmatprep.subr.mxu0 0.0
    %1254 = vmatpush1.msra.mxu0 0.0
    %1255 = vmatprep.subr.mxu0 0.0
    %1256 = vmatpush1.msra.mxu0 0.0
    %1257 = vmatprep.subr.mxu0 0.0
    %1258 = vmatpush1.msra.mxu0 0.0
    %1259 = vmatprep.subr.mxu0 0.0
    %1260 = vmatpush1.msra.mxu0 0.0
    %1261 = vmatprep.subr.mxu0 0.0
    %1262 = vmatpush1.msra.mxu0 0.0
    %1263 = vmatprep.subr.mxu0 0.0
    %1264 = vmatpush1.msra.mxu0 0.0
    %1265 = vmatprep.subr.mxu0 0.0
    %1266 = vmatpush1.msra.mxu0 0.0
    %1267 = vmatprep.subr.mxu0 0.0
    %1268 = vmatpush1.msra.mxu0 0.0
    %1269 = vmatprep.subr.mxu0 0.0
    %1270 = vmatpush1.msra.mxu0 0.0
    %1271 = vmatprep.subr.mxu0 0.0
    %1272 = vmatpush1.msra.mxu0 0.0
    %1273 = vmatprep.subr.mxu0 0.0
    %1274 = vmatpush1.msra.mxu0 0.0
    %1275 = vmatprep.subr.mxu0 0.0
    %1276 = vmatpush1.msra.mxu0 0.0
    %1277 = vmatprep.subr.mxu0 0.0
    %1278 = vmatpush1.msra.mxu0 0.0
    %1279 = vmatprep.subr.mxu0 0.0
    %1280 = vmatpush1.msra.mxu0 0.0
    %1281 = vmatprep.subr.mxu0 0.0
    %1282 = vmatpush1.msra.mxu0 0.0
    %1283 = vmatprep.subr.mxu0 0.0
    %1284 = vmatpush1.msra.mxu0 0.0
    %1285 = vmatprep.subr.mxu0 0.0
    %1286 = vmatpush1.msra.mxu0 0.0
    %1287 = vmatprep.subr.mxu0 0.0
    %1288 = vmatpush1.msra.mxu0 0.0
    %1289 = vmatprep.subr.mxu0 0.0
    %1290 = vmatpush1.msra.mxu0 0.0
    %1291 = vmatprep.subr.mxu0 0.0
    %1292 = vmatpush1.msra.mxu0 0.0
    %1293 = vmatprep.mubr.f32.mxu0 0.0
    %1294 = vmatmul.mubr.f32.gmra.mrb[0].mxu0 %v1219
    %v1295 = vpop.f32.mrb[0].mxu0
    %v1296 = vadd.f32 0.0, %v1295
    %v1297 = vpop.f32.mrb[0].mxu0
    %1298 = vmatprep.mubr.f32.mxu0 0.0
    %1299 = vmatmul.mubr.f32.gmra.mrb[0].mxu0 %v1222
    %v1300 = vpop.f32.mrb[0].mxu0
    %v1301 = vadd.f32 0.0, %v1300
    %v1302 = vpop.f32.mrb[0].mxu0
    %1303 = vmatprep.mubr.f32.mxu0 0.0
    %1304 = vmatmul.mubr.f32.gmra.mrb[0].mxu0 %v1225
    %v1305 = vpop.f32.mrb[0].mxu0
    %v1306 = vadd.f32 0.0, %v1305
    %v1307 = vpop.f32.mrb[0].mxu0
    %1308 = vdwg.mxu0
    %1312 = vrot.lane.b32.xlu0 %v818, 8
    %v1313 = vpop.permute.xlu0 %1312
    %1314 = vrot.lane.b32.xlu0 %v823, 8
    %v1315 = vpop.permute.xlu0 %1314
    %1316 = vrot.lane.b32.xlu0 %v828, 8
    %v1317 = vpop.permute.xlu0 %1316
    %1324 = vrot.lane.b32.xlu0 %v1057, 16
    %v1325 = vpop.permute.xlu0 %1324
    %1326 = vrot.lane.b32.xlu0 %v1062, 16
    %v1327 = vpop.permute.xlu0 %1326
    %1328 = vrot.lane.b32.xlu0 %v1067, 16
    %v1329 = vpop.permute.xlu0 %1328
    %1336 = vrot.lane.b32.xlu0 %v1296, 24
    %v1337 = vpop.permute.xlu0 %1336
    %1338 = vrot.lane.b32.xlu0 %v1301, 24
    %v1339 = vpop.permute.xlu0 %1338
    %1340 = vrot.lane.b32.xlu0 %v1306, 24
    %v1341 = vpop.permute.xlu0 %1340
    %v1345 = vsel %vm361, %v579, %v1313
    %v1346 = vsel %vm361, %v584, %v1315
    %v1347 = vsel %vm361, %v589, %v1317
    %vm1348 = vcmask 130048
    %v1349 = vsel %vm1348, %v1345, %v1325
    %v1350 = vsel %vm1348, %v1346, %v1327
    %v1351 = vsel %vm1348, %v1347, %v1329
    %vm1352 = vcmask 195584
    %v1353 = vsel %vm1352, %v1349, %v1337
    %v1354 = vsel %vm1352, %v1350, %v1339
    %v1355 = vsel %vm1352, %v1351, %v1341
    %vm1358 = vcmask 1046528
    %v1359 = vrot.slane %v339, 1
    %v1360 = vrot.slane %v344, 1
    %v1361 = vsel %vm1358, %v1359, %v1360
    %v1362 = vrot.slane %v349, 1
    %v1363 = vsel %vm1358, %v1360, %v1362
    %1364 = vrot.lane.b32.xlu0 %v1361, 96
    %v1365 = vpop.permute.xlu0 %1364
    %1366 = vrot.lane.b32.xlu0 %v1363, 96
    %v1367 = vpop.permute.xlu0 %1366
    %1368 = vrot.lane.b32.xlu0 %v1362, 96
    %v1369 = vpop.permute.xlu0 %1368
    %v1370 = vsel %vm361, %v1361, 0
    %v1372 = vsel %vm361, %v1363, 0
    %v1374 = vsel %vm361, %v1362, 0
    %v1376 = vsel %vm361, %v1365, 0
    %v1378 = vsel %vm361, %v1367, 0
    %v1380 = vsel %vm361, %v1369, 0
    %1382 = vmatprep.subr.mxu0 0.0
    %1383 = vmatpush1.xpose.msra.mxu0 %v1376
    %1384 = vmatprep.subr.mxu0 0.0
    %1385 = vmatpush1.xpose.msra.mxu0 %v1378
    %1386 = vmatprep.subr.mxu0 0.0
    %1387 = vmatpush1.xpose.msra.mxu0 %v1380
    %1388 = vmatprep.subr.mxu0 0.0
    %1389 = vmatpush1.xpose.msra.mxu0 0.0
    %1390 = vmatprep.subr.mxu0 0.0
    %1391 = vmatpush1.xpose.msra.mxu0 0.0
    %1392 = vmatprep.subr.mxu0 0.0
    %1393 = vmatpush1.xpose.msra.mxu0 0.0
    %1394 = vmatprep.subr.mxu0 0.0
    %1395 = vmatpush1.xpose.msra.mxu0 0.0
    %1396 = vmatprep.subr.mxu0 0.0
    %1397 = vmatpush1.xpose.msra.mxu0 0.0
    %1398 = vmatprep.subr.mxu0 0.0
    %1399 = vmatpush1.xpose.msra.mxu0 0.0
    %1400 = vmatprep.subr.mxu0 0.0
    %1401 = vmatpush1.xpose.msra.mxu0 0.0
    %1402 = vmatprep.subr.mxu0 0.0
    %1403 = vmatpush1.xpose.msra.mxu0 0.0
    %1404 = vmatprep.subr.mxu0 0.0
    %1405 = vmatpush1.xpose.msra.mxu0 0.0
    %1406 = vmatprep.subr.mxu0 0.0
    %1407 = vmatpush1.xpose.msra.mxu0 0.0
    %1408 = vmatprep.subr.mxu0 0.0
    %1409 = vmatpush1.xpose.msra.mxu0 0.0
    %1410 = vmatprep.subr.mxu0 0.0
    %1411 = vmatpush1.xpose.msra.mxu0 0.0
    %1412 = vmatprep.subr.mxu0 0.0
    %1413 = vmatpush1.xpose.msra.mxu0 0.0
    %1414 = vmatprep.subr.mxu0 0.0
    %1415 = vmatpush1.xpose.msra.mxu0 0.0
    %1416 = vmatprep.subr.mxu0 0.0
    %1417 = vmatpush1.xpose.msra.mxu0 0.0
    %1418 = vmatprep.subr.mxu0 0.0
    %1419 = vmatpush1.xpose.msra.mxu0 0.0
    %1420 = vmatprep.subr.mxu0 0.0
    %1421 = vmatpush1.xpose.msra.mxu0 0.0
    %1422 = vmatprep.subr.mxu0 0.0
    %1423 = vmatpush1.xpose.msra.mxu0 0.0
    %1424 = vmatprep.subr.mxu0 0.0
    %1425 = vmatpush1.xpose.msra.mxu0 0.0
    %1426 = vmatprep.subr.mxu0 0.0
    %1427 = vmatpush1.xpose.msra.mxu0 0.0
    %1428 = vmatprep.subr.mxu0 0.0
    %1429 = vmatpush1.xpose.msra.mxu0 0.0
    %1430 = vmatprep.subr.mxu0 0.0
    %1431 = vmatpush1.xpose.msra.mxu0 0.0
    %1432 = vmatprep.subr.mxu0 0.0
    %1433 = vmatpush1.xpose.msra.mxu0 0.0
    %1434 = vmatprep.subr.mxu0 0.0
    %1435 = vmatpush1.xpose.msra.mxu0 0.0
    %1436 = vmatprep.subr.mxu0 0.0
    %1437 = vmatpush1.xpose.msra.mxu0 0.0
    %1438 = vmatprep.subr.mxu0 0.0
    %1439 = vmatpush1.xpose.msra.mxu0 0.0
    %1440 = vmatprep.subr.mxu0 0.0
    %1441 = vmatpush1.xpose.msra.mxu0 0.0
    %1442 = vmatprep.subr.mxu0 0.0
    %1443 = vmatpush1.xpose.msra.mxu0 0.0
    %1444 = vmatprep.subr.mxu0 0.0
    %1445 = vmatpush1.xpose.msra.mxu0 0.0
    %1446 = vmatprep.mubr.f32.mxu0 0.0
    %1447 = vmatmul.mubr.f32.gmra.mrb[0].mxu0 %v1370
    %v1448 = vpop.f32.mrb[0].mxu0
    %v1449 = vadd.f32 0.0, %v1448
    %v1450 = vpop.f32.mrb[0].mxu0
    %1451 = vmatprep.mubr.f32.mxu0 0.0
    %1452 = vmatmul.mubr.f32.gmra.mrb[0].mxu0 %v1372
    %v1453 = vpop.f32.mrb[0].mxu0
    %v1454 = vadd.f32 0.0, %v1453
    %v1455 = vpop.f32.mrb[0].mxu0
    %1456 = vmatprep.mubr.f32.mxu0 0.0
    %1457 = vmatmul.mubr.f32.gmra.mrb[0].mxu0 %v1374
    %v1458 = vpop.f32.mrb[0].mxu0
    %v1459 = vadd.f32 0.0, %v1458
    %v1460 = vpop.f32.mrb[0].mxu0
    %1461 = vdwg.mxu0
    %v1462 = vmul.f32 %v1449, 0.35355338
    %v1463 = vmul.f32 %v1454, 0.35355338
    %v1464 = vmul.f32 %v1459, 0.35355338
    %v1465 = vsel %vm457, %v1462, -inf
    %1466 = vmax.xlane.f32.xlu0 %v1465
    %v1467 = vpop.xlane.xlu0 %1466
    %v1468 = vsel %vm457, %v1463, -inf
    %1469 = vmax.xlane.f32.xlu0 %v1468
    %v1470 = vpop.xlane.xlu0 %1469
    %v1471 = vsel %vm464, %v1464, -inf
    %1472 = vmax.xlane.f32.xlu0 %v1471
    %v1473 = vpop.xlane.xlu0 %1472
    %v1474 = vsub.f32 %v1462, %v1467
    %v1475 = vsub.f32 %v1463, %v1470
    %v1476 = vsub.f32 %v1464, %v1473
    %v1477 = vmul.f32 %v1474, 1.442695
    %v1478 = vpow.pop %v1477
    %v1479 = vmul.f32 %v1475, 1.442695
    %v1480 = vpow.pop %v1479
    %v1481 = vmul.f32 %v1476, 1.442695
    %v1482 = vpow.pop %v1481
    %v1483 = vsel %vm457, %v1478, 0.0
    %1484 = vadd.xlane.f32.xlu0 %v1483
    %v1485 = vpop.xlane.xlu0 %1484
    %v1486 = vsel %vm457, %v1480, 0.0
    %1487 = vadd.xlane.f32.xlu0 %v1486
    %v1488 = vpop.xlane.xlu0 %1487
    %v1489 = vsel %vm464, %v1482, 0.0
    %1490 = vadd.xlane.f32.xlu0 %v1489
    %v1491 = vpop.xlane.xlu0 %1490
    %v1492 = vrcp.pop %v1485
    %v1493 = vrcp.pop %v1488
    %v1494 = vrcp.pop %v1491
    %v1495 = vmul.f32 %v1478, %v1492
    %v1496 = vmul.f32 %v1480, %v1493
    %v1497 = vmul.f32 %v1482, %v1494
    %1498 = vrot.lane.b32.xlu0 %v1361, 64
    %v1499 = vpop.permute.xlu0 %1498
    %1500 = vrot.lane.b32.xlu0 %v1363, 64
    %v1501 = vpop.permute.xlu0 %1500
    %1502 = vrot.lane.b32.xlu0 %v1362, 64
    %v1503 = vpop.permute.xlu0 %1502
    %v1507 = vsel %vm457, %v1495, 0
    %v1510 = vsel %vm457, %v1496, 0
    %v1513 = vsel %vm457, %v1497, 0
    %v1515 = vsel %vm509, %v1503, 0
    %1517 = vmatprep.subr.mxu0 0.0
    %1518 = vmatpush1.msra.mxu0 %v1499
    %1519 = vmatprep.subr.mxu0 0.0
    %1520 = vmatpush1.msra.mxu0 %v1501
    %1521 = vmatprep.subr.mxu0 0.0
    %1522 = vmatpush1.msra.mxu0 %v1515
    %1523 = vmatprep.subr.mxu0 0.0
    %1524 = vmatpush1.msra.mxu0 0.0
    %1525 = vmatprep.subr.mxu0 0.0
    %1526 = vmatpush1.msra.mxu0 0.0
    %1527 = vmatprep.subr.mxu0 0.0
    %1528 = vmatpush1.msra.mxu0 0.0
    %1529 = vmatprep.subr.mxu0 0.0
    %1530 = vmatpush1.msra.mxu0 0.0
    %1531 = vmatprep.subr.mxu0 0.0
    %1532 = vmatpush1.msra.mxu0 0.0
    %1533 = vmatprep.subr.mxu0 0.0
    %1534 = vmatpush1.msra.mxu0 0.0
    %1535 = vmatprep.subr.mxu0 0.0
    %1536 = vmatpush1.msra.mxu0 0.0
    %1537 = vmatprep.subr.mxu0 0.0
    %1538 = vmatpush1.msra.mxu0 0.0
    %1539 = vmatprep.subr.mxu0 0.0
    %1540 = vmatpush1.msra.mxu0 0.0
    %1541 = vmatprep.subr.mxu0 0.0
    %1542 = vmatpush1.msra.mxu0 0.0
    %1543 = vmatprep.subr.mxu0 0.0
    %1544 = vmatpush1.msra.mxu0 0.0
    %1545 = vmatprep.subr.mxu0 0.0
    %1546 = vmatpush1.msra.mxu0 0.0
    %1547 = vmatprep.subr.mxu0 0.0
    %1548 = vmatpush1.msra.mxu0 0.0
    %1549 = vmatprep.subr.mxu0 0.0
    %1550 = vmatpush1.msra.mxu0 0.0
    %1551 = vmatprep.subr.mxu0 0.0
    %1552 = vmatpush1.msra.mxu0 0.0
    %1553 = vmatprep.subr.mxu0 0.0
    %1554 = vmatpush1.msra.mxu0 0.0
    %1555 = vmatprep.subr.mxu0 0.0
    %1556 = vmatpush1.msra.mxu0 0.0
    %1557 = vmatprep.subr.mxu0 0.0
    %1558 = vmatpush1.msra.mxu0 0.0
    %1559 = vmatprep.subr.mxu0 0.0
    %1560 = vmatpush1.msra.mxu0 0.0
    %1561 = vmatprep.subr.mxu0 0.0
    %1562 = vmatpush1.msra.mxu0 0.0
    %1563 = vmatprep.subr.mxu0 0.0
    %1564 = vmatpush1.msra.mxu0 0.0
    %1565 = vmatprep.subr.mxu0 0.0
    %1566 = vmatpush1.msra.mxu0 0.0
    %1567 = vmatprep.subr.mxu0 0.0
    %1568 = vmatpush1.msra.mxu0 0.0
    %1569 = vmatprep.subr.mxu0 0.0
    %1570 = vmatpush1.msra.mxu0 0.0
    %1571 = vmatprep.subr.mxu0 0.0
    %1572 = vmatpush1.msra.mxu0 0.0
    %1573 = vmatprep.subr.mxu0 0.0
    %1574 = vmatpush1.msra.mxu0 0.0
    %1575 = vmatprep.subr.mxu0 0.0
    %1576 = vmatpush1.msra.mxu0 0.0
    %1577 = vmatprep.subr.mxu0 0.0
    %1578 = vmatpush1.msra.mxu0 0.0
    %1579 = vmatprep.subr.mxu0 0.0
    %1580 = vmatpush1.msra.mxu0 0.0
    %1581 = vmatprep.mubr.f32.mxu0 0.0
    %1582 = vmatmul.mubr.f32.gmra.mrb[0].mxu0 %v1507
    %v1583 = vpop.f32.mrb[0].mxu0
    %v1584 = vadd.f32 0.0, %v1583
    %v1585 = vpop.f32.mrb[0].mxu0
    %1586 = vmatprep.mubr.f32.mxu0 0.0
    %1587 = vmatmul.mubr.f32.gmra.mrb[0].mxu0 %v1510
    %v1588 = vpop.f32.mrb[0].mxu0
    %v1589 = vadd.f32 0.0, %v1588
    %v1590 = vpop.f32.mrb[0].mxu0
    %1591 = vmatprep.mubr.f32.mxu0 0.0
    %1592 = vmatmul.mubr.f32.gmra.mrb[0].mxu0 %v1513
    %v1593 = vpop.f32.mrb[0].mxu0
    %v1594 = vadd.f32 0.0, %v1593
    %v1595 = vpop.f32.mrb[0].mxu0
    %1596 = vdwg.mxu0
    %1597 = vrot.lane.b32.xlu0 %v1361, 120
    %v1598 = vpop.permute.xlu0 %1597
    %1599 = vrot.lane.b32.xlu0 %v1363, 120
    %v1600 = vpop.permute.xlu0 %1599
    %1601 = vrot.lane.b32.xlu0 %v1362, 120
    %v1602 = vpop.permute.xlu0 %1601
    %1603 = vrot.lane.b32.xlu0 %v1361, 88
    %v1604 = vpop.permute.xlu0 %1603
    %1605 = vrot.lane.b32.xlu0 %v1363, 88
    %v1606 = vpop.permute.xlu0 %1605
    %1607 = vrot.lane.b32.xlu0 %v1362, 88
    %v1608 = vpop.permute.xlu0 %1607
    %v1609 = vsel %vm361, %v1598, 0
    %v1611 = vsel %vm361, %v1600, 0
    %v1613 = vsel %vm361, %v1602, 0
    %v1615 = vsel %vm361, %v1604, 0
    %v1617 = vsel %vm361, %v1606, 0
    %v1619 = vsel %vm361, %v1608, 0
    %1621 = vmatprep.subr.mxu0 0.0
    %1622 = vmatpush1.xpose.msra.mxu0 %v1615
    %1623 = vmatprep.subr.mxu0 0.0
    %1624 = vmatpush1.xpose.msra.mxu0 %v1617
    %1625 = vmatprep.subr.mxu0 0.0
    %1626 = vmatpush1.xpose.msra.mxu0 %v1619
    %1627 = vmatprep.subr.mxu0 0.0
    %1628 = vmatpush1.xpose.msra.mxu0 0.0
    %1629 = vmatprep.subr.mxu0 0.0
    %1630 = vmatpush1.xpose.msra.mxu0 0.0
    %1631 = vmatprep.subr.mxu0 0.0
    %1632 = vmatpush1.xpose.msra.mxu0 0.0
    %1633 = vmatprep.subr.mxu0 0.0
    %1634 = vmatpush1.xpose.msra.mxu0 0.0
    %1635 = vmatprep.subr.mxu0 0.0
    %1636 = vmatpush1.xpose.msra.mxu0 0.0
    %1637 = vmatprep.subr.mxu0 0.0
    %1638 = vmatpush1.xpose.msra.mxu0 0.0
    %1639 = vmatprep.subr.mxu0 0.0
    %1640 = vmatpush1.xpose.msra.mxu0 0.0
    %1641 = vmatprep.subr.mxu0 0.0
    %1642 = vmatpush1.xpose.msra.mxu0 0.0
    %1643 = vmatprep.subr.mxu0 0.0
    %1644 = vmatpush1.xpose.msra.mxu0 0.0
    %1645 = vmatprep.subr.mxu0 0.0
    %1646 = vmatpush1.xpose.msra.mxu0 0.0
    %1647 = vmatprep.subr.mxu0 0.0
    %1648 = vmatpush1.xpose.msra.mxu0 0.0
    %1649 = vmatprep.subr.mxu0 0.0
    %1650 = vmatpush1.xpose.msra.mxu0 0.0
    %1651 = vmatprep.subr.mxu0 0.0
    %1652 = vmatpush1.xpose.msra.mxu0 0.0
    %1653 = vmatprep.subr.mxu0 0.0
    %1654 = vmatpush1.xpose.msra.mxu0 0.0
    %1655 = vmatprep.subr.mxu0 0.0
    %1656 = vmatpush1.xpose.msra.mxu0 0.0
    %1657 = vmatprep.subr.mxu0 0.0
    %1658 = vmatpush1.xpose.msra.mxu0 0.0
    %1659 = vmatprep.subr.mxu0 0.0
    %1660 = vmatpush1.xpose.msra.mxu0 0.0
    %1661 = vmatprep.subr.mxu0 0.0
    %1662 = vmatpush1.xpose.msra.mxu0 0.0
    %1663 = vmatprep.subr.mxu0 0.0
    %1664 = vmatpush1.xpose.msra.mxu0 0.0
    %1665 = vmatprep.subr.mxu0 0.0
    %1666 = vmatpush1.xpose.msra.mxu0 0.0
    %1667 = vmatprep.subr.mxu0 0.0
    %1668 = vmatpush1.xpose.msra.mxu0 0.0
    %1669 = vmatprep.subr.mxu0 0.0
    %1670 = vmatpush1.xpose.msra.mxu0 0.0
    %1671 = vmatprep.subr.mxu0 0.0
    %1672 = vmatpush1.xpose.msra.mxu0 0.0
    %1673 = vmatprep.subr.mxu0 0.0
    %1674 = vmatpush1.xpose.msra.mxu0 0.0
    %1675 = vmatprep.subr.mxu0 0.0
    %1676 = vmatpush1.xpose.msra.mxu0 0.0
    %1677 = vmatprep.subr.mxu0 0.0
    %1678 = vmatpush1.xpose.msra.mxu0 0.0
    %1679 = vmatprep.subr.mxu0 0.0
    %1680 = vmatpush1.xpose.msra.mxu0 0.0
    %1681 = vmatprep.subr.mxu0 0.0
    %1682 = vmatpush1.xpose.msra.mxu0 0.0
    %1683 = vmatprep.subr.mxu0 0.0
    %1684 = vmatpush1.xpose.msra.mxu0 0.0
    %1685 = vmatprep.mubr.f32.mxu0 0.0
    %1686 = vmatmul.mubr.f32.gmra.mrb[0].mxu0 %v1609
    %v1687 = vpop.f32.mrb[0].mxu0
    %v1688 = vadd.f32 0.0, %v1687
    %v1689 = vpop.f32.mrb[0].mxu0
    %1690 = vmatprep.mubr.f32.mxu0 0.0
    %1691 = vmatmul.mubr.f32.gmra.mrb[0].mxu0 %v1611
    %v1692 = vpop.f32.mrb[0].mxu0
    %v1693 = vadd.f32 0.0, %v1692
    %v1694 = vpop.f32.mrb[0].mxu0
    %1695 = vmatprep.mubr.f32.mxu0 0.0
    %1696 = vmatmul.mubr.f32.gmra.mrb[0].mxu0 %v1613
    %v1697 = vpop.f32.mrb[0].mxu0
    %v1698 = vadd.f32 0.0, %v1697
    %v1699 = vpop.f32.mrb[0].mxu0
    %1700 = vdwg.mxu0
    %v1701 = vmul.f32 %v1688, 0.35355338
    %v1702 = vmul.f32 %v1693, 0.35355338
    %v1703 = vmul.f32 %v1698, 0.35355338
    %v1704 = vsel %vm457, %v1701, -inf
    %1705 = vmax.xlane.f32.xlu0 %v1704
    %v1706 = vpop.xlane.xlu0 %1705
    %v1707 = vsel %vm457, %v1702, -inf
    %1708 = vmax.xlane.f32.xlu0 %v1707
    %v1709 = vpop.xlane.xlu0 %1708
    %v1710 = vsel %vm464, %v1703, -inf
    %1711 = vmax.xlane.f32.xlu0 %v1710
    %v1712 = vpop.xlane.xlu0 %1711
    %v1713 = vsub.f32 %v1701, %v1706
    %v1714 = vsub.f32 %v1702, %v1709
    %v1715 = vsub.f32 %v1703, %v1712
    %v1716 = vmul.f32 %v1713, 1.442695
    %v1717 = vpow.pop %v1716
    %v1718 = vmul.f32 %v1714, 1.442695
    %v1719 = vpow.pop %v1718
    %v1720 = vmul.f32 %v1715, 1.442695
    %v1721 = vpow.pop %v1720
    %v1722 = vsel %vm457, %v1717, 0.0
    %1723 = vadd.xlane.f32.xlu0 %v1722
    %v1724 = vpop.xlane.xlu0 %1723
    %v1725 = vsel %vm457, %v1719, 0.0
    %1726 = vadd.xlane.f32.xlu0 %v1725
    %v1727 = vpop.xlane.xlu0 %1726
    %v1728 = vsel %vm464, %v1721, 0.0
    %1729 = vadd.xlane.f32.xlu0 %v1728
    %v1730 = vpop.xlane.xlu0 %1729
    %v1731 = vrcp.pop %v1724
    %v1732 = vrcp.pop %v1727
    %v1733 = vrcp.pop %v1730
    %v1734 = vmul.f32 %v1717, %v1731
    %v1735 = vmul.f32 %v1719, %v1732
    %v1736 = vmul.f32 %v1721, %v1733
    %1737 = vrot.lane.b32.xlu0 %v1361, 56
    %v1738 = vpop.permute.xlu0 %1737
    %1739 = vrot.lane.b32.xlu0 %v1363, 56
    %v1740 = vpop.permute.xlu0 %1739
    %1741 = vrot.lane.b32.xlu0 %v1362, 56
    %v1742 = vpop.permute.xlu0 %1741
    %v1746 = vsel %vm457, %v1734, 0
    %v1749 = vsel %vm457, %v1735, 0
    %v1752 = vsel %vm457, %v1736, 0
    %v1754 = vsel %vm509, %v1742, 0
    %1756 = vmatprep.subr.mxu0 0.0
    %1757 = vmatpush1.msra.mxu0 %v1738
    %1758 = vmatprep.subr.mxu0 0.0
    %1759 = vmatpush1.msra.mxu0 %v1740
    %1760 = vmatprep.subr.mxu0 0.0
    %1761 = vmatpush1.msra.mxu0 %v1754
    %1762 = vmatprep.subr.mxu0 0.0
    %1763 = vmatpush1.msra.mxu0 0.0
    %1764 = vmatprep.subr.mxu0 0.0
    %1765 = vmatpush1.msra.mxu0 0.0
    %1766 = vmatprep.subr.mxu0 0.0
    %1767 = vmatpush1.msra.mxu0 0.0
    %1768 = vmatprep.subr.mxu0 0.0
    %1769 = vmatpush1.msra.mxu0 0.0
    %1770 = vmatprep.subr.mxu0 0.0
    %1771 = vmatpush1.msra.mxu0 0.0
    %1772 = vmatprep.subr.mxu0 0.0
    %1773 = vmatpush1.msra.mxu0 0.0
    %1774 = vmatprep.subr.mxu0 0.0
    %1775 = vmatpush1.msra.mxu0 0.0
    %1776 = vmatprep.subr.mxu0 0.0
    %1777 = vmatpush1.msra.mxu0 0.0
    %1778 = vmatprep.subr.mxu0 0.0
    %1779 = vmatpush1.msra.mxu0 0.0
    %1780 = vmatprep.subr.mxu0 0.0
    %1781 = vmatpush1.msra.mxu0 0.0
    %1782 = vmatprep.subr.mxu0 0.0
    %1783 = vmatpush1.msra.mxu0 0.0
    %1784 = vmatprep.subr.mxu0 0.0
    %1785 = vmatpush1.msra.mxu0 0.0
    %1786 = vmatprep.subr.mxu0 0.0
    %1787 = vmatpush1.msra.mxu0 0.0
    %1788 = vmatprep.subr.mxu0 0.0
    %1789 = vmatpush1.msra.mxu0 0.0
    %1790 = vmatprep.subr.mxu0 0.0
    %1791 = vmatpush1.msra.mxu0 0.0
    %1792 = vmatprep.subr.mxu0 0.0
    %1793 = vmatpush1.msra.mxu0 0.0
    %1794 = vmatprep.subr.mxu0 0.0
    %1795 = vmatpush1.msra.mxu0 0.0
    %1796 = vmatprep.subr.mxu0 0.0
    %1797 = vmatpush1.msra.mxu0 0.0
    %1798 = vmatprep.subr.mxu0 0.0
    %1799 = vmatpush1.msra.mxu0 0.0
    %1800 = vmatprep.subr.mxu0 0.0
    %1801 = vmatpush1.msra.mxu0 0.0
    %1802 = vmatprep.subr.mxu0 0.0
    %1803 = vmatpush1.msra.mxu0 0.0
    %1804 = vmatprep.subr.mxu0 0.0
    %1805 = vmatpush1.msra.mxu0 0.0
    %1806 = vmatprep.subr.mxu0 0.0
    %1807 = vmatpush1.msra.mxu0 0.0
    %1808 = vmatprep.subr.mxu0 0.0
    %1809 = vmatpush1.msra.mxu0 0.0
    %1810 = vmatprep.subr.mxu0 0.0
    %1811 = vmatpush1.msra.mxu0 0.0
    %1812 = vmatprep.subr.mxu0 0.0
    %1813 = vmatpush1.msra.mxu0 0.0
    %1814 = vmatprep.subr.mxu0 0.0
    %1815 = vmatpush1.msra.mxu0 0.0
    %1816 = vmatprep.subr.mxu0 0.0
    %1817 = vmatpush1.msra.mxu0 0.0
    %1818 = vmatprep.subr.mxu0 0.0
    %1819 = vmatpush1.msra.mxu0 0.0
    %1820 = vmatprep.mubr.f32.mxu0 0.0
    %1821 = vmatmul.mubr.f32.gmra.mrb[0].mxu0 %v1746
    %v1822 = vpop.f32.mrb[0].mxu0
    %v1823 = vadd.f32 0.0, %v1822
    %v1824 = vpop.f32.mrb[0].mxu0
    %1825 = vmatprep.mubr.f32.mxu0 0.0
    %1826 = vmatmul.mubr.f32.gmra.mrb[0].mxu0 %v1749
    %v1827 = vpop.f32.mrb[0].mxu0
    %v1828 = vadd.f32 0.0, %v1827
    %v1829 = vpop.f32.mrb[0].mxu0
    %1830 = vmatprep.mubr.f32.mxu0 0.0
    %1831 = vmatmul.mubr.f32.gmra.mrb[0].mxu0 %v1752
    %v1832 = vpop.f32.mrb[0].mxu0
    %v1833 = vadd.f32 0.0, %v1832
    %v1834 = vpop.f32.mrb[0].mxu0
    %1835 = vdwg.mxu0
    %1836 = vrot.lane.b32.xlu0 %v1361, 112
    %v1837 = vpop.permute.xlu0 %1836
    %1838 = vrot.lane.b32.xlu0 %v1363, 112
    %v1839 = vpop.permute.xlu0 %1838
    %1840 = vrot.lane.b32.xlu0 %v1362, 112
    %v1841 = vpop.permute.xlu0 %1840
    %1842 = vrot.lane.b32.xlu0 %v1361, 80
    %v1843 = vpop.permute.xlu0 %1842
    %1844 = vrot.lane.b32.xlu0 %v1363, 80
    %v1845 = vpop.permute.xlu0 %1844
    %1846 = vrot.lane.b32.xlu0 %v1362, 80
    %v1847 = vpop.permute.xlu0 %1846
    %v1848 = vsel %vm361, %v1837, 0
    %v1850 = vsel %vm361, %v1839, 0
    %v1852 = vsel %vm361, %v1841, 0
    %v1854 = vsel %vm361, %v1843, 0
    %v1856 = vsel %vm361, %v1845, 0
    %v1858 = vsel %vm361, %v1847, 0
    %1860 = vmatprep.subr.mxu0 0.0
    %1861 = vmatpush1.xpose.msra.mxu0 %v1854
    %1862 = vmatprep.subr.mxu0 0.0
    %1863 = vmatpush1.xpose.msra.mxu0 %v1856
    %1864 = vmatprep.subr.mxu0 0.0
    %1865 = vmatpush1.xpose.msra.mxu0 %v1858
    %1866 = vmatprep.subr.mxu0 0.0
    %1867 = vmatpush1.xpose.msra.mxu0 0.0
    %1868 = vmatprep.subr.mxu0 0.0
    %1869 = vmatpush1.xpose.msra.mxu0 0.0
    %1870 = vmatprep.subr.mxu0 0.0
    %1871 = vmatpush1.xpose.msra.mxu0 0.0
    %1872 = vmatprep.subr.mxu0 0.0
    %1873 = vmatpush1.xpose.msra.mxu0 0.0
    %1874 = vmatprep.subr.mxu0 0.0
    %1875 = vmatpush1.xpose.msra.mxu0 0.0
    %1876 = vmatprep.subr.mxu0 0.0
    %1877 = vmatpush1.xpose.msra.mxu0 0.0
    %1878 = vmatprep.subr.mxu0 0.0
    %1879 = vmatpush1.xpose.msra.mxu0 0.0
    %1880 = vmatprep.subr.mxu0 0.0
    %1881 = vmatpush1.xpose.msra.mxu0 0.0
    %1882 = vmatprep.subr.mxu0 0.0
    %1883 = vmatpush1.xpose.msra.mxu0 0.0
    %1884 = vmatprep.subr.mxu0 0.0
    %1885 = vmatpush1.xpose.msra.mxu0 0.0
    %1886 = vmatprep.subr.mxu0 0.0
    %1887 = vmatpush1.xpose.msra.mxu0 0.0
    %1888 = vmatprep.subr.mxu0 0.0
    %1889 = vmatpush1.xpose.msra.mxu0 0.0
    %1890 = vmatprep.subr.mxu0 0.0
    %1891 = vmatpush1.xpose.msra.mxu0 0.0
    %1892 = vmatprep.subr.mxu0 0.0
    %1893 = vmatpush1.xpose.msra.mxu0 0.0
    %1894 = vmatprep.subr.mxu0 0.0
    %1895 = vmatpush1.xpose.msra.mxu0 0.0
    %1896 = vmatprep.subr.mxu0 0.0
    %1897 = vmatpush1.xpose.msra.mxu0 0.0
    %1898 = vmatprep.subr.mxu0 0.0
    %1899 = vmatpush1.xpose.msra.mxu0 0.0
    %1900 = vmatprep.subr.mxu0 0.0
    %1901 = vmatpush1.xpose.msra.mxu0 0.0
    %1902 = vmatprep.subr.mxu0 0.0
    %1903 = vmatpush1.xpose.msra.mxu0 0.0
    %1904 = vmatprep.subr.mxu0 0.0
    %1905 = vmatpush1.xpose.msra.mxu0 0.0
    %1906 = vmatprep.subr.mxu0 0.0
    %1907 = vmatpush1.xpose.msra.mxu0 0.0
    %1908 = vmatprep.subr.mxu0 0.0
    %1909 = vmatpush1.xpose.msra.mxu0 0.0
    %1910 = vmatprep.subr.mxu0 0.0
    %1911 = vmatpush1.xpose.msra.mxu0 0.0
    %1912 = vmatprep.subr.mxu0 0.0
    %1913 = vmatpush1.xpose.msra.mxu0 0.0
    %1914 = vmatprep.subr.mxu0 0.0
    %1915 = vmatpush1.xpose.msra.mxu0 0.0
    %1916 = vmatprep.subr.mxu0 0.0
    %1917 = vmatpush1.xpose.msra.mxu0 0.0
    %1918 = vmatprep.subr.mxu0 0.0
    %1919 = vmatpush1.xpose.msra.mxu0 0.0
    %1920 = vmatprep.subr.mxu0 0.0
    %1921 = vmatpush1.xpose.msra.mxu0 0.0
    %1922 = vmatprep.subr.mxu0 0.0
    %1923 = vmatpush1.xpose.msra.mxu0 0.0
    %1924 = vmatprep.mubr.f32.mxu0 0.0
    %1925 = vmatmul.mubr.f32.gmra.mrb[0].mxu0 %v1848
    %v1926 = vpop.f32.mrb[0].mxu0
    %v1927 = vadd.f32 0.0, %v1926
    %v1928 = vpop.f32.mrb[0].mxu0
    %1929 = vmatprep.mubr.f32.mxu0 0.0
    %1930 = vmatmul.mubr.f32.gmra.mrb[0].mxu0 %v1850
    %v1931 = vpop.f32.mrb[0].mxu0
    %v1932 = vadd.f32 0.0, %v1931
    %v1933 = vpop.f32.mrb[0].mxu0
    %1934 = vmatprep.mubr.f32.mxu0 0.0
    %1935 = vmatmul.mubr.f32.gmra.mrb[0].mxu0 %v1852
    %v1936 = vpop.f32.mrb[0].mxu0
    %v1937 = vadd.f32 0.0, %v1936
    %v1938 = vpop.f32.mrb[0].mxu0
    %1939 = vdwg.mxu0
    %v1940 = vmul.f32 %v1927, 0.35355338
    %v1941 = vmul.f32 %v1932, 0.35355338
    %v1942 = vmul.f32 %v1937, 0.35355338
    %v1943 = vsel %vm457, %v1940, -inf
    %1944 = vmax.xlane.f32.xlu0 %v1943
    %v1945 = vpop.xlane.xlu0 %1944
    %v1946 = vsel %vm457, %v1941, -inf
    %1947 = vmax.xlane.f32.xlu0 %v1946
    %v1948 = vpop.xlane.xlu0 %1947
    %v1949 = vsel %vm464, %v1942, -inf
    %1950 = vmax.xlane.f32.xlu0 %v1949
    %v1951 = vpop.xlane.xlu0 %1950
    %v1952 = vsub.f32 %v1940, %v1945
    %v1953 = vsub.f32 %v1941, %v1948
    %v1954 = vsub.f32 %v1942, %v1951
    %v1955 = vmul.f32 %v1952, 1.442695
    %v1956 = vpow.pop %v1955
    %v1957 = vmul.f32 %v1953, 1.442695
    %v1958 = vpow.pop %v1957
    %v1959 = vmul.f32 %v1954, 1.442695
    %v1960 = vpow.pop %v1959
    %v1961 = vsel %vm457, %v1956, 0.0
    %1962 = vadd.xlane.f32.xlu0 %v1961
    %v1963 = vpop.xlane.xlu0 %1962
    %v1964 = vsel %vm457, %v1958, 0.0
    %1965 = vadd.xlane.f32.xlu0 %v1964
    %v1966 = vpop.xlane.xlu0 %1965
    %v1967 = vsel %vm464, %v1960, 0.0
    %1968 = vadd.xlane.f32.xlu0 %v1967
    %v1969 = vpop.xlane.xlu0 %1968
    %v1970 = vrcp.pop %v1963
    %v1971 = vrcp.pop %v1966
    %v1972 = vrcp.pop %v1969
    %v1973 = vmul.f32 %v1956, %v1970
    %v1974 = vmul.f32 %v1958, %v1971
    %v1975 = vmul.f32 %v1960, %v1972
    %1976 = vrot.lane.b32.xlu0 %v1361, 48
    %v1977 = vpop.permute.xlu0 %1976
    %1978 = vrot.lane.b32.xlu0 %v1363, 48
    %v1979 = vpop.permute.xlu0 %1978
    %1980 = vrot.lane.b32.xlu0 %v1362, 48
    %v1981 = vpop.permute.xlu0 %1980
    %v1985 = vsel %vm457, %v1973, 0
    %v1988 = vsel %vm457, %v1974, 0
    %v1991 = vsel %vm457, %v1975, 0
    %v1993 = vsel %vm509, %v1981, 0
    %1995 = vmatprep.subr.mxu0 0.0
    %1996 = vmatpush1.msra.mxu0 %v1977
    %1997 = vmatprep.subr.mxu0 0.0
    %1998 = vmatpush1.msra.mxu0 %v1979
    %1999 = vmatprep.subr.mxu0 0.0
    %2000 = vmatpush1.msra.mxu0 %v1993
    %2001 = vmatprep.subr.mxu0 0.0
    %2002 = vmatpush1.msra.mxu0 0.0
    %2003 = vmatprep.subr.mxu0 0.0
    %2004 = vmatpush1.msra.mxu0 0.0
    %2005 = vmatprep.subr.mxu0 0.0
    %2006 = vmatpush1.msra.mxu0 0.0
    %2007 = vmatprep.subr.mxu0 0.0
    %2008 = vmatpush1.msra.mxu0 0.0
    %2009 = vmatprep.subr.mxu0 0.0
    %2010 = vmatpush1.msra.mxu0 0.0
    %2011 = vmatprep.subr.mxu0 0.0
    %2012 = vmatpush1.msra.mxu0 0.0
    %2013 = vmatprep.subr.mxu0 0.0
    %2014 = vmatpush1.msra.mxu0 0.0
    %2015 = vmatprep.subr.mxu0 0.0
    %2016 = vmatpush1.msra.mxu0 0.0
    %2017 = vmatprep.subr.mxu0 0.0
    %2018 = vmatpush1.msra.mxu0 0.0
    %2019 = vmatprep.subr.mxu0 0.0
    %2020 = vmatpush1.msra.mxu0 0.0
    %2021 = vmatprep.subr.mxu0 0.0
    %2022 = vmatpush1.msra.mxu0 0.0
    %2023 = vmatprep.subr.mxu0 0.0
    %2024 = vmatpush1.msra.mxu0 0.0
    %2025 = vmatprep.subr.mxu0 0.0
    %2026 = vmatpush1.msra.mxu0 0.0
    %2027 = vmatprep.subr.mxu0 0.0
    %2028 = vmatpush1.msra.mxu0 0.0
    %2029 = vmatprep.subr.mxu0 0.0
    %2030 = vmatpush1.msra.mxu0 0.0
    %2031 = vmatprep.subr.mxu0 0.0
    %2032 = vmatpush1.msra.mxu0 0.0
    %2033 = vmatprep.subr.mxu0 0.0
    %2034 = vmatpush1.msra.mxu0 0.0
    %2035 = vmatprep.subr.mxu0 0.0
    %2036 = vmatpush1.msra.mxu0 0.0
    %2037 = vmatprep.subr.mxu0 0.0
    %2038 = vmatpush1.msra.mxu0 0.0
    %2039 = vmatprep.subr.mxu0 0.0
    %2040 = vmatpush1.msra.mxu0 0.0
    %2041 = vmatprep.subr.mxu0 0.0
    %2042 = vmatpush1.msra.mxu0 0.0
    %2043 = vmatprep.subr.mxu0 0.0
    %2044 = vmatpush1.msra.mxu0 0.0
    %2045 = vmatprep.subr.mxu0 0.0
    %2046 = vmatpush1.msra.mxu0 0.0
    %2047 = vmatprep.subr.mxu0 0.0
    %2048 = vmatpush1.msra.mxu0 0.0
    %2049 = vmatprep.subr.mxu0 0.0
    %2050 = vmatpush1.msra.mxu0 0.0
    %2051 = vmatprep.subr.mxu0 0.0
    %2052 = vmatpush1.msra.mxu0 0.0
    %2053 = vmatprep.subr.mxu0 0.0
    %2054 = vmatpush1.msra.mxu0 0.0
    %2055 = vmatprep.subr.mxu0 0.0
    %2056 = vmatpush1.msra.mxu0 0.0
    %2057 = vmatprep.subr.mxu0 0.0
    %2058 = vmatpush1.msra.mxu0 0.0
    %2059 = vmatprep.mubr.f32.mxu0 0.0
    %2060 = vmatmul.mubr.f32.gmra.mrb[0].mxu0 %v1985
    %v2061 = vpop.f32.mrb[0].mxu0
    %v2062 = vadd.f32 0.0, %v2061
    %v2063 = vpop.f32.mrb[0].mxu0
    %2064 = vmatprep.mubr.f32.mxu0 0.0
    %2065 = vmatmul.mubr.f32.gmra.mrb[0].mxu0 %v1988
    %v2066 = vpop.f32.mrb[0].mxu0
    %v2067 = vadd.f32 0.0, %v2066
    %v2068 = vpop.f32.mrb[0].mxu0
    %2069 = vmatprep.mubr.f32.mxu0 0.0
    %2070 = vmatmul.mubr.f32.gmra.mrb[0].mxu0 %v1991
    %v2071 = vpop.f32.mrb[0].mxu0
    %v2072 = vadd.f32 0.0, %v2071
    %v2073 = vpop.f32.mrb[0].mxu0
    %2074 = vdwg.mxu0
    %2075 = vrot.lane.b32.xlu0 %v1361, 104
    %v2076 = vpop.permute.xlu0 %2075
    %2077 = vrot.lane.b32.xlu0 %v1363, 104
    %v2078 = vpop.permute.xlu0 %2077
    %2079 = vrot.lane.b32.xlu0 %v1362, 104
    %v2080 = vpop.permute.xlu0 %2079
    %2081 = vrot.lane.b32.xlu0 %v1361, 72
    %v2082 = vpop.permute.xlu0 %2081
    %2083 = vrot.lane.b32.xlu0 %v1363, 72
    %v2084 = vpop.permute.xlu0 %2083
    %2085 = vrot.lane.b32.xlu0 %v1362, 72
    %v2086 = vpop.permute.xlu0 %2085
    %v2087 = vsel %vm361, %v2076, 0
    %v2089 = vsel %vm361, %v2078, 0
    %v2091 = vsel %vm361, %v2080, 0
    %v2093 = vsel %vm361, %v2082, 0
    %v2095 = vsel %vm361, %v2084, 0
    %v2097 = vsel %vm361, %v2086, 0
    %2099 = vmatprep.subr.mxu0 0.0
    %2100 = vmatpush1.xpose.msra.mxu0 %v2093
    %2101 = vmatprep.subr.mxu0 0.0
    %2102 = vmatpush1.xpose.msra.mxu0 %v2095
    %2103 = vmatprep.subr.mxu0 0.0
    %2104 = vmatpush1.xpose.msra.mxu0 %v2097
    %2105 = vmatprep.subr.mxu0 0.0
    %2106 = vmatpush1.xpose.msra.mxu0 0.0
    %2107 = vmatprep.subr.mxu0 0.0
    %2108 = vmatpush1.xpose.msra.mxu0 0.0
    %2109 = vmatprep.subr.mxu0 0.0
    %2110 = vmatpush1.xpose.msra.mxu0 0.0
    %2111 = vmatprep.subr.mxu0 0.0
    %2112 = vmatpush1.xpose.msra.mxu0 0.0
    %2113 = vmatprep.subr.mxu0 0.0
    %2114 = vmatpush1.xpose.msra.mxu0 0.0
    %2115 = vmatprep.subr.mxu0 0.0
    %2116 = vmatpush1.xpose.msra.mxu0 0.0
    %2117 = vmatprep.subr.mxu0 0.0
    %2118 = vmatpush1.xpose.msra.mxu0 0.0
    %2119 = vmatprep.subr.mxu0 0.0
    %2120 = vmatpush1.xpose.msra.mxu0 0.0
    %2121 = vmatprep.subr.mxu0 0.0
    %2122 = vmatpush1.xpose.msra.mxu0 0.0
    %2123 = vmatprep.subr.mxu0 0.0
    %2124 = vmatpush1.xpose.msra.mxu0 0.0
    %2125 = vmatprep.subr.mxu0 0.0
    %2126 = vmatpush1.xpose.msra.mxu0 0.0
    %2127 = vmatprep.subr.mxu0 0.0
    %2128 = vmatpush1.xpose.msra.mxu0 0.0
    %2129 = vmatprep.subr.mxu0 0.0
    %2130 = vmatpush1.xpose.msra.mxu0 0.0
    %2131 = vmatprep.subr.mxu0 0.0
    %2132 = vmatpush1.xpose.msra.mxu0 0.0
    %2133 = vmatprep.subr.mxu0 0.0
    %2134 = vmatpush1.xpose.msra.mxu0 0.0
    %2135 = vmatprep.subr.mxu0 0.0
    %2136 = vmatpush1.xpose.msra.mxu0 0.0
    %2137 = vmatprep.subr.mxu0 0.0
    %2138 = vmatpush1.xpose.msra.mxu0 0.0
    %2139 = vmatprep.subr.mxu0 0.0
    %2140 = vmatpush1.xpose.msra.mxu0 0.0
    %2141 = vmatprep.subr.mxu0 0.0
    %2142 = vmatpush1.xpose.msra.mxu0 0.0
    %2143 = vmatprep.subr.mxu0 0.0
    %2144 = vmatpush1.xpose.msra.mxu0 0.0
    %2145 = vmatprep.subr.mxu0 0.0
    %2146 = vmatpush1.xpose.msra.mxu0 0.0
    %2147 = vmatprep.subr.mxu0 0.0
    %2148 = vmatpush1.xpose.msra.mxu0 0.0
    %2149 = vmatprep.subr.mxu0 0.0
    %2150 = vmatpush1.xpose.msra.mxu0 0.0
    %2151 = vmatprep.subr.mxu0 0.0
    %2152 = vmatpush1.xpose.msra.mxu0 0.0
    %2153 = vmatprep.subr.mxu0 0.0
    %2154 = vmatpush1.xpose.msra.mxu0 0.0
    %2155 = vmatprep.subr.mxu0 0.0
    %2156 = vmatpush1.xpose.msra.mxu0 0.0
    %2157 = vmatprep.subr.mxu0 0.0
    %2158 = vmatpush1.xpose.msra.mxu0 0.0
    %2159 = vmatprep.subr.mxu0 0.0
    %2160 = vmatpush1.xpose.msra.mxu0 0.0
    %2161 = vmatprep.subr.mxu0 0.0
    %2162 = vmatpush1.xpose.msra.mxu0 0.0
    %2163 = vmatprep.mubr.f32.mxu0 0.0
    %2164 = vmatmul.mubr.f32.gmra.mrb[0].mxu0 %v2087
    %v2165 = vpop.f32.mrb[0].mxu0
    %v2166 = vadd.f32 0.0, %v2165
    %v2167 = vpop.f32.mrb[0].mxu0
    %2168 = vmatprep.mubr.f32.mxu0 0.0
    %2169 = vmatmul.mubr.f32.gmra.mrb[0].mxu0 %v2089
    %v2170 = vpop.f32.mrb[0].mxu0
    %v2171 = vadd.f32 0.0, %v2170
    %v2172 = vpop.f32.mrb[0].mxu0
    %2173 = vmatprep.mubr.f32.mxu0 0.0
    %2174 = vmatmul.mubr.f32.gmra.mrb[0].mxu0 %v2091
    %v2175 = vpop.f32.mrb[0].mxu0
    %v2176 = vadd.f32 0.0, %v2175
    %v2177 = vpop.f32.mrb[0].mxu0
    %2178 = vdwg.mxu0
    %v2179 = vmul.f32 %v2166, 0.35355338
    %v2180 = vmul.f32 %v2171, 0.35355338
    %v2181 = vmul.f32 %v2176, 0.35355338
    %v2182 = vsel %vm457, %v2179, -inf
    %2183 = vmax.xlane.f32.xlu0 %v2182
    %v2184 = vpop.xlane.xlu0 %2183
    %v2185 = vsel %vm457, %v2180, -inf
    %2186 = vmax.xlane.f32.xlu0 %v2185
    %v2187 = vpop.xlane.xlu0 %2186
    %v2188 = vsel %vm464, %v2181, -inf
    %2189 = vmax.xlane.f32.xlu0 %v2188
    %v2190 = vpop.xlane.xlu0 %2189
    %v2191 = vsub.f32 %v2179, %v2184
    %v2192 = vsub.f32 %v2180, %v2187
    %v2193 = vsub.f32 %v2181, %v2190
    %v2194 = vmul.f32 %v2191, 1.442695
    %v2195 = vpow.pop %v2194
    %v2196 = vmul.f32 %v2192, 1.442695
    %v2197 = vpow.pop %v2196
    %v2198 = vmul.f32 %v2193, 1.442695
    %v2199 = vpow.pop %v2198
    %v2200 = vsel %vm457, %v2195, 0.0
    %2201 = vadd.xlane.f32.xlu0 %v2200
    %v2202 = vpop.xlane.xlu0 %2201
    %v2203 = vsel %vm457, %v2197, 0.0
    %2204 = vadd.xlane.f32.xlu0 %v2203
    %v2205 = vpop.xlane.xlu0 %2204
    %v2206 = vsel %vm464, %v2199, 0.0
    %2207 = vadd.xlane.f32.xlu0 %v2206
    %v2208 = vpop.xlane.xlu0 %2207
    %v2209 = vrcp.pop %v2202
    %v2210 = vrcp.pop %v2205
    %v2211 = vrcp.pop %v2208
    %v2212 = vmul.f32 %v2195, %v2209
    %v2213 = vmul.f32 %v2197, %v2210
    %v2214 = vmul.f32 %v2199, %v2211
    %2215 = vrot.lane.b32.xlu0 %v1361, 40
    %v2216 = vpop.permute.xlu0 %2215
    %2217 = vrot.lane.b32.xlu0 %v1363, 40
    %v2218 = vpop.permute.xlu0 %2217
    %2219 = vrot.lane.b32.xlu0 %v1362, 40
    %v2220 = vpop.permute.xlu0 %2219
    %v2224 = vsel %vm457, %v2212, 0
    %v2227 = vsel %vm457, %v2213, 0
    %v2230 = vsel %vm457, %v2214, 0
    %v2232 = vsel %vm509, %v2220, 0
    %2234 = vmatprep.subr.mxu0 0.0
    %2235 = vmatpush1.msra.mxu0 %v2216
    %2236 = vmatprep.subr.mxu0 0.0
    %2237 = vmatpush1.msra.mxu0 %v2218
    %2238 = vmatprep.subr.mxu0 0.0
    %2239 = vmatpush1.msra.mxu0 %v2232
    %2240 = vmatprep.subr.mxu0 0.0
    %2241 = vmatpush1.msra.mxu0 0.0
    %2242 = vmatprep.subr.mxu0 0.0
    %2243 = vmatpush1.msra.mxu0 0.0
    %2244 = vmatprep.subr.mxu0 0.0
    %2245 = vmatpush1.msra.mxu0 0.0
    %2246 = vmatprep.subr.mxu0 0.0
    %2247 = vmatpush1.msra.mxu0 0.0
    %2248 = vmatprep.subr.mxu0 0.0
    %2249 = vmatpush1.msra.mxu0 0.0
    %2250 = vmatprep.subr.mxu0 0.0
    %2251 = vmatpush1.msra.mxu0 0.0
    %2252 = vmatprep.subr.mxu0 0.0
    %2253 = vmatpush1.msra.mxu0 0.0
    %2254 = vmatprep.subr.mxu0 0.0
    %2255 = vmatpush1.msra.mxu0 0.0
    %2256 = vmatprep.subr.mxu0 0.0
    %2257 = vmatpush1.msra.mxu0 0.0
    %2258 = vmatprep.subr.mxu0 0.0
    %2259 = vmatpush1.msra.mxu0 0.0
    %2260 = vmatprep.subr.mxu0 0.0
    %2261 = vmatpush1.msra.mxu0 0.0
    %2262 = vmatprep.subr.mxu0 0.0
    %2263 = vmatpush1.msra.mxu0 0.0
    %2264 = vmatprep.subr.mxu0 0.0
    %2265 = vmatpush1.msra.mxu0 0.0
    %2266 = vmatprep.subr.mxu0 0.0
    %2267 = vmatpush1.msra.mxu0 0.0
    %2268 = vmatprep.subr.mxu0 0.0
    %2269 = vmatpush1.msra.mxu0 0.0
    %2270 = vmatprep.subr.mxu0 0.0
    %2271 = vmatpush1.msra.mxu0 0.0
    %2272 = vmatprep.subr.mxu0 0.0
    %2273 = vmatpush1.msra.mxu0 0.0
    %2274 = vmatprep.subr.mxu0 0.0
    %2275 = vmatpush1.msra.mxu0 0.0
    %2276 = vmatprep.subr.mxu0 0.0
    %2277 = vmatpush1.msra.mxu0 0.0
    %2278 = vmatprep.subr.mxu0 0.0
    %2279 = vmatpush1.msra.mxu0 0.0
    %2280 = vmatprep.subr.mxu0 0.0
    %2281 = vmatpush1.msra.mxu0 0.0
    %2282 = vmatprep.subr.mxu0 0.0
    %2283 = vmatpush1.msra.mxu0 0.0
    %2284 = vmatprep.subr.mxu0 0.0
    %2285 = vmatpush1.msra.mxu0 0.0
    %2286 = vmatprep.subr.mxu0 0.0
    %2287 = vmatpush1.msra.mxu0 0.0
    %2288 = vmatprep.subr.mxu0 0.0
    %2289 = vmatpush1.msra.mxu0 0.0
    %2290 = vmatprep.subr.mxu0 0.0
    %2291 = vmatpush1.msra.mxu0 0.0
    %2292 = vmatprep.subr.mxu0 0.0
    %2293 = vmatpush1.msra.mxu0 0.0
    %2294 = vmatprep.subr.mxu0 0.0
    %2295 = vmatpush1.msra.mxu0 0.0
    %2296 = vmatprep.subr.mxu0 0.0
    %2297 = vmatpush1.msra.mxu0 0.0
    %2298 = vmatprep.mubr.f32.mxu0 0.0
    %2299 = vmatmul.mubr.f32.gmra.mrb[0].mxu0 %v2224
    %v2300 = vpop.f32.mrb[0].mxu0
    %v2301 = vadd.f32 0.0, %v2300
    %v2302 = vpop.f32.mrb[0].mxu0
    %2303 = vmatprep.mubr.f32.mxu0 0.0
    %2304 = vmatmul.mubr.f32.gmra.mrb[0].mxu0 %v2227
    %v2305 = vpop.f32.mrb[0].mxu0
    %v2306 = vadd.f32 0.0, %v2305
    %v2307 = vpop.f32.mrb[0].mxu0
    %2308 = vmatprep.mubr.f32.mxu0 0.0
    %2309 = vmatmul.mubr.f32.gmra.mrb[0].mxu0 %v2230
    %v2310 = vpop.f32.mrb[0].mxu0
    %v2311 = vadd.f32 0.0, %v2310
    %v2312 = vpop.f32.mrb[0].mxu0
    %2313 = vdwg.mxu0
    %2317 = vrot.lane.b32.xlu0 %v1823, 8
    %v2318 = vpop.permute.xlu0 %2317
    %2319 = vrot.lane.b32.xlu0 %v1828, 8
    %v2320 = vpop.permute.xlu0 %2319
    %2321 = vrot.lane.b32.xlu0 %v1833, 8
    %v2322 = vpop.permute.xlu0 %2321
    %2329 = vrot.lane.b32.xlu0 %v2062, 16
    %v2330 = vpop.permute.xlu0 %2329
    %2331 = vrot.lane.b32.xlu0 %v2067, 16
    %v2332 = vpop.permute.xlu0 %2331
    %2333 = vrot.lane.b32.xlu0 %v2072, 16
    %v2334 = vpop.permute.xlu0 %2333
    %2341 = vrot.lane.b32.xlu0 %v2301, 24
    %v2342 = vpop.permute.xlu0 %2341
    %2343 = vrot.lane.b32.xlu0 %v2306, 24
    %v2344 = vpop.permute.xlu0 %2343
    %2345 = vrot.lane.b32.xlu0 %v2311, 24
    %v2346 = vpop.permute.xlu0 %2345
    %v2350 = vsel %vm361, %v1584, %v2318
    %v2351 = vsel %vm361, %v1589, %v2320
    %v2352 = vsel %vm361, %v1594, %v2322
    %v2353 = vsel %vm1348, %v2350, %v2330
    %v2354 = vsel %vm1348, %v2351, %v2332
    %v2355 = vsel %vm1348, %v2352, %v2334
    %v2356 = vsel %vm1352, %v2353, %v2342
    %v2357 = vsel %vm1352, %v2354, %v2344
    %v2358 = vsel %vm1352, %v2355, %v2346
    %v2362 = vrot.slane %v2356, 7
    %v2363 = vrot.slane %v2357, 7
    %v2364 = vsel %vm509, %v2362, %v2363
    %v2365 = vrot.slane %v2358, 7
    %v2366 = vsel %vm509, %v2363, %v2365
    %v2368 = vsel %vm509, %v1355, %v2362
    %v2369 = vld [vmem:[%s4] sm:$0xff]
    %v2370 = vld [vmem:[%s4 + $0x8] sm:$0xff]
    %v2371 = vld [vmem:[%s4 + $0x10] sm:$0xff]
    %v2372 = vld [vmem:[%s4 + $0x18] sm:$0xff]
    %v2374 = vsel %vm153, %v1353, 0
    %v2377 = vsel %vm153, %v1354, 0
    %v2380 = vsel %vm153, %v2368, 0
    %v2382 = vsel %vm153, %v2364, 0
    %v2384 = vsel %vm153, %v2366, 0
    %2386 = vmatprep.subr.mxu0 0.0
    %2387 = vmatpush1.msra.mxu0 %v2369
    %2388 = vmatprep.subr.mxu0 0.0
    %2389 = vmatpush1.msra.mxu0 %v2370
    %2390 = vmatprep.subr.mxu0 0.0
    %2391 = vmatpush1.msra.mxu0 %v2371
    %2392 = vmatprep.subr.mxu0 0.0
    %2393 = vmatpush1.msra.mxu0 %v2372
    %2394 = vmatprep.subr.mxu0 0.0
    %2395 = vmatpush1.msra.mxu0 0.0
    %2396 = vmatprep.subr.mxu0 0.0
    %2397 = vmatpush1.msra.mxu0 0.0
    %2398 = vmatprep.subr.mxu0 0.0
    %2399 = vmatpush1.msra.mxu0 0.0
    %2400 = vmatprep.subr.mxu0 0.0
    %2401 = vmatpush1.msra.mxu0 0.0
    %2402 = vmatprep.subr.mxu0 0.0
    %2403 = vmatpush1.msra.mxu0 0.0
    %2404 = vmatprep.subr.mxu0 0.0
    %2405 = vmatpush1.msra.mxu0 0.0
    %2406 = vmatprep.subr.mxu0 0.0
    %2407 = vmatpush1.msra.mxu0 0.0
    %2408 = vmatprep.subr.mxu0 0.0
    %2409 = vmatpush1.msra.mxu0 0.0
    %2410 = vmatprep.subr.mxu0 0.0
    %2411 = vmatpush1.msra.mxu0 0.0
    %2412 = vmatprep.subr.mxu0 0.0
    %2413 = vmatpush1.msra.mxu0 0.0
    %2414 = vmatprep.subr.mxu0 0.0
    %2415 = vmatpush1.msra.mxu0 0.0
    %2416 = vmatprep.subr.mxu0 0.0
    %2417 = vmatpush1.msra.mxu0 0.0
    %2418 = vmatprep.subr.mxu0 0.0
    %2419 = vmatpush1.msra.mxu0 0.0
    %2420 = vmatprep.subr.mxu0 0.0
    %2421 = vmatpush1.msra.mxu0 0.0
    %2422 = vmatprep.subr.mxu0 0.0
    %2423 = vmatpush1.msra.mxu0 0.0
    %2424 = vmatprep.subr.mxu0 0.0
    %2425 = vmatpush1.msra.mxu0 0.0
    %2426 = vmatprep.subr.mxu0 0.0
    %2427 = vmatpush1.msra.mxu0 0.0
    %2428 = vmatprep.subr.mxu0 0.0
    %2429 = vmatpush1.msra.mxu0 0.0
    %2430 = vmatprep.subr.mxu0 0.0
    %2431 = vmatpush1.msra.mxu0 0.0
    %2432 = vmatprep.subr.mxu0 0.0
    %2433 = vmatpush1.msra.mxu0 0.0
    %2434 = vmatprep.subr.mxu0 0.0
    %2435 = vmatpush1.msra.mxu0 0.0
    %2436 = vmatprep.subr.mxu0 0.0
    %2437 = vmatpush1.msra.mxu0 0.0
    %2438 = vmatprep.subr.mxu0 0.0
    %2439 = vmatpush1.msra.mxu0 0.0
    %2440 = vmatprep.subr.mxu0 0.0
    %2441 = vmatpush1.msra.mxu0 0.0
    %2442 = vmatprep.subr.mxu0 0.0
    %2443 = vmatpush1.msra.mxu0 0.0
    %2444 = vmatprep.subr.mxu0 0.0
    %2445 = vmatpush1.msra.mxu0 0.0
    %2446 = vmatprep.subr.mxu0 0.0
    %2447 = vmatpush1.msra.mxu0 0.0
    %2448 = vmatprep.subr.mxu0 0.0
    %2449 = vmatpush1.msra.mxu0 0.0
    %2450 = vmatprep.mubr.f32.mxu0 0.0
    %2451 = vmatmul.mubr.f32.gmra.mrb[0].mxu0 %v2374
    %v2452 = vpop.f32.mrb[0].mxu0
    %v2453 = vadd.f32 0.0, %v2452
    %v2454 = vpop.f32.mrb[0].mxu0
    %2455 = vmatprep.mubr.f32.mxu0 0.0
    %2456 = vmatmul.mubr.f32.gmra.mrb[0].mxu0 %v2377
    %v2457 = vpop.f32.mrb[0].mxu0
    %v2458 = vadd.f32 0.0, %v2457
    %v2459 = vpop.f32.mrb[0].mxu0
    %2460 = vmatprep.mubr.f32.mxu0 0.0
    %2461 = vmatmul.mubr.f32.gmra.mrb[0].mxu0 %v2380
    %v2462 = vpop.f32.mrb[0].mxu0
    %v2463 = vadd.f32 0.0, %v2462
    %v2464 = vpop.f32.mrb[0].mxu0
    %2465 = vmatprep.mubr.f32.mxu0 0.0
    %2466 = vmatmul.mubr.f32.gmra.mrb[0].mxu0 %v2382
    %v2467 = vpop.f32.mrb[0].mxu0
    %v2468 = vadd.f32 0.0, %v2467
    %v2469 = vpop.f32.mrb[0].mxu0
    %2470 = vmatprep.mubr.f32.mxu0 0.0
    %2471 = vmatmul.mubr.f32.gmra.mrb[0].mxu0 %v2384
    %v2472 = vpop.f32.mrb[0].mxu0
    %v2473 = vadd.f32 0.0, %v2472
    %v2474 = vpop.f32.mrb[0].mxu0
    %2475 = vdwg.mxu0
    %v2476 = vadd.f32 %v129, %v2453
    %v2477 = vadd.f32 %v134, %v2458
    %v2478 = vadd.f32 %v139, %v2463
    %v2479 = vadd.f32 %v144, %v2468
    %v2480 = vadd.f32 %v149, %v2473
    %v2481 = vlaneseq
    %v2482 = vshrl.u32 %v2481, 7
    %v2483 = vsub.s32 5, %v2482
    %v2484 = vrot.slane %v152, %v2483
    %v2485 = vadd.f32 %v2476, %v2484
    %v2486 = vadd.f32 %v2477, %v2484
    %v2487 = vadd.f32 %v2478, %v2484
    %v2488 = vadd.f32 %v2479, %v2484
    %v2489 = vadd.f32 %v2480, %v2484
    %v2490 = vsel %vm153, %v2485, 0.0
    %2491 = vadd.xlane.f32.xlu0 %v2490
    %v2492 = vpop.xlane.xlu0 %2491
    %v2493 = vsel %vm153, %v2486, 0.0
    %2494 = vadd.xlane.f32.xlu0 %v2493
    %v2495 = vpop.xlane.xlu0 %2494
    %v2496 = vsel %vm153, %v2487, 0.0
    %2497 = vadd.xlane.f32.xlu0 %v2496
    %v2498 = vpop.xlane.xlu0 %2497
    %v2499 = vsel %vm153, %v2488, 0.0
    %2500 = vadd.xlane.f32.xlu0 %v2499
    %v2501 = vpop.xlane.xlu0 %2500
    %v2502 = vsel %vm166, %v2489, 0.0
    %2503 = vadd.xlane.f32.xlu0 %v2502
    %v2504 = vpop.xlane.xlu0 %2503
    %v2505 = vmul.f32 %v2492, %v170
    %v2506 = vmul.f32 %v2495, %v170
    %v2507 = vmul.f32 %v2498, %v170
    %v2508 = vmul.f32 %v2501, %v170
    %v2509 = vmul.f32 %v2504, %v170
    %v2510 = vsub.f32 %v2485, %v2505
    %v2511 = vsub.f32 %v2486, %v2506
    %v2512 = vsub.f32 %v2487, %v2507
    %v2513 = vsub.f32 %v2488, %v2508
    %v2514 = vsub.f32 %v2489, %v2509
    %v2515 = vmul.f32 %v2510, %v2510
    %v2516 = vmul.f32 %v2511, %v2511
    %v2517 = vmul.f32 %v2512, %v2512
    %v2518 = vmul.f32 %v2513, %v2513
    %v2519 = vmul.f32 %v2514, %v2514
    %v2520 = vsel %vm153, %v2515, 0.0
    %2521 = vadd.xlane.f32.xlu0 %v2520
    %v2522 = vpop.xlane.xlu0 %2521
    %v2523 = vsel %vm153, %v2516, 0.0
    %2524 = vadd.xlane.f32.xlu0 %v2523
    %v2525 = vpop.xlane.xlu0 %2524
    %v2526 = vsel %vm153, %v2517, 0.0
    %2527 = vadd.xlane.f32.xlu0 %v2526
    %v2528 = vpop.xlane.xlu0 %2527
    %v2529 = vsel %vm153, %v2518, 0.0
    %2530 = vadd.xlane.f32.xlu0 %v2529
    %v2531 = vpop.xlane.xlu0 %2530
    %v2532 = vsel %vm166, %v2519, 0.0
    %2533 = vadd.xlane.f32.xlu0 %v2532
    %v2534 = vpop.xlane.xlu0 %2533
    %v2535 = vmul.f32 %v2522, %v170
    %v2536 = vmul.f32 %v2525, %v170
    %v2537 = vmul.f32 %v2528, %v170
    %v2538 = vmul.f32 %v2531, %v170
    %v2539 = vmul.f32 %v2534, %v170
    %v2540 = vadd.f32 %v2535, 1e-05
    %v2541 = vadd.f32 %v2536, 1e-05
    %v2542 = vadd.f32 %v2537, 1e-05
    %v2543 = vadd.f32 %v2538, 1e-05
    %v2544 = vadd.f32 %v2539, 1e-05
    %v2545 = vrsqrt.pop %v2540
    %v2546 = vrsqrt.pop %v2541
    %v2547 = vrsqrt.pop %v2542
    %v2548 = vrsqrt.pop %v2543
    %v2549 = vrsqrt.pop %v2544
    %v2550 = vmul.f32 %v2510, %v2545
    %v2551 = vmul.f32 %v2511, %v2546
    %v2552 = vmul.f32 %v2512, %v2547
    %v2553 = vmul.f32 %v2513, %v2548
    %v2554 = vmul.f32 %v2514, %v2549
    %v2555 = vlaneseq
    %v2556 = vshrl.u32 %v2555, 7
    %v2557 = vsub.s32 2, %v2556
    %v2558 = vrot.slane %v152, %v2557
    %v2559 = vmul.f32 %v2550, %v2558
    %v2560 = vmul.f32 %v2551, %v2558
    %v2561 = vmul.f32 %v2552, %v2558
    %v2562 = vmul.f32 %v2553, %v2558
    %v2563 = vmul.f32 %v2554, %v2558
    %v2564 = vlaneseq
    %v2565 = vshrl.u32 %v2564, 7
    %v2566 = vsub.s32 3, %v2565
    %v2567 = vrot.slane %v152, %v2566
    %v2568 = vadd.f32 %v2559, %v2567
    %v2569 = vadd.f32 %v2560, %v2567
    %v2570 = vadd.f32 %v2561, %v2567
    %v2571 = vadd.f32 %v2562, %v2567
    %v2572 = vadd.f32 %v2563, %v2567
    %v2573 = vld [vmem:[%s5] sm:$0xff]
    %v2574 = vld [vmem:[%s5 + $0x8] sm:$0xff]
    %v2575 = vld [vmem:[%s5 + $0x10] sm:$0xff]
    %v2576 = vld [vmem:[%s5 + $0x18] sm:$0xff]
    %v2577 = vlaneseq
    %v2578 = vshrl.u32 %v2577, 7
    %v2579 = vsub.s32 6, %v2578
    %v2580 = vrot.slane %v152, %v2579
    %v2582 = vsel %vm153, %v2568, 0
    %v2585 = vsel %vm153, %v2569, 0
    %v2588 = vsel %vm153, %v2570, 0
    %v2591 = vsel %vm153, %v2571, 0
    %v2594 = vsel %vm153, %v2572, 0
    %2596 = vmatprep.subr.mxu0 0.0
    %2597 = vmatpush1.msra.mxu0 %v2573
    %2598 = vmatprep.subr.mxu0 0.0
    %2599 = vmatpush1.msra.mxu0 %v2574
    %2600 = vmatprep.subr.mxu0 0.0
    %2601 = vmatpush1.msra.mxu0 %v2575
    %2602 = vmatprep.subr.mxu0 0.0
    %2603 = vmatpush1.msra.mxu0 %v2576
    %2604 = vmatprep.subr.mxu0 0.0
    %2605 = vmatpush1.msra.mxu0 0.0
    %2606 = vmatprep.subr.mxu0 0.0
    %2607 = vmatpush1.msra.mxu0 0.0
    %2608 = vmatprep.subr.mxu0 0.0
    %2609 = vmatpush1.msra.mxu0 0.0
    %2610 = vmatprep.subr.mxu0 0.0
    %2611 = vmatpush1.msra.mxu0 0.0
    %2612 = vmatprep.subr.mxu0 0.0
    %2613 = vmatpush1.msra.mxu0 0.0
    %2614 = vmatprep.subr.mxu0 0.0
    %2615 = vmatpush1.msra.mxu0 0.0
    %2616 = vmatprep.subr.mxu0 0.0
    %2617 = vmatpush1.msra.mxu0 0.0
    %2618 = vmatprep.subr.mxu0 0.0
    %2619 = vmatpush1.msra.mxu0 0.0
    %2620 = vmatprep.subr.mxu0 0.0
    %2621 = vmatpush1.msra.mxu0 0.0
    %2622 = vmatprep.subr.mxu0 0.0
    %2623 = vmatpush1.msra.mxu0 0.0
    %2624 = vmatprep.subr.mxu0 0.0
    %2625 = vmatpush1.msra.mxu0 0.0
    %2626 = vmatprep.subr.mxu0 0.0
    %2627 = vmatpush1.msra.mxu0 0.0
    %2628 = vmatprep.subr.mxu0 0.0
    %2629 = vmatpush1.msra.mxu0 0.0
    %2630 = vmatprep.subr.mxu0 0.0
    %2631 = vmatpush1.msra.mxu0 0.0
    %2632 = vmatprep.subr.mxu0 0.0
    %2633 = vmatpush1.msra.mxu0 0.0
    %2634 = vmatprep.subr.mxu0 0.0
    %2635 = vmatpush1.msra.mxu0 0.0
    %2636 = vmatprep.subr.mxu0 0.0
    %2637 = vmatpush1.msra.mxu0 0.0
    %2638 = vmatprep.subr.mxu0 0.0
    %2639 = vmatpush1.msra.mxu0 0.0
    %2640 = vmatprep.subr.mxu0 0.0
    %2641 = vmatpush1.msra.mxu0 0.0
    %2642 = vmatprep.subr.mxu0 0.0
    %2643 = vmatpush1.msra.mxu0 0.0
    %2644 = vmatprep.subr.mxu0 0.0
    %2645 = vmatpush1.msra.mxu0 0.0
    %2646 = vmatprep.subr.mxu0 0.0
    %2647 = vmatpush1.msra.mxu0 0.0
    %2648 = vmatprep.subr.mxu0 0.0
    %2649 = vmatpush1.msra.mxu0 0.0
    %2650 = vmatprep.subr.mxu0 0.0
    %2651 = vmatpush1.msra.mxu0 0.0
    %2652 = vmatprep.subr.mxu0 0.0
    %2653 = vmatpush1.msra.mxu0 0.0
    %2654 = vmatprep.subr.mxu0 0.0
    %2655 = vmatpush1.msra.mxu0 0.0
    %2656 = vmatprep.subr.mxu0 0.0
    %2657 = vmatpush1.msra.mxu0 0.0
    %2658 = vmatprep.subr.mxu0 0.0
    %2659 = vmatpush1.msra.mxu0 0.0
    %2660 = vmatprep.mubr.f32.mxu0 0.0
    %2661 = vmatmul.mubr.f32.gmra.mrb[0].mxu0 %v2582
    %v2662 = vpop.f32.mrb[0].mxu0
    %v2663 = vadd.f32 %v2580, %v2662
    %v2664 = vpop.f32.mrb[0].mxu0
    %2665 = vmatprep.mubr.f32.mxu0 0.0
    %2666 = vmatmul.mubr.f32.gmra.mrb[0].mxu0 %v2585
    %v2667 = vpop.f32.mrb[0].mxu0
    %v2668 = vadd.f32 %v2580, %v2667
    %v2669 = vpop.f32.mrb[0].mxu0
    %2670 = vmatprep.mubr.f32.mxu0 0.0
    %2671 = vmatmul.mubr.f32.gmra.mrb[0].mxu0 %v2588
    %v2672 = vpop.f32.mrb[0].mxu0
    %v2673 = vadd.f32 %v2580, %v2672
    %v2674 = vpop.f32.mrb[0].mxu0
    %2675 = vmatprep.mubr.f32.mxu0 0.0
    %2676 = vmatmul.mubr.f32.gmra.mrb[0].mxu0 %v2591
    %v2677 = vpop.f32.mrb[0].mxu0
    %v2678 = vadd.f32 %v2580, %v2677
    %v2679 = vpop.f32.mrb[0].mxu0
    %2680 = vmatprep.mubr.f32.mxu0 0.0
    %2681 = vmatmul.mubr.f32.gmra.mrb[0].mxu0 %v2594
    %v2682 = vpop.f32.mrb[0].mxu0
    %v2683 = vadd.f32 %v2580, %v2682
    %v2684 = vpop.f32.mrb[0].mxu0
    %2685 = vdwg.mxu0
    %v2686 = vmul.f32 %v2663, 0.5
    %v2687 = vmul.f32 %v2668, 0.5
    %v2688 = vmul.f32 %v2673, 0.5
    %v2689 = vmul.f32 %v2678, 0.5
    %v2690 = vmul.f32 %v2683, 0.5
    %v2691 = vmul.f32 %v2663, 0.044715
    %v2692 = vmul.f32 %v2668, 0.044715
    %v2693 = vmul.f32 %v2673, 0.044715
    %v2694 = vmul.f32 %v2678, 0.044715
    %v2695 = vmul.f32 %v2683, 0.044715
    %v2696 = vmul.f32 %v2691, %v2663
    %v2697 = vmul.f32 %v2692, %v2668
    %v2698 = vmul.f32 %v2693, %v2673
    %v2699 = vmul.f32 %v2694, %v2678
    %v2700 = vmul.f32 %v2695, %v2683
    %v2701 = vmul.f32 %v2696, %v2663
    %v2702 = vmul.f32 %v2697, %v2668
    %v2703 = vmul.f32 %v2698, %v2673
    %v2704 = vmul.f32 %v2699, %v2678
    %v2705 = vmul.f32 %v2700, %v2683
    %v2706 = vadd.f32 %v2663, %v2701
    %v2707 = vadd.f32 %v2668, %v2702
    %v2708 = vadd.f32 %v2673, %v2703
    %v2709 = vadd.f32 %v2678, %v2704
    %v2710 = vadd.f32 %v2683, %v2705
    %v2711 = vmul.f32 %v2706, 0.7978846
    %v2712 = vmul.f32 %v2707, 0.7978846
    %v2713 = vmul.f32 %v2708, 0.7978846
    %v2714 = vmul.f32 %v2709, 0.7978846
    %v2715 = vmul.f32 %v2710, 0.7978846
    %v2716 = vtanh.pop %v2711
    %v2717 = vtanh.pop %v2712
    %v2718 = vtanh.pop %v2713
    %v2719 = vtanh.pop %v2714
    %v2720 = vtanh.pop %v2715
    %v2721 = vadd.f32 %v2716, 1.0
    %v2722 = vadd.f32 %v2717, 1.0
    %v2723 = vadd.f32 %v2718, 1.0
    %v2724 = vadd.f32 %v2719, 1.0
    %v2725 = vadd.f32 %v2720, 1.0
    %v2726 = vmul.f32 %v2686, %v2721
    %v2727 = vmul.f32 %v2687, %v2722
    %v2728 = vmul.f32 %v2688, %v2723
    %v2729 = vmul.f32 %v2689, %v2724
    %v2730 = vmul.f32 %v2690, %v2725
    %v2731 = vld [vmem:[%s6] sm:$0xff]
    %v2732 = vld [vmem:[%s6 + $0x8] sm:$0xff]
    %v2733 = vld [vmem:[%s6 + $0x10] sm:$0xff]
    %v2734 = vld [vmem:[%s6 + $0x18] sm:$0xff]
    %v2735 = vld [vmem:[%s6 + $0x20] sm:$0xff]
    %v2736 = vld [vmem:[%s6 + $0x28] sm:$0xff]
    %v2737 = vld [vmem:[%s6 + $0x30] sm:$0xff]
    %v2738 = vld [vmem:[%s6 + $0x38] sm:$0xff]
    %v2739 = vld [vmem:[%s6 + $0x40] sm:$0xff]
    %v2740 = vld [vmem:[%s6 + $0x48] sm:$0xff]
    %v2741 = vld [vmem:[%s6 + $0x50] sm:$0xff]
    %v2742 = vld [vmem:[%s6 + $0x58] sm:$0xff]
    %v2743 = vld [vmem:[%s6 + $0x60] sm:$0xff]
    %v2744 = vld [vmem:[%s6 + $0x68] sm:$0xff]
    %v2745 = vld [vmem:[%s6 + $0x70] sm:$0xff]
    %v2746 = vld [vmem:[%s6 + $0x78] sm:$0xff]
    %2747 = vmatprep.subr.mxu0 0.0
    %2748 = vmatpush1.msra.mxu0 %v2731
    %2749 = vmatprep.subr.mxu0 0.0
    %2750 = vmatpush1.msra.mxu0 %v2732
    %2751 = vmatprep.subr.mxu0 0.0
    %2752 = vmatpush1.msra.mxu0 %v2733
    %2753 = vmatprep.subr.mxu0 0.0
    %2754 = vmatpush1.msra.mxu0 %v2734
    %2755 = vmatprep.subr.mxu0 0.0
    %2756 = vmatpush1.msra.mxu0 %v2735
    %2757 = vmatprep.subr.mxu0 0.0
    %2758 = vmatpush1.msra.mxu0 %v2736
    %2759 = vmatprep.subr.mxu0 0.0
    %2760 = vmatpush1.msra.mxu0 %v2737
    %2761 = vmatprep.subr.mxu0 0.0
    %2762 = vmatpush1.msra.mxu0 %v2738
    %2763 = vmatprep.subr.mxu0 0.0
    %2764 = vmatpush1.msra.mxu0 %v2739
    %2765 = vmatprep.subr.mxu0 0.0
    %2766 = vmatpush1.msra.mxu0 %v2740
    %2767 = vmatprep.subr.mxu0 0.0
    %2768 = vmatpush1.msra.mxu0 %v2741
    %2769 = vmatprep.subr.mxu0 0.0
    %2770 = vmatpush1.msra.mxu0 %v2742
    %2771 = vmatprep.subr.mxu0 0.0
    %2772 = vmatpush1.msra.mxu0 %v2743
    %2773 = vmatprep.subr.mxu0 0.0
    %2774 = vmatpush1.msra.mxu0 %v2744
    %2775 = vmatprep.subr.mxu0 0.0
    %2776 = vmatpush1.msra.mxu0 %v2745
    %2777 = vmatprep.subr.mxu0 0.0
    %2778 = vmatpush1.msra.mxu0 %v2746
    %2779 = vmatprep.subr.mxu0 0.0
    %2780 = vmatpush1.msra.mxu0 0.0
    %2781 = vmatprep.subr.mxu0 0.0
    %2782 = vmatpush1.msra.mxu0 0.0
    %2783 = vmatprep.subr.mxu0 0.0
    %2784 = vmatpush1.msra.mxu0 0.0
    %2785 = vmatprep.subr.mxu0 0.0
    %2786 = vmatpush1.msra.mxu0 0.0
    %2787 = vmatprep.subr.mxu0 0.0
    %2788 = vmatpush1.msra.mxu0 0.0
    %2789 = vmatprep.subr.mxu0 0.0
    %2790 = vmatpush1.msra.mxu0 0.0
    %2791 = vmatprep.subr.mxu0 0.0
    %2792 = vmatpush1.msra.mxu0 0.0
    %2793 = vmatprep.subr.mxu0 0.0
    %2794 = vmatpush1.msra.mxu0 0.0
    %2795 = vmatprep.subr.mxu0 0.0
    %2796 = vmatpush1.msra.mxu0 0.0
    %2797 = vmatprep.subr.mxu0 0.0
    %2798 = vmatpush1.msra.mxu0 0.0
    %2799 = vmatprep.subr.mxu0 0.0
    %2800 = vmatpush1.msra.mxu0 0.0
    %2801 = vmatprep.subr.mxu0 0.0
    %2802 = vmatpush1.msra.mxu0 0.0
    %2803 = vmatprep.subr.mxu0 0.0
    %2804 = vmatpush1.msra.mxu0 0.0
    %2805 = vmatprep.subr.mxu0 0.0
    %2806 = vmatpush1.msra.mxu0 0.0
    %2807 = vmatprep.subr.mxu0 0.0
    %2808 = vmatpush1.msra.mxu0 0.0
    %2809 = vmatprep.subr.mxu0 0.0
    %2810 = vmatpush1.msra.mxu0 0.0
    %2811 = vmatprep.mubr.f32.mxu0 0.0
    %2812 = vmatmul.mubr.f32.gmra.mrb[0].mxu0 %v2726
    %v2813 = vpop.f32.mrb[0].mxu0
    %v2814 = vadd.f32 0.0, %v2813
    %v2815 = vpop.f32.mrb[0].mxu0
    %2816 = vmatprep.mubr.f32.mxu0 0.0
    %2817 = vmatmul.mubr.f32.gmra.mrb[0].mxu0 %v2727
    %v2818 = vpop.f32.mrb[0].mxu0
    %v2819 = vadd.f32 0.0, %v2818
    %v2820 = vpop.f32.mrb[0].mxu0
    %2821 = vmatprep.mubr.f32.mxu0 0.0
    %2822 = vmatmul.mubr.f32.gmra.mrb[0].mxu0 %v2728
    %v2823 = vpop.f32.mrb[0].mxu0
    %v2824 = vadd.f32 0.0, %v2823
    %v2825 = vpop.f32.mrb[0].mxu0
    %2826 = vmatprep.mubr.f32.mxu0 0.0
    %2827 = vmatmul.mubr.f32.gmra.mrb[0].mxu0 %v2729
    %v2828 = vpop.f32.mrb[0].mxu0
    %v2829 = vadd.f32 0.0, %v2828
    %v2830 = vpop.f32.mrb[0].mxu0
    %2831 = vmatprep.mubr.f32.mxu0 0.0
    %2832 = vmatmul.mubr.f32.gmra.mrb[0].mxu0 %v2730
    %v2833 = vpop.f32.mrb[0].mxu0
    %v2834 = vadd.f32 0.0, %v2833
    %v2835 = vpop.f32.mrb[0].mxu0
    %2836 = vdwg.mxu0
    %v2837 = vadd.f32 %v2485, %v2814
    %v2838 = vadd.f32 %v2486, %v2819
    %v2839 = vadd.f32 %v2487, %v2824
    %v2840 = vadd.f32 %v2488, %v2829
    %v2841 = vadd.f32 %v2489, %v2834
    %v2842 = vlaneseq
    %v2843 = vshrl.u32 %v2842, 7
    %v2844 = vsub.s32 7, %v2843
    %v2845 = vrot.slane %v152, %v2844
    %v2846 = vadd.f32 %v2837, %v2845
    %v2847 = vadd.f32 %v2838, %v2845
    %v2848 = vadd.f32 %v2839, %v2845
    %v2849 = vadd.f32 %v2840, %v2845
    %v2850 = vadd.f32 %v2841, %v2845
    %s2851 = scalar_lea.vmem %s7, 8
    %v2852 = vld [vmem:[%s2851] sm:$0xff]
    %v2853 = vsel %vm153, %v2846, 0.0
    %2854 = vadd.xlane.f32.xlu0 %v2853
    %v2855 = vpop.xlane.xlu0 %2854
    %v2856 = vsel %vm153, %v2847, 0.0
    %2857 = vadd.xlane.f32.xlu0 %v2856
    %v2858 = vpop.xlane.xlu0 %2857
    %v2859 = vsel %vm153, %v2848, 0.0
    %2860 = vadd.xlane.f32.xlu0 %v2859
    %v2861 = vpop.xlane.xlu0 %2860
    %v2862 = vsel %vm153, %v2849, 0.0
    %2863 = vadd.xlane.f32.xlu0 %v2862
    %v2864 = vpop.xlane.xlu0 %2863
    %v2865 = vsel %vm166, %v2850, 0.0
    %2866 = vadd.xlane.f32.xlu0 %v2865
    %v2867 = vpop.xlane.xlu0 %2866
    %v2868 = vmul.f32 %v2855, %v170
    %v2869 = vmul.f32 %v2858, %v170
    %v2870 = vmul.f32 %v2861, %v170
    %v2871 = vmul.f32 %v2864, %v170
    %v2872 = vmul.f32 %v2867, %v170
    %v2873 = vsub.f32 %v2846, %v2868
    %v2874 = vsub.f32 %v2847, %v2869
    %v2875 = vsub.f32 %v2848, %v2870
    %v2876 = vsub.f32 %v2849, %v2871
    %v2877 = vsub.f32 %v2850, %v2872
    %v2878 = vmul.f32 %v2873, %v2873
    %v2879 = vmul.f32 %v2874, %v2874
    %v2880 = vmul.f32 %v2875, %v2875
    %v2881 = vmul.f32 %v2876, %v2876
    %v2882 = vmul.f32 %v2877, %v2877
    %v2883 = vsel %vm153, %v2878, 0.0
    %2884 = vadd.xlane.f32.xlu0 %v2883
    %v2885 = vpop.xlane.xlu0 %2884
    %v2886 = vsel %vm153, %v2879, 0.0
    %2887 = vadd.xlane.f32.xlu0 %v2886
    %v2888 = vpop.xlane.xlu0 %2887
    %v2889 = vsel %vm153, %v2880, 0.0
    %2890 = vadd.xlane.f32.xlu0 %v2889
    %v2891 = vpop.xlane.xlu0 %2890
    %v2892 = vsel %vm153, %v2881, 0.0
    %2893 = vadd.xlane.f32.xlu0 %v2892
    %v2894 = vpop.xlane.xlu0 %2893
    %v2895 = vsel %vm166, %v2882, 0.0
    %2896 = vadd.xlane.f32.xlu0 %v2895
    %v2897 = vpop.xlane.xlu0 %2896
    %v2898 = vmul.f32 %v2885, %v170
    %v2899 = vmul.f32 %v2888, %v170
    %v2900 = vmul.f32 %v2891, %v170
    %v2901 = vmul.f32 %v2894, %v170
    %v2902 = vmul.f32 %v2897, %v170
    %v2903 = vadd.f32 %v2898, 1e-05
    %v2904 = vadd.f32 %v2899, 1e-05
    %v2905 = vadd.f32 %v2900, 1e-05
    %v2906 = vadd.f32 %v2901, 1e-05
    %v2907 = vadd.f32 %v2902, 1e-05
    %v2908 = vrsqrt.pop %v2903
    %v2909 = vrsqrt.pop %v2904
    %v2910 = vrsqrt.pop %v2905
    %v2911 = vrsqrt.pop %v2906
    %v2912 = vrsqrt.pop %v2907
    %v2913 = vmul.f32 %v2873, %v2908
    %v2914 = vmul.f32 %v2874, %v2909
    %v2915 = vmul.f32 %v2875, %v2910
    %v2916 = vmul.f32 %v2876, %v2911
    %v2917 = vmul.f32 %v2877, %v2912
    %v2918 = vlaneseq
    %v2919 = vshrl.u32 %v2918, 7
    %v2920 = vsub.s32 0, %v2919
    %v2921 = vrot.slane %v2852, %v2920
    %v2922 = vmul.f32 %v2913, %v2921
    %v2923 = vmul.f32 %v2914, %v2921
    %v2924 = vmul.f32 %v2915, %v2921
    %v2925 = vmul.f32 %v2916, %v2921
    %v2926 = vmul.f32 %v2917, %v2921
    %v2927 = vlaneseq
    %v2928 = vshrl.u32 %v2927, 7
    %v2929 = vsub.s32 1, %v2928
    %v2930 = vrot.slane %v2852, %v2929
    %v2931 = vadd.f32 %v2922, %v2930
    %v2932 = vadd.f32 %v2923, %v2930
    %v2933 = vadd.f32 %v2924, %v2930
    %v2934 = vadd.f32 %v2925, %v2930
    %v2935 = vadd.f32 %v2926, %v2930
    %s2936 = scalar_lea.vmem %s3, 32
    %v2937 = vld [vmem:[%s2936] sm:$0xff]
    %v2938 = vld [vmem:[%s2936 + $0x8] sm:$0xff]
    %v2939 = vld [vmem:[%s2936 + $0x10] sm:$0xff]
    %v2940 = vld [vmem:[%s2936 + $0x18] sm:$0xff]
    %v2941 = vlaneseq
    %v2942 = vshrl.u32 %v2941, 7
    %v2943 = vsub.s32 4, %v2942
    %v2944 = vrot.slane %v2852, %v2943
    %v2946 = vsel %vm153, %v2931, 0
    %v2949 = vsel %vm153, %v2932, 0
    %v2952 = vsel %vm153, %v2933, 0
    %v2955 = vsel %vm153, %v2934, 0
    %v2958 = vsel %vm153, %v2935, 0
    %2960 = vmatprep.subr.mxu0 0.0
    %2961 = vmatpush1.msra.mxu0 %v2937
    %2962 = vmatprep.subr.mxu0 0.0
    %2963 = vmatpush1.msra.mxu0 %v2938
    %2964 = vmatprep.subr.mxu0 0.0
    %2965 = vmatpush1.msra.mxu0 %v2939
    %2966 = vmatprep.subr.mxu0 0.0
    %2967 = vmatpush1.msra.mxu0 %v2940
    %2968 = vmatprep.subr.mxu0 0.0
    %2969 = vmatpush1.msra.mxu0 0.0
    %2970 = vmatprep.subr.mxu0 0.0
    %2971 = vmatpush1.msra.mxu0 0.0
    %2972 = vmatprep.subr.mxu0 0.0
    %2973 = vmatpush1.msra.mxu0 0.0
    %2974 = vmatprep.subr.mxu0 0.0
    %2975 = vmatpush1.msra.mxu0 0.0
    %2976 = vmatprep.subr.mxu0 0.0
    %2977 = vmatpush1.msra.mxu0 0.0
    %2978 = vmatprep.subr.mxu0 0.0
    %2979 = vmatpush1.msra.mxu0 0.0
    %2980 = vmatprep.subr.mxu0 0.0
    %2981 = vmatpush1.msra.mxu0 0.0
    %2982 = vmatprep.subr.mxu0 0.0
    %2983 = vmatpush1.msra.mxu0 0.0
    %2984 = vmatprep.subr.mxu0 0.0
    %2985 = vmatpush1.msra.mxu0 0.0
    %2986 = vmatprep.subr.mxu0 0.0
    %2987 = vmatpush1.msra.mxu0 0.0
    %2988 = vmatprep.subr.mxu0 0.0
    %2989 = vmatpush1.msra.mxu0 0.0
    %2990 = vmatprep.subr.mxu0 0.0
    %2991 = vmatpush1.msra.mxu0 0.0
    %2992 = vmatprep.subr.mxu0 0.0
    %2993 = vmatpush1.msra.mxu0 0.0
    %2994 = vmatprep.subr.mxu0 0.0
    %2995 = vmatpush1.msra.mxu0 0.0
    %2996 = vmatprep.subr.mxu0 0.0
    %2997 = vmatpush1.msra.mxu0 0.0
    %2998 = vmatprep.subr.mxu0 0.0
    %2999 = vmatpush1.msra.mxu0 0.0
    %3000 = vmatprep.subr.mxu0 0.0
    %3001 = vmatpush1.msra.mxu0 0.0
    %3002 = vmatprep.subr.mxu0 0.0
    %3003 = vmatpush1.msra.mxu0 0.0
    %3004 = vmatprep.subr.mxu0 0.0
    %3005 = vmatpush1.msra.mxu0 0.0
    %3006 = vmatprep.subr.mxu0 0.0
    %3007 = vmatpush1.msra.mxu0 0.0
    %3008 = vmatprep.subr.mxu0 0.0
    %3009 = vmatpush1.msra.mxu0 0.0
    %3010 = vmatprep.subr.mxu0 0.0
    %3011 = vmatpush1.msra.mxu0 0.0
    %3012 = vmatprep.subr.mxu0 0.0
    %3013 = vmatpush1.msra.mxu0 0.0
    %3014 = vmatprep.subr.mxu0 0.0
    %3015 = vmatpush1.msra.mxu0 0.0
    %3016 = vmatprep.subr.mxu0 0.0
    %3017 = vmatpush1.msra.mxu0 0.0
    %3018 = vmatprep.subr.mxu0 0.0
    %3019 = vmatpush1.msra.mxu0 0.0
    %3020 = vmatprep.subr.mxu0 0.0
    %3021 = vmatpush1.msra.mxu0 0.0
    %3022 = vmatprep.subr.mxu0 0.0
    %3023 = vmatpush1.msra.mxu0 0.0
    %3024 = vmatprep.mubr.f32.mxu0 0.0
    %3025 = vmatmul.mubr.f32.gmra.mrb[0].mxu0 %v2946
    %v3026 = vpop.f32.mrb[0].mxu0
    %v3027 = vadd.f32 %v2944, %v3026
    %v3028 = vpop.f32.mrb[0].mxu0
    %3029 = vmatprep.mubr.f32.mxu0 0.0
    %3030 = vmatmul.mubr.f32.gmra.mrb[0].mxu0 %v2949
    %v3031 = vpop.f32.mrb[0].mxu0
    %v3032 = vadd.f32 %v2944, %v3031
    %v3033 = vpop.f32.mrb[0].mxu0
    %3034 = vmatprep.mubr.f32.mxu0 0.0
    %3035 = vmatmul.mubr.f32.gmra.mrb[0].mxu0 %v2952
    %v3036 = vpop.f32.mrb[0].mxu0
    %v3037 = vadd.f32 %v2944, %v3036
    %v3038 = vpop.f32.mrb[0].mxu0
    %3039 = vmatprep.mubr.f32.mxu0 0.0
    %3040 = vmatmul.mubr.f32.gmra.mrb[0].mxu0 %v2955
    %v3041 = vpop.f32.mrb[0].mxu0
    %v3042 = vadd.f32 %v2944, %v3041
    %v3043 = vpop.f32.mrb[0].mxu0
    %3044 = vmatprep.mubr.f32.mxu0 0.0
    %3045 = vmatmul.mubr.f32.gmra.mrb[0].mxu0 %v2958
    %v3046 = vpop.f32.mrb[0].mxu0
    %v3047 = vadd.f32 %v2944, %v3046
    %v3048 = vpop.f32.mrb[0].mxu0
    %3049 = vdwg.mxu0
    %3053 = vrot.lane.b32.xlu0 %v3027, 96
    %v3054 = vpop.permute.xlu0 %3053
    %3055 = vrot.lane.b32.xlu0 %v3032, 96
    %v3056 = vpop.permute.xlu0 %3055
    %3057 = vrot.lane.b32.xlu0 %v3037, 96
    %v3058 = vpop.permute.xlu0 %3057
    %v3059 = vsel %vm361, %v3027, 0
    %v3061 = vsel %vm361, %v3032, 0
    %v3063 = vsel %vm361, %v3037, 0
    %v3065 = vsel %vm361, %v3054, 0
    %v3067 = vsel %vm361, %v3056, 0
    %v3069 = vsel %vm361, %v3058, 0
    %3071 = vmatprep.subr.mxu0 0.0
    %3072 = vmatpush1.xpose.msra.mxu0 %v3065
    %3073 = vmatprep.subr.mxu0 0.0
    %3074 = vmatpush1.xpose.msra.mxu0 %v3067
    %3075 = vmatprep.subr.mxu0 0.0
    %3076 = vmatpush1.xpose.msra.mxu0 %v3069
    %3077 = vmatprep.subr.mxu0 0.0
    %3078 = vmatpush1.xpose.msra.mxu0 0.0
    %3079 = vmatprep.subr.mxu0 0.0
    %3080 = vmatpush1.xpose.msra.mxu0 0.0
    %3081 = vmatprep.subr.mxu0 0.0
    %3082 = vmatpush1.xpose.msra.mxu0 0.0
    %3083 = vmatprep.subr.mxu0 0.0
    %3084 = vmatpush1.xpose.msra.mxu0 0.0
    %3085 = vmatprep.subr.mxu0 0.0
    %3086 = vmatpush1.xpose.msra.mxu0 0.0
    %3087 = vmatprep.subr.mxu0 0.0
    %3088 = vmatpush1.xpose.msra.mxu0 0.0
    %3089 = vmatprep.subr.mxu0 0.0
    %3090 = vmatpush1.xpose.msra.mxu0 0.0
    %3091 = vmatprep.subr.mxu0 0.0
    %3092 = vmatpush1.xpose.msra.mxu0 0.0
    %3093 = vmatprep.subr.mxu0 0.0
    %3094 = vmatpush1.xpose.msra.mxu0 0.0
    %3095 = vmatprep.subr.mxu0 0.0
    %3096 = vmatpush1.xpose.msra.mxu0 0.0
    %3097 = vmatprep.subr.mxu0 0.0
    %3098 = vmatpush1.xpose.msra.mxu0 0.0
    %3099 = vmatprep.subr.mxu0 0.0
    %3100 = vmatpush1.xpose.msra.mxu0 0.0
    %3101 = vmatprep.subr.mxu0 0.0
    %3102 = vmatpush1.xpose.msra.mxu0 0.0
    %3103 = vmatprep.subr.mxu0 0.0
    %3104 = vmatpush1.xpose.msra.mxu0 0.0
    %3105 = vmatprep.subr.mxu0 0.0
    %3106 = vmatpush1.xpose.msra.mxu0 0.0
    %3107 = vmatprep.subr.mxu0 0.0
    %3108 = vmatpush1.xpose.msra.mxu0 0.0
    %3109 = vmatprep.subr.mxu0 0.0
    %3110 = vmatpush1.xpose.msra.mxu0 0.0
    %3111 = vmatprep.subr.mxu0 0.0
    %3112 = vmatpush1.xpose.msra.mxu0 0.0
    %3113 = vmatprep.subr.mxu0 0.0
    %3114 = vmatpush1.xpose.msra.mxu0 0.0
    %3115 = vmatprep.subr.mxu0 0.0
    %3116 = vmatpush1.xpose.msra.mxu0 0.0
    %3117 = vmatprep.subr.mxu0 0.0
    %3118 = vmatpush1.xpose.msra.mxu0 0.0
    %3119 = vmatprep.subr.mxu0 0.0
    %3120 = vmatpush1.xpose.msra.mxu0 0.0
    %3121 = vmatprep.subr.mxu0 0.0
    %3122 = vmatpush1.xpose.msra.mxu0 0.0
    %3123 = vmatprep.subr.mxu0 0.0
    %3124 = vmatpush1.xpose.msra.mxu0 0.0
    %3125 = vmatprep.subr.mxu0 0.0
    %3126 = vmatpush1.xpose.msra.mxu0 0.0
    %3127 = vmatprep.subr.mxu0 0.0
    %3128 = vmatpush1.xpose.msra.mxu0 0.0
    %3129 = vmatprep.subr.mxu0 0.0
    %3130 = vmatpush1.xpose.msra.mxu0 0.0
    %3131 = vmatprep.subr.mxu0 0.0
    %3132 = vmatpush1.xpose.msra.mxu0 0.0
    %3133 = vmatprep.subr.mxu0 0.0
    %3134 = vmatpush1.xpose.msra.mxu0 0.0
    %3135 = vmatprep.mubr.f32.mxu0 0.0
    %3136 = vmatmul.mubr.f32.gmra.mrb[0].mxu0 %v3059
    %v3137 = vpop.f32.mrb[0].mxu0
    %v3138 = vadd.f32 0.0, %v3137
    %v3139 = vpop.f32.mrb[0].mxu0
    %3140 = vmatprep.mubr.f32.mxu0 0.0
    %3141 = vmatmul.mubr.f32.gmra.mrb[0].mxu0 %v3061
    %v3142 = vpop.f32.mrb[0].mxu0
    %v3143 = vadd.f32 0.0, %v3142
    %v3144 = vpop.f32.mrb[0].mxu0
    %3145 = vmatprep.mubr.f32.mxu0 0.0
    %3146 = vmatmul.mubr.f32.gmra.mrb[0].mxu0 %v3063
    %v3147 = vpop.f32.mrb[0].mxu0
    %v3148 = vadd.f32 0.0, %v3147
    %v3149 = vpop.f32.mrb[0].mxu0
    %3150 = vdwg.mxu0
    %v3151 = vmul.f32 %v3138, 0.35355338
    %v3152 = vmul.f32 %v3143, 0.35355338
    %v3153 = vmul.f32 %v3148, 0.35355338
    %v3154 = vsel %vm457, %v3151, -inf
    %3155 = vmax.xlane.f32.xlu0 %v3154
    %v3156 = vpop.xlane.xlu0 %3155
    %v3157 = vsel %vm457, %v3152, -inf
    %3158 = vmax.xlane.f32.xlu0 %v3157
    %v3159 = vpop.xlane.xlu0 %3158
    %v3160 = vsel %vm464, %v3153, -inf
    %3161 = vmax.xlane.f32.xlu0 %v3160
    %v3162 = vpop.xlane.xlu0 %3161
    %v3163 = vsub.f32 %v3151, %v3156
    %v3164 = vsub.f32 %v3152, %v3159
    %v3165 = vsub.f32 %v3153, %v3162
    %v3166 = vmul.f32 %v3163, 1.442695
    %v3167 = vpow.pop %v3166
    %v3168 = vmul.f32 %v3164, 1.442695
    %v3169 = vpow.pop %v3168
    %v3170 = vmul.f32 %v3165, 1.442695
    %v3171 = vpow.pop %v3170
    %v3172 = vsel %vm457, %v3167, 0.0
    %3173 = vadd.xlane.f32.xlu0 %v3172
    %v3174 = vpop.xlane.xlu0 %3173
    %v3175 = vsel %vm457, %v3169, 0.0
    %3176 = vadd.xlane.f32.xlu0 %v3175
    %v3177 = vpop.xlane.xlu0 %3176
    %v3178 = vsel %vm464, %v3171, 0.0
    %3179 = vadd.xlane.f32.xlu0 %v3178
    %v3180 = vpop.xlane.xlu0 %3179
    %v3181 = vrcp.pop %v3174
    %v3182 = vrcp.pop %v3177
    %v3183 = vrcp.pop %v3180
    %v3184 = vmul.f32 %v3167, %v3181
    %v3185 = vmul.f32 %v3169, %v3182
    %v3186 = vmul.f32 %v3171, %v3183
    %3187 = vrot.lane.b32.xlu0 %v3027, 64
    %v3188 = vpop.permute.xlu0 %3187
    %3189 = vrot.lane.b32.xlu0 %v3032, 64
    %v3190 = vpop.permute.xlu0 %3189
    %3191 = vrot.lane.b32.xlu0 %v3037, 64
    %v3192 = vpop.permute.xlu0 %3191
    %v3196 = vsel %vm457, %v3184, 0
    %v3199 = vsel %vm457, %v3185, 0
    %v3202 = vsel %vm457, %v3186, 0
    %v3204 = vsel %vm509, %v3192, 0
    %3206 = vmatprep.subr.mxu0 0.0
    %3207 = vmatpush1.msra.mxu0 %v3188
    %3208 = vmatprep.subr.mxu0 0.0
    %3209 = vmatpush1.msra.mxu0 %v3190
    %3210 = vmatprep.subr.mxu0 0.0
    %3211 = vmatpush1.msra.mxu0 %v3204
    %3212 = vmatprep.subr.mxu0 0.0
    %3213 = vmatpush1.msra.mxu0 0.0
    %3214 = vmatprep.subr.mxu0 0.0
    %3215 = vmatpush1.msra.mxu0 0.0
    %3216 = vmatprep.subr.mxu0 0.0
    %3217 = vmatpush1.msra.mxu0 0.0
    %3218 = vmatprep.subr.mxu0 0.0
    %3219 = vmatpush1.msra.mxu0 0.0
    %3220 = vmatprep.subr.mxu0 0.0
    %3221 = vmatpush1.msra.mxu0 0.0
    %3222 = vmatprep.subr.mxu0 0.0
    %3223 = vmatpush1.msra.mxu0 0.0
    %3224 = vmatprep.subr.mxu0 0.0
    %3225 = vmatpush1.msra.mxu0 0.0
    %3226 = vmatprep.subr.mxu0 0.0
    %3227 = vmatpush1.msra.mxu0 0.0
    %3228 = vmatprep.subr.mxu0 0.0
    %3229 = vmatpush1.msra.mxu0 0.0
    %3230 = vmatprep.subr.mxu0 0.0
    %3231 = vmatpush1.msra.mxu0 0.0
    %3232 = vmatprep.subr.mxu0 0.0
    %3233 = vmatpush1.msra.mxu0 0.0
    %3234 = vmatprep.subr.mxu0 0.0
    %3235 = vmatpush1.msra.mxu0 0.0
    %3236 = vmatprep.subr.mxu0 0.0
    %3237 = vmatpush1.msra.mxu0 0.0
    %3238 = vmatprep.subr.mxu0 0.0
    %3239 = vmatpush1.msra.mxu0 0.0
    %3240 = vmatprep.subr.mxu0 0.0
    %3241 = vmatpush1.msra.mxu0 0.0
    %3242 = vmatprep.subr.mxu0 0.0
    %3243 = vmatpush1.msra.mxu0 0.0
    %3244 = vmatprep.subr.mxu0 0.0
    %3245 = vmatpush1.msra.mxu0 0.0
    %3246 = vmatprep.subr.mxu0 0.0
    %3247 = vmatpush1.msra.mxu0 0.0
    %3248 = vmatprep.subr.mxu0 0.0
    %3249 = vmatpush1.msra.mxu0 0.0
    %3250 = vmatprep.subr.mxu0 0.0
    %3251 = vmatpush1.msra.mxu0 0.0
    %3252 = vmatprep.subr.mxu0 0.0
    %3253 = vmatpush1.msra.mxu0 0.0
    %3254 = vmatprep.subr.mxu0 0.0
    %3255 = vmatpush1.msra.mxu0 0.0
    %3256 = vmatprep.subr.mxu0 0.0
    %3257 = vmatpush1.msra.mxu0 0.0
    %3258 = vmatprep.subr.mxu0 0.0
    %3259 = vmatpush1.msra.mxu0 0.0
    %3260 = vmatprep.subr.mxu0 0.0
    %3261 = vmatpush1.msra.mxu0 0.0
    %3262 = vmatprep.subr.mxu0 0.0
    %3263 = vmatpush1.msra.mxu0 0.0
    %3264 = vmatprep.subr.mxu0 0.0
    %3265 = vmatpush1.msra.mxu0 0.0
    %3266 = vmatprep.subr.mxu0 0.0
    %3267 = vmatpush1.msra.mxu0 0.0
    %3268 = vmatprep.subr.mxu0 0.0
    %3269 = vmatpush1.msra.mxu0 0.0
    %3270 = vmatprep.mubr.f32.mxu0 0.0
    %3271 = vmatmul.mubr.f32.gmra.mrb[0].mxu0 %v3196
    %v3272 = vpop.f32.mrb[0].mxu0
    %v3273 = vadd.f32 0.0, %v3272
    %v3274 = vpop.f32.mrb[0].mxu0
    %3275 = vmatprep.mubr.f32.mxu0 0.0
    %3276 = vmatmul.mubr.f32.gmra.mrb[0].mxu0 %v3199
    %v3277 = vpop.f32.mrb[0].mxu0
    %v3278 = vadd.f32 0.0, %v3277
    %v3279 = vpop.f32.mrb[0].mxu0
    %3280 = vmatprep.mubr.f32.mxu0 0.0
    %3281 = vmatmul.mubr.f32.gmra.mrb[0].mxu0 %v3202
    %v3282 = vpop.f32.mrb[0].mxu0
    %v3283 = vadd.f32 0.0, %v3282
    %v3284 = vpop.f32.mrb[0].mxu0
    %3285 = vdwg.mxu0
    %3286 = vrot.lane.b32.xlu0 %v3027, 120
    %v3287 = vpop.permute.xlu0 %3286
    %3288 = vrot.lane.b32.xlu0 %v3032, 120
    %v3289 = vpop.permute.xlu0 %3288
    %3290 = vrot.lane.b32.xlu0 %v3037, 120
    %v3291 = vpop.permute.xlu0 %3290
    %3292 = vrot.lane.b32.xlu0 %v3027, 88
    %v3293 = vpop.permute.xlu0 %3292
    %3294 = vrot.lane.b32.xlu0 %v3032, 88
    %v3295 = vpop.permute.xlu0 %3294
    %3296 = vrot.lane.b32.xlu0 %v3037, 88
    %v3297 = vpop.permute.xlu0 %3296
    %v3298 = vsel %vm361, %v3287, 0
    %v3300 = vsel %vm361, %v3289, 0
    %v3302 = vsel %vm361, %v3291, 0
    %v3304 = vsel %vm361, %v3293, 0
    %v3306 = vsel %vm361, %v3295, 0
    %v3308 = vsel %vm361, %v3297, 0
    %3310 = vmatprep.subr.mxu0 0.0
    %3311 = vmatpush1.xpose.msra.mxu0 %v3304
    %3312 = vmatprep.subr.mxu0 0.0
    %3313 = vmatpush1.xpose.msra.mxu0 %v3306
    %3314 = vmatprep.subr.mxu0 0.0
    %3315 = vmatpush1.xpose.msra.mxu0 %v3308
    %3316 = vmatprep.subr.mxu0 0.0
    %3317 = vmatpush1.xpose.msra.mxu0 0.0
    %3318 = vmatprep.subr.mxu0 0.0
    %3319 = vmatpush1.xpose.msra.mxu0 0.0
    %3320 = vmatprep.subr.mxu0 0.0
    %3321 = vmatpush1.xpose.msra.mxu0 0.0
    %3322 = vmatprep.subr.mxu0 0.0
    %3323 = vmatpush1.xpose.msra.mxu0 0.0
    %3324 = vmatprep.subr.mxu0 0.0
    %3325 = vmatpush1.xpose.msra.mxu0 0.0
    %3326 = vmatprep.subr.mxu0 0.0
    %3327 = vmatpush1.xpose.msra.mxu0 0.0
    %3328 = vmatprep.subr.mxu0 0.0
    %3329 = vmatpush1.xpose.msra.mxu0 0.0
    %3330 = vmatprep.subr.mxu0 0.0
    %3331 = vmatpush1.xpose.msra.mxu0 0.0
    %3332 = vmatprep.subr.mxu0 0.0
    %3333 = vmatpush1.xpose.msra.mxu0 0.0
    %3334 = vmatprep.subr.mxu0 0.0
    %3335 = vmatpush1.xpose.msra.mxu0 0.0
    %3336 = vmatprep.subr.mxu0 0.0
    %3337 = vmatpush1.xpose.msra.mxu0 0.0
    %3338 = vmatprep.subr.mxu0 0.0
    %3339 = vmatpush1.xpose.msra.mxu0 0.0
    %3340 = vmatprep.subr.mxu0 0.0
    %3341 = vmatpush1.xpose.msra.mxu0 0.0
    %3342 = vmatprep.subr.mxu0 0.0
    %3343 = vmatpush1.xpose.msra.mxu0 0.0
    %3344 = vmatprep.subr.mxu0 0.0
    %3345 = vmatpush1.xpose.msra.mxu0 0.0
    %3346 = vmatprep.subr.mxu0 0.0
    %3347 = vmatpush1.xpose.msra.mxu0 0.0
    %3348 = vmatprep.subr.mxu0 0.0
    %3349 = vmatpush1.xpose.msra.mxu0 0.0
    %3350 = vmatprep.subr.mxu0 0.0
    %3351 = vmatpush1.xpose.msra.mxu0 0.0
    %3352 = vmatprep.subr.mxu0 0.0
    %3353 = vmatpush1.xpose.msra.mxu0 0.0
    %3354 = vmatprep.subr.mxu0 0.0
    %3355 = vmatpush1.xpose.msra.mxu0 0.0
    %3356 = vmatprep.subr.mxu0 0.0
    %3357 = vmatpush1.xpose.msra.mxu0 0.0
    %3358 = vmatprep.subr.mxu0 0.0
    %3359 = vmatpush1.xpose.msra.mxu0 0.0
    %3360 = vmatprep.subr.mxu0 0.0
    %3361 = vmatpush1.xpose.msra.mxu0 0.0
    %3362 = vmatprep.subr.mxu0 0.0
    %3363 = vmatpush1.xpose.msra.mxu0 0.0
    %3364 = vmatprep.subr.mxu0 0.0
    %3365 = vmatpush1.xpose.msra.mxu0 0.0
    %3366 = vmatprep.subr.mxu0 0.0
    %3367 = vmatpush1.xpose.msra.mxu0 0.0
    %3368 = vmatprep.subr.mxu0 0.0
    %3369 = vmatpush1.xpose.msra.mxu0 0.0
    %3370 = vmatprep.subr.mxu0 0.0
    %3371 = vmatpush1.xpose.msra.mxu0 0.0
    %3372 = vmatprep.subr.mxu0 0.0
    %3373 = vmatpush1.xpose.msra.mxu0 0.0
    %3374 = vmatprep.mubr.f32.mxu0 0.0
    %3375 = vmatmul.mubr.f32.gmra.mrb[0].mxu0 %v3298
    %v3376 = vpop.f32.mrb[0].mxu0
    %v3377 = vadd.f32 0.0, %v3376
    %v3378 = vpop.f32.mrb[0].mxu0
    %3379 = vmatprep.mubr.f32.mxu0 0.0
    %3380 = vmatmul.mubr.f32.gmra.mrb[0].mxu0 %v3300
    %v3381 = vpop.f32.mrb[0].mxu0
    %v3382 = vadd.f32 0.0, %v3381
    %v3383 = vpop.f32.mrb[0].mxu0
    %3384 = vmatprep.mubr.f32.mxu0 0.0
    %3385 = vmatmul.mubr.f32.gmra.mrb[0].mxu0 %v3302
    %v3386 = vpop.f32.mrb[0].mxu0
    %v3387 = vadd.f32 0.0, %v3386
    %v3388 = vpop.f32.mrb[0].mxu0
    %3389 = vdwg.mxu0
    %v3390 = vmul.f32 %v3377, 0.35355338
    %v3391 = vmul.f32 %v3382, 0.35355338
    %v3392 = vmul.f32 %v3387, 0.35355338
    %v3393 = vsel %vm457, %v3390, -inf
    %3394 = vmax.xlane.f32.xlu0 %v3393
    %v3395 = vpop.xlane.xlu0 %3394
    %v3396 = vsel %vm457, %v3391, -inf
    %3397 = vmax.xlane.f32.xlu0 %v3396
    %v3398 = vpop.xlane.xlu0 %3397
    %v3399 = vsel %vm464, %v3392, -inf
    %3400 = vmax.xlane.f32.xlu0 %v3399
    %v3401 = vpop.xlane.xlu0 %3400
    %v3402 = vsub.f32 %v3390, %v3395
    %v3403 = vsub.f32 %v3391, %v3398
    %v3404 = vsub.f32 %v3392, %v3401
    %v3405 = vmul.f32 %v3402, 1.442695
    %v3406 = vpow.pop %v3405
    %v3407 = vmul.f32 %v3403, 1.442695
    %v3408 = vpow.pop %v3407
    %v3409 = vmul.f32 %v3404, 1.442695
    %v3410 = vpow.pop %v3409
    %v3411 = vsel %vm457, %v3406, 0.0
    %3412 = vadd.xlane.f32.xlu0 %v3411
    %v3413 = vpop.xlane.xlu0 %3412
    %v3414 = vsel %vm457, %v3408, 0.0
    %3415 = vadd.xlane.f32.xlu0 %v3414
    %v3416 = vpop.xlane.xlu0 %3415
    %v3417 = vsel %vm464, %v3410, 0.0
    %3418 = vadd.xlane.f32.xlu0 %v3417
    %v3419 = vpop.xlane.xlu0 %3418
    %v3420 = vrcp.pop %v3413
    %v3421 = vrcp.pop %v3416
    %v3422 = vrcp.pop %v3419
    %v3423 = vmul.f32 %v3406, %v3420
    %v3424 = vmul.f32 %v3408, %v3421
    %v3425 = vmul.f32 %v3410, %v3422
    %3426 = vrot.lane.b32.xlu0 %v3027, 56
    %v3427 = vpop.permute.xlu0 %3426
    %3428 = vrot.lane.b32.xlu0 %v3032, 56
    %v3429 = vpop.permute.xlu0 %3428
    %3430 = vrot.lane.b32.xlu0 %v3037, 56
    %v3431 = vpop.permute.xlu0 %3430
    %v3435 = vsel %vm457, %v3423, 0
    %v3438 = vsel %vm457, %v3424, 0
    %v3441 = vsel %vm457, %v3425, 0
    %v3443 = vsel %vm509, %v3431, 0
    %3445 = vmatprep.subr.mxu0 0.0
    %3446 = vmatpush1.msra.mxu0 %v3427
    %3447 = vmatprep.subr.mxu0 0.0
    %3448 = vmatpush1.msra.mxu0 %v3429
    %3449 = vmatprep.subr.mxu0 0.0
    %3450 = vmatpush1.msra.mxu0 %v3443
    %3451 = vmatprep.subr.mxu0 0.0
    %3452 = vmatpush1.msra.mxu0 0.0
    %3453 = vmatprep.subr.mxu0 0.0
    %3454 = vmatpush1.msra.mxu0 0.0
    %3455 = vmatprep.subr.mxu0 0.0
    %3456 = vmatpush1.msra.mxu0 0.0
    %3457 = vmatprep.subr.mxu0 0.0
    %3458 = vmatpush1.msra.mxu0 0.0
    %3459 = vmatprep.subr.mxu0 0.0
    %3460 = vmatpush1.msra.mxu0 0.0
    %3461 = vmatprep.subr.mxu0 0.0
    %3462 = vmatpush1.msra.mxu0 0.0
    %3463 = vmatprep.subr.mxu0 0.0
    %3464 = vmatpush1.msra.mxu0 0.0
    %3465 = vmatprep.subr.mxu0 0.0
    %3466 = vmatpush1.msra.mxu0 0.0
    %3467 = vmatprep.subr.mxu0 0.0
    %3468 = vmatpush1.msra.mxu0 0.0
    %3469 = vmatprep.subr.mxu0 0.0
    %3470 = vmatpush1.msra.mxu0 0.0
    %3471 = vmatprep.subr.mxu0 0.0
    %3472 = vmatpush1.msra.mxu0 0.0
    %3473 = vmatprep.subr.mxu0 0.0
    %3474 = vmatpush1.msra.mxu0 0.0
    %3475 = vmatprep.subr.mxu0 0.0
    %3476 = vmatpush1.msra.mxu0 0.0
    %3477 = vmatprep.subr.mxu0 0.0
    %3478 = vmatpush1.msra.mxu0 0.0
    %3479 = vmatprep.subr.mxu0 0.0
    %3480 = vmatpush1.msra.mxu0 0.0
    %3481 = vmatprep.subr.mxu0 0.0
    %3482 = vmatpush1.msra.mxu0 0.0
    %3483 = vmatprep.subr.mxu0 0.0
    %3484 = vmatpush1.msra.mxu0 0.0
    %3485 = vmatprep.subr.mxu0 0.0
    %3486 = vmatpush1.msra.mxu0 0.0
    %3487 = vmatprep.subr.mxu0 0.0
    %3488 = vmatpush1.msra.mxu0 0.0
    %3489 = vmatprep.subr.mxu0 0.0
    %3490 = vmatpush1.msra.mxu0 0.0
    %3491 = vmatprep.subr.mxu0 0.0
    %3492 = vmatpush1.msra.mxu0 0.0
    %3493 = vmatprep.subr.mxu0 0.0
    %3494 = vmatpush1.msra.mxu0 0.0
    %3495 = vmatprep.subr.mxu0 0.0
    %3496 = vmatpush1.msra.mxu0 0.0
    %3497 = vmatprep.subr.mxu0 0.0
    %3498 = vmatpush1.msra.mxu0 0.0
    %3499 = vmatprep.subr.mxu0 0.0
    %3500 = vmatpush1.msra.mxu0 0.0
    %3501 = vmatprep.subr.mxu0 0.0
    %3502 = vmatpush1.msra.mxu0 0.0
    %3503 = vmatprep.subr.mxu0 0.0
    %3504 = vmatpush1.msra.mxu0 0.0
    %3505 = vmatprep.subr.mxu0 0.0
    %3506 = vmatpush1.msra.mxu0 0.0
    %3507 = vmatprep.subr.mxu0 0.0
    %3508 = vmatpush1.msra.mxu0 0.0
    %3509 = vmatprep.mubr.f32.mxu0 0.0
    %3510 = vmatmul.mubr.f32.gmra.mrb[0].mxu0 %v3435
    %v3511 = vpop.f32.mrb[0].mxu0
    %v3512 = vadd.f32 0.0, %v3511
    %v3513 = vpop.f32.mrb[0].mxu0
    %3514 = vmatprep.mubr.f32.mxu0 0.0
    %3515 = vmatmul.mubr.f32.gmra.mrb[0].mxu0 %v3438
    %v3516 = vpop.f32.mrb[0].mxu0
    %v3517 = vadd.f32 0.0, %v3516
    %v3518 = vpop.f32.mrb[0].mxu0
    %3519 = vmatprep.mubr.f32.mxu0 0.0
    %3520 = vmatmul.mubr.f32.gmra.mrb[0].mxu0 %v3441
    %v3521 = vpop.f32.mrb[0].mxu0
    %v3522 = vadd.f32 0.0, %v3521
    %v3523 = vpop.f32.mrb[0].mxu0
    %3524 = vdwg.mxu0
    %3525 = vrot.lane.b32.xlu0 %v3027, 112
    %v3526 = vpop.permute.xlu0 %3525
    %3527 = vrot.lane.b32.xlu0 %v3032, 112
    %v3528 = vpop.permute.xlu0 %3527
    %3529 = vrot.lane.b32.xlu0 %v3037, 112
    %v3530 = vpop.permute.xlu0 %3529
    %3531 = vrot.lane.b32.xlu0 %v3027, 80
    %v3532 = vpop.permute.xlu0 %3531
    %3533 = vrot.lane.b32.xlu0 %v3032, 80
    %v3534 = vpop.permute.xlu0 %3533
    %3535 = vrot.lane.b32.xlu0 %v3037, 80
    %v3536 = vpop.permute.xlu0 %3535
    %v3537 = vsel %vm361, %v3526, 0
    %v3539 = vsel %vm361, %v3528, 0
    %v3541 = vsel %vm361, %v3530, 0
    %v3543 = vsel %vm361, %v3532, 0
    %v3545 = vsel %vm361, %v3534, 0
    %v3547 = vsel %vm361, %v3536, 0
    %3549 = vmatprep.subr.mxu0 0.0
    %3550 = vmatpush1.xpose.msra.mxu0 %v3543
    %3551 = vmatprep.subr.mxu0 0.0
    %3552 = vmatpush1.xpose.msra.mxu0 %v3545
    %3553 = vmatprep.subr.mxu0 0.0
    %3554 = vmatpush1.xpose.msra.mxu0 %v3547
    %3555 = vmatprep.subr.mxu0 0.0
    %3556 = vmatpush1.xpose.msra.mxu0 0.0
    %3557 = vmatprep.subr.mxu0 0.0
    %3558 = vmatpush1.xpose.msra.mxu0 0.0
    %3559 = vmatprep.subr.mxu0 0.0
    %3560 = vmatpush1.xpose.msra.mxu0 0.0
    %3561 = vmatprep.subr.mxu0 0.0
    %3562 = vmatpush1.xpose.msra.mxu0 0.0
    %3563 = vmatprep.subr.mxu0 0.0
    %3564 = vmatpush1.xpose.msra.mxu0 0.0
    %3565 = vmatprep.subr.mxu0 0.0
    %3566 = vmatpush1.xpose.msra.mxu0 0.0
    %3567 = vmatprep.subr.mxu0 0.0
    %3568 = vmatpush1.xpose.msra.mxu0 0.0
    %3569 = vmatprep.subr.mxu0 0.0
    %3570 = vmatpush1.xpose.msra.mxu0 0.0
    %3571 = vmatprep.subr.mxu0 0.0
    %3572 = vmatpush1.xpose.msra.mxu0 0.0
    %3573 = vmatprep.subr.mxu0 0.0
    %3574 = vmatpush1.xpose.msra.mxu0 0.0
    %3575 = vmatprep.subr.mxu0 0.0
    %3576 = vmatpush1.xpose.msra.mxu0 0.0
    %3577 = vmatprep.subr.mxu0 0.0
    %3578 = vmatpush1.xpose.msra.mxu0 0.0
    %3579 = vmatprep.subr.mxu0 0.0
    %3580 = vmatpush1.xpose.msra.mxu0 0.0
    %3581 = vmatprep.subr.mxu0 0.0
    %3582 = vmatpush1.xpose.msra.mxu0 0.0
    %3583 = vmatprep.subr.mxu0 0.0
    %3584 = vmatpush1.xpose.msra.mxu0 0.0
    %3585 = vmatprep.subr.mxu0 0.0
    %3586 = vmatpush1.xpose.msra.mxu0 0.0
    %3587 = vmatprep.subr.mxu0 0.0
    %3588 = vmatpush1.xpose.msra.mxu0 0.0
    %3589 = vmatprep.subr.mxu0 0.0
    %3590 = vmatpush1.xpose.msra.mxu0 0.0
    %3591 = vmatprep.subr.mxu0 0.0
    %3592 = vmatpush1.xpose.msra.mxu0 0.0
    %3593 = vmatprep.subr.mxu0 0.0
    %3594 = vmatpush1.xpose.msra.mxu0 0.0
    %3595 = vmatprep.subr.mxu0 0.0
    %3596 = vmatpush1.xpose.msra.mxu0 0.0
    %3597 = vmatprep.subr.mxu0 0.0
    %3598 = vmatpush1.xpose.msra.mxu0 0.0
    %3599 = vmatprep.subr.mxu0 0.0
    %3600 = vmatpush1.xpose.msra.mxu0 0.0
    %3601 = vmatprep.subr.mxu0 0.0
    %3602 = vmatpush1.xpose.msra.mxu0 0.0
    %3603 = vmatprep.subr.mxu0 0.0
    %3604 = vmatpush1.xpose.msra.mxu0 0.0
    %3605 = vmatprep.subr.mxu0 0.0
    %3606 = vmatpush1.xpose.msra.mxu0 0.0
    %3607 = vmatprep.subr.mxu0 0.0
    %3608 = vmatpush1.xpose.msra.mxu0 0.0
    %3609 = vmatprep.subr.mxu0 0.0
    %3610 = vmatpush1.xpose.msra.mxu0 0.0
    %3611 = vmatprep.subr.mxu0 0.0
    %3612 = vmatpush1.xpose.msra.mxu0 0.0
    %3613 = vmatprep.mubr.f32.mxu0 0.0
    %3614 = vmatmul.mubr.f32.gmra.mrb[0].mxu0 %v3537
    %v3615 = vpop.f32.mrb[0].mxu0
    %v3616 = vadd.f32 0.0, %v3615
    %v3617 = vpop.f32.mrb[0].mxu0
    %3618 = vmatprep.mubr.f32.mxu0 0.0
    %3619 = vmatmul.mubr.f32.gmra.mrb[0].mxu0 %v3539
    %v3620 = vpop.f32.mrb[0].mxu0
    %v3621 = vadd.f32 0.0, %v3620
    %v3622 = vpop.f32.mrb[0].mxu0
    %3623 = vmatprep.mubr.f32.mxu0 0.0
    %3624 = vmatmul.mubr.f32.gmra.mrb[0].mxu0 %v3541
    %v3625 = vpop.f32.mrb[0].mxu0
    %v3626 = vadd.f32 0.0, %v3625
    %v3627 = vpop.f32.mrb[0].mxu0
    %3628 = vdwg.mxu0
    %v3629 = vmul.f32 %v3616, 0.35355338
    %v3630 = vmul.f32 %v3621, 0.35355338
    %v3631 = vmul.f32 %v3626, 0.35355338
    %v3632 = vsel %vm457, %v3629, -inf
    %3633 = vmax.xlane.f32.xlu0 %v3632
    %v3634 = vpop.xlane.xlu0 %3633
    %v3635 = vsel %vm457, %v3630, -inf
    %3636 = vmax.xlane.f32.xlu0 %v3635
    %v3637 = vpop.xlane.xlu0 %3636
    %v3638 = vsel %vm464, %v3631, -inf
    %3639 = vmax.xlane.f32.xlu0 %v3638
    %v3640 = vpop.xlane.xlu0 %3639
    %v3641 = vsub.f32 %v3629, %v3634
    %v3642 = vsub.f32 %v3630, %v3637
    %v3643 = vsub.f32 %v3631, %v3640
    %v3644 = vmul.f32 %v3641, 1.442695
    %v3645 = vpow.pop %v3644
    %v3646 = vmul.f32 %v3642, 1.442695
    %v3647 = vpow.pop %v3646
    %v3648 = vmul.f32 %v3643, 1.442695
    %v3649 = vpow.pop %v3648
    %v3650 = vsel %vm457, %v3645, 0.0
    %3651 = vadd.xlane.f32.xlu0 %v3650
    %v3652 = vpop.xlane.xlu0 %3651
    %v3653 = vsel %vm457, %v3647, 0.0
    %3654 = vadd.xlane.f32.xlu0 %v3653
    %v3655 = vpop.xlane.xlu0 %3654
    %v3656 = vsel %vm464, %v3649, 0.0
    %3657 = vadd.xlane.f32.xlu0 %v3656
    %v3658 = vpop.xlane.xlu0 %3657
    %v3659 = vrcp.pop %v3652
    %v3660 = vrcp.pop %v3655
    %v3661 = vrcp.pop %v3658
    %v3662 = vmul.f32 %v3645, %v3659
    %v3663 = vmul.f32 %v3647, %v3660
    %v3664 = vmul.f32 %v3649, %v3661
    %3665 = vrot.lane.b32.xlu0 %v3027, 48
    %v3666 = vpop.permute.xlu0 %3665
    %3667 = vrot.lane.b32.xlu0 %v3032, 48
    %v3668 = vpop.permute.xlu0 %3667
    %3669 = vrot.lane.b32.xlu0 %v3037, 48
    %v3670 = vpop.permute.xlu0 %3669
    %v3674 = vsel %vm457, %v3662, 0
    %v3677 = vsel %vm457, %v3663, 0
    %v3680 = vsel %vm457, %v3664, 0
    %v3682 = vsel %vm509, %v3670, 0
    %3684 = vmatprep.subr.mxu0 0.0
    %3685 = vmatpush1.msra.mxu0 %v3666
    %3686 = vmatprep.subr.mxu0 0.0
    %3687 = vmatpush1.msra.mxu0 %v3668
    %3688 = vmatprep.subr.mxu0 0.0
    %3689 = vmatpush1.msra.mxu0 %v3682
    %3690 = vmatprep.subr.mxu0 0.0
    %3691 = vmatpush1.msra.mxu0 0.0
    %3692 = vmatprep.subr.mxu0 0.0
    %3693 = vmatpush1.msra.mxu0 0.0
    %3694 = vmatprep.subr.mxu0 0.0
    %3695 = vmatpush1.msra.mxu0 0.0
    %3696 = vmatprep.subr.mxu0 0.0
    %3697 = vmatpush1.msra.mxu0 0.0
    %3698 = vmatprep.subr.mxu0 0.0
    %3699 = vmatpush1.msra.mxu0 0.0
    %3700 = vmatprep.subr.mxu0 0.0
    %3701 = vmatpush1.msra.mxu0 0.0
    %3702 = vmatprep.subr.mxu0 0.0
    %3703 = vmatpush1.msra.mxu0 0.0
    %3704 = vmatprep.subr.mxu0 0.0
    %3705 = vmatpush1.msra.mxu0 0.0
    %3706 = vmatprep.subr.mxu0 0.0
    %3707 = vmatpush1.msra.mxu0 0.0
    %3708 = vmatprep.subr.mxu0 0.0
    %3709 = vmatpush1.msra.mxu0 0.0
    %3710 = vmatprep.subr.mxu0 0.0
    %3711 = vmatpush1.msra.mxu0 0.0
    %3712 = vmatprep.subr.mxu0 0.0
    %3713 = vmatpush1.msra.mxu0 0.0
    %3714 = vmatprep.subr.mxu0 0.0
    %3715 = vmatpush1.msra.mxu0 0.0
    %3716 = vmatprep.subr.mxu0 0.0
    %3717 = vmatpush1.msra.mxu0 0.0
    %3718 = vmatprep.subr.mxu0 0.0
    %3719 = vmatpush1.msra.mxu0 0.0
    %3720 = vmatprep.subr.mxu0 0.0
    %3721 = vmatpush1.msra.mxu0 0.0
    %3722 = vmatprep.subr.mxu0 0.0
    %3723 = vmatpush1.msra.mxu0 0.0
    %3724 = vmatprep.subr.mxu0 0.0
    %3725 = vmatpush1.msra.mxu0 0.0
    %3726 = vmatprep.subr.mxu0 0.0
    %3727 = vmatpush1.msra.mxu0 0.0
    %3728 = vmatprep.subr.mxu0 0.0
    %3729 = vmatpush1.msra.mxu0 0.0
    %3730 = vmatprep.subr.mxu0 0.0
    %3731 = vmatpush1.msra.mxu0 0.0
    %3732 = vmatprep.subr.mxu0 0.0
    %3733 = vmatpush1.msra.mxu0 0.0
    %3734 = vmatprep.subr.mxu0 0.0
    %3735 = vmatpush1.msra.mxu0 0.0
    %3736 = vmatprep.subr.mxu0 0.0
    %3737 = vmatpush1.msra.mxu0 0.0
    %3738 = vmatprep.subr.mxu0 0.0
    %3739 = vmatpush1.msra.mxu0 0.0
    %3740 = vmatprep.subr.mxu0 0.0
    %3741 = vmatpush1.msra.mxu0 0.0
    %3742 = vmatprep.subr.mxu0 0.0
    %3743 = vmatpush1.msra.mxu0 0.0
    %3744 = vmatprep.subr.mxu0 0.0
    %3745 = vmatpush1.msra.mxu0 0.0
    %3746 = vmatprep.subr.mxu0 0.0
    %3747 = vmatpush1.msra.mxu0 0.0
    %3748 = vmatprep.mubr.f32.mxu0 0.0
    %3749 = vmatmul.mubr.f32.gmra.mrb[0].mxu0 %v3674
    %v3750 = vpop.f32.mrb[0].mxu0
    %v3751 = vadd.f32 0.0, %v3750
    %v3752 = vpop.f32.mrb[0].mxu0
    %3753 = vmatprep.mubr.f32.mxu0 0.0
    %3754 = vmatmul.mubr.f32.gmra.mrb[0].mxu0 %v3677
    %v3755 = vpop.f32.mrb[0].mxu0
    %v3756 = vadd.f32 0.0, %v3755
    %v3757 = vpop.f32.mrb[0].mxu0
    %3758 = vmatprep.mubr.f32.mxu0 0.0
    %3759 = vmatmul.mubr.f32.gmra.mrb[0].mxu0 %v3680
    %v3760 = vpop.f32.mrb[0].mxu0
    %v3761 = vadd.f32 0.0, %v3760
    %v3762 = vpop.f32.mrb[0].mxu0
    %3763 = vdwg.mxu0
    %3764 = vrot.lane.b32.xlu0 %v3027, 104
    %v3765 = vpop.permute.xlu0 %3764
    %3766 = vrot.lane.b32.xlu0 %v3032, 104
    %v3767 = vpop.permute.xlu0 %3766
    %3768 = vrot.lane.b32.xlu0 %v3037, 104
    %v3769 = vpop.permute.xlu0 %3768
    %3770 = vrot.lane.b32.xlu0 %v3027, 72
    %v3771 = vpop.permute.xlu0 %3770
    %3772 = vrot.lane.b32.xlu0 %v3032, 72
    %v3773 = vpop.permute.xlu0 %3772
    %3774 = vrot.lane.b32.xlu0 %v3037, 72
    %v3775 = vpop.permute.xlu0 %3774
    %v3776 = vsel %vm361, %v3765, 0
    %v3778 = vsel %vm361, %v3767, 0
    %v3780 = vsel %vm361, %v3769, 0
    %v3782 = vsel %vm361, %v3771, 0
    %v3784 = vsel %vm361, %v3773, 0
    %v3786 = vsel %vm361, %v3775, 0
    %3788 = vmatprep.subr.mxu0 0.0
    %3789 = vmatpush1.xpose.msra.mxu0 %v3782
    %3790 = vmatprep.subr.mxu0 0.0
    %3791 = vmatpush1.xpose.msra.mxu0 %v3784
    %3792 = vmatprep.subr.mxu0 0.0
    %3793 = vmatpush1.xpose.msra.mxu0 %v3786
    %3794 = vmatprep.subr.mxu0 0.0
    %3795 = vmatpush1.xpose.msra.mxu0 0.0
    %3796 = vmatprep.subr.mxu0 0.0
    %3797 = vmatpush1.xpose.msra.mxu0 0.0
    %3798 = vmatprep.subr.mxu0 0.0
    %3799 = vmatpush1.xpose.msra.mxu0 0.0
    %3800 = vmatprep.subr.mxu0 0.0
    %3801 = vmatpush1.xpose.msra.mxu0 0.0
    %3802 = vmatprep.subr.mxu0 0.0
    %3803 = vmatpush1.xpose.msra.mxu0 0.0
    %3804 = vmatprep.subr.mxu0 0.0
    %3805 = vmatpush1.xpose.msra.mxu0 0.0
    %3806 = vmatprep.subr.mxu0 0.0
    %3807 = vmatpush1.xpose.msra.mxu0 0.0
    %3808 = vmatprep.subr.mxu0 0.0
    %3809 = vmatpush1.xpose.msra.mxu0 0.0
    %3810 = vmatprep.subr.mxu0 0.0
    %3811 = vmatpush1.xpose.msra.mxu0 0.0
    %3812 = vmatprep.subr.mxu0 0.0
    %3813 = vmatpush1.xpose.msra.mxu0 0.0
    %3814 = vmatprep.subr.mxu0 0.0
    %3815 = vmatpush1.xpose.msra.mxu0 0.0
    %3816 = vmatprep.subr.mxu0 0.0
    %3817 = vmatpush1.xpose.msra.mxu0 0.0
    %3818 = vmatprep.subr.mxu0 0.0
    %3819 = vmatpush1.xpose.msra.mxu0 0.0
    %3820 = vmatprep.subr.mxu0 0.0
    %3821 = vmatpush1.xpose.msra.mxu0 0.0
    %3822 = vmatprep.subr.mxu0 0.0
    %3823 = vmatpush1.xpose.msra.mxu0 0.0
    %3824 = vmatprep.subr.mxu0 0.0
    %3825 = vmatpush1.xpose.msra.mxu0 0.0
    %3826 = vmatprep.subr.mxu0 0.0
    %3827 = vmatpush1.xpose.msra.mxu0 0.0
    %3828 = vmatprep.subr.mxu0 0.0
    %3829 = vmatpush1.xpose.msra.mxu0 0.0
    %3830 = vmatprep.subr.mxu0 0.0
    %3831 = vmatpush1.xpose.msra.mxu0 0.0
    %3832 = vmatprep.subr.mxu0 0.0
    %3833 = vmatpush1.xpose.msra.mxu0 0.0
    %3834 = vmatprep.subr.mxu0 0.0
    %3835 = vmatpush1.xpose.msra.mxu0 0.0
    %3836 = vmatprep.subr.mxu0 0.0
    %3837 = vmatpush1.xpose.msra.mxu0 0.0
    %3838 = vmatprep.subr.mxu0 0.0
    %3839 = vmatpush1.xpose.msra.mxu0 0.0
    %3840 = vmatprep.subr.mxu0 0.0
    %3841 = vmatpush1.xpose.msra.mxu0 0.0
    %3842 = vmatprep.subr.mxu0 0.0
    %3843 = vmatpush1.xpose.msra.mxu0 0.0
    %3844 = vmatprep.subr.mxu0 0.0
    %3845 = vmatpush1.xpose.msra.mxu0 0.0
    %3846 = vmatprep.subr.mxu0 0.0
    %3847 = vmatpush1.xpose.msra.mxu0 0.0
    %3848 = vmatprep.subr.mxu0 0.0
    %3849 = vmatpush1.xpose.msra.mxu0 0.0
    %3850 = vmatprep.subr.mxu0 0.0
    %3851 = vmatpush1.xpose.msra.mxu0 0.0
    %3852 = vmatprep.mubr.f32.mxu0 0.0
    %3853 = vmatmul.mubr.f32.gmra.mrb[0].mxu0 %v3776
    %v3854 = vpop.f32.mrb[0].mxu0
    %v3855 = vadd.f32 0.0, %v3854
    %v3856 = vpop.f32.mrb[0].mxu0
    %3857 = vmatprep.mubr.f32.mxu0 0.0
    %3858 = vmatmul.mubr.f32.gmra.mrb[0].mxu0 %v3778
    %v3859 = vpop.f32.mrb[0].mxu0
    %v3860 = vadd.f32 0.0, %v3859
    %v3861 = vpop.f32.mrb[0].mxu0
    %3862 = vmatprep.mubr.f32.mxu0 0.0
    %3863 = vmatmul.mubr.f32.gmra.mrb[0].mxu0 %v3780
    %v3864 = vpop.f32.mrb[0].mxu0
    %v3865 = vadd.f32 0.0, %v3864
    %v3866 = vpop.f32.mrb[0].mxu0
    %3867 = vdwg.mxu0
    %v3868 = vmul.f32 %v3855, 0.35355338
    %v3869 = vmul.f32 %v3860, 0.35355338
    %v3870 = vmul.f32 %v3865, 0.35355338
    %v3871 = vsel %vm457, %v3868, -inf
    %3872 = vmax.xlane.f32.xlu0 %v3871
    %v3873 = vpop.xlane.xlu0 %3872
    %v3874 = vsel %vm457, %v3869, -inf
    %3875 = vmax.xlane.f32.xlu0 %v3874
    %v3876 = vpop.xlane.xlu0 %3875
    %v3877 = vsel %vm464, %v3870, -inf
    %3878 = vmax.xlane.f32.xlu0 %v3877
    %v3879 = vpop.xlane.xlu0 %3878
    %v3880 = vsub.f32 %v3868, %v3873
    %v3881 = vsub.f32 %v3869, %v3876
    %v3882 = vsub.f32 %v3870, %v3879
    %v3883 = vmul.f32 %v3880, 1.442695
    %v3884 = vpow.pop %v3883
    %v3885 = vmul.f32 %v3881, 1.442695
    %v3886 = vpow.pop %v3885
    %v3887 = vmul.f32 %v3882, 1.442695
    %v3888 = vpow.pop %v3887
    %v3889 = vsel %vm457, %v3884, 0.0
    %3890 = vadd.xlane.f32.xlu0 %v3889
    %v3891 = vpop.xlane.xlu0 %3890
    %v3892 = vsel %vm457, %v3886, 0.0
    %3893 = vadd.xlane.f32.xlu0 %v3892
    %v3894 = vpop.xlane.xlu0 %3893
    %v3895 = vsel %vm464, %v3888, 0.0
    %3896 = vadd.xlane.f32.xlu0 %v3895
    %v3897 = vpop.xlane.xlu0 %3896
    %v3898 = vrcp.pop %v3891
    %v3899 = vrcp.pop %v3894
    %v3900 = vrcp.pop %v3897
    %v3901 = vmul.f32 %v3884, %v3898
    %v3902 = vmul.f32 %v3886, %v3899
    %v3903 = vmul.f32 %v3888, %v3900
    %3904 = vrot.lane.b32.xlu0 %v3027, 40
    %v3905 = vpop.permute.xlu0 %3904
    %3906 = vrot.lane.b32.xlu0 %v3032, 40
    %v3907 = vpop.permute.xlu0 %3906
    %3908 = vrot.lane.b32.xlu0 %v3037, 40
    %v3909 = vpop.permute.xlu0 %3908
    %v3913 = vsel %vm457, %v3901, 0
    %v3916 = vsel %vm457, %v3902, 0
    %v3919 = vsel %vm457, %v3903, 0
    %v3921 = vsel %vm509, %v3909, 0
    %3923 = vmatprep.subr.mxu0 0.0
    %3924 = vmatpush1.msra.mxu0 %v3905
    %3925 = vmatprep.subr.mxu0 0.0
    %3926 = vmatpush1.msra.mxu0 %v3907
    %3927 = vmatprep.subr.mxu0 0.0
    %3928 = vmatpush1.msra.mxu0 %v3921
    %3929 = vmatprep.subr.mxu0 0.0
    %3930 = vmatpush1.msra.mxu0 0.0
    %3931 = vmatprep.subr.mxu0 0.0
    %3932 = vmatpush1.msra.mxu0 0.0
    %3933 = vmatprep.subr.mxu0 0.0
    %3934 = vmatpush1.msra.mxu0 0.0
    %3935 = vmatprep.subr.mxu0 0.0
    %3936 = vmatpush1.msra.mxu0 0.0
    %3937 = vmatprep.subr.mxu0 0.0
    %3938 = vmatpush1.msra.mxu0 0.0
    %3939 = vmatprep.subr.mxu0 0.0
    %3940 = vmatpush1.msra.mxu0 0.0
    %3941 = vmatprep.subr.mxu0 0.0
    %3942 = vmatpush1.msra.mxu0 0.0
    %3943 = vmatprep.subr.mxu0 0.0
    %3944 = vmatpush1.msra.mxu0 0.0
    %3945 = vmatprep.subr.mxu0 0.0
    %3946 = vmatpush1.msra.mxu0 0.0
    %3947 = vmatprep.subr.mxu0 0.0
    %3948 = vmatpush1.msra.mxu0 0.0
    %3949 = vmatprep.subr.mxu0 0.0
    %3950 = vmatpush1.msra.mxu0 0.0
    %3951 = vmatprep.subr.mxu0 0.0
    %3952 = vmatpush1.msra.mxu0 0.0
    %3953 = vmatprep.subr.mxu0 0.0
    %3954 = vmatpush1.msra.mxu0 0.0
    %3955 = vmatprep.subr.mxu0 0.0
    %3956 = vmatpush1.msra.mxu0 0.0
    %3957 = vmatprep.subr.mxu0 0.0
    %3958 = vmatpush1.msra.mxu0 0.0
    %3959 = vmatprep.subr.mxu0 0.0
    %3960 = vmatpush1.msra.mxu0 0.0
    %3961 = vmatprep.subr.mxu0 0.0
    %3962 = vmatpush1.msra.mxu0 0.0
    %3963 = vmatprep.subr.mxu0 0.0
    %3964 = vmatpush1.msra.mxu0 0.0
    %3965 = vmatprep.subr.mxu0 0.0
    %3966 = vmatpush1.msra.mxu0 0.0
    %3967 = vmatprep.subr.mxu0 0.0
    %3968 = vmatpush1.msra.mxu0 0.0
    %3969 = vmatprep.subr.mxu0 0.0
    %3970 = vmatpush1.msra.mxu0 0.0
    %3971 = vmatprep.subr.mxu0 0.0
    %3972 = vmatpush1.msra.mxu0 0.0
    %3973 = vmatprep.subr.mxu0 0.0
    %3974 = vmatpush1.msra.mxu0 0.0
    %3975 = vmatprep.subr.mxu0 0.0
    %3976 = vmatpush1.msra.mxu0 0.0
    %3977 = vmatprep.subr.mxu0 0.0
    %3978 = vmatpush1.msra.mxu0 0.0
    %3979 = vmatprep.subr.mxu0 0.0
    %3980 = vmatpush1.msra.mxu0 0.0
    %3981 = vmatprep.subr.mxu0 0.0
    %3982 = vmatpush1.msra.mxu0 0.0
    %3983 = vmatprep.subr.mxu0 0.0
    %3984 = vmatpush1.msra.mxu0 0.0
    %3985 = vmatprep.subr.mxu0 0.0
    %3986 = vmatpush1.msra.mxu0 0.0
    %3987 = vmatprep.mubr.f32.mxu0 0.0
    %3988 = vmatmul.mubr.f32.gmra.mrb[0].mxu0 %v3913
    %v3989 = vpop.f32.mrb[0].mxu0
    %v3990 = vadd.f32 0.0, %v3989
    %v3991 = vpop.f32.mrb[0].mxu0
    %3992 = vmatprep.mubr.f32.mxu0 0.0
    %3993 = vmatmul.mubr.f32.gmra.mrb[0].mxu0 %v3916
    %v3994 = vpop.f32.mrb[0].mxu0
    %v3995 = vadd.f32 0.0, %v3994
    %v3996 = vpop.f32.mrb[0].mxu0
    %3997 = vmatprep.mubr.f32.mxu0 0.0
    %3998 = vmatmul.mubr.f32.gmra.mrb[0].mxu0 %v3919
    %v3999 = vpop.f32.mrb[0].mxu0
    %v4000 = vadd.f32 0.0, %v3999
    %v4001 = vpop.f32.mrb[0].mxu0
    %4002 = vdwg.mxu0
    %4006 = vrot.lane.b32.xlu0 %v3512, 8
    %v4007 = vpop.permute.xlu0 %4006
    %4008 = vrot.lane.b32.xlu0 %v3517, 8
    %v4009 = vpop.permute.xlu0 %4008
    %4010 = vrot.lane.b32.xlu0 %v3522, 8
    %v4011 = vpop.permute.xlu0 %4010
    %4018 = vrot.lane.b32.xlu0 %v3751, 16
    %v4019 = vpop.permute.xlu0 %4018
    %4020 = vrot.lane.b32.xlu0 %v3756, 16
    %v4021 = vpop.permute.xlu0 %4020
    %4022 = vrot.lane.b32.xlu0 %v3761, 16
    %v4023 = vpop.permute.xlu0 %4022
    %4030 = vrot.lane.b32.xlu0 %v3990, 24
    %v4031 = vpop.permute.xlu0 %4030
    %4032 = vrot.lane.b32.xlu0 %v3995, 24
    %v4033 = vpop.permute.xlu0 %4032
    %4034 = vrot.lane.b32.xlu0 %v4000, 24
    %v4035 = vpop.permute.xlu0 %4034
    %v4039 = vsel %vm361, %v3273, %v4007
    %v4040 = vsel %vm361, %v3278, %v4009
    %v4041 = vsel %vm361, %v3283, %v4011
    %v4042 = vsel %vm1348, %v4039, %v4019
    %v4043 = vsel %vm1348, %v4040, %v4021
    %v4044 = vsel %vm1348, %v4041, %v4023
    %v4045 = vsel %vm1352, %v4042, %v4031
    %v4046 = vsel %vm1352, %v4043, %v4033
    %v4047 = vsel %vm1352, %v4044, %v4035
    %v4050 = vrot.slane %v3037, 1
    %v4051 = vrot.slane %v3042, 1
    %v4052 = vsel %vm1358, %v4050, %v4051
    %v4053 = vrot.slane %v3047, 1
    %v4054 = vsel %vm1358, %v4051, %v4053
    %4055 = vrot.lane.b32.xlu0 %v4052, 96
    %v4056 = vpop.permute.xlu0 %4055
    %4057 = vrot.lane.b32.xlu0 %v4054, 96
    %v4058 = vpop.permute.xlu0 %4057
    %4059 = vrot.lane.b32.xlu0 %v4053, 96
    %v4060 = vpop.permute.xlu0 %4059
    %v4061 = vsel %vm361, %v4052, 0
    %v4063 = vsel %vm361, %v4054, 0
    %v4065 = vsel %vm361, %v4053, 0
    %v4067 = vsel %vm361, %v4056, 0
    %v4069 = vsel %vm361, %v4058, 0
    %v4071 = vsel %vm361, %v4060, 0
    %4073 = vmatprep.subr.mxu0 0.0
    %4074 = vmatpush1.xpose.msra.mxu0 %v4067
    %4075 = vmatprep.subr.mxu0 0.0
    %4076 = vmatpush1.xpose.msra.mxu0 %v4069
    %4077 = vmatprep.subr.mxu0 0.0
    %4078 = vmatpush1.xpose.msra.mxu0 %v4071
    %4079 = vmatprep.subr.mxu0 0.0
    %4080 = vmatpush1.xpose.msra.mxu0 0.0
    %4081 = vmatprep.subr.mxu0 0.0
    %4082 = vmatpush1.xpose.msra.mxu0 0.0
    %4083 = vmatprep.subr.mxu0 0.0
    %4084 = vmatpush1.xpose.msra.mxu0 0.0
    %4085 = vmatprep.subr.mxu0 0.0
    %4086 = vmatpush1.xpose.msra.mxu0 0.0
    %4087 = vmatprep.subr.mxu0 0.0
    %4088 = vmatpush1.xpose.msra.mxu0 0.0
    %4089 = vmatprep.subr.mxu0 0.0
    %4090 = vmatpush1.xpose.msra.mxu0 0.0
    %4091 = vmatprep.subr.mxu0 0.0
    %4092 = vmatpush1.xpose.msra.mxu0 0.0
    %4093 = vmatprep.subr.mxu0 0.0
    %4094 = vmatpush1.xpose.msra.mxu0 0.0
    %4095 = vmatprep.subr.mxu0 0.0
    %4096 = vmatpush1.xpose.msra.mxu0 0.0
    %4097 = vmatprep.subr.mxu0 0.0
    %4098 = vmatpush1.xpose.msra.mxu0 0.0
    %4099 = vmatprep.subr.mxu0 0.0
    %4100 = vmatpush1.xpose.msra.mxu0 0.0
    %4101 = vmatprep.subr.mxu0 0.0
    %4102 = vmatpush1.xpose.msra.mxu0 0.0
    %4103 = vmatprep.subr.mxu0 0.0
    %4104 = vmatpush1.xpose.msra.mxu0 0.0
    %4105 = vmatprep.subr.mxu0 0.0
    %4106 = vmatpush1.xpose.msra.mxu0 0.0
    %4107 = vmatprep.subr.mxu0 0.0
    %4108 = vmatpush1.xpose.msra.mxu0 0.0
    %4109 = vmatprep.subr.mxu0 0.0
    %4110 = vmatpush1.xpose.msra.mxu0 0.0
    %4111 = vmatprep.subr.mxu0 0.0
    %4112 = vmatpush1.xpose.msra.mxu0 0.0
    %4113 = vmatprep.subr.mxu0 0.0
    %4114 = vmatpush1.xpose.msra.mxu0 0.0
    %4115 = vmatprep.subr.mxu0 0.0
    %4116 = vmatpush1.xpose.msra.mxu0 0.0
    %4117 = vmatprep.subr.mxu0 0.0
    %4118 = vmatpush1.xpose.msra.mxu0 0.0
    %4119 = vmatprep.subr.mxu0 0.0
    %4120 = vmatpush1.xpose.msra.mxu0 0.0
    %4121 = vmatprep.subr.mxu0 0.0
    %4122 = vmatpush1.xpose.msra.mxu0 0.0
    %4123 = vmatprep.subr.mxu0 0.0
    %4124 = vmatpush1.xpose.msra.mxu0 0.0
    %4125 = vmatprep.subr.mxu0 0.0
    %4126 = vmatpush1.xpose.msra.mxu0 0.0
    %4127 = vmatprep.subr.mxu0 0.0
    %4128 = vmatpush1.xpose.msra.mxu0 0.0
    %4129 = vmatprep.subr.mxu0 0.0
    %4130 = vmatpush1.xpose.msra.mxu0 0.0
    %4131 = vmatprep.subr.mxu0 0.0
    %4132 = vmatpush1.xpose.msra.mxu0 0.0
    %4133 = vmatprep.subr.mxu0 0.0
    %4134 = vmatpush1.xpose.msra.mxu0 0.0
    %4135 = vmatprep.subr.mxu0 0.0
    %4136 = vmatpush1.xpose.msra.mxu0 0.0
    %4137 = vmatprep.mubr.f32.mxu0 0.0
    %4138 = vmatmul.mubr.f32.gmra.mrb[0].mxu0 %v4061
    %v4139 = vpop.f32.mrb[0].mxu0
    %v4140 = vadd.f32 0.0, %v4139
    %v4141 = vpop.f32.mrb[0].mxu0
    %4142 = vmatprep.mubr.f32.mxu0 0.0
    %4143 = vmatmul.mubr.f32.gmra.mrb[0].mxu0 %v4063
    %v4144 = vpop.f32.mrb[0].mxu0
    %v4145 = vadd.f32 0.0, %v4144
    %v4146 = vpop.f32.mrb[0].mxu0
    %4147 = vmatprep.mubr.f32.mxu0 0.0
    %4148 = vmatmul.mubr.f32.gmra.mrb[0].mxu0 %v4065
    %v4149 = vpop.f32.mrb[0].mxu0
    %v4150 = vadd.f32 0.0, %v4149
    %v4151 = vpop.f32.mrb[0].mxu0
    %4152 = vdwg.mxu0
    %v4153 = vmul.f32 %v4140, 0.35355338
    %v4154 = vmul.f32 %v4145, 0.35355338
    %v4155 = vmul.f32 %v4150, 0.35355338
    %v4156 = vsel %vm457, %v4153, -inf
    %4157 = vmax.xlane.f32.xlu0 %v4156
    %v4158 = vpop.xlane.xlu0 %4157
    %v4159 = vsel %vm457, %v4154, -inf
    %4160 = vmax.xlane.f32.xlu0 %v4159
    %v4161 = vpop.xlane.xlu0 %4160
    %v4162 = vsel %vm464, %v4155, -inf
    %4163 = vmax.xlane.f32.xlu0 %v4162
    %v4164 = vpop.xlane.xlu0 %4163
    %v4165 = vsub.f32 %v4153, %v4158
    %v4166 = vsub.f32 %v4154, %v4161
    %v4167 = vsub.f32 %v4155, %v4164
    %v4168 = vmul.f32 %v4165, 1.442695
    %v4169 = vpow.pop %v4168
    %v4170 = vmul.f32 %v4166, 1.442695
    %v4171 = vpow.pop %v4170
    %v4172 = vmul.f32 %v4167, 1.442695
    %v4173 = vpow.pop %v4172
    %v4174 = vsel %vm457, %v4169, 0.0
    %4175 = vadd.xlane.f32.xlu0 %v4174
    %v4176 = vpop.xlane.xlu0 %4175
    %v4177 = vsel %vm457, %v4171, 0.0
    %4178 = vadd.xlane.f32.xlu0 %v4177
    %v4179 = vpop.xlane.xlu0 %4178
    %v4180 = vsel %vm464, %v4173, 0.0
    %4181 = vadd.xlane.f32.xlu0 %v4180
    %v4182 = vpop.xlane.xlu0 %4181
    %v4183 = vrcp.pop %v4176
    %v4184 = vrcp.pop %v4179
    %v4185 = vrcp.pop %v4182
    %v4186 = vmul.f32 %v4169, %v4183
    %v4187 = vmul.f32 %v4171, %v4184
    %v4188 = vmul.f32 %v4173, %v4185
    %4189 = vrot.lane.b32.xlu0 %v4052, 64
    %v4190 = vpop.permute.xlu0 %4189
    %4191 = vrot.lane.b32.xlu0 %v4054, 64
    %v4192 = vpop.permute.xlu0 %4191
    %4193 = vrot.lane.b32.xlu0 %v4053, 64
    %v4194 = vpop.permute.xlu0 %4193
    %v4198 = vsel %vm457, %v4186, 0
    %v4201 = vsel %vm457, %v4187, 0
    %v4204 = vsel %vm457, %v4188, 0
    %v4206 = vsel %vm509, %v4194, 0
    %4208 = vmatprep.subr.mxu0 0.0
    %4209 = vmatpush1.msra.mxu0 %v4190
    %4210 = vmatprep.subr.mxu0 0.0
    %4211 = vmatpush1.msra.mxu0 %v4192
    %4212 = vmatprep.subr.mxu0 0.0
    %4213 = vmatpush1.msra.mxu0 %v4206
    %4214 = vmatprep.subr.mxu0 0.0
    %4215 = vmatpush1.msra.mxu0 0.0
    %4216 = vmatprep.subr.mxu0 0.0
    %4217 = vmatpush1.msra.mxu0 0.0
    %4218 = vmatprep.subr.mxu0 0.0
    %4219 = vmatpush1.msra.mxu0 0.0
    %4220 = vmatprep.subr.mxu0 0.0
    %4221 = vmatpush1.msra.mxu0 0.0
    %4222 = vmatprep.subr.mxu0 0.0
    %4223 = vmatpush1.msra.mxu0 0.0
    %4224 = vmatprep.subr.mxu0 0.0
    %4225 = vmatpush1.msra.mxu0 0.0
    %4226 = vmatprep.subr.mxu0 0.0
    %4227 = vmatpush1.msra.mxu0 0.0
    %4228 = vmatprep.subr.mxu0 0.0
    %4229 = vmatpush1.msra.mxu0 0.0
    %4230 = vmatprep.subr.mxu0 0.0
    %4231 = vmatpush1.msra.mxu0 0.0
    %4232 = vmatprep.subr.mxu0 0.0
    %4233 = vmatpush1.msra.mxu0 0.0
    %4234 = vmatprep.subr.mxu0 0.0
    %4235 = vmatpush1.msra.mxu0 0.0
    %4236 = vmatprep.subr.mxu0 0.0
    %4237 = vmatpush1.msra.mxu0 0.0
    %4238 = vmatprep.subr.mxu0 0.0
    %4239 = vmatpush1.msra.mxu0 0.0
    %4240 = vmatprep.subr.mxu0 0.0
    %4241 = vmatpush1.msra.mxu0 0.0
    %4242 = vmatprep.subr.mxu0 0.0
    %4243 = vmatpush1.msra.mxu0 0.0
    %4244 = vmatprep.subr.mxu0 0.0
    %4245 = vmatpush1.msra.mxu0 0.0
    %4246 = vmatprep.subr.mxu0 0.0
    %4247 = vmatpush1.msra.mxu0 0.0
    %4248 = vmatprep.subr.mxu0 0.0
    %4249 = vmatpush1.msra.mxu0 0.0
    %4250 = vmatprep.subr.mxu0 0.0
    %4251 = vmatpush1.msra.mxu0 0.0
    %4252 = vmatprep.subr.mxu0 0.0
    %4253 = vmatpush1.msra.mxu0 0.0
    %4254 = vmatprep.subr.mxu0 0.0
    %4255 = vmatpush1.msra.mxu0 0.0
    %4256 = vmatprep.subr.mxu0 0.0
    %4257 = vmatpush1.msra.mxu0 0.0
    %4258 = vmatprep.subr.mxu0 0.0
    %4259 = vmatpush1.msra.mxu0 0.0
    %4260 = vmatprep.subr.mxu0 0.0
    %4261 = vmatpush1.msra.mxu0 0.0
    %4262 = vmatprep.subr.mxu0 0.0
    %4263 = vmatpush1.msra.mxu0 0.0
    %4264 = vmatprep.subr.mxu0 0.0
    %4265 = vmatpush1.msra.mxu0 0.0
    %4266 = vmatprep.subr.mxu0 0.0
    %4267 = vmatpush1.msra.mxu0 0.0
    %4268 = vmatprep.subr.mxu0 0.0
    %4269 = vmatpush1.msra.mxu0 0.0
    %4270 = vmatprep.subr.mxu0 0.0
    %4271 = vmatpush1.msra.mxu0 0.0
    %4272 = vmatprep.mubr.f32.mxu0 0.0
    %4273 = vmatmul.mubr.f32.gmra.mrb[0].mxu0 %v4198
    %v4274 = vpop.f32.mrb[0].mxu0
    %v4275 = vadd.f32 0.0, %v4274
    %v4276 = vpop.f32.mrb[0].mxu0
    %4277 = vmatprep.mubr.f32.mxu0 0.0
    %4278 = vmatmul.mubr.f32.gmra.mrb[0].mxu0 %v4201
    %v4279 = vpop.f32.mrb[0].mxu0
    %v4280 = vadd.f32 0.0, %v4279
    %v4281 = vpop.f32.mrb[0].mxu0
    %4282 = vmatprep.mubr.f32.mxu0 0.0
    %4283 = vmatmul.mubr.f32.gmra.mrb[0].mxu0 %v4204
    %v4284 = vpop.f32.mrb[0].mxu0
    %v4285 = vadd.f32 0.0, %v4284
    %v4286 = vpop.f32.mrb[0].mxu0
    %4287 = vdwg.mxu0
    %4288 = vrot.lane.b32.xlu0 %v4052, 120
    %v4289 = vpop.permute.xlu0 %4288
    %4290 = vrot.lane.b32.xlu0 %v4054, 120
    %v4291 = vpop.permute.xlu0 %4290
    %4292 = vrot.lane.b32.xlu0 %v4053, 120
    %v4293 = vpop.permute.xlu0 %4292
    %4294 = vrot.lane.b32.xlu0 %v4052, 88
    %v4295 = vpop.permute.xlu0 %4294
    %4296 = vrot.lane.b32.xlu0 %v4054, 88
    %v4297 = vpop.permute.xlu0 %4296
    %4298 = vrot.lane.b32.xlu0 %v4053, 88
    %v4299 = vpop.permute.xlu0 %4298
    %v4300 = vsel %vm361, %v4289, 0
    %v4302 = vsel %vm361, %v4291, 0
    %v4304 = vsel %vm361, %v4293, 0
    %v4306 = vsel %vm361, %v4295, 0
    %v4308 = vsel %vm361, %v4297, 0
    %v4310 = vsel %vm361, %v4299, 0
    %4312 = vmatprep.subr.mxu0 0.0
    %4313 = vmatpush1.xpose.msra.mxu0 %v4306
    %4314 = vmatprep.subr.mxu0 0.0
    %4315 = vmatpush1.xpose.msra.mxu0 %v4308
    %4316 = vmatprep.subr.mxu0 0.0
    %4317 = vmatpush1.xpose.msra.mxu0 %v4310
    %4318 = vmatprep.subr.mxu0 0.0
    %4319 = vmatpush1.xpose.msra.mxu0 0.0
    %4320 = vmatprep.subr.mxu0 0.0
    %4321 = vmatpush1.xpose.msra.mxu0 0.0
    %4322 = vmatprep.subr.mxu0 0.0
    %4323 = vmatpush1.xpose.msra.mxu0 0.0
    %4324 = vmatprep.subr.mxu0 0.0
    %4325 = vmatpush1.xpose.msra.mxu0 0.0
    %4326 = vmatprep.subr.mxu0 0.0
    %4327 = vmatpush1.xpose.msra.mxu0 0.0
    %4328 = vmatprep.subr.mxu0 0.0
    %4329 = vmatpush1.xpose.msra.mxu0 0.0
    %4330 = vmatprep.subr.mxu0 0.0
    %4331 = vmatpush1.xpose.msra.mxu0 0.0
    %4332 = vmatprep.subr.mxu0 0.0
    %4333 = vmatpush1.xpose.msra.mxu0 0.0
    %4334 = vmatprep.subr.mxu0 0.0
    %4335 = vmatpush1.xpose.msra.mxu0 0.0
    %4336 = vmatprep.subr.mxu0 0.0
    %4337 = vmatpush1.xpose.msra.mxu0 0.0
    %4338 = vmatprep.subr.mxu0 0.0
    %4339 = vmatpush1.xpose.msra.mxu0 0.0
    %4340 = vmatprep.subr.mxu0 0.0
    %4341 = vmatpush1.xpose.msra.mxu0 0.0
    %4342 = vmatprep.subr.mxu0 0.0
    %4343 = vmatpush1.xpose.msra.mxu0 0.0
    %4344 = vmatprep.subr.mxu0 0.0
    %4345 = vmatpush1.xpose.msra.mxu0 0.0
    %4346 = vmatprep.subr.mxu0 0.0
    %4347 = vmatpush1.xpose.msra.mxu0 0.0
    %4348 = vmatprep.subr.mxu0 0.0
    %4349 = vmatpush1.xpose.msra.mxu0 0.0
    %4350 = vmatprep.subr.mxu0 0.0
    %4351 = vmatpush1.xpose.msra.mxu0 0.0
    %4352 = vmatprep.subr.mxu0 0.0
    %4353 = vmatpush1.xpose.msra.mxu0 0.0
    %4354 = vmatprep.subr.mxu0 0.0
    %4355 = vmatpush1.xpose.msra.mxu0 0.0
    %4356 = vmatprep.subr.mxu0 0.0
    %4357 = vmatpush1.xpose.msra.mxu0 0.0
    %4358 = vmatprep.subr.mxu0 0.0
    %4359 = vmatpush1.xpose.msra.mxu0 0.0
    %4360 = vmatprep.subr.mxu0 0.0
    %4361 = vmatpush1.xpose.msra.mxu0 0.0
    %4362 = vmatprep.subr.mxu0 0.0
    %4363 = vmatpush1.xpose.msra.mxu0 0.0
    %4364 = vmatprep.subr.mxu0 0.0
    %4365 = vmatpush1.xpose.msra.mxu0 0.0
    %4366 = vmatprep.subr.mxu0 0.0
    %4367 = vmatpush1.xpose.msra.mxu0 0.0
    %4368 = vmatprep.subr.mxu0 0.0
    %4369 = vmatpush1.xpose.msra.mxu0 0.0
    %4370 = vmatprep.subr.mxu0 0.0
    %4371 = vmatpush1.xpose.msra.mxu0 0.0
    %4372 = vmatprep.subr.mxu0 0.0
    %4373 = vmatpush1.xpose.msra.mxu0 0.0
    %4374 = vmatprep.subr.mxu0 0.0
    %4375 = vmatpush1.xpose.msra.mxu0 0.0
    %4376 = vmatprep.mubr.f32.mxu0 0.0
    %4377 = vmatmul.mubr.f32.gmra.mrb[0].mxu0 %v4300
    %v4378 = vpop.f32.mrb[0].mxu0
    %v4379 = vadd.f32 0.0, %v4378
    %v4380 = vpop.f32.mrb[0].mxu0
    %4381 = vmatprep.mubr.f32.mxu0 0.0
    %4382 = vmatmul.mubr.f32.gmra.mrb[0].mxu0 %v4302
    %v4383 = vpop.f32.mrb[0].mxu0
    %v4384 = vadd.f32 0.0, %v4383
    %v4385 = vpop.f32.mrb[0].mxu0
    %4386 = vmatprep.mubr.f32.mxu0 0.0
    %4387 = vmatmul.mubr.f32.gmra.mrb[0].mxu0 %v4304
    %v4388 = vpop.f32.mrb[0].mxu0
    %v4389 = vadd.f32 0.0, %v4388
    %v4390 = vpop.f32.mrb[0].mxu0
    %4391 = vdwg.mxu0
    %v4392 = vmul.f32 %v4379, 0.35355338
    %v4393 = vmul.f32 %v4384, 0.35355338
    %v4394 = vmul.f32 %v4389, 0.35355338
    %v4395 = vsel %vm457, %v4392, -inf
    %4396 = vmax.xlane.f32.xlu0 %v4395
    %v4397 = vpop.xlane.xlu0 %4396
    %v4398 = vsel %vm457, %v4393, -inf
    %4399 = vmax.xlane.f32.xlu0 %v4398
    %v4400 = vpop.xlane.xlu0 %4399
    %v4401 = vsel %vm464, %v4394, -inf
    %4402 = vmax.xlane.f32.xlu0 %v4401
    %v4403 = vpop.xlane.xlu0 %4402
    %v4404 = vsub.f32 %v4392, %v4397
    %v4405 = vsub.f32 %v4393, %v4400
    %v4406 = vsub.f32 %v4394, %v4403
    %v4407 = vmul.f32 %v4404, 1.442695
    %v4408 = vpow.pop %v4407
    %v4409 = vmul.f32 %v4405, 1.442695
    %v4410 = vpow.pop %v4409
    %v4411 = vmul.f32 %v4406, 1.442695
    %v4412 = vpow.pop %v4411
    %v4413 = vsel %vm457, %v4408, 0.0
    %4414 = vadd.xlane.f32.xlu0 %v4413
    %v4415 = vpop.xlane.xlu0 %4414
    %v4416 = vsel %vm457, %v4410, 0.0
    %4417 = vadd.xlane.f32.xlu0 %v4416
    %v4418 = vpop.xlane.xlu0 %4417
    %v4419 = vsel %vm464, %v4412, 0.0
    %4420 = vadd.xlane.f32.xlu0 %v4419
    %v4421 = vpop.xlane.xlu0 %4420
    %v4422 = vrcp.pop %v4415
    %v4423 = vrcp.pop %v4418
    %v4424 = vrcp.pop %v4421
    %v4425 = vmul.f32 %v4408, %v4422
    %v4426 = vmul.f32 %v4410, %v4423
    %v4427 = vmul.f32 %v4412, %v4424
    %4428 = vrot.lane.b32.xlu0 %v4052, 56
    %v4429 = vpop.permute.xlu0 %4428
    %4430 = vrot.lane.b32.xlu0 %v4054, 56
    %v4431 = vpop.permute.xlu0 %4430
    %4432 = vrot.lane.b32.xlu0 %v4053, 56
    %v4433 = vpop.permute.xlu0 %4432
    %v4437 = vsel %vm457, %v4425, 0
    %v4440 = vsel %vm457, %v4426, 0
    %v4443 = vsel %vm457, %v4427, 0
    %v4445 = vsel %vm509, %v4433, 0
    %4447 = vmatprep.subr.mxu0 0.0
    %4448 = vmatpush1.msra.mxu0 %v4429
    %4449 = vmatprep.subr.mxu0 0.0
    %4450 = vmatpush1.msra.mxu0 %v4431
    %4451 = vmatprep.subr.mxu0 0.0
    %4452 = vmatpush1.msra.mxu0 %v4445
    %4453 = vmatprep.subr.mxu0 0.0
    %4454 = vmatpush1.msra.mxu0 0.0
    %4455 = vmatprep.subr.mxu0 0.0
    %4456 = vmatpush1.msra.mxu0 0.0
    %4457 = vmatprep.subr.mxu0 0.0
    %4458 = vmatpush1.msra.mxu0 0.0
    %4459 = vmatprep.subr.mxu0 0.0
    %4460 = vmatpush1.msra.mxu0 0.0
    %4461 = vmatprep.subr.mxu0 0.0
    %4462 = vmatpush1.msra.mxu0 0.0
    %4463 = vmatprep.subr.mxu0 0.0
    %4464 = vmatpush1.msra.mxu0 0.0
    %4465 = vmatprep.subr.mxu0 0.0
    %4466 = vmatpush1.msra.mxu0 0.0
    %4467 = vmatprep.subr.mxu0 0.0
    %4468 = vmatpush1.msra.mxu0 0.0
    %4469 = vmatprep.subr.mxu0 0.0
    %4470 = vmatpush1.msra.mxu0 0.0
    %4471 = vmatprep.subr.mxu0 0.0
    %4472 = vmatpush1.msra.mxu0 0.0
    %4473 = vmatprep.subr.mxu0 0.0
    %4474 = vmatpush1.msra.mxu0 0.0
    %4475 = vmatprep.subr.mxu0 0.0
    %4476 = vmatpush1.msra.mxu0 0.0
    %4477 = vmatprep.subr.mxu0 0.0
    %4478 = vmatpush1.msra.mxu0 0.0
    %4479 = vmatprep.subr.mxu0 0.0
    %4480 = vmatpush1.msra.mxu0 0.0
    %4481 = vmatprep.subr.mxu0 0.0
    %4482 = vmatpush1.msra.mxu0 0.0
    %4483 = vmatprep.subr.mxu0 0.0
    %4484 = vmatpush1.msra.mxu0 0.0
    %4485 = vmatprep.subr.mxu0 0.0
    %4486 = vmatpush1.msra.mxu0 0.0
    %4487 = vmatprep.subr.mxu0 0.0
    %4488 = vmatpush1.msra.mxu0 0.0
    %4489 = vmatprep.subr.mxu0 0.0
    %4490 = vmatpush1.msra.mxu0 0.0
    %4491 = vmatprep.subr.mxu0 0.0
    %4492 = vmatpush1.msra.mxu0 0.0
    %4493 = vmatprep.subr.mxu0 0.0
    %4494 = vmatpush1.msra.mxu0 0.0
    %4495 = vmatprep.subr.mxu0 0.0
    %4496 = vmatpush1.msra.mxu0 0.0
    %4497 = vmatprep.subr.mxu0 0.0
    %4498 = vmatpush1.msra.mxu0 0.0
    %4499 = vmatprep.subr.mxu0 0.0
    %4500 = vmatpush1.msra.mxu0 0.0
    %4501 = vmatprep.subr.mxu0 0.0
    %4502 = vmatpush1.msra.mxu0 0.0
    %4503 = vmatprep.subr.mxu0 0.0
    %4504 = vmatpush1.msra.mxu0 0.0
    %4505 = vmatprep.subr.mxu0 0.0
    %4506 = vmatpush1.msra.mxu0 0.0
    %4507 = vmatprep.subr.mxu0 0.0
    %4508 = vmatpush1.msra.mxu0 0.0
    %4509 = vmatprep.subr.mxu0 0.0
    %4510 = vmatpush1.msra.mxu0 0.0
    %4511 = vmatprep.mubr.f32.mxu0 0.0
    %4512 = vmatmul.mubr.f32.gmra.mrb[0].mxu0 %v4437
    %v4513 = vpop.f32.mrb[0].mxu0
    %v4514 = vadd.f32 0.0, %v4513
    %v4515 = vpop.f32.mrb[0].mxu0
    %4516 = vmatprep.mubr.f32.mxu0 0.0
    %4517 = vmatmul.mubr.f32.gmra.mrb[0].mxu0 %v4440
    %v4518 = vpop.f32.mrb[0].mxu0
    %v4519 = vadd.f32 0.0, %v4518
    %v4520 = vpop.f32.mrb[0].mxu0
    %4521 = vmatprep.mubr.f32.mxu0 0.0
    %4522 = vmatmul.mubr.f32.gmra.mrb[0].mxu0 %v4443
    %v4523 = vpop.f32.mrb[0].mxu0
    %v4524 = vadd.f32 0.0, %v4523
    %v4525 = vpop.f32.mrb[0].mxu0
    %4526 = vdwg.mxu0
    %4527 = vrot.lane.b32.xlu0 %v4052, 112
    %v4528 = vpop.permute.xlu0 %4527
    %4529 = vrot.lane.b32.xlu0 %v4054, 112
    %v4530 = vpop.permute.xlu0 %4529
    %4531 = vrot.lane.b32.xlu0 %v4053, 112
    %v4532 = vpop.permute.xlu0 %4531
    %4533 = vrot.lane.b32.xlu0 %v4052, 80
    %v4534 = vpop.permute.xlu0 %4533
    %4535 = vrot.lane.b32.xlu0 %v4054, 80
    %v4536 = vpop.permute.xlu0 %4535
    %4537 = vrot.lane.b32.xlu0 %v4053, 80
    %v4538 = vpop.permute.xlu0 %4537
    %v4539 = vsel %vm361, %v4528, 0
    %v4541 = vsel %vm361, %v4530, 0
    %v4543 = vsel %vm361, %v4532, 0
    %v4545 = vsel %vm361, %v4534, 0
    %v4547 = vsel %vm361, %v4536, 0
    %v4549 = vsel %vm361, %v4538, 0
    %4551 = vmatprep.subr.mxu0 0.0
    %4552 = vmatpush1.xpose.msra.mxu0 %v4545
    %4553 = vmatprep.subr.mxu0 0.0
    %4554 = vmatpush1.xpose.msra.mxu0 %v4547
    %4555 = vmatprep.subr.mxu0 0.0
    %4556 = vmatpush1.xpose.msra.mxu0 %v4549
    %4557 = vmatprep.subr.mxu0 0.0
    %4558 = vmatpush1.xpose.msra.mxu0 0.0
    %4559 = vmatprep.subr.mxu0 0.0
    %4560 = vmatpush1.xpose.msra.mxu0 0.0
    %4561 = vmatprep.subr.mxu0 0.0
    %4562 = vmatpush1.xpose.msra.mxu0 0.0
    %4563 = vmatprep.subr.mxu0 0.0
    %4564 = vmatpush1.xpose.msra.mxu0 0.0
    %4565 = vmatprep.subr.mxu0 0.0
    %4566 = vmatpush1.xpose.msra.mxu0 0.0
    %4567 = vmatprep.subr.mxu0 0.0
    %4568 = vmatpush1.xpose.msra.mxu0 0.0
    %4569 = vmatprep.subr.mxu0 0.0
    %4570 = vmatpush1.xpose.msra.mxu0 0.0
    %4571 = vmatprep.subr.mxu0 0.0
    %4572 = vmatpush1.xpose.msra.mxu0 0.0
    %4573 = vmatprep.subr.mxu0 0.0
    %4574 = vmatpush1.xpose.msra.mxu0 0.0
    %4575 = vmatprep.subr.mxu0 0.0
    %4576 = vmatpush1.xpose.msra.mxu0 0.0
    %4577 = vmatprep.subr.mxu0 0.0
    %4578 = vmatpush1.xpose.msra.mxu0 0.0
    %4579 = vmatprep.subr.mxu0 0.0
    %4580 = vmatpush1.xpose.msra.mxu0 0.0
    %4581 = vmatprep.subr.mxu0 0.0
    %4582 = vmatpush1.xpose.msra.mxu0 0.0
    %4583 = vmatprep.subr.mxu0 0.0
    %4584 = vmatpush1.xpose.msra.mxu0 0.0
    %4585 = vmatprep.subr.mxu0 0.0
    %4586 = vmatpush1.xpose.msra.mxu0 0.0
    %4587 = vmatprep.subr.mxu0 0.0
    %4588 = vmatpush1.xpose.msra.mxu0 0.0
    %4589 = vmatprep.subr.mxu0 0.0
    %4590 = vmatpush1.xpose.msra.mxu0 0.0
    %4591 = vmatprep.subr.mxu0 0.0
    %4592 = vmatpush1.xpose.msra.mxu0 0.0
    %4593 = vmatprep.subr.mxu0 0.0
    %4594 = vmatpush1.xpose.msra.mxu0 0.0
    %4595 = vmatprep.subr.mxu0 0.0
    %4596 = vmatpush1.xpose.msra.mxu0 0.0
    %4597 = vmatprep.subr.mxu0 0.0
    %4598 = vmatpush1.xpose.msra.mxu0 0.0
    %4599 = vmatprep.subr.mxu0 0.0
    %4600 = vmatpush1.xpose.msra.mxu0 0.0
    %4601 = vmatprep.subr.mxu0 0.0
    %4602 = vmatpush1.xpose.msra.mxu0 0.0
    %4603 = vmatprep.subr.mxu0 0.0
    %4604 = vmatpush1.xpose.msra.mxu0 0.0
    %4605 = vmatprep.subr.mxu0 0.0
    %4606 = vmatpush1.xpose.msra.mxu0 0.0
    %4607 = vmatprep.subr.mxu0 0.0
    %4608 = vmatpush1.xpose.msra.mxu0 0.0
    %4609 = vmatprep.subr.mxu0 0.0
    %4610 = vmatpush1.xpose.msra.mxu0 0.0
    %4611 = vmatprep.subr.mxu0 0.0
    %4612 = vmatpush1.xpose.msra.mxu0 0.0
    %4613 = vmatprep.subr.mxu0 0.0
    %4614 = vmatpush1.xpose.msra.mxu0 0.0
    %4615 = vmatprep.mubr.f32.mxu0 0.0
    %4616 = vmatmul.mubr.f32.gmra.mrb[0].mxu0 %v4539
    %v4617 = vpop.f32.mrb[0].mxu0
    %v4618 = vadd.f32 0.0, %v4617
    %v4619 = vpop.f32.mrb[0].mxu0
    %4620 = vmatprep.mubr.f32.mxu0 0.0
    %4621 = vmatmul.mubr.f32.gmra.mrb[0].mxu0 %v4541
    %v4622 = vpop.f32.mrb[0].mxu0
    %v4623 = vadd.f32 0.0, %v4622
    %v4624 = vpop.f32.mrb[0].mxu0
    %4625 = vmatprep.mubr.f32.mxu0 0.0
    %4626 = vmatmul.mubr.f32.gmra.mrb[0].mxu0 %v4543
    %v4627 = vpop.f32.mrb[0].mxu0
    %v4628 = vadd.f32 0.0, %v4627
    %v4629 = vpop.f32.mrb[0].mxu0
    %4630 = vdwg.mxu0
    %v4631 = vmul.f32 %v4618, 0.35355338
    %v4632 = vmul.f32 %v4623, 0.35355338
    %v4633 = vmul.f32 %v4628, 0.35355338
    %v4634 = vsel %vm457, %v4631, -inf
    %4635 = vmax.xlane.f32.xlu0 %v4634
    %v4636 = vpop.xlane.xlu0 %4635
    %v4637 = vsel %vm457, %v4632, -inf
    %4638 = vmax.xlane.f32.xlu0 %v4637
    %v4639 = vpop.xlane.xlu0 %4638
    %v4640 = vsel %vm464, %v4633, -inf
    %4641 = vmax.xlane.f32.xlu0 %v4640
    %v4642 = vpop.xlane.xlu0 %4641
    %v4643 = vsub.f32 %v4631, %v4636
    %v4644 = vsub.f32 %v4632, %v4639
    %v4645 = vsub.f32 %v4633, %v4642
    %v4646 = vmul.f32 %v4643, 1.442695
    %v4647 = vpow.pop %v4646
    %v4648 = vmul.f32 %v4644, 1.442695
    %v4649 = vpow.pop %v4648
    %v4650 = vmul.f32 %v4645, 1.442695
    %v4651 = vpow.pop %v4650
    %v4652 = vsel %vm457, %v4647, 0.0
    %4653 = vadd.xlane.f32.xlu0 %v4652
    %v4654 = vpop.xlane.xlu0 %4653
    %v4655 = vsel %vm457, %v4649, 0.0
    %4656 = vadd.xlane.f32.xlu0 %v4655
    %v4657 = vpop.xlane.xlu0 %4656
    %v4658 = vsel %vm464, %v4651, 0.0
    %4659 = vadd.xlane.f32.xlu0 %v4658
    %v4660 = vpop.xlane.xlu0 %4659
    %v4661 = vrcp.pop %v4654
    %v4662 = vrcp.pop %v4657
    %v4663 = vrcp.pop %v4660
    %v4664 = vmul.f32 %v4647, %v4661
    %v4665 = vmul.f32 %v4649, %v4662
    %v4666 = vmul.f32 %v4651, %v4663
    %4667 = vrot.lane.b32.xlu0 %v4052, 48
    %v4668 = vpop.permute.xlu0 %4667
    %4669 = vrot.lane.b32.xlu0 %v4054, 48
    %v4670 = vpop.permute.xlu0 %4669
    %4671 = vrot.lane.b32.xlu0 %v4053, 48
    %v4672 = vpop.permute.xlu0 %4671
    %v4676 = vsel %vm457, %v4664, 0
    %v4679 = vsel %vm457, %v4665, 0
    %v4682 = vsel %vm457, %v4666, 0
    %v4684 = vsel %vm509, %v4672, 0
    %4686 = vmatprep.subr.mxu0 0.0
    %4687 = vmatpush1.msra.mxu0 %v4668
    %4688 = vmatprep.subr.mxu0 0.0
    %4689 = vmatpush1.msra.mxu0 %v4670
    %4690 = vmatprep.subr.mxu0 0.0
    %4691 = vmatpush1.msra.mxu0 %v4684
    %4692 = vmatprep.subr.mxu0 0.0
    %4693 = vmatpush1.msra.mxu0 0.0
    %4694 = vmatprep.subr.mxu0 0.0
    %4695 = vmatpush1.msra.mxu0 0.0
    %4696 = vmatprep.subr.mxu0 0.0
    %4697 = vmatpush1.msra.mxu0 0.0
    %4698 = vmatprep.subr.mxu0 0.0
    %4699 = vmatpush1.msra.mxu0 0.0
    %4700 = vmatprep.subr.mxu0 0.0
    %4701 = vmatpush1.msra.mxu0 0.0
    %4702 = vmatprep.subr.mxu0 0.0
    %4703 = vmatpush1.msra.mxu0 0.0
    %4704 = vmatprep.subr.mxu0 0.0
    %4705 = vmatpush1.msra.mxu0 0.0
    %4706 = vmatprep.subr.mxu0 0.0
    %4707 = vmatpush1.msra.mxu0 0.0
    %4708 = vmatprep.subr.mxu0 0.0
    %4709 = vmatpush1.msra.mxu0 0.0
    %4710 = vmatprep.subr.mxu0 0.0
    %4711 = vmatpush1.msra.mxu0 0.0
    %4712 = vmatprep.subr.mxu0 0.0
    %4713 = vmatpush1.msra.mxu0 0.0
    %4714 = vmatprep.subr.mxu0 0.0
    %4715 = vmatpush1.msra.mxu0 0.0
    %4716 = vmatprep.subr.mxu0 0.0
    %4717 = vmatpush1.msra.mxu0 0.0
    %4718 = vmatprep.subr.mxu0 0.0
    %4719 = vmatpush1.msra.mxu0 0.0
    %4720 = vmatprep.subr.mxu0 0.0
    %4721 = vmatpush1.msra.mxu0 0.0
    %4722 = vmatprep.subr.mxu0 0.0
    %4723 = vmatpush1.msra.mxu0 0.0
    %4724 = vmatprep.subr.mxu0 0.0
    %4725 = vmatpush1.msra.mxu0 0.0
    %4726 = vmatprep.subr.mxu0 0.0
    %4727 = vmatpush1.msra.mxu0 0.0
    %4728 = vmatprep.subr.mxu0 0.0
    %4729 = vmatpush1.msra.mxu0 0.0
    %4730 = vmatprep.subr.mxu0 0.0
    %4731 = vmatpush1.msra.mxu0 0.0
    %4732 = vmatprep.subr.mxu0 0.0
    %4733 = vmatpush1.msra.mxu0 0.0
    %4734 = vmatprep.subr.mxu0 0.0
    %4735 = vmatpush1.msra.mxu0 0.0
    %4736 = vmatprep.subr.mxu0 0.0
    %4737 = vmatpush1.msra.mxu0 0.0
    %4738 = vmatprep.subr.mxu0 0.0
    %4739 = vmatpush1.msra.mxu0 0.0
    %4740 = vmatprep.subr.mxu0 0.0
    %4741 = vmatpush1.msra.mxu0 0.0
    %4742 = vmatprep.subr.mxu0 0.0
    %4743 = vmatpush1.msra.mxu0 0.0
    %4744 = vmatprep.subr.mxu0 0.0
    %4745 = vmatpush1.msra.mxu0 0.0
    %4746 = vmatprep.subr.mxu0 0.0
    %4747 = vmatpush1.msra.mxu0 0.0
    %4748 = vmatprep.subr.mxu0 0.0
    %4749 = vmatpush1.msra.mxu0 0.0
    %4750 = vmatprep.mubr.f32.mxu0 0.0
    %4751 = vmatmul.mubr.f32.gmra.mrb[0].mxu0 %v4676
    %v4752 = vpop.f32.mrb[0].mxu0
    %v4753 = vadd.f32 0.0, %v4752
    %v4754 = vpop.f32.mrb[0].mxu0
    %4755 = vmatprep.mubr.f32.mxu0 0.0
    %4756 = vmatmul.mubr.f32.gmra.mrb[0].mxu0 %v4679
    %v4757 = vpop.f32.mrb[0].mxu0
    %v4758 = vadd.f32 0.0, %v4757
    %v4759 = vpop.f32.mrb[0].mxu0
    %4760 = vmatprep.mubr.f32.mxu0 0.0
    %4761 = vmatmul.mubr.f32.gmra.mrb[0].mxu0 %v4682
    %v4762 = vpop.f32.mrb[0].mxu0
    %v4763 = vadd.f32 0.0, %v4762
    %v4764 = vpop.f32.mrb[0].mxu0
    %4765 = vdwg.mxu0
    %4766 = vrot.lane.b32.xlu0 %v4052, 104
    %v4767 = vpop.permute.xlu0 %4766
    %4768 = vrot.lane.b32.xlu0 %v4054, 104
    %v4769 = vpop.permute.xlu0 %4768
    %4770 = vrot.lane.b32.xlu0 %v4053, 104
    %v4771 = vpop.permute.xlu0 %4770
    %4772 = vrot.lane.b32.xlu0 %v4052, 72
    %v4773 = vpop.permute.xlu0 %4772
    %4774 = vrot.lane.b32.xlu0 %v4054, 72
    %v4775 = vpop.permute.xlu0 %4774
    %4776 = vrot.lane.b32.xlu0 %v4053, 72
    %v4777 = vpop.permute.xlu0 %4776
    %v4778 = vsel %vm361, %v4767, 0
    %v4780 = vsel %vm361, %v4769, 0
    %v4782 = vsel %vm361, %v4771, 0
    %v4784 = vsel %vm361, %v4773, 0
    %v4786 = vsel %vm361, %v4775, 0
    %v4788 = vsel %vm361, %v4777, 0
    %4790 = vmatprep.subr.mxu0 0.0
    %4791 = vmatpush1.xpose.msra.mxu0 %v4784
    %4792 = vmatprep.subr.mxu0 0.0
    %4793 = vmatpush1.xpose.msra.mxu0 %v4786
    %4794 = vmatprep.subr.mxu0 0.0
    %4795 = vmatpush1.xpose.msra.mxu0 %v4788
    %4796 = vmatprep.subr.mxu0 0.0
    %4797 = vmatpush1.xpose.msra.mxu0 0.0
    %4798 = vmatprep.subr.mxu0 0.0
    %4799 = vmatpush1.xpose.msra.mxu0 0.0
    %4800 = vmatprep.subr.mxu0 0.0
    %4801 = vmatpush1.xpose.msra.mxu0 0.0
    %4802 = vmatprep.subr.mxu0 0.0
    %4803 = vmatpush1.xpose.msra.mxu0 0.0
    %4804 = vmatprep.subr.mxu0 0.0
    %4805 = vmatpush1.xpose.msra.mxu0 0.0
    %4806 = vmatprep.subr.mxu0 0.0
    %4807 = vmatpush1.xpose.msra.mxu0 0.0
    %4808 = vmatprep.subr.mxu0 0.0
    %4809 = vmatpush1.xpose.msra.mxu0 0.0
    %4810 = vmatprep.subr.mxu0 0.0
    %4811 = vmatpush1.xpose.msra.mxu0 0.0
    %4812 = vmatprep.subr.mxu0 0.0
    %4813 = vmatpush1.xpose.msra.mxu0 0.0
    %4814 = vmatprep.subr.mxu0 0.0
    %4815 = vmatpush1.xpose.msra.mxu0 0.0
    %4816 = vmatprep.subr.mxu0 0.0
    %4817 = vmatpush1.xpose.msra.mxu0 0.0
    %4818 = vmatprep.subr.mxu0 0.0
    %4819 = vmatpush1.xpose.msra.mxu0 0.0
    %4820 = vmatprep.subr.mxu0 0.0
    %4821 = vmatpush1.xpose.msra.mxu0 0.0
    %4822 = vmatprep.subr.mxu0 0.0
    %4823 = vmatpush1.xpose.msra.mxu0 0.0
    %4824 = vmatprep.subr.mxu0 0.0
    %4825 = vmatpush1.xpose.msra.mxu0 0.0
    %4826 = vmatprep.subr.mxu0 0.0
    %4827 = vmatpush1.xpose.msra.mxu0 0.0
    %4828 = vmatprep.subr.mxu0 0.0
    %4829 = vmatpush1.xpose.msra.mxu0 0.0
    %4830 = vmatprep.subr.mxu0 0.0
    %4831 = vmatpush1.xpose.msra.mxu0 0.0
    %4832 = vmatprep.subr.mxu0 0.0
    %4833 = vmatpush1.xpose.msra.mxu0 0.0
    %4834 = vmatprep.subr.mxu0 0.0
    %4835 = vmatpush1.xpose.msra.mxu0 0.0
    %4836 = vmatprep.subr.mxu0 0.0
    %4837 = vmatpush1.xpose.msra.mxu0 0.0
    %4838 = vmatprep.subr.mxu0 0.0
    %4839 = vmatpush1.xpose.msra.mxu0 0.0
    %4840 = vmatprep.subr.mxu0 0.0
    %4841 = vmatpush1.xpose.msra.mxu0 0.0
    %4842 = vmatprep.subr.mxu0 0.0
    %4843 = vmatpush1.xpose.msra.mxu0 0.0
    %4844 = vmatprep.subr.mxu0 0.0
    %4845 = vmatpush1.xpose.msra.mxu0 0.0
    %4846 = vmatprep.subr.mxu0 0.0
    %4847 = vmatpush1.xpose.msra.mxu0 0.0
    %4848 = vmatprep.subr.mxu0 0.0
    %4849 = vmatpush1.xpose.msra.mxu0 0.0
    %4850 = vmatprep.subr.mxu0 0.0
    %4851 = vmatpush1.xpose.msra.mxu0 0.0
    %4852 = vmatprep.subr.mxu0 0.0
    %4853 = vmatpush1.xpose.msra.mxu0 0.0
    %4854 = vmatprep.mubr.f32.mxu0 0.0
    %4855 = vmatmul.mubr.f32.gmra.mrb[0].mxu0 %v4778
    %v4856 = vpop.f32.mrb[0].mxu0
    %v4857 = vadd.f32 0.0, %v4856
    %v4858 = vpop.f32.mrb[0].mxu0
    %4859 = vmatprep.mubr.f32.mxu0 0.0
    %4860 = vmatmul.mubr.f32.gmra.mrb[0].mxu0 %v4780
    %v4861 = vpop.f32.mrb[0].mxu0
    %v4862 = vadd.f32 0.0, %v4861
    %v4863 = vpop.f32.mrb[0].mxu0
    %4864 = vmatprep.mubr.f32.mxu0 0.0
    %4865 = vmatmul.mubr.f32.gmra.mrb[0].mxu0 %v4782
    %v4866 = vpop.f32.mrb[0].mxu0
    %v4867 = vadd.f32 0.0, %v4866
    %v4868 = vpop.f32.mrb[0].mxu0
    %4869 = vdwg.mxu0
    %v4870 = vmul.f32 %v4857, 0.35355338
    %v4871 = vmul.f32 %v4862, 0.35355338
    %v4872 = vmul.f32 %v4867, 0.35355338
    %v4873 = vsel %vm457, %v4870, -inf
    %4874 = vmax.xlane.f32.xlu0 %v4873
    %v4875 = vpop.xlane.xlu0 %4874
    %v4876 = vsel %vm457, %v4871, -inf
    %4877 = vmax.xlane.f32.xlu0 %v4876
    %v4878 = vpop.xlane.xlu0 %4877
    %v4879 = vsel %vm464, %v4872, -inf
    %4880 = vmax.xlane.f32.xlu0 %v4879
    %v4881 = vpop.xlane.xlu0 %4880
    %v4882 = vsub.f32 %v4870, %v4875
    %v4883 = vsub.f32 %v4871, %v4878
    %v4884 = vsub.f32 %v4872, %v4881
    %v4885 = vmul.f32 %v4882, 1.442695
    %v4886 = vpow.pop %v4885
    %v4887 = vmul.f32 %v4883, 1.442695
    %v4888 = vpow.pop %v4887
    %v4889 = vmul.f32 %v4884, 1.442695
    %v4890 = vpow.pop %v4889
    %v4891 = vsel %vm457, %v4886, 0.0
    %4892 = vadd.xlane.f32.xlu0 %v4891
    %v4893 = vpop.xlane.xlu0 %4892
    %v4894 = vsel %vm457, %v4888, 0.0
    %4895 = vadd.xlane.f32.xlu0 %v4894
    %v4896 = vpop.xlane.xlu0 %4895
    %v4897 = vsel %vm464, %v4890, 0.0
    %4898 = vadd.xlane.f32.xlu0 %v4897
    %v4899 = vpop.xlane.xlu0 %4898
    %v4900 = vrcp.pop %v4893
    %v4901 = vrcp.pop %v4896
    %v4902 = vrcp.pop %v4899
    %v4903 = vmul.f32 %v4886, %v4900
    %v4904 = vmul.f32 %v4888, %v4901
    %v4905 = vmul.f32 %v4890, %v4902
    %4906 = vrot.lane.b32.xlu0 %v4052, 40
    %v4907 = vpop.permute.xlu0 %4906
    %4908 = vrot.lane.b32.xlu0 %v4054, 40
    %v4909 = vpop.permute.xlu0 %4908
    %4910 = vrot.lane.b32.xlu0 %v4053, 40
    %v4911 = vpop.permute.xlu0 %4910
    %v4915 = vsel %vm457, %v4903, 0
    %v4918 = vsel %vm457, %v4904, 0
    %v4921 = vsel %vm457, %v4905, 0
    %v4923 = vsel %vm509, %v4911, 0
    %4925 = vmatprep.subr.mxu0 0.0
    %4926 = vmatpush1.msra.mxu0 %v4907
    %4927 = vmatprep.subr.mxu0 0.0
    %4928 = vmatpush1.msra.mxu0 %v4909
    %4929 = vmatprep.subr.mxu0 0.0
    %4930 = vmatpush1.msra.mxu0 %v4923
    %4931 = vmatprep.subr.mxu0 0.0
    %4932 = vmatpush1.msra.mxu0 0.0
    %4933 = vmatprep.subr.mxu0 0.0
    %4934 = vmatpush1.msra.mxu0 0.0
    %4935 = vmatprep.subr.mxu0 0.0
    %4936 = vmatpush1.msra.mxu0 0.0
    %4937 = vmatprep.subr.mxu0 0.0
    %4938 = vmatpush1.msra.mxu0 0.0
    %4939 = vmatprep.subr.mxu0 0.0
    %4940 = vmatpush1.msra.mxu0 0.0
    %4941 = vmatprep.subr.mxu0 0.0
    %4942 = vmatpush1.msra.mxu0 0.0
    %4943 = vmatprep.subr.mxu0 0.0
    %4944 = vmatpush1.msra.mxu0 0.0
    %4945 = vmatprep.subr.mxu0 0.0
    %4946 = vmatpush1.msra.mxu0 0.0
    %4947 = vmatprep.subr.mxu0 0.0
    %4948 = vmatpush1.msra.mxu0 0.0
    %4949 = vmatprep.subr.mxu0 0.0
    %4950 = vmatpush1.msra.mxu0 0.0
    %4951 = vmatprep.subr.mxu0 0.0
    %4952 = vmatpush1.msra.mxu0 0.0
    %4953 = vmatprep.subr.mxu0 0.0
    %4954 = vmatpush1.msra.mxu0 0.0
    %4955 = vmatprep.subr.mxu0 0.0
    %4956 = vmatpush1.msra.mxu0 0.0
    %4957 = vmatprep.subr.mxu0 0.0
    %4958 = vmatpush1.msra.mxu0 0.0
    %4959 = vmatprep.subr.mxu0 0.0
    %4960 = vmatpush1.msra.mxu0 0.0
    %4961 = vmatprep.subr.mxu0 0.0
    %4962 = vmatpush1.msra.mxu0 0.0
    %4963 = vmatprep.subr.mxu0 0.0
    %4964 = vmatpush1.msra.mxu0 0.0
    %4965 = vmatprep.subr.mxu0 0.0
    %4966 = vmatpush1.msra.mxu0 0.0
    %4967 = vmatprep.subr.mxu0 0.0
    %4968 = vmatpush1.msra.mxu0 0.0
    %4969 = vmatprep.subr.mxu0 0.0
    %4970 = vmatpush1.msra.mxu0 0.0
    %4971 = vmatprep.subr.mxu0 0.0
    %4972 = vmatpush1.msra.mxu0 0.0
    %4973 = vmatprep.subr.mxu0 0.0
    %4974 = vmatpush1.msra.mxu0 0.0
    %4975 = vmatprep.subr.mxu0 0.0
    %4976 = vmatpush1.msra.mxu0 0.0
    %4977 = vmatprep.subr.mxu0 0.0
    %4978 = vmatpush1.msra.mxu0 0.0
    %4979 = vmatprep.subr.mxu0 0.0
    %4980 = vmatpush1.msra.mxu0 0.0
    %4981 = vmatprep.subr.mxu0 0.0
    %4982 = vmatpush1.msra.mxu0 0.0
    %4983 = vmatprep.subr.mxu0 0.0
    %4984 = vmatpush1.msra.mxu0 0.0
    %4985 = vmatprep.subr.mxu0 0.0
    %4986 = vmatpush1.msra.mxu0 0.0
    %4987 = vmatprep.subr.mxu0 0.0
    %4988 = vmatpush1.msra.mxu0 0.0
    %4989 = vmatprep.mubr.f32.mxu0 0.0
    %4990 = vmatmul.mubr.f32.gmra.mrb[0].mxu0 %v4915
    %v4991 = vpop.f32.mrb[0].mxu0
    %v4992 = vadd.f32 0.0, %v4991
    %v4993 = vpop.f32.mrb[0].mxu0
    %4994 = vmatprep.mubr.f32.mxu0 0.0
    %4995 = vmatmul.mubr.f32.gmra.mrb[0].mxu0 %v4918
    %v4996 = vpop.f32.mrb[0].mxu0
    %v4997 = vadd.f32 0.0, %v4996
    %v4998 = vpop.f32.mrb[0].mxu0
    %4999 = vmatprep.mubr.f32.mxu0 0.0
    %5000 = vmatmul.mubr.f32.gmra.mrb[0].mxu0 %v4921
    %v5001 = vpop.f32.mrb[0].mxu0
    %v5002 = vadd.f32 0.0, %v5001
    %v5003 = vpop.f32.mrb[0].mxu0
    %5004 = vdwg.mxu0
    %5008 = vrot.lane.b32.xlu0 %v4514, 8
    %v5009 = vpop.permute.xlu0 %5008
    %5010 = vrot.lane.b32.xlu0 %v4519, 8
    %v5011 = vpop.permute.xlu0 %5010
    %5012 = vrot.lane.b32.xlu0 %v4524, 8
    %v5013 = vpop.permute.xlu0 %5012
    %5020 = vrot.lane.b32.xlu0 %v4753, 16
    %v5021 = vpop.permute.xlu0 %5020
    %5022 = vrot.lane.b32.xlu0 %v4758, 16
    %v5023 = vpop.permute.xlu0 %5022
    %5024 = vrot.lane.b32.xlu0 %v4763, 16
    %v5025 = vpop.permute.xlu0 %5024
    %5032 = vrot.lane.b32.xlu0 %v4992, 24
    %v5033 = vpop.permute.xlu0 %5032
    %5034 = vrot.lane.b32.xlu0 %v4997, 24
    %v5035 = vpop.permute.xlu0 %5034
    %5036 = vrot.lane.b32.xlu0 %v5002, 24
    %v5037 = vpop.permute.xlu0 %5036
    %v5041 = vsel %vm361, %v4275, %v5009
    %v5042 = vsel %vm361, %v4280, %v5011
    %v5043 = vsel %vm361, %v4285, %v5013
    %v5044 = vsel %vm1348, %v5041, %v5021
    %v5045 = vsel %vm1348, %v5042, %v5023
    %v5046 = vsel %vm1348, %v5043, %v5025
    %v5047 = vsel %vm1352, %v5044, %v5033
    %v5048 = vsel %vm1352, %v5045, %v5035
    %v5049 = vsel %vm1352, %v5046, %v5037
    %v5053 = vrot.slane %v5047, 7
    %v5054 = vrot.slane %v5048, 7
    %v5055 = vsel %vm509, %v5053, %v5054
    %v5056 = vrot.slane %v5049, 7
    %v5057 = vsel %vm509, %v5054, %v5056
    %v5059 = vsel %vm509, %v4047, %v5053
    %s5060 = scalar_lea.vmem %s4, 32
    %v5061 = vld [vmem:[%s5060] sm:$0xff]
    %v5062 = vld [vmem:[%s5060 + $0x8] sm:$0xff]
    %v5063 = vld [vmem:[%s5060 + $0x10] sm:$0xff]
    %v5064 = vld [vmem:[%s5060 + $0x18] sm:$0xff]
    %v5066 = vsel %vm153, %v4045, 0
    %v5069 = vsel %vm153, %v4046, 0
    %v5072 = vsel %vm153, %v5059, 0
    %v5074 = vsel %vm153, %v5055, 0
    %v5076 = vsel %vm153, %v5057, 0
    %5078 = vmatprep.subr.mxu0 0.0
    %5079 = vmatpush1.msra.mxu0 %v5061
    %5080 = vmatprep.subr.mxu0 0.0
    %5081 = vmatpush1.msra.mxu0 %v5062
    %5082 = vmatprep.subr.mxu0 0.0
    %5083 = vmatpush1.msra.mxu0 %v5063
    %5084 = vmatprep.subr.mxu0 0.0
    %5085 = vmatpush1.msra.mxu0 %v5064
    %5086 = vmatprep.subr.mxu0 0.0
    %5087 = vmatpush1.msra.mxu0 0.0
    %5088 = vmatprep.subr.mxu0 0.0
    %5089 = vmatpush1.msra.mxu0 0.0
    %5090 = vmatprep.subr.mxu0 0.0
    %5091 = vmatpush1.msra.mxu0 0.0
    %5092 = vmatprep.subr.mxu0 0.0
    %5093 = vmatpush1.msra.mxu0 0.0
    %5094 = vmatprep.subr.mxu0 0.0
    %5095 = vmatpush1.msra.mxu0 0.0
    %5096 = vmatprep.subr.mxu0 0.0
    %5097 = vmatpush1.msra.mxu0 0.0
    %5098 = vmatprep.subr.mxu0 0.0
    %5099 = vmatpush1.msra.mxu0 0.0
    %5100 = vmatprep.subr.mxu0 0.0
    %5101 = vmatpush1.msra.mxu0 0.0
    %5102 = vmatprep.subr.mxu0 0.0
    %5103 = vmatpush1.msra.mxu0 0.0
    %5104 = vmatprep.subr.mxu0 0.0
    %5105 = vmatpush1.msra.mxu0 0.0
    %5106 = vmatprep.subr.mxu0 0.0
    %5107 = vmatpush1.msra.mxu0 0.0
    %5108 = vmatprep.subr.mxu0 0.0
    %5109 = vmatpush1.msra.mxu0 0.0
    %5110 = vmatprep.subr.mxu0 0.0
    %5111 = vmatpush1.msra.mxu0 0.0
    %5112 = vmatprep.subr.mxu0 0.0
    %5113 = vmatpush1.msra.mxu0 0.0
    %5114 = vmatprep.subr.mxu0 0.0
    %5115 = vmatpush1.msra.mxu0 0.0
    %5116 = vmatprep.subr.mxu0 0.0
    %5117 = vmatpush1.msra.mxu0 0.0
    %5118 = vmatprep.subr.mxu0 0.0
    %5119 = vmatpush1.msra.mxu0 0.0
    %5120 = vmatprep.subr.mxu0 0.0
    %5121 = vmatpush1.msra.mxu0 0.0
    %5122 = vmatprep.subr.mxu0 0.0
    %5123 = vmatpush1.msra.mxu0 0.0
    %5124 = vmatprep.subr.mxu0 0.0
    %5125 = vmatpush1.msra.mxu0 0.0
    %5126 = vmatprep.subr.mxu0 0.0
    %5127 = vmatpush1.msra.mxu0 0.0
    %5128 = vmatprep.subr.mxu0 0.0
    %5129 = vmatpush1.msra.mxu0 0.0
    %5130 = vmatprep.subr.mxu0 0.0
    %5131 = vmatpush1.msra.mxu0 0.0
    %5132 = vmatprep.subr.mxu0 0.0
    %5133 = vmatpush1.msra.mxu0 0.0
    %5134 = vmatprep.subr.mxu0 0.0
    %5135 = vmatpush1.msra.mxu0 0.0
    %5136 = vmatprep.subr.mxu0 0.0
    %5137 = vmatpush1.msra.mxu0 0.0
    %5138 = vmatprep.subr.mxu0 0.0
    %5139 = vmatpush1.msra.mxu0 0.0
    %5140 = vmatprep.subr.mxu0 0.0
    %5141 = vmatpush1.msra.mxu0 0.0
    %5142 = vmatprep.mubr.f32.mxu0 0.0
    %5143 = vmatmul.mubr.f32.gmra.mrb[0].mxu0 %v5066
    %v5144 = vpop.f32.mrb[0].mxu0
    %v5145 = vadd.f32 0.0, %v5144
    %v5146 = vpop.f32.mrb[0].mxu0
    %5147 = vmatprep.mubr.f32.mxu0 0.0
    %5148 = vmatmul.mubr.f32.gmra.mrb[0].mxu0 %v5069
    %v5149 = vpop.f32.mrb[0].mxu0
    %v5150 = vadd.f32 0.0, %v5149
    %v5151 = vpop.f32.mrb[0].mxu0
    %5152 = vmatprep.mubr.f32.mxu0 0.0
    %5153 = vmatmul.mubr.f32.gmra.mrb[0].mxu0 %v5072
    %v5154 = vpop.f32.mrb[0].mxu0
    %v5155 = vadd.f32 0.0, %v5154
    %v5156 = vpop.f32.mrb[0].mxu0
    %5157 = vmatprep.mubr.f32.mxu0 0.0
    %5158 = vmatmul.mubr.f32.gmra.mrb[0].mxu0 %v5074
    %v5159 = vpop.f32.mrb[0].mxu0
    %v5160 = vadd.f32 0.0, %v5159
    %v5161 = vpop.f32.mrb[0].mxu0
    %5162 = vmatprep.mubr.f32.mxu0 0.0
    %5163 = vmatmul.mubr.f32.gmra.mrb[0].mxu0 %v5076
    %v5164 = vpop.f32.mrb[0].mxu0
    %v5165 = vadd.f32 0.0, %v5164
    %v5166 = vpop.f32.mrb[0].mxu0
    %5167 = vdwg.mxu0
    %v5168 = vadd.f32 %v2846, %v5145
    %v5169 = vadd.f32 %v2847, %v5150
    %v5170 = vadd.f32 %v2848, %v5155
    %v5171 = vadd.f32 %v2849, %v5160
    %v5172 = vadd.f32 %v2850, %v5165
    %v5173 = vlaneseq
    %v5174 = vshrl.u32 %v5173, 7
    %v5175 = vsub.s32 5, %v5174
    %v5176 = vrot.slane %v2852, %v5175
    %v5177 = vadd.f32 %v5168, %v5176
    %v5178 = vadd.f32 %v5169, %v5176
    %v5179 = vadd.f32 %v5170, %v5176
    %v5180 = vadd.f32 %v5171, %v5176
    %v5181 = vadd.f32 %v5172, %v5176
    %v5182 = vsel %vm153, %v5177, 0.0
    %5183 = vadd.xlane.f32.xlu0 %v5182
    %v5184 = vpop.xlane.xlu0 %5183
    %v5185 = vsel %vm153, %v5178, 0.0
    %5186 = vadd.xlane.f32.xlu0 %v5185
    %v5187 = vpop.xlane.xlu0 %5186
    %v5188 = vsel %vm153, %v5179, 0.0
    %5189 = vadd.xlane.f32.xlu0 %v5188
    %v5190 = vpop.xlane.xlu0 %5189
    %v5191 = vsel %vm153, %v5180, 0.0
    %5192 = vadd.xlane.f32.xlu0 %v5191
    %v5193 = vpop.xlane.xlu0 %5192
    %v5194 = vsel %vm166, %v5181, 0.0
    %5195 = vadd.xlane.f32.xlu0 %v5194
    %v5196 = vpop.xlane.xlu0 %5195
    %v5197 = vmul.f32 %v5184, %v170
    %v5198 = vmul.f32 %v5187, %v170
    %v5199 = vmul.f32 %v5190, %v170
    %v5200 = vmul.f32 %v5193, %v170
    %v5201 = vmul.f32 %v5196, %v170
    %v5202 = vsub.f32 %v5177, %v5197
    %v5203 = vsub.f32 %v5178, %v5198
    %v5204 = vsub.f32 %v5179, %v5199
    %v5205 = vsub.f32 %v5180, %v5200
    %v5206 = vsub.f32 %v5181, %v5201
    %v5207 = vmul.f32 %v5202, %v5202
    %v5208 = vmul.f32 %v5203, %v5203
    %v5209 = vmul.f32 %v5204, %v5204
    %v5210 = vmul.f32 %v5205, %v5205
    %v5211 = vmul.f32 %v5206, %v5206
    %v5212 = vsel %vm153, %v5207, 0.0
    %5213 = vadd.xlane.f32.xlu0 %v5212
    %v5214 = vpop.xlane.xlu0 %5213
    %v5215 = vsel %vm153, %v5208, 0.0
    %5216 = vadd.xlane.f32.xlu0 %v5215
    %v5217 = vpop.xlane.xlu0 %5216
    %v5218 = vsel %vm153, %v5209, 0.0
    %5219 = vadd.xlane.f32.xlu0 %v5218
    %v5220 = vpop.xlane.xlu0 %5219
    %v5221 = vsel %vm153, %v5210, 0.0
    %5222 = vadd.xlane.f32.xlu0 %v5221
    %v5223 = vpop.xlane.xlu0 %5222
    %v5224 = vsel %vm166, %v5211, 0.0
    %5225 = vadd.xlane.f32.xlu0 %v5224
    %v5226 = vpop.xlane.xlu0 %5225
    %v5227 = vmul.f32 %v5214, %v170
    %v5228 = vmul.f32 %v5217, %v170
    %v5229 = vmul.f32 %v5220, %v170
    %v5230 = vmul.f32 %v5223, %v170
    %v5231 = vmul.f32 %v5226, %v170
    %v5232 = vadd.f32 %v5227, 1e-05
    %v5233 = vadd.f32 %v5228, 1e-05
    %v5234 = vadd.f32 %v5229, 1e-05
    %v5235 = vadd.f32 %v5230, 1e-05
    %v5236 = vadd.f32 %v5231, 1e-05
    %v5237 = vrsqrt.pop %v5232
    %v5238 = vrsqrt.pop %v5233
    %v5239 = vrsqrt.pop %v5234
    %v5240 = vrsqrt.pop %v5235
    %v5241 = vrsqrt.pop %v5236
    %v5242 = vmul.f32 %v5202, %v5237
    %v5243 = vmul.f32 %v5203, %v5238
    %v5244 = vmul.f32 %v5204, %v5239
    %v5245 = vmul.f32 %v5205, %v5240
    %v5246 = vmul.f32 %v5206, %v5241
    %v5247 = vlaneseq
    %v5248 = vshrl.u32 %v5247, 7
    %v5249 = vsub.s32 2, %v5248
    %v5250 = vrot.slane %v2852, %v5249
    %v5251 = vmul.f32 %v5242, %v5250
    %v5252 = vmul.f32 %v5243, %v5250
    %v5253 = vmul.f32 %v5244, %v5250
    %v5254 = vmul.f32 %v5245, %v5250
    %v5255 = vmul.f32 %v5246, %v5250
    %v5256 = vlaneseq
    %v5257 = vshrl.u32 %v5256, 7
    %v5258 = vsub.s32 3, %v5257
    %v5259 = vrot.slane %v2852, %v5258
    %v5260 = vadd.f32 %v5251, %v5259
    %v5261 = vadd.f32 %v5252, %v5259
    %v5262 = vadd.f32 %v5253, %v5259
    %v5263 = vadd.f32 %v5254, %v5259
    %v5264 = vadd.f32 %v5255, %v5259
    %s5265 = scalar_lea.vmem %s5, 32
    %v5266 = vld [vmem:[%s5265] sm:$0xff]
    %v5267 = vld [vmem:[%s5265 + $0x8] sm:$0xff]
    %v5268 = vld [vmem:[%s5265 + $0x10] sm:$0xff]
    %v5269 = vld [vmem:[%s5265 + $0x18] sm:$0xff]
    %v5270 = vlaneseq
    %v5271 = vshrl.u32 %v5270, 7
    %v5272 = vsub.s32 6, %v5271
    %v5273 = vrot.slane %v2852, %v5272
    %v5275 = vsel %vm153, %v5260, 0
    %v5278 = vsel %vm153, %v5261, 0
    %v5281 = vsel %vm153, %v5262, 0
    %v5284 = vsel %vm153, %v5263, 0
    %v5287 = vsel %vm153, %v5264, 0
    %5289 = vmatprep.subr.mxu0 0.0
    %5290 = vmatpush1.msra.mxu0 %v5266
    %5291 = vmatprep.subr.mxu0 0.0
    %5292 = vmatpush1.msra.mxu0 %v5267
    %5293 = vmatprep.subr.mxu0 0.0
    %5294 = vmatpush1.msra.mxu0 %v5268
    %5295 = vmatprep.subr.mxu0 0.0
    %5296 = vmatpush1.msra.mxu0 %v5269
    %5297 = vmatprep.subr.mxu0 0.0
    %5298 = vmatpush1.msra.mxu0 0.0
    %5299 = vmatprep.subr.mxu0 0.0
    %5300 = vmatpush1.msra.mxu0 0.0
    %5301 = vmatprep.subr.mxu0 0.0
    %5302 = vmatpush1.msra.mxu0 0.0
    %5303 = vmatprep.subr.mxu0 0.0
    %5304 = vmatpush1.msra.mxu0 0.0
    %5305 = vmatprep.subr.mxu0 0.0
    %5306 = vmatpush1.msra.mxu0 0.0
    %5307 = vmatprep.subr.mxu0 0.0
    %5308 = vmatpush1.msra.mxu0 0.0
    %5309 = vmatprep.subr.mxu0 0.0
    %5310 = vmatpush1.msra.mxu0 0.0
    %5311 = vmatprep.subr.mxu0 0.0
    %5312 = vmatpush1.msra.mxu0 0.0
    %5313 = vmatprep.subr.mxu0 0.0
    %5314 = vmatpush1.msra.mxu0 0.0
    %5315 = vmatprep.subr.mxu0 0.0
    %5316 = vmatpush1.msra.mxu0 0.0
    %5317 = vmatprep.subr.mxu0 0.0
    %5318 = vmatpush1.msra.mxu0 0.0
    %5319 = vmatprep.subr.mxu0 0.0
    %5320 = vmatpush1.msra.mxu0 0.0
    %5321 = vmatprep.subr.mxu0 0.0
    %5322 = vmatpush1.msra.mxu0 0.0
    %5323 = vmatprep.subr.mxu0 0.0
    %5324 = vmatpush1.msra.mxu0 0.0
    %5325 = vmatprep.subr.mxu0 0.0
    %5326 = vmatpush1.msra.mxu0 0.0
    %5327 = vmatprep.subr.mxu0 0.0
    %5328 = vmatpush1.msra.mxu0 0.0
    %5329 = vmatprep.subr.mxu0 0.0
    %5330 = vmatpush1.msra.mxu0 0.0
    %5331 = vmatprep.subr.mxu0 0.0
    %5332 = vmatpush1.msra.mxu0 0.0
    %5333 = vmatprep.subr.mxu0 0.0
    %5334 = vmatpush1.msra.mxu0 0.0
    %5335 = vmatprep.subr.mxu0 0.0
    %5336 = vmatpush1.msra.mxu0 0.0
    %5337 = vmatprep.subr.mxu0 0.0
    %5338 = vmatpush1.msra.mxu0 0.0
    %5339 = vmatprep.subr.mxu0 0.0
    %5340 = vmatpush1.msra.mxu0 0.0
    %5341 = vmatprep.subr.mxu0 0.0
    %5342 = vmatpush1.msra.mxu0 0.0
    %5343 = vmatprep.subr.mxu0 0.0
    %5344 = vmatpush1.msra.mxu0 0.0
    %5345 = vmatprep.subr.mxu0 0.0
    %5346 = vmatpush1.msra.mxu0 0.0
    %5347 = vmatprep.subr.mxu0 0.0
    %5348 = vmatpush1.msra.mxu0 0.0
    %5349 = vmatprep.subr.mxu0 0.0
    %5350 = vmatpush1.msra.mxu0 0.0
    %5351 = vmatprep.subr.mxu0 0.0
    %5352 = vmatpush1.msra.mxu0 0.0
    %5353 = vmatprep.mubr.f32.mxu0 0.0
    %5354 = vmatmul.mubr.f32.gmra.mrb[0].mxu0 %v5275
    %v5355 = vpop.f32.mrb[0].mxu0
    %v5356 = vadd.f32 %v5273, %v5355
    %v5357 = vpop.f32.mrb[0].mxu0
    %5358 = vmatprep.mubr.f32.mxu0 0.0
    %5359 = vmatmul.mubr.f32.gmra.mrb[0].mxu0 %v5278
    %v5360 = vpop.f32.mrb[0].mxu0
    %v5361 = vadd.f32 %v5273, %v5360
    %v5362 = vpop.f32.mrb[0].mxu0
    %5363 = vmatprep.mubr.f32.mxu0 0.0
    %5364 = vmatmul.mubr.f32.gmra.mrb[0].mxu0 %v5281
    %v5365 = vpop.f32.mrb[0].mxu0
    %v5366 = vadd.f32 %v5273, %v5365
    %v5367 = vpop.f32.mrb[0].mxu0
    %5368 = vmatprep.mubr.f32.mxu0 0.0
    %5369 = vmatmul.mubr.f32.gmra.mrb[0].mxu0 %v5284
    %v5370 = vpop.f32.mrb[0].mxu0
    %v5371 = vadd.f32 %v5273, %v5370
    %v5372 = vpop.f32.mrb[0].mxu0
    %5373 = vmatprep.mubr.f32.mxu0 0.0
    %5374 = vmatmul.mubr.f32.gmra.mrb[0].mxu0 %v5287
    %v5375 = vpop.f32.mrb[0].mxu0
    %v5376 = vadd.f32 %v5273, %v5375
    %v5377 = vpop.f32.mrb[0].mxu0
    %5378 = vdwg.mxu0
    %v5379 = vmul.f32 %v5356, 0.5
    %v5380 = vmul.f32 %v5361, 0.5
    %v5381 = vmul.f32 %v5366, 0.5
    %v5382 = vmul.f32 %v5371, 0.5
    %v5383 = vmul.f32 %v5376, 0.5
    %v5384 = vmul.f32 %v5356, 0.044715
    %v5385 = vmul.f32 %v5361, 0.044715
    %v5386 = vmul.f32 %v5366, 0.044715
    %v5387 = vmul.f32 %v5371, 0.044715
    %v5388 = vmul.f32 %v5376, 0.044715
    %v5389 = vmul.f32 %v5384, %v5356
    %v5390 = vmul.f32 %v5385, %v5361
    %v5391 = vmul.f32 %v5386, %v5366
    %v5392 = vmul.f32 %v5387, %v5371
    %v5393 = vmul.f32 %v5388, %v5376
    %v5394 = vmul.f32 %v5389, %v5356
    %v5395 = vmul.f32 %v5390, %v5361
    %v5396 = vmul.f32 %v5391, %v5366
    %v5397 = vmul.f32 %v5392, %v5371
    %v5398 = vmul.f32 %v5393, %v5376
    %v5399 = vadd.f32 %v5356, %v5394
    %v5400 = vadd.f32 %v5361, %v5395
    %v5401 = vadd.f32 %v5366, %v5396
    %v5402 = vadd.f32 %v5371, %v5397
    %v5403 = vadd.f32 %v5376, %v5398
    %v5404 = vmul.f32 %v5399, 0.7978846
    %v5405 = vmul.f32 %v5400, 0.7978846
    %v5406 = vmul.f32 %v5401, 0.7978846
    %v5407 = vmul.f32 %v5402, 0.7978846
    %v5408 = vmul.f32 %v5403, 0.7978846
    %v5409 = vtanh.pop %v5404
    %v5410 = vtanh.pop %v5405
    %v5411 = vtanh.pop %v5406
    %v5412 = vtanh.pop %v5407
    %v5413 = vtanh.pop %v5408
    %v5414 = vadd.f32 %v5409, 1.0
    %v5415 = vadd.f32 %v5410, 1.0
    %v5416 = vadd.f32 %v5411, 1.0
    %v5417 = vadd.f32 %v5412, 1.0
    %v5418 = vadd.f32 %v5413, 1.0
    %v5419 = vmul.f32 %v5379, %v5414
    %v5420 = vmul.f32 %v5380, %v5415
    %v5421 = vmul.f32 %v5381, %v5416
    %v5422 = vmul.f32 %v5382, %v5417
    %v5423 = vmul.f32 %v5383, %v5418
    %s5424 = scalar_lea.vmem %s6, 128
    %v5425 = vld [vmem:[%s5424] sm:$0xff]
    %v5426 = vld [vmem:[%s5424 + $0x8] sm:$0xff]
    %v5427 = vld [vmem:[%s5424 + $0x10] sm:$0xff]
    %v5428 = vld [vmem:[%s5424 + $0x18] sm:$0xff]
    %v5429 = vld [vmem:[%s5424 + $0x20] sm:$0xff]
    %v5430 = vld [vmem:[%s5424 + $0x28] sm:$0xff]
    %v5431 = vld [vmem:[%s5424 + $0x30] sm:$0xff]
    %v5432 = vld [vmem:[%s5424 + $0x38] sm:$0xff]
    %v5433 = vld [vmem:[%s5424 + $0x40] sm:$0xff]
    %v5434 = vld [vmem:[%s5424 + $0x48] sm:$0xff]
    %v5435 = vld [vmem:[%s5424 + $0x50] sm:$0xff]
    %v5436 = vld [vmem:[%s5424 + $0x58] sm:$0xff]
    %v5437 = vld [vmem:[%s5424 + $0x60] sm:$0xff]
    %v5438 = vld [vmem:[%s5424 + $0x68] sm:$0xff]
    %v5439 = vld [vmem:[%s5424 + $0x70] sm:$0xff]
    %v5440 = vld [vmem:[%s5424 + $0x78] sm:$0xff]
    %5441 = vmatprep.subr.mxu0 0.0
    %5442 = vmatpush1.msra.mxu0 %v5425
    %5443 = vmatprep.subr.mxu0 0.0
    %5444 = vmatpush1.msra.mxu0 %v5426
    %5445 = vmatprep.subr.mxu0 0.0
    %5446 = vmatpush1.msra.mxu0 %v5427
    %5447 = vmatprep.subr.mxu0 0.0
    %5448 = vmatpush1.msra.mxu0 %v5428
    %5449 = vmatprep.subr.mxu0 0.0
    %5450 = vmatpush1.msra.mxu0 %v5429
    %5451 = vmatprep.subr.mxu0 0.0
    %5452 = vmatpush1.msra.mxu0 %v5430
    %5453 = vmatprep.subr.mxu0 0.0
    %5454 = vmatpush1.msra.mxu0 %v5431
    %5455 = vmatprep.subr.mxu0 0.0
    %5456 = vmatpush1.msra.mxu0 %v5432
    %5457 = vmatprep.subr.mxu0 0.0
    %5458 = vmatpush1.msra.mxu0 %v5433
    %5459 = vmatprep.subr.mxu0 0.0
    %5460 = vmatpush1.msra.mxu0 %v5434
    %5461 = vmatprep.subr.mxu0 0.0
    %5462 = vmatpush1.msra.mxu0 %v5435
    %5463 = vmatprep.subr.mxu0 0.0
    %5464 = vmatpush1.msra.mxu0 %v5436
    %5465 = vmatprep.subr.mxu0 0.0
    %5466 = vmatpush1.msra.mxu0 %v5437
    %5467 = vmatprep.subr.mxu0 0.0
    %5468 = vmatpush1.msra.mxu0 %v5438
    %5469 = vmatprep.subr.mxu0 0.0
    %5470 = vmatpush1.msra.mxu0 %v5439
    %5471 = vmatprep.subr.mxu0 0.0
    %5472 = vmatpush1.msra.mxu0 %v5440
    %5473 = vmatprep.subr.mxu0 0.0
    %5474 = vmatpush1.msra.mxu0 0.0
    %5475 = vmatprep.subr.mxu0 0.0
    %5476 = vmatpush1.msra.mxu0 0.0
    %5477 = vmatprep.subr.mxu0 0.0
    %5478 = vmatpush1.msra.mxu0 0.0
    %5479 = vmatprep.subr.mxu0 0.0
    %5480 = vmatpush1.msra.mxu0 0.0
    %5481 = vmatprep.subr.mxu0 0.0
    %5482 = vmatpush1.msra.mxu0 0.0
    %5483 = vmatprep.subr.mxu0 0.0
    %5484 = vmatpush1.msra.mxu0 0.0
    %5485 = vmatprep.subr.mxu0 0.0
    %5486 = vmatpush1.msra.mxu0 0.0
    %5487 = vmatprep.subr.mxu0 0.0
    %5488 = vmatpush1.msra.mxu0 0.0
    %5489 = vmatprep.subr.mxu0 0.0
    %5490 = vmatpush1.msra.mxu0 0.0
    %5491 = vmatprep.subr.mxu0 0.0
    %5492 = vmatpush1.msra.mxu0 0.0
    %5493 = vmatprep.subr.mxu0 0.0
    %5494 = vmatpush1.msra.mxu0 0.0
    %5495 = vmatprep.subr.mxu0 0.0
    %5496 = vmatpush1.msra.mxu0 0.0
    %5497 = vmatprep.subr.mxu0 0.0
    %5498 = vmatpush1.msra.mxu0 0.0
    %5499 = vmatprep.subr.mxu0 0.0
    %5500 = vmatpush1.msra.mxu0 0.0
    %5501 = vmatprep.subr.mxu0 0.0
    %5502 = vmatpush1.msra.mxu0 0.0
    %5503 = vmatprep.subr.mxu0 0.0
    %5504 = vmatpush1.msra.mxu0 0.0
    %5505 = vmatprep.mubr.f32.mxu0 0.0
    %5506 = vmatmul.mubr.f32.gmra.mrb[0].mxu0 %v5419
    %v5507 = vpop.f32.mrb[0].mxu0
    %v5508 = vadd.f32 0.0, %v5507
    %v5509 = vpop.f32.mrb[0].mxu0
    %5510 = vmatprep.mubr.f32.mxu0 0.0
    %5511 = vmatmul.mubr.f32.gmra.mrb[0].mxu0 %v5420
    %v5512 = vpop.f32.mrb[0].mxu0
    %v5513 = vpop.f32.mrb[0].mxu0
    %5514 = vmatprep.mubr.f32.mxu0 0.0
    %5515 = vmatmul.mubr.f32.gmra.mrb[0].mxu0 %v5421
    %v5516 = vpop.f32.mrb[0].mxu0
    %v5517 = vadd.f32 0.0, %v5516
    %v5518 = vpop.f32.mrb[0].mxu0
    %5519 = vmatprep.mubr.f32.mxu0 0.0
    %5520 = vmatmul.mubr.f32.gmra.mrb[0].mxu0 %v5422
    %v5521 = vpop.f32.mrb[0].mxu0
    %v5522 = vpop.f32.mrb[0].mxu0
    %5523 = vmatprep.mubr.f32.mxu0 0.0
    %5524 = vmatmul.mubr.f32.gmra.mrb[0].mxu0 %v5423
    %v5525 = vpop.f32.mrb[0].mxu0
    %v5526 = vpop.f32.mrb[0].mxu0
    %5527 = vdwg.mxu0
    %v5528 = vadd.f32 %v5177, %v5508
    %v5529 = vadd.f32 %v5179, %v5517
    %v5530 = vlaneseq
    %v5531 = vshrl.u32 %v5530, 7
    %v5532 = vsub.s32 7, %v5531
    %v5533 = vrot.slane %v2852, %v5532
    %v5534 = vadd.f32 %v5528, %v5533
    %v5535 = vadd.f32 %v5529, %v5533
    %s5536 = scalar_lea.vmem %s7, 16
    %v5537 = vld [vmem:[%s5536] sm:$0xff]
    %v5538 = vsel %vm509, %v5534, %v5535
    %v5539 = vsel %vm166, %v5538, 0.0
    %5540 = vadd.xlane.f32.xlu0 %v5539
    %v5541 = vpop.xlane.xlu0 %5540
    %v5542 = vmul.f32 %v5541, %v170
    %v5543 = vsub.f32 %v5538, %v5542
    %v5544 = vmul.f32 %v5543, %v5543
    %v5545 = vsel %vm166, %v5544, 0.0
    %5546 = vadd.xlane.f32.xlu0 %v5545
    %v5547 = vpop.xlane.xlu0 %5546
    %v5548 = vmul.f32 %v5547, %v170
    %v5549 = vadd.f32 %v5548, 1e-05
    %v5550 = vrsqrt.pop %v5549
    %v5551 = vmul.f32 %v5543, %v5550
    %v5552 = vlaneseq
    %v5553 = vshrl.u32 %v5552, 7
    %v5554 = vsub.s32 0, %v5553
    %v5555 = vrot.slane %v5537, %v5554
    %v5556 = vmul.f32 %v5551, %v5555
    %v5557 = vlaneseq
    %v5558 = vshrl.u32 %v5557, 7
    %v5559 = vsub.s32 1, %v5558
    %v5560 = vrot.slane %v5537, %v5559
    %v5561 = vadd.f32 %v5556, %v5560
    %5562 = vst.msk [vmem:[#allocation2] sm:$0x3] %vm166, %v5561
    // Predicated region
    $region34: #{_vit_forward_impl.1} parent=1 // pred_check
      _
    $region35: #{_vit_forward_impl.1} parent=1 // pred_check_branch
      %5564 = sbr.rel (0) target = $region37
    $region36: #{_vit_forward_impl.1} parent=1 // pred_region
      %s5566 = ssub.s32 32, 32
      %5567 = vsyncadd [#allocation3], %s5566
      %s5569 = sshll.u32 [#allocation2], 4
      %s5570 = int_to_ptr.vmem [resolvable:$true] %s5569
      %5572 = dma.vmem_to_hbm [thread:$0]  %s5570, 32, %s8, [#allocation3]
    $region37: #{_vit_forward_impl.1} parent=1 // pred_fallthru
      _
    // Predicated region
    $region38: #{_vit_forward_impl.1} parent=1 // pred_check
      _
    $region39: #{_vit_forward_impl.1} parent=1 // pred_check_branch
      %5574 = sbr.rel (0) target = $region41
    $region40: #{_vit_forward_impl.1} parent=1 // pred_region
      %5575 = dma.done [#allocation3], 32
    $region41: #{_vit_forward_impl.1} parent=1 // pred_fallthru
      _
    %5576 = vsyncpa [#allocation3], 1

</llo_original>
